<compile_context>
chip_gen: v7x
topology: tpu7x:2x2x1
jax: 0.10.0
libtpu: 0.0.40
codegen_flags: <defaults>
</compile_context>

<pallas_src>
import functools

import jax
import jax.numpy as jnp
from jax import lax
from jax.experimental import pallas as pl
from jax.experimental.pallas import tpu as pltpu

LANE = 128


def _round_up(x, m):
    return ((x + m - 1) // m) * m


# ----------------------------------------------------------------------------
# In-kernel helpers (pure value math, all static shapes).
# ----------------------------------------------------------------------------
def _im2col_3x3(xpad, Ho, Wo, stride):
    """(Hp, Wp, C) spatially padded image -> (Ho*Wo, 9*C), K ordered (kh, kw, c)."""
    taps = []
    for kh in range(3):
        for kw in range(3):
            t = xpad[kh:kh + stride * (Ho - 1) + 1:stride,
                     kw:kw + stride * (Wo - 1) + 1:stride, :]
            taps.append(t.reshape(Ho * Wo, -1))
    return jnp.concatenate(taps, axis=-1)


def _conv3x3(xpad, w_ref, Ho, Wo, stride, tap_loop):
    """3x3 conv of a padded bf16 (Hp, Wp, Cin) image with a (9*Cin, Cout) bf16
    weight matrix -> (Ho*Wo, Cout) f32 accumulator.

    tap_loop=False (v6e/v7x): one fused K=9*Cin MXU contraction from an
      in-VMEM bf16 im2col (fills the 256-deep MXU).
    tap_loop=True (v5e): nine accumulating K=Cin matmuls, skipping the
      (P, 9*Cin) im2col materialization (v5e MXU depth is 128, so fusing K
      buys nothing but VMEM/store traffic).
    """
    Cin = xpad.shape[-1]
    if tap_loop:
        acc = jnp.zeros((Ho * Wo, w_ref.shape[-1]), jnp.float32)
        for kh in range(3):
            for kw in range(3):
                t = xpad[kh:kh + stride * (Ho - 1) + 1:stride,
                         kw:kw + stride * (Wo - 1) + 1:stride, :]
                t = t.reshape(Ho * Wo, Cin)
                w_t = w_ref[(kh * 3 + kw) * Cin:(kh * 3 + kw + 1) * Cin, :]
                acc = acc + jnp.dot(t, w_t, preferred_element_type=jnp.float32)
        return acc
    im = _im2col_3x3(xpad, Ho, Wo, stride)                 # bf16 (P, 9*Cin)
    return jnp.dot(im, w_ref[...], preferred_element_type=jnp.float32)


def _partial_stats(z):
    """Per-image one-pass BN partials: (2, C) = [sum, sum of squares], f32."""
    return jnp.concatenate([jnp.sum(z, axis=0, keepdims=True),
                            jnp.sum(z * z, axis=0, keepdims=True)], axis=0)


# ----------------------------------------------------------------------------
# Host-side (plain JAX) BN fold: reduce per-image partials once, produce the
# fused per-channel scale/shift vectors fed to the next pass.
# ----------------------------------------------------------------------------
def _bn_fold(stats, gamma, beta, count, eps):
    st = jnp.sum(stats, axis=0)                            # (2, Cp) f32
    mean = st[0] / count
    var = jnp.maximum(st[1] / count - mean * mean, 0.0)    # biased variance
    scale = gamma * lax.rsqrt(var + eps)
    shift = beta - mean * scale
    return scale.reshape(1, -1), shift.reshape(1, -1)


# ----------------------------------------------------------------------------
# Pass 1: conv1 (+ fused 1x1 projection shortcut) + per-image BN partial stats.
# ----------------------------------------------------------------------------
def _conv1_kernel(*refs, Ho, Wo, stride, has_proj, tap_loop):
    if has_proj:
        xp_ref, w1_ref, scw_ref, y1_ref, s1_ref, zs_ref, ss_ref = refs
    else:
        xp_ref, w1_ref, y1_ref, s1_ref = refs

    x = xp_ref[0]                                          # (H+2, W+2, Cpi) bf16
    acc = _conv3x3(x, w1_ref, Ho, Wo, stride, tap_loop)    # (P, Cp) f32
    y1_ref[0] = acc.astype(y1_ref.dtype)                   # bf16 to HBM
    s1_ref[0] = _partial_stats(acc)                        # f32 stats

    if has_proj:
        # 1x1 projection shortcut: strided interior of the xp tile already in VMEM.
        xs = x[1:1 + stride * (Ho - 1) + 1:stride,
               1:1 + stride * (Wo - 1) + 1:stride, :].reshape(Ho * Wo, -1)
        zs = jnp.dot(xs, scw_ref[...], preferred_element_type=jnp.float32)
        zs_ref[0] = zs.astype(zs_ref.dtype)
        ss_ref[0] = _partial_stats(zs)


# ----------------------------------------------------------------------------
# Pass 2: BN1 (pre-folded scale/shift) + ReLU, conv2 + BN2 partial stats.
# ----------------------------------------------------------------------------
def _mid_kernel(y1_ref, w2_ref, sc1_ref, sh1_ref, z2_ref, s2_ref, hp_ref,
                *, Ho, Wo, tap_loop):
    Cp = y1_ref.shape[-1]
    # BN1 + ReLU in f32, then drop to bf16 for all data movement / MXU.
    h = jnp.maximum(y1_ref[0].astype(jnp.float32) * sc1_ref[...] + sh1_ref[...], 0.0)
    h = h.astype(jnp.bfloat16).reshape(Ho, Wo, Cp)

    # conv2's zero halo: persistent VMEM scratch, thin border memsets + one
    # interior store (no sublane-shifting concatenation).
    zero_row = jnp.zeros((1, Wo + 2, Cp), jnp.bfloat16)
    zero_col = jnp.zeros((Ho + 2, 1, Cp), jnp.bfloat16)
    hp_ref[0:1, :, :] = zero_row
    hp_ref[Ho + 1:Ho + 2, :, :] = zero_row
    hp_ref[:, 0:1, :] = zero_col
    hp_ref[:, Wo + 1:Wo + 2, :] = zero_col
    hp_ref[1:Ho + 1, 1:Wo + 1, :] = h

    z2 = _conv3x3(hp_ref[...], w2_ref, Ho, Wo, 1, tap_loop)
    z2_ref[0] = z2.astype(z2_ref.dtype)
    s2_ref[0] = _partial_stats(z2)


# ----------------------------------------------------------------------------
# Pass 3: BN2 (+ shortcut BN or identity), residual add, final ReLU.
# ----------------------------------------------------------------------------
def _final_kernel(*refs, has_proj):
    if has_proj:
        z2_ref, sc2_ref, sh2_ref, zs_ref, scs_ref, shs_ref, out_ref = refs
    else:
        z2_ref, sc2_ref, sh2_ref, xid_ref, out_ref = refs

    out = z2_ref[0].astype(jnp.float32) * sc2_ref[...] + sh2_ref[...]
    if has_proj:
        out = out + (zs_ref[0].astype(jnp.float32) * scs_ref[...] + shs_ref[...])
    else:
        out = out + xid_ref[0].astype(jnp.float32)          # identity shortcut
    out_ref[0] = jnp.maximum(out, 0.0)


# ----------------------------------------------------------------------------
# Wrapper.
# ----------------------------------------------------------------------------
def basic_block_forward(x_nchw, params, stride=1, eps=1e-5, tap_loop=False):
    f32, bf16 = jnp.float32, jnp.bfloat16
    N, Cin, H, W = x_nchw.shape
    w1 = params["conv1_w"]                                  # (Cout, Cin, 3, 3)
    Cout = int(w1.shape[0])
    Ho = (H - 1) // stride + 1
    Wo = (W - 1) // stride + 1
    P = Ho * Wo
    M = N * P
    Cpi = _round_up(Cin, LANE)
    Cp = _round_up(Cout, LANE)
    has_proj = (stride != 1) or (Cin != Cout)

    # NCHW -> NHWC, lane-pad channels, spatial halo-pad once; bf16 MXU operands.
    x = jnp.transpose(x_nchw, (0, 2, 3, 1)).astype(f32)
    x = jnp.pad(x, ((0, 0), (0, 0), (0, 0), (0, Cpi - Cin)))
    xp = jnp.pad(x, ((0, 0), (1, 1), (1, 1), (0, 0))).astype(bf16)

    def conv3_w(w, cin_p):                                  # OIHW -> (9*cin_p, Cp) bf16
        o, i = w.shape[0], w.shape[1]
        wt = jnp.transpose(w, (2, 3, 1, 0))                 # (kh, kw, I, O)
        wt = jnp.pad(wt, ((0, 0), (0, 0), (0, cin_p - i), (0, Cp - o)))
        return wt.reshape(9 * cin_p, Cp).astype(bf16)

    def bn_pad(g, b):
        # Padded lanes get gamma=0 (not 1) so their folded BN scale is exactly
        # zero and no rsqrt(eps) amplifier ever touches padded lanes.
        return (jnp.pad(g.astype(f32), (0, Cp - Cout)),
                jnp.pad(b.astype(f32), (0, Cp - Cout)))

    w1m = conv3_w(w1, Cpi)                                  # (9*Cpi, Cp)
    w2m = conv3_w(params["conv2_w"], Cp)                    # (9*Cp,  Cp)
    g1, b1 = bn_pad(params["bn1_gamma"], params["bn1_beta"])
    g2, b2 = bn_pad(params["bn2_gamma"], params["bn2_beta"])

    blk_img = lambda C: pl.BlockSpec((1, P, C), lambda n: (n, 0, 0))
    blk_stat = pl.BlockSpec((1, 2, Cp), lambda n: (n, 0, 0))
    vec_spec = pl.BlockSpec((1, Cp), lambda n: (0, 0))
    mat_spec = lambda a, b_: pl.BlockSpec((a, b_), lambda n: (0, 0))

    def compiler_params(*block_bytes):
        # Rough per-step working set (double-buffered blocks + in-kernel
        # temporaries already included by the caller), clamped so the request
        # stays within v7x's 64 MiB physical VMEM.
        need = 4 * sum(int(b) for b in block_bytes)
        vmem = int(min(64 * 1024 * 1024, max(32 * 1024 * 1024, need)))
        return pltpu.CompilerParams(dimension_semantics=("parallel",),
                                    vmem_limit_bytes=vmem)

    # ---- pass 1: conv1 (+ projection shortcut) -------------------------------
    in_specs = [pl.BlockSpec((1, H + 2, W + 2, Cpi), lambda n: (n, 0, 0, 0)),
                mat_spec(9 * Cpi, Cp)]
    inputs = [xp, w1m]
    out_shape = [jax.ShapeDtypeStruct((N, P, Cp), bf16),
                 jax.ShapeDtypeStruct((N, 2, Cp), f32)]
    out_specs = [blk_img(Cp), blk_stat]
    blk_bytes1 = [(H + 2) * (W + 2) * Cpi * 2, 9 * Cpi * Cp * 2,
                  P * Cp * 2, 2 * Cp * 4, P * 9 * Cpi * 2, P * Cp * 4]
    flops1 = 2 * M * (9 * Cpi) * Cp + 4 * M * Cp
    bytes1 = xp.size * 2 + w1m.size * 2 + M * Cp * 2 + N * 2 * Cp * 4
    if has_proj:
        scw = jnp.transpose(params["sc_conv_w"][:, :, 0, 0], (1, 0))   # (Cin, Cout)
        scw = jnp.pad(scw, ((0, Cpi - Cin), (0, Cp - Cout))).astype(bf16)
        scg, scb = bn_pad(params["sc_bn_gamma"], params["sc_bn_beta"])
        in_specs.append(mat_spec(Cpi, Cp))
        inputs.append(scw)
        out_shape += [jax.ShapeDtypeStruct((N, P, Cp), bf16),
                      jax.ShapeDtypeStruct((N, 2, Cp), f32)]
        out_specs += [blk_img(Cp), blk_stat]
        blk_bytes1 += [Cpi * Cp * 2, P * Cp * 2, 2 * Cp * 4, P * Cp * 4]
        flops1 += 2 * M * Cpi * Cp + 4 * M * Cp
        bytes1 += Cpi * Cp * 2 + M * Cp * 2 + N * 2 * Cp * 4

    res1 = pl.pallas_call(
        functools.partial(_conv1_kernel, Ho=Ho, Wo=Wo, stride=stride,
                          has_proj=has_proj, tap_loop=tap_loop),
        grid=(N,),
        out_shape=tuple(out_shape),
        in_specs=in_specs,
        out_specs=tuple(out_specs),
        compiler_params=compiler_params(*blk_bytes1),
        cost_estimate=pl.CostEstimate(flops=int(flops1), transcendentals=0,
                                      bytes_accessed=int(bytes1)),
    )(*inputs)
    if has_proj:
        y1, s1, zs, ss = res1
    else:
        y1, s1 = res1

    # Fold BN1 once (plain JAX); only a (1, Cp) scale/shift enters pass 2.
    sc1, sh1 = _bn_fold(s1, g1, b1, float(M), eps)

    # ---- pass 2: BN1+ReLU, conv2 ---------------------------------------------
    blk_bytes2 = [P * Cp * 2, 9 * Cp * Cp * 2, 2 * Cp * 4, P * Cp * 2,
                  (Ho + 2) * (Wo + 2) * Cp * 2, P * 9 * Cp * 2, P * Cp * 4]
    z2, s2 = pl.pallas_call(
        functools.partial(_mid_kernel, Ho=Ho, Wo=Wo, tap_loop=tap_loop),
        grid=(N,),
        out_shape=(jax.ShapeDtypeStruct((N, P, Cp), bf16),
                   jax.ShapeDtypeStruct((N, 2, Cp), f32)),
        in_specs=[blk_img(Cp), mat_spec(9 * Cp, Cp), vec_spec, vec_spec],
        out_specs=(blk_img(Cp), blk_stat),
        scratch_shapes=[pltpu.VMEM((Ho + 2, Wo + 2, Cp), bf16)],
        compiler_params=compiler_params(*blk_bytes2),
        cost_estimate=pl.CostEstimate(
            flops=int(2 * M * (9 * Cp) * Cp + 8 * M * Cp), transcendentals=0,
            bytes_accessed=int(2 * M * Cp * 2 + 9 * Cp * Cp * 2 + N * 2 * Cp * 4)),
    )(y1, w2m, sc1, sh1)

    # Fold BN2 (and shortcut BN) once.
    sc2, sh2 = _bn_fold(s2, g2, b2, float(M), eps)

    # ---- pass 3: BN2 (+ shortcut), residual add, ReLU --------------------------
    in_specs = [blk_img(Cp), vec_spec, vec_spec]
    inputs = [z2, sc2, sh2]
    if has_proj:
        scs, shs = _bn_fold(ss, scg, scb, float(M), eps)
        in_specs += [blk_img(Cp), vec_spec, vec_spec]
        inputs += [zs, scs, shs]
    else:
        xid = x.reshape(N, P, Cpi).astype(bf16)             # identity (Cpi == Cp)
        in_specs += [blk_img(Cp)]
        inputs += [xid]

    out = pl.pallas_call(
        functools.partial(_final_kernel, has_proj=has_proj),
        grid=(N,),
        out_shape=jax.ShapeDtypeStruct((N, P, Cp), f32),
        in_specs=in_specs,
        out_specs=blk_img(Cp),
        compiler_params=compiler_params(P * Cp * 2, P * Cp * 2, P * Cp * 4),
        cost_estimate=pl.CostEstimate(flops=int(8 * M * Cp), transcendentals=0,
                                      bytes_accessed=int(2 * M * Cp * 2 + M * Cp * 4)),
    )(*inputs)

    out = out[:, :, :Cout].reshape(N, Ho, Wo, Cout)
    return jnp.transpose(out, (0, 3, 1, 2))                 # NHWC -> NCHW


# ----------------------------------------------------------------------------
# Pure-JAX reference (NCHW, f32 HIGHEST) for verification.
# ----------------------------------------------------------------------------
def _ref_forward(x, params, stride=1, eps=1e-5):
    def conv(x, w, s, pad):
        return lax.conv_general_dilated(
            x, w, (s, s), [(pad, pad), (pad, pad)],
            dimension_numbers=("NCHW", "OIHW", "NCHW"),
            precision=lax.Precision.HIGHEST)

    def bn(x, g, b):
        mean = jnp.mean(x, axis=(0, 2, 3), keepdims=True)
        var = jnp.mean((x - mean) ** 2, axis=(0, 2, 3), keepdims=True)
        return ((x - mean) * lax.rsqrt(var + eps)
                * g.reshape(1, -1, 1, 1) + b.reshape(1, -1, 1, 1))

    Cin = x.shape[1]
    Cout = params["conv1_w"].shape[0]
    out = jax.nn.relu(bn(conv(x, params["conv1_w"], stride, 1),
                         params["bn1_gamma"], params["bn1_beta"]))
    out = bn(conv(out, params["conv2_w"], 1, 1),
             params["bn2_gamma"], params["bn2_beta"])
    if stride != 1 or Cin != Cout:
        sc = bn(conv(x, params["sc_conv_w"], stride, 0),
                params["sc_bn_gamma"], params["sc_bn_beta"])
    else:
        sc = x
    return jax.nn.relu(out + sc)


def make_params(key, in_channels, out_channels):
    ks = jax.random.split(key, 8)
    return {
        "conv1_w": 0.2 * jax.random.normal(ks[0], (out_channels, in_channels, 3, 3), jnp.float32),
        "bn1_gamma": 1.0 + 0.1 * jax.random.normal(ks[1], (out_channels,), jnp.float32),
        "bn1_beta": 0.1 * jax.random.normal(ks[2], (out_channels,), jnp.float32),
        "conv2_w": 0.2 * jax.random.normal(ks[3], (out_channels, out_channels, 3, 3), jnp.float32),
        "bn2_gamma": 1.0 + 0.1 * jax.random.normal(ks[4], (out_channels,), jnp.float32),
        "bn2_beta": 0.1 * jax.random.normal(ks[5], (out_channels,), jnp.float32),
        # projection-shortcut params (used when stride != 1 or Cin != Cout)
        "sc_conv_w": 0.2 * jax.random.normal(ks[6], (out_channels, in_channels, 1, 1), jnp.float32),
        "sc_bn_gamma": jnp.ones((out_channels,), jnp.float32),
        "sc_bn_beta": 0.1 * jax.random.normal(ks[7], (out_channels,), jnp.float32),
    }


if __name__ == "__main__":
    key = jax.random.PRNGKey(0)
    k_x, k_p = jax.random.split(key)

    N, Cin, H, W = 2, 4, 16, 16
    Cout, stride = 8, 1          # Cin != Cout -> exercises the projection shortcut

    x = jax.random.normal(k_x, (N, Cin, H, W), jnp.float32)
    params = make_params(k_p, Cin, Cout)

    fwd = jax.jit(functools.partial(basic_block_forward, stride=stride))
    out = jax.block_until_ready(fwd(x, params))

    ref = _ref_forward(x, params, stride=stride)
    # bf16 MXU operands + bf16 inter-pass activations (f32 accumulation/BN math)
    # vs. an f32 HIGHEST reference: tolerance covers the rounding; structural
    # bugs would produce O(1) errors.
    if not jnp.allclose(out, ref, atol=6e-2, rtol=6e-2):
        err = float(jnp.max(jnp.abs(out - ref)))
        raise AssertionError(
            f"Pallas BasicBlock output mismatch vs reference (max abs err {err:.4f})")

    print("KERNEL_OK")
</pallas_src>

<mosaic_0001>
module attributes {stable_mosaic.version = 11 : i64} {
  func.func @_conv1_kernel(%arg0: i32, %arg1: memref<1x18x18x128xbf16, #tpu.memory_space<vmem>>, %arg2: memref<1152x128xbf16, #tpu.memory_space<vmem>>, %arg3: memref<128x128xbf16, #tpu.memory_space<vmem>>, %arg4: memref<1x256x128xbf16, #tpu.memory_space<vmem>>, %arg5: memref<1x2x128xf32, #tpu.memory_space<vmem>>, %arg6: memref<1x256x128xbf16, #tpu.memory_space<vmem>>, %arg7: memref<1x2x128xf32, #tpu.memory_space<vmem>>) attributes {dimension_semantics = [#tpu.dimension_semantics<parallel>], iteration_bounds = array<i64: 2>, scalar_prefetch = 0 : i64, scratch_operands = 0 : i64, tpu.core_type = #tpu.core_type<tc>, window_params = [{transform_indices = @transform_0, window_bounds = array<i64: 1, 18, 18, 128>}, {pipeline_mode = #tpu.pipeline_mode<synchronous>, transform_indices = @transform_1, window_bounds = array<i64: 1152, 128>}, {pipeline_mode = #tpu.pipeline_mode<synchronous>, transform_indices = @transform_2, window_bounds = array<i64: 128, 128>}, {transform_indices = @transform_3, window_bounds = array<i64: 1, 256, 128>}, {transform_indices = @transform_4, window_bounds = array<i64: 1, 2, 128>}, {transform_indices = @transform_5, window_bounds = array<i64: 1, 256, 128>}, {transform_indices = @transform_6, window_bounds = array<i64: 1, 2, 128>}]} {
    %c0 = arith.constant 0 : index
    %c0_0 = arith.constant 0 : index
    %c0_1 = arith.constant 0 : index
    %c0_2 = arith.constant 0 : index
    %0 = vector.load %arg1[%c0, %c0_0, %c0_1, %c0_2] : memref<1x18x18x128xbf16, #tpu.memory_space<vmem>>, vector<1x18x18x128xbf16>
    %1 = vector.shape_cast %0 : vector<1x18x18x128xbf16> to vector<18x18x128xbf16>
    %2 = vector.extract_strided_slice %1 {offsets = [0, 0, 0], sizes = [16, 16, 128], strides = [1, 1, 1]} : vector<18x18x128xbf16> to vector<16x16x128xbf16>
    %3 = vector.shape_cast %2 : vector<16x16x128xbf16> to vector<256x128xbf16>
    %4 = vector.extract_strided_slice %1 {offsets = [0, 1, 0], sizes = [16, 16, 128], strides = [1, 1, 1]} : vector<18x18x128xbf16> to vector<16x16x128xbf16>
    %5 = vector.shape_cast %4 : vector<16x16x128xbf16> to vector<256x128xbf16>
    %6 = vector.extract_strided_slice %1 {offsets = [0, 2, 0], sizes = [16, 16, 128], strides = [1, 1, 1]} : vector<18x18x128xbf16> to vector<16x16x128xbf16>
    %7 = vector.shape_cast %6 : vector<16x16x128xbf16> to vector<256x128xbf16>
    %8 = vector.extract_strided_slice %1 {offsets = [1, 0, 0], sizes = [16, 16, 128], strides = [1, 1, 1]} : vector<18x18x128xbf16> to vector<16x16x128xbf16>
    %9 = vector.shape_cast %8 : vector<16x16x128xbf16> to vector<256x128xbf16>
    %10 = vector.extract_strided_slice %1 {offsets = [1, 1, 0], sizes = [16, 16, 128], strides = [1, 1, 1]} : vector<18x18x128xbf16> to vector<16x16x128xbf16>
    %11 = vector.shape_cast %10 : vector<16x16x128xbf16> to vector<256x128xbf16>
    %12 = vector.extract_strided_slice %1 {offsets = [1, 2, 0], sizes = [16, 16, 128], strides = [1, 1, 1]} : vector<18x18x128xbf16> to vector<16x16x128xbf16>
    %13 = vector.shape_cast %12 : vector<16x16x128xbf16> to vector<256x128xbf16>
    %14 = vector.extract_strided_slice %1 {offsets = [2, 0, 0], sizes = [16, 16, 128], strides = [1, 1, 1]} : vector<18x18x128xbf16> to vector<16x16x128xbf16>
    %15 = vector.shape_cast %14 : vector<16x16x128xbf16> to vector<256x128xbf16>
    %16 = vector.extract_strided_slice %1 {offsets = [2, 1, 0], sizes = [16, 16, 128], strides = [1, 1, 1]} : vector<18x18x128xbf16> to vector<16x16x128xbf16>
    %17 = vector.shape_cast %16 : vector<16x16x128xbf16> to vector<256x128xbf16>
    %18 = vector.extract_strided_slice %1 {offsets = [2, 2, 0], sizes = [16, 16, 128], strides = [1, 1, 1]} : vector<18x18x128xbf16> to vector<16x16x128xbf16>
    %19 = vector.shape_cast %18 : vector<16x16x128xbf16> to vector<256x128xbf16>
    %20 = tpu.concatenate %3, %5, %7, %9, %11, %13, %15, %17, %19 in 1 : vector<256x128xbf16>, vector<256x128xbf16>, vector<256x128xbf16>, vector<256x128xbf16>, vector<256x128xbf16>, vector<256x128xbf16>, vector<256x128xbf16>, vector<256x128xbf16>, vector<256x128xbf16> -> vector<256x1152xbf16>
    %c0_3 = arith.constant 0 : index
    %c0_4 = arith.constant 0 : index
    %21 = vector.load %arg2[%c0_3, %c0_4] : memref<1152x128xbf16, #tpu.memory_space<vmem>>, vector<1152x128xbf16>
    %cst = arith.constant dense<0.000000e+00> : vector<256x128xf32>
    %22 = tpu.matmul %20, %21, %cst {dimension_numbers = #tpu.dot_dimension_numbers<[1], [0], [0], [1], [0, 0, 1, 1], [], []>} : vector<256x1152xbf16>, vector<1152x128xbf16>, vector<256x128xf32> -> vector<256x128xf32>
    %23 = arith.truncf %22 : vector<256x128xf32> to vector<256x128xbf16>
    %c0_5 = arith.constant 0 : index
    %c0_6 = arith.constant 0 : index
    %c0_7 = arith.constant 0 : index
    %24 = vector.load %arg4[%c0_5, %c0_6, %c0_7] : memref<1x256x128xbf16, #tpu.memory_space<vmem>>, vector<1x256x128xbf16>
    %25 = vector.shape_cast %24 : vector<1x256x128xbf16> to vector<256x128xbf16>
    %26 = vector.shape_cast %23 : vector<256x128xbf16> to vector<1x256x128xbf16>
    tpu.vector_store %arg4[%c0_5, %c0_6, %c0_7], %26 {strides = array<i32>} : memref<1x256x128xbf16, #tpu.memory_space<vmem>>, vector<1x256x128xbf16>,
    %cst_8 = arith.constant dense<0.000000e+00> : vector<128xf32>
    %27 = vector.multi_reduction <add>, %22, %cst_8 [0] : vector<256x128xf32> to vector<128xf32>
    %28 = vector.shape_cast %27 : vector<128xf32> to vector<1x128xf32>
    %29 = arith.mulf %22, %22 : vector<256x128xf32>
    %cst_9 = arith.constant dense<0.000000e+00> : vector<128xf32>
    %30 = vector.multi_reduction <add>, %29, %cst_9 [0] : vector<256x128xf32> to vector<128xf32>
    %31 = vector.shape_cast %30 : vector<128xf32> to vector<1x128xf32>
    %32 = tpu.concatenate %28, %31 in 0 : vector<1x128xf32>, vector<1x128xf32> -> vector<2x128xf32>
    %c0_10 = arith.constant 0 : index
    %c0_11 = arith.constant 0 : index
    %c0_12 = arith.constant 0 : index
    %33 = vector.load %arg5[%c0_10, %c0_11, %c0_12] : memref<1x2x128xf32, #tpu.memory_space<vmem>>, vector<1x2x128xf32>
    %34 = vector.shape_cast %33 : vector<1x2x128xf32> to vector<2x128xf32>
    %35 = vector.shape_cast %32 : vector<2x128xf32> to vector<1x2x128xf32>
    tpu.vector_store %arg5[%c0_10, %c0_11, %c0_12], %35 {strides = array<i32>} : memref<1x2x128xf32, #tpu.memory_space<vmem>>, vector<1x2x128xf32>,
    %36 = vector.extract_strided_slice %1 {offsets = [1, 1, 0], sizes = [16, 16, 128], strides = [1, 1, 1]} : vector<18x18x128xbf16> to vector<16x16x128xbf16>
    %37 = vector.shape_cast %36 : vector<16x16x128xbf16> to vector<256x128xbf16>
    %c0_13 = arith.constant 0 : index
    %c0_14 = arith.constant 0 : index
    %38 = vector.load %arg3[%c0_13, %c0_14] : memref<128x128xbf16, #tpu.memory_space<vmem>>, vector<128x128xbf16>
    %cst_15 = arith.constant dense<0.000000e+00> : vector<256x128xf32>
    %39 = tpu.matmul %37, %38, %cst_15 {dimension_numbers = #tpu.dot_dimension_numbers<[1], [0], [0], [1], [0, 0, 1, 1], [], []>} : vector<256x128xbf16>, vector<128x128xbf16>, vector<256x128xf32> -> vector<256x128xf32>
    %40 = arith.truncf %39 : vector<256x128xf32> to vector<256x128xbf16>
    %c0_16 = arith.constant 0 : index
    %c0_17 = arith.constant 0 : index
    %c0_18 = arith.constant 0 : index
    %41 = vector.load %arg6[%c0_16, %c0_17, %c0_18] : memref<1x256x128xbf16, #tpu.memory_space<vmem>>, vector<1x256x128xbf16>
    %42 = vector.shape_cast %41 : vector<1x256x128xbf16> to vector<256x128xbf16>
    %43 = vector.shape_cast %40 : vector<256x128xbf16> to vector<1x256x128xbf16>
    tpu.vector_store %arg6[%c0_16, %c0_17, %c0_18], %43 {strides = array<i32>} : memref<1x256x128xbf16, #tpu.memory_space<vmem>>, vector<1x256x128xbf16>,
    %cst_19 = arith.constant dense<0.000000e+00> : vector<128xf32>
    %44 = vector.multi_reduction <add>, %39, %cst_19 [0] : vector<256x128xf32> to vector<128xf32>
    %45 = vector.shape_cast %44 : vector<128xf32> to vector<1x128xf32>
    %46 = arith.mulf %39, %39 : vector<256x128xf32>
    %cst_20 = arith.constant dense<0.000000e+00> : vector<128xf32>
    %47 = vector.multi_reduction <add>, %46, %cst_20 [0] : vector<256x128xf32> to vector<128xf32>
    %48 = vector.shape_cast %47 : vector<128xf32> to vector<1x128xf32>
    %49 = tpu.concatenate %45, %48 in 0 : vector<1x128xf32>, vector<1x128xf32> -> vector<2x128xf32>
    %c0_21 = arith.constant 0 : index
    %c0_22 = arith.constant 0 : index
    %c0_23 = arith.constant 0 : index
    %50 = vector.load %arg7[%c0_21, %c0_22, %c0_23] : memref<1x2x128xf32, #tpu.memory_space<vmem>>, vector<1x2x128xf32>
    %51 = vector.shape_cast %50 : vector<1x2x128xf32> to vector<2x128xf32>
    %52 = vector.shape_cast %49 : vector<2x128xf32> to vector<1x2x128xf32>
    tpu.vector_store %arg7[%c0_21, %c0_22, %c0_23], %52 {strides = array<i32>} : memref<1x2x128xf32, #tpu.memory_space<vmem>>, vector<1x2x128xf32>,
    return
  }
  func.func @transform_0(%arg0: i32) -> (i32, i32, i32, i32) {
    %c0_i32 = arith.constant 0 : i32
    %c0_i32_0 = arith.constant 0 : i32
    %c0_i32_1 = arith.constant 0 : i32
    %c0_i32_2 = arith.constant 0 : i32
    return %arg0, %c0_i32, %c0_i32_0, %c0_i32_1 : i32, i32, i32, i32
  }
  func.func @transform_1(%arg0: i32) -> (i32, i32) {
    %c0_i32 = arith.constant 0 : i32
    %c0_i32_0 = arith.constant 0 : i32
    %c0_i32_1 = arith.constant 0 : i32
    return %c0_i32, %c0_i32_0 : i32, i32
  }
  func.func @transform_2(%arg0: i32) -> (i32, i32) {
    %c0_i32 = arith.constant 0 : i32
    %c0_i32_0 = arith.constant 0 : i32
    %c0_i32_1 = arith.constant 0 : i32
    return %c0_i32, %c0_i32_0 : i32, i32
  }
  func.func @transform_3(%arg0: i32) -> (i32, i32, i32) {
    %c0_i32 = arith.constant 0 : i32
    %c0_i32_0 = arith.constant 0 : i32
    %c0_i32_1 = arith.constant 0 : i32
    return %arg0, %c0_i32, %c0_i32_0 : i32, i32, i32
  }
  func.func @transform_4(%arg0: i32) -> (i32, i32, i32) {
    %c0_i32 = arith.constant 0 : i32
    %c0_i32_0 = arith.constant 0 : i32
    %c0_i32_1 = arith.constant 0 : i32
    return %arg0, %c0_i32, %c0_i32_0 : i32, i32, i32
  }
  func.func @transform_5(%arg0: i32) -> (i32, i32, i32) {
    %c0_i32 = arith.constant 0 : i32
    %c0_i32_0 = arith.constant 0 : i32
    %c0_i32_1 = arith.constant 0 : i32
    return %arg0, %c0_i32, %c0_i32_0 : i32, i32, i32
  }
  func.func @transform_6(%arg0: i32) -> (i32, i32, i32) {
    %c0_i32 = arith.constant 0 : i32
    %c0_i32_0 = arith.constant 0 : i32
    %c0_i32_1 = arith.constant 0 : i32
    return %arg0, %c0_i32, %c0_i32_0 : i32, i32, i32
  }
}

module attributes {stable_mosaic.version = 11 : i64} {
  func.func @_mid_kernel(%arg0: i32, %arg1: memref<1x256x128xbf16, #tpu.memory_space<vmem>>, %arg2: memref<1152x128xbf16, #tpu.memory_space<vmem>>, %arg3: memref<1x128xf32, #tpu.memory_space<vmem>>, %arg4: memref<1x128xf32, #tpu.memory_space<vmem>>, %arg5: memref<1x256x128xbf16, #tpu.memory_space<vmem>>, %arg6: memref<1x2x128xf32, #tpu.memory_space<vmem>>, %arg7: memref<18x18x128xbf16, #tpu.memory_space<vmem>>) attributes {dimension_semantics = [#tpu.dimension_semantics<parallel>], iteration_bounds = array<i64: 2>, scalar_prefetch = 0 : i64, scratch_operands = 1 : i64, tpu.core_type = #tpu.core_type<tc>, window_params = [{transform_indices = @transform_0, window_bounds = array<i64: 1, 256, 128>}, {pipeline_mode = #tpu.pipeline_mode<synchronous>, transform_indices = @transform_1, window_bounds = array<i64: 1152, 128>}, {pipeline_mode = #tpu.pipeline_mode<synchronous>, transform_indices = @transform_2, window_bounds = array<i64: 1, 128>}, {pipeline_mode = #tpu.pipeline_mode<synchronous>, transform_indices = @transform_3, window_bounds = array<i64: 1, 128>}, {transform_indices = @transform_4, window_bounds = array<i64: 1, 256, 128>}, {transform_indices = @transform_5, window_bounds = array<i64: 1, 2, 128>}]} {
    %c0 = arith.constant 0 : index
    %c0_0 = arith.constant 0 : index
    %c0_1 = arith.constant 0 : index
    %0 = vector.load %arg1[%c0, %c0_0, %c0_1] : memref<1x256x128xbf16, #tpu.memory_space<vmem>>, vector<1x256x128xbf16>
    %1 = vector.shape_cast %0 : vector<1x256x128xbf16> to vector<256x128xbf16>
    %2 = arith.extf %1 : vector<256x128xbf16> to vector<256x128xf32>
    %c0_2 = arith.constant 0 : index
    %c0_3 = arith.constant 0 : index
    %3 = vector.load %arg3[%c0_2, %c0_3] : memref<1x128xf32, #tpu.memory_space<vmem>>, vector<1x128xf32>
    %4 = vector.broadcast %3 : vector<1x128xf32> to vector<256x128xf32>
    %5 = arith.mulf %2, %4 : vector<256x128xf32>
    %c0_4 = arith.constant 0 : index
    %c0_5 = arith.constant 0 : index
    %6 = vector.load %arg4[%c0_4, %c0_5] : memref<1x128xf32, #tpu.memory_space<vmem>>, vector<1x128xf32>
    %7 = vector.broadcast %6 : vector<1x128xf32> to vector<256x128xf32>
    %8 = arith.addf %5, %7 : vector<256x128xf32>
    %cst = arith.constant 0.000000e+00 : f32
    %9 = vector.broadcast %cst : f32 to vector<256x128xf32>
    %10 = arith.maximumf %8, %9 : vector<256x128xf32>
    %11 = arith.truncf %10 : vector<256x128xf32> to vector<256x128xbf16>
    %12 = vector.shape_cast %11 : vector<256x128xbf16> to vector<16x16x128xbf16>
    %cst_6 = arith.constant 0.000000e+00 : bf16
    %13 = vector.broadcast %cst_6 : bf16 to vector<1x18x128xbf16>
    %cst_7 = arith.constant 0.000000e+00 : bf16
    %14 = vector.broadcast %cst_7 : bf16 to vector<18x1x128xbf16>
    %c0_8 = arith.constant 0 : index
    %c0_9 = arith.constant 0 : index
    %c0_10 = arith.constant 0 : index
    %15 = vector.load %arg7[%c0_8, %c0_9, %c0_10] : memref<18x18x128xbf16, #tpu.memory_space<vmem>>, vector<1x18x128xbf16>
    tpu.vector_store %arg7[%c0_8, %c0_9, %c0_10], %13 {strides = array<i32>} : memref<18x18x128xbf16, #tpu.memory_space<vmem>>, vector<1x18x128xbf16>,
    %c17 = arith.constant 17 : index
    %c0_11 = arith.constant 0 : index
    %c0_12 = arith.constant 0 : index
    %16 = vector.load %arg7[%c17, %c0_11, %c0_12] : memref<18x18x128xbf16, #tpu.memory_space<vmem>>, vector<1x18x128xbf16>
    tpu.vector_store %arg7[%c17, %c0_11, %c0_12], %13 {strides = array<i32>} : memref<18x18x128xbf16, #tpu.memory_space<vmem>>, vector<1x18x128xbf16>,
    %c0_13 = arith.constant 0 : index
    %c0_14 = arith.constant 0 : index
    %c0_15 = arith.constant 0 : index
    %17 = vector.load %arg7[%c0_13, %c0_14, %c0_15] : memref<18x18x128xbf16, #tpu.memory_space<vmem>>, vector<18x1x128xbf16>
    tpu.vector_store %arg7[%c0_13, %c0_14, %c0_15], %14 {strides = array<i32>} : memref<18x18x128xbf16, #tpu.memory_space<vmem>>, vector<18x1x128xbf16>,
    %c0_16 = arith.constant 0 : index
    %c17_17 = arith.constant 17 : index
    %c0_18 = arith.constant 0 : index
    %18 = vector.load %arg7[%c0_16, %c17_17, %c0_18] : memref<18x18x128xbf16, #tpu.memory_space<vmem>>, vector<18x1x128xbf16>
    tpu.vector_store %arg7[%c0_16, %c17_17, %c0_18], %14 {strides = array<i32>} : memref<18x18x128xbf16, #tpu.memory_space<vmem>>, vector<18x1x128xbf16>,
    %c1 = arith.constant 1 : index
    %c1_19 = arith.constant 1 : index
    %c0_20 = arith.constant 0 : index
    %19 = vector.load %arg7[%c1, %c1_19, %c0_20] : memref<18x18x128xbf16, #tpu.memory_space<vmem>>, vector<16x16x128xbf16>
    tpu.vector_store %arg7[%c1, %c1_19, %c0_20], %12 {strides = array<i32>} : memref<18x18x128xbf16, #tpu.memory_space<vmem>>, vector<16x16x128xbf16>,
    %c0_21 = arith.constant 0 : index
    %c0_22 = arith.constant 0 : index
    %c0_23 = arith.constant 0 : index
    %20 = vector.load %arg7[%c0_21, %c0_22, %c0_23] : memref<18x18x128xbf16, #tpu.memory_space<vmem>>, vector<18x18x128xbf16>
    %21 = vector.extract_strided_slice %20 {offsets = [0, 0, 0], sizes = [16, 16, 128], strides = [1, 1, 1]} : vector<18x18x128xbf16> to vector<16x16x128xbf16>
    %22 = vector.shape_cast %21 : vector<16x16x128xbf16> to vector<256x128xbf16>
    %23 = vector.extract_strided_slice %20 {offsets = [0, 1, 0], sizes = [16, 16, 128], strides = [1, 1, 1]} : vector<18x18x128xbf16> to vector<16x16x128xbf16>
    %24 = vector.shape_cast %23 : vector<16x16x128xbf16> to vector<256x128xbf16>
    %25 = vector.extract_strided_slice %20 {offsets = [0, 2, 0], sizes = [16, 16, 128], strides = [1, 1, 1]} : vector<18x18x128xbf16> to vector<16x16x128xbf16>
    %26 = vector.shape_cast %25 : vector<16x16x128xbf16> to vector<256x128xbf16>
    %27 = vector.extract_strided_slice %20 {offsets = [1, 0, 0], sizes = [16, 16, 128], strides = [1, 1, 1]} : vector<18x18x128xbf16> to vector<16x16x128xbf16>
    %28 = vector.shape_cast %27 : vector<16x16x128xbf16> to vector<256x128xbf16>
    %29 = vector.extract_strided_slice %20 {offsets = [1, 1, 0], sizes = [16, 16, 128], strides = [1, 1, 1]} : vector<18x18x128xbf16> to vector<16x16x128xbf16>
    %30 = vector.shape_cast %29 : vector<16x16x128xbf16> to vector<256x128xbf16>
    %31 = vector.extract_strided_slice %20 {offsets = [1, 2, 0], sizes = [16, 16, 128], strides = [1, 1, 1]} : vector<18x18x128xbf16> to vector<16x16x128xbf16>
    %32 = vector.shape_cast %31 : vector<16x16x128xbf16> to vector<256x128xbf16>
    %33 = vector.extract_strided_slice %20 {offsets = [2, 0, 0], sizes = [16, 16, 128], strides = [1, 1, 1]} : vector<18x18x128xbf16> to vector<16x16x128xbf16>
    %34 = vector.shape_cast %33 : vector<16x16x128xbf16> to vector<256x128xbf16>
    %35 = vector.extract_strided_slice %20 {offsets = [2, 1, 0], sizes = [16, 16, 128], strides = [1, 1, 1]} : vector<18x18x128xbf16> to vector<16x16x128xbf16>
    %36 = vector.shape_cast %35 : vector<16x16x128xbf16> to vector<256x128xbf16>
    %37 = vector.extract_strided_slice %20 {offsets = [2, 2, 0], sizes = [16, 16, 128], strides = [1, 1, 1]} : vector<18x18x128xbf16> to vector<16x16x128xbf16>
    %38 = vector.shape_cast %37 : vector<16x16x128xbf16> to vector<256x128xbf16>
    %39 = tpu.concatenate %22, %24, %26, %28, %30, %32, %34, %36, %38 in 1 : vector<256x128xbf16>, vector<256x128xbf16>, vector<256x128xbf16>, vector<256x128xbf16>, vector<256x128xbf16>, vector<256x128xbf16>, vector<256x128xbf16>, vector<256x128xbf16>, vector<256x128xbf16> -> vector<256x1152xbf16>
    %c0_24 = arith.constant 0 : index
    %c0_25 = arith.constant 0 : index
    %40 = vector.load %arg2[%c0_24, %c0_25] : memref<1152x128xbf16, #tpu.memory_space<vmem>>, vector<1152x128xbf16>
    %cst_26 = arith.constant dense<0.000000e+00> : vector<256x128xf32>
    %41 = tpu.matmul %39, %40, %cst_26 {dimension_numbers = #tpu.dot_dimension_numbers<[1], [0], [0], [1], [0, 0, 1, 1], [], []>} : vector<256x1152xbf16>, vector<1152x128xbf16>, vector<256x128xf32> -> vector<256x128xf32>
    %42 = arith.truncf %41 : vector<256x128xf32> to vector<256x128xbf16>
    %c0_27 = arith.constant 0 : index
    %c0_28 = arith.constant 0 : index
    %c0_29 = arith.constant 0 : index
    %43 = vector.load %arg5[%c0_27, %c0_28, %c0_29] : memref<1x256x128xbf16, #tpu.memory_space<vmem>>, vector<1x256x128xbf16>
    %44 = vector.shape_cast %43 : vector<1x256x128xbf16> to vector<256x128xbf16>
    %45 = vector.shape_cast %42 : vector<256x128xbf16> to vector<1x256x128xbf16>
    tpu.vector_store %arg5[%c0_27, %c0_28, %c0_29], %45 {strides = array<i32>} : memref<1x256x128xbf16, #tpu.memory_space<vmem>>, vector<1x256x128xbf16>,
    %cst_30 = arith.constant dense<0.000000e+00> : vector<128xf32>
    %46 = vector.multi_reduction <add>, %41, %cst_30 [0] : vector<256x128xf32> to vector<128xf32>
    %47 = vector.shape_cast %46 : vector<128xf32> to vector<1x128xf32>
    %48 = arith.mulf %41, %41 : vector<256x128xf32>
    %cst_31 = arith.constant dense<0.000000e+00> : vector<128xf32>
    %49 = vector.multi_reduction <add>, %48, %cst_31 [0] : vector<256x128xf32> to vector<128xf32>
    %50 = vector.shape_cast %49 : vector<128xf32> to vector<1x128xf32>
    %51 = tpu.concatenate %47, %50 in 0 : vector<1x128xf32>, vector<1x128xf32> -> vector<2x128xf32>
    %c0_32 = arith.constant 0 : index
    %c0_33 = arith.constant 0 : index
    %c0_34 = arith.constant 0 : index
    %52 = vector.load %arg6[%c0_32, %c0_33, %c0_34] : memref<1x2x128xf32, #tpu.memory_space<vmem>>, vector<1x2x128xf32>
    %53 = vector.shape_cast %52 : vector<1x2x128xf32> to vector<2x128xf32>
    %54 = vector.shape_cast %51 : vector<2x128xf32> to vector<1x2x128xf32>
    tpu.vector_store %arg6[%c0_32, %c0_33, %c0_34], %54 {strides = array<i32>} : memref<1x2x128xf32, #tpu.memory_space<vmem>>, vector<1x2x128xf32>,
    return
  }
  func.func @transform_0(%arg0: i32) -> (i32, i32, i32) {
    %c0_i32 = arith.constant 0 : i32
    %c0_i32_0 = arith.constant 0 : i32
    %c0_i32_1 = arith.constant 0 : i32
    return %arg0, %c0_i32, %c0_i32_0 : i32, i32, i32
  }
  func.func @transform_1(%arg0: i32) -> (i32, i32) {
    %c0_i32 = arith.constant 0 : i32
    %c0_i32_0 = arith.constant 0 : i32
    %c0_i32_1 = arith.constant 0 : i32
    return %c0_i32, %c0_i32_0 : i32, i32
  }
  func.func @transform_2(%arg0: i32) -> (i32, i32) {
    %c0_i32 = arith.constant 0 : i32
    %c0_i32_0 = arith.constant 0 : i32
    %c0_i32_1 = arith.constant 0 : i32
    return %c0_i32, %c0_i32_0 : i32, i32
  }
  func.func @transform_3(%arg0: i32) -> (i32, i32) {
    %c0_i32 = arith.constant 0 : i32
    %c0_i32_0 = arith.constant 0 : i32
    %c0_i32_1 = arith.constant 0 : i32
    return %c0_i32, %c0_i32_0 : i32, i32
  }
  func.func @transform_4(%arg0: i32) -> (i32, i32, i32) {
    %c0_i32 = arith.constant 0 : i32
    %c0_i32_0 = arith.constant 0 : i32
    %c0_i32_1 = arith.constant 0 : i32
    return %arg0, %c0_i32, %c0_i32_0 : i32, i32, i32
  }
  func.func @transform_5(%arg0: i32) -> (i32, i32, i32) {
    %c0_i32 = arith.constant 0 : i32
    %c0_i32_0 = arith.constant 0 : i32
    %c0_i32_1 = arith.constant 0 : i32
    return %arg0, %c0_i32, %c0_i32_0 : i32, i32, i32
  }
}

module attributes {stable_mosaic.version = 11 : i64} {
  func.func @_final_kernel(%arg0: i32, %arg1: memref<1x256x128xbf16, #tpu.memory_space<vmem>>, %arg2: memref<1x128xf32, #tpu.memory_space<vmem>>, %arg3: memref<1x128xf32, #tpu.memory_space<vmem>>, %arg4: memref<1x256x128xbf16, #tpu.memory_space<vmem>>, %arg5: memref<1x128xf32, #tpu.memory_space<vmem>>, %arg6: memref<1x128xf32, #tpu.memory_space<vmem>>, %arg7: memref<1x256x128xf32, #tpu.memory_space<vmem>>) attributes {dimension_semantics = [#tpu.dimension_semantics<parallel>], iteration_bounds = array<i64: 2>, scalar_prefetch = 0 : i64, scratch_operands = 0 : i64, tpu.core_type = #tpu.core_type<tc>, window_params = [{transform_indices = @transform_0, window_bounds = array<i64: 1, 256, 128>}, {pipeline_mode = #tpu.pipeline_mode<synchronous>, transform_indices = @transform_1, window_bounds = array<i64: 1, 128>}, {pipeline_mode = #tpu.pipeline_mode<synchronous>, transform_indices = @transform_2, window_bounds = array<i64: 1, 128>}, {transform_indices = @transform_3, window_bounds = array<i64: 1, 256, 128>}, {pipeline_mode = #tpu.pipeline_mode<synchronous>, transform_indices = @transform_4, window_bounds = array<i64: 1, 128>}, {pipeline_mode = #tpu.pipeline_mode<synchronous>, transform_indices = @transform_5, window_bounds = array<i64: 1, 128>}, {transform_indices = @transform_6, window_bounds = array<i64: 1, 256, 128>}]} {
    %c0 = arith.constant 0 : index
    %c0_0 = arith.constant 0 : index
    %c0_1 = arith.constant 0 : index
    %0 = vector.load %arg1[%c0, %c0_0, %c0_1] : memref<1x256x128xbf16, #tpu.memory_space<vmem>>, vector<1x256x128xbf16>
    %1 = vector.shape_cast %0 : vector<1x256x128xbf16> to vector<256x128xbf16>
    %2 = arith.extf %1 : vector<256x128xbf16> to vector<256x128xf32>
    %c0_2 = arith.constant 0 : index
    %c0_3 = arith.constant 0 : index
    %3 = vector.load %arg2[%c0_2, %c0_3] : memref<1x128xf32, #tpu.memory_space<vmem>>, vector<1x128xf32>
    %4 = vector.broadcast %3 : vector<1x128xf32> to vector<256x128xf32>
    %5 = arith.mulf %2, %4 : vector<256x128xf32>
    %c0_4 = arith.constant 0 : index
    %c0_5 = arith.constant 0 : index
    %6 = vector.load %arg3[%c0_4, %c0_5] : memref<1x128xf32, #tpu.memory_space<vmem>>, vector<1x128xf32>
    %7 = vector.broadcast %6 : vector<1x128xf32> to vector<256x128xf32>
    %8 = arith.addf %5, %7 : vector<256x128xf32>
    %c0_6 = arith.constant 0 : index
    %c0_7 = arith.constant 0 : index
    %c0_8 = arith.constant 0 : index
    %9 = vector.load %arg4[%c0_6, %c0_7, %c0_8] : memref<1x256x128xbf16, #tpu.memory_space<vmem>>, vector<1x256x128xbf16>
    %10 = vector.shape_cast %9 : vector<1x256x128xbf16> to vector<256x128xbf16>
    %11 = arith.extf %10 : vector<256x128xbf16> to vector<256x128xf32>
    %c0_9 = arith.constant 0 : index
    %c0_10 = arith.constant 0 : index
    %12 = vector.load %arg5[%c0_9, %c0_10] : memref<1x128xf32, #tpu.memory_space<vmem>>, vector<1x128xf32>
    %13 = vector.broadcast %12 : vector<1x128xf32> to vector<256x128xf32>
    %14 = arith.mulf %11, %13 : vector<256x128xf32>
    %c0_11 = arith.constant 0 : index
    %c0_12 = arith.constant 0 : index
    %15 = vector.load %arg6[%c0_11, %c0_12] : memref<1x128xf32, #tpu.memory_space<vmem>>, vector<1x128xf32>
    %16 = vector.broadcast %15 : vector<1x128xf32> to vector<256x128xf32>
    %17 = arith.addf %14, %16 : vector<256x128xf32>
    %18 = arith.addf %8, %17 : vector<256x128xf32>
    %cst = arith.constant 0.000000e+00 : f32
    %19 = vector.broadcast %cst : f32 to vector<256x128xf32>
    %20 = arith.maximumf %18, %19 : vector<256x128xf32>
    %c0_13 = arith.constant 0 : index
    %c0_14 = arith.constant 0 : index
    %c0_15 = arith.constant 0 : index
    %21 = vector.load %arg7[%c0_13, %c0_14, %c0_15] : memref<1x256x128xf32, #tpu.memory_space<vmem>>, vector<1x256x128xf32>
    %22 = vector.shape_cast %21 : vector<1x256x128xf32> to vector<256x128xf32>
    %23 = vector.shape_cast %20 : vector<256x128xf32> to vector<1x256x128xf32>
    tpu.vector_store %arg7[%c0_13, %c0_14, %c0_15], %23 {strides = array<i32>} : memref<1x256x128xf32, #tpu.memory_space<vmem>>, vector<1x256x128xf32>,
    return
  }
  func.func @transform_0(%arg0: i32) -> (i32, i32, i32) {
    %c0_i32 = arith.constant 0 : i32
    %c0_i32_0 = arith.constant 0 : i32
    %c0_i32_1 = arith.constant 0 : i32
    return %arg0, %c0_i32, %c0_i32_0 : i32, i32, i32
  }
  func.func @transform_1(%arg0: i32) -> (i32, i32) {
    %c0_i32 = arith.constant 0 : i32
    %c0_i32_0 = arith.constant 0 : i32
    %c0_i32_1 = arith.constant 0 : i32
    return %c0_i32, %c0_i32_0 : i32, i32
  }
  func.func @transform_2(%arg0: i32) -> (i32, i32) {
    %c0_i32 = arith.constant 0 : i32
    %c0_i32_0 = arith.constant 0 : i32
    %c0_i32_1 = arith.constant 0 : i32
    return %c0_i32, %c0_i32_0 : i32, i32
  }
  func.func @transform_3(%arg0: i32) -> (i32, i32, i32) {
    %c0_i32 = arith.constant 0 : i32
    %c0_i32_0 = arith.constant 0 : i32
    %c0_i32_1 = arith.constant 0 : i32
    return %arg0, %c0_i32, %c0_i32_0 : i32, i32, i32
  }
  func.func @transform_4(%arg0: i32) -> (i32, i32) {
    %c0_i32 = arith.constant 0 : i32
    %c0_i32_0 = arith.constant 0 : i32
    %c0_i32_1 = arith.constant 0 : i32
    return %c0_i32, %c0_i32_0 : i32, i32
  }
  func.func @transform_5(%arg0: i32) -> (i32, i32) {
    %c0_i32 = arith.constant 0 : i32
    %c0_i32_0 = arith.constant 0 : i32
    %c0_i32_1 = arith.constant 0 : i32
    return %c0_i32, %c0_i32_0 : i32, i32
  }
  func.func @transform_6(%arg0: i32) -> (i32, i32, i32) {
    %c0_i32 = arith.constant 0 : i32
    %c0_i32_0 = arith.constant 0 : i32
    %c0_i32_1 = arith.constant 0 : i32
    return %arg0, %c0_i32, %c0_i32_0 : i32, i32, i32
  }
}

</mosaic_0001>

<llo_original>
// kernel: basic_block_forward.5
$region0: #{basic_block_forward.5}
  #allocation0 [shape = 'u32[]', space=smem, size = 0x4, offset = 0x4, fixed_abs, tag = 'smem constant byte address 0x4 - core index']
  #allocation1 [shape = 'u32[144,128]{1,0:T(1,128)}', space=vmem, size = 0x12000, scoped, tag = 'internal scratch']
  %s0 = inlined_call_operand.vmem [shape: bf16[2,256,128], index: 0, kind: input, shape index: {}]
  %s1 = inlined_call_operand.vmem [shape: f32[1,128], index: 1, kind: input, shape index: {}]
  %s2 = inlined_call_operand.vmem [shape: f32[1,128], index: 2, kind: input, shape index: {}]
  %s3 = inlined_call_operand.vmem [shape: bf16[2,256,128], index: 3, kind: input, shape index: {}]
  %s4 = inlined_call_operand.vmem [shape: f32[1,128], index: 4, kind: input, shape index: {}]
  %s5 = inlined_call_operand.vmem [shape: f32[1,128], index: 5, kind: input, shape index: {}]
  %s6 = inlined_call_operand.vmem [shape: f32[2,256,128], index: 6, kind: output, shape index: {}]
  %s7 = sld [smem:[#allocation0]]
  $region57: #{basic_block_forward.5} parent=0
    _
  %s9 = ssub.s32 1, %s7
  %s10 = scalar_select 0, %s9, %s7
  loop: start=0, step=1, limit=4
  $region2: #{basic_block_forward.5} parent=0 // loop_pre_header
    _
  $region3: #{basic_block_forward.5} parent=0 // loop_header
    %s12 = sphi 0, %s16
    %p13 = scmp.ge.s32.totalorder %s12, 4
    %s22 = sphi 0, %s24
    %s25 = sphi 0, %s22
    %s26 = sphi 0, %s25
    %s42 = sphi 0, %s26
    %s46 = sphi 0, %s46
    %s48 = sphi 0, %s46
    %s49 = sphi 0, %s48
    %s63 = sphi 0, %s49
    %s67 = sphi 0, %s67
    %s69 = sphi 0, %s67
    %s70 = sphi 0, %s69
    %s84 = sphi 0, %s70
    %s90 = sphi 0, %s92
    %s93 = sphi 0, %s90
    %s94 = sphi 0, %s93
    %s110 = sphi 0, %s94
    %s114 = sphi 0, %s114
    %s116 = sphi 0, %s114
    %s117 = sphi 0, %s116
    %s131 = sphi 0, %s117
    %s135 = sphi 0, %s135
    %s137 = sphi 0, %s135
    %s138 = sphi 0, %s137
    %s152 = sphi 0, %s138
    %s158 = sphi 0, %s160
    %s161 = sphi 0, %s158
    %s162 = sphi 0, %s161
    %s178 = sphi 0, %s162
  $region4: #{basic_block_forward.5} parent=0 // loop_header_branch
    %15 = sbr.rel (%p13) target = $region8
  $region5: #{basic_block_forward.5} parent=0 // loop_body
    %s17 = ssub.s32 %s12, 1
    %s18 = ssub.s32 %s12, 2
    %s19 = sadd.s32 %s12, 1
    %s20 = ssub.s32 %s12, %s19
    %p21 = scmp.eq.s32.totalorder %s20, 0
    %s23 = sadd.s32 %s22, 1
    %s24 = scalar_select %p21, %s22, %s23
    %p27 = pneg %p21
    %p28 = scmp.eq.s32.totalorder %s12, 1
    %p29 = por %p27, %p28
    %p30 = scmp.ne.s32.totalorder %s22, %s25
    %p31 = scmp.eq.s32.totalorder %s12, 0
    %p32 = por %p30, %p31
    %p33 = scmp.ne.s32.totalorder %s22, %s25
    %p34 = scmp.eq.s32.totalorder %s17, 1
    %p35 = por %p33, %p34
    %p36 = scmp.ne.s32.totalorder %s25, %s26
    %p37 = scmp.eq.s32.totalorder %s17, 0
    %p38 = por %p36, %p37
    %p39 = scmp.ne.s32.totalorder %s25, %s26
    %p40 = scmp.eq.s32.totalorder %s18, 1
    %p41 = por %p39, %p40
    %p43 = scmp.ne.s32.totalorder %s26, %s42
    %p44 = scmp.eq.s32.totalorder %s18, 0
    %p45 = por %p43, %p44
    %s47 = sadd.s32 %s46, 1
    %p50 = scmp.eq.s32.totalorder %s12, 1
    %p51 = scmp.ne.s32.totalorder %s46, %s48
    %p52 = scmp.eq.s32.totalorder %s12, 0
    %p53 = por %p51, %p52
    %p54 = scmp.ne.s32.totalorder %s46, %s48
    %p55 = scmp.eq.s32.totalorder %s17, 1
    %p56 = por %p54, %p55
    %p57 = scmp.ne.s32.totalorder %s48, %s49
    %p58 = scmp.eq.s32.totalorder %s17, 0
    %p59 = por %p57, %p58
    %p60 = scmp.ne.s32.totalorder %s48, %s49
    %p61 = scmp.eq.s32.totalorder %s18, 1
    %p62 = por %p60, %p61
    %p64 = scmp.ne.s32.totalorder %s49, %s63
    %p65 = scmp.eq.s32.totalorder %s18, 0
    %p66 = por %p64, %p65
    %s68 = sadd.s32 %s67, 1
    %p71 = scmp.eq.s32.totalorder %s12, 1
    %p72 = scmp.ne.s32.totalorder %s67, %s69
    %p73 = scmp.eq.s32.totalorder %s12, 0
    %p74 = por %p72, %p73
    %p75 = scmp.ne.s32.totalorder %s67, %s69
    %p76 = scmp.eq.s32.totalorder %s17, 1
    %p77 = por %p75, %p76
    %p78 = scmp.ne.s32.totalorder %s69, %s70
    %p79 = scmp.eq.s32.totalorder %s17, 0
    %p80 = por %p78, %p79
    %p81 = scmp.ne.s32.totalorder %s69, %s70
    %p82 = scmp.eq.s32.totalorder %s18, 1
    %p83 = por %p81, %p82
    %p85 = scmp.ne.s32.totalorder %s70, %s84
    %p86 = scmp.eq.s32.totalorder %s18, 0
    %p87 = por %p85, %p86
    %s88 = ssub.s32 %s12, %s19
    %p89 = scmp.eq.s32.totalorder %s88, 0
    %s91 = sadd.s32 %s90, 1
    %s92 = scalar_select %p89, %s90, %s91
    %p95 = pneg %p89
    %p96 = scmp.eq.s32.totalorder %s12, 1
    %p97 = por %p95, %p96
    %p98 = scmp.ne.s32.totalorder %s90, %s93
    %p99 = scmp.eq.s32.totalorder %s12, 0
    %p100 = por %p98, %p99
    %p101 = scmp.ne.s32.totalorder %s90, %s93
    %p102 = scmp.eq.s32.totalorder %s17, 1
    %p103 = por %p101, %p102
    %p104 = scmp.ne.s32.totalorder %s93, %s94
    %p105 = scmp.eq.s32.totalorder %s17, 0
    %p106 = por %p104, %p105
    %p107 = scmp.ne.s32.totalorder %s93, %s94
    %p108 = scmp.eq.s32.totalorder %s18, 1
    %p109 = por %p107, %p108
    %p111 = scmp.ne.s32.totalorder %s94, %s110
    %p112 = scmp.eq.s32.totalorder %s18, 0
    %p113 = por %p111, %p112
    %s115 = sadd.s32 %s114, 1
    %p118 = scmp.eq.s32.totalorder %s12, 1
    %p119 = scmp.ne.s32.totalorder %s114, %s116
    %p120 = scmp.eq.s32.totalorder %s12, 0
    %p121 = por %p119, %p120
    %p122 = scmp.ne.s32.totalorder %s114, %s116
    %p123 = scmp.eq.s32.totalorder %s17, 1
    %p124 = por %p122, %p123
    %p125 = scmp.ne.s32.totalorder %s116, %s117
    %p126 = scmp.eq.s32.totalorder %s17, 0
    %p127 = por %p125, %p126
    %p128 = scmp.ne.s32.totalorder %s116, %s117
    %p129 = scmp.eq.s32.totalorder %s18, 1
    %p130 = por %p128, %p129
    %p132 = scmp.ne.s32.totalorder %s117, %s131
    %p133 = scmp.eq.s32.totalorder %s18, 0
    %p134 = por %p132, %p133
    %s136 = sadd.s32 %s135, 1
    %p139 = scmp.eq.s32.totalorder %s12, 1
    %p140 = scmp.ne.s32.totalorder %s135, %s137
    %p141 = scmp.eq.s32.totalorder %s12, 0
    %p142 = por %p140, %p141
    %p143 = scmp.ne.s32.totalorder %s135, %s137
    %p144 = scmp.eq.s32.totalorder %s17, 1
    %p145 = por %p143, %p144
    %p146 = scmp.ne.s32.totalorder %s137, %s138
    %p147 = scmp.eq.s32.totalorder %s17, 0
    %p148 = por %p146, %p147
    %p149 = scmp.ne.s32.totalorder %s137, %s138
    %p150 = scmp.eq.s32.totalorder %s18, 1
    %p151 = por %p149, %p150
    %p153 = scmp.ne.s32.totalorder %s138, %s152
    %p154 = scmp.eq.s32.totalorder %s18, 0
    %p155 = por %p153, %p154
    %s156 = ssub.s32 %s12, %s19
    %p157 = scmp.eq.s32.totalorder %s156, 0
    %s159 = sadd.s32 %s158, 1
    %s160 = scalar_select %p157, %s158, %s159
    %p163 = pneg %p157
    %p164 = scmp.eq.s32.totalorder %s12, 1
    %p165 = por %p163, %p164
    %p166 = scmp.ne.s32.totalorder %s158, %s161
    %p167 = scmp.eq.s32.totalorder %s12, 0
    %p168 = por %p166, %p167
    %p169 = scmp.ne.s32.totalorder %s158, %s161
    %p170 = scmp.eq.s32.totalorder %s17, 1
    %p171 = por %p169, %p170
    %p172 = scmp.ne.s32.totalorder %s161, %s162
    %p173 = scmp.eq.s32.totalorder %s17, 0
    %p174 = por %p172, %p173
    %p175 = scmp.ne.s32.totalorder %s161, %s162
    %p176 = scmp.eq.s32.totalorder %s18, 1
    %p177 = por %p175, %p176
    %p179 = scmp.ne.s32.totalorder %s162, %s178
    %p180 = scmp.eq.s32.totalorder %s18, 0
    %p181 = por %p179, %p180
    %p182 = scmp.le.s32.totalorder 1, %s12
    %p183 = scmp.lt.s32.totalorder %s12, 3
    %p184 = pnand %p182, %p183
    %p185 = pneg %p184
    // Predicated region
    $region9: #{basic_block_forward.5} parent=5 // pred_check
      _
    $region10: #{basic_block_forward.5} parent=5 // pred_check_branch
      %187 = sbr.rel (%p184) target = $region12
    $region11: #{basic_block_forward.5} parent=5 // pred_region
      %s188 = ssub.s32 %s12, 1
      // Predicated region
      $region13: #{basic_block_forward.5} parent=11 // pred_check
        %p189 = pneg %p59
      $region14: #{basic_block_forward.5} parent=11 // pred_check_branch
        %191 = sbr.rel (%p189) target = $region16
      $region15: #{basic_block_forward.5} parent=11 // pred_region
        _
      $region16: #{basic_block_forward.5} parent=11 // pred_fallthru
        _
      // Predicated region
      $region17: #{basic_block_forward.5} parent=11 // pred_check
        %p192 = pneg %p80
      $region18: #{basic_block_forward.5} parent=11 // pred_check_branch
        %194 = sbr.rel (%p192) target = $region20
      $region19: #{basic_block_forward.5} parent=11 // pred_region
        _
      $region20: #{basic_block_forward.5} parent=11 // pred_fallthru
        _
      // Predicated region
      $region21: #{basic_block_forward.5} parent=11 // pred_check
        %p195 = pneg %p127
      $region22: #{basic_block_forward.5} parent=11 // pred_check_branch
        %197 = sbr.rel (%p195) target = $region24
      $region23: #{basic_block_forward.5} parent=11 // pred_region
        _
      $region24: #{basic_block_forward.5} parent=11 // pred_fallthru
        _
      // Predicated region
      $region25: #{basic_block_forward.5} parent=11 // pred_check
        %p198 = pneg %p148
      $region26: #{basic_block_forward.5} parent=11 // pred_check_branch
        %200 = sbr.rel (%p198) target = $region28
      $region27: #{basic_block_forward.5} parent=11 // pred_region
        _
      $region28: #{basic_block_forward.5} parent=11 // pred_fallthru
        _
    $region12: #{basic_block_forward.5} parent=5 // pred_fallthru
      _
    %p201 = scmp.lt.s32.totalorder %s12, 2
    // Predicated region
    $region29: #{basic_block_forward.5} parent=5 // pred_check
      %p202 = pneg %p201
    $region30: #{basic_block_forward.5} parent=5 // pred_check_branch
      %204 = sbr.rel (%p202) target = $region32
    $region31: #{basic_block_forward.5} parent=5 // pred_region
      // Predicated region
      $region33: #{basic_block_forward.5} parent=31 // pred_check
        %p205 = pneg %p32
      $region34: #{basic_block_forward.5} parent=31 // pred_check_branch
        %207 = sbr.rel (%p205) target = $region36
      $region35: #{basic_block_forward.5} parent=31 // pred_region
        %p208 = scmp.lt.s32.totalorder %s12, 1
        %s209 = scalar_select %p208, %s12, 1
        %s210 = smul.addr %s209, 32
        %s211 = smul.addr %s210, 4
        %s212 = scalar_lea.vmem %s0, %s211
      $region36: #{basic_block_forward.5} parent=31 // pred_fallthru
        _
      // Predicated region
      $region37: #{basic_block_forward.5} parent=31 // pred_check
        %p213 = pneg %p100
      $region38: #{basic_block_forward.5} parent=31 // pred_check_branch
        %215 = sbr.rel (%p213) target = $region40
      $region39: #{basic_block_forward.5} parent=31 // pred_region
        %p216 = scmp.lt.s32.totalorder %s12, 1
        %s217 = scalar_select %p216, %s12, 1
        %s218 = smul.addr %s217, 32
        %s219 = smul.addr %s218, 4
        %s220 = scalar_lea.vmem %s3, %s219
      $region40: #{basic_block_forward.5} parent=31 // pred_fallthru
        _
    $region32: #{basic_block_forward.5} parent=5 // pred_fallthru
      _
    %p221 = scmp.le.s32.totalorder 1, %s12
    %p222 = scmp.lt.s32.totalorder %s12, 3
    %p223 = pnand %p221, %p222
    %p224 = pneg %p223
    // Predicated region
    $region41: #{basic_block_forward.5} parent=5 // pred_check
      _
    $region42: #{basic_block_forward.5} parent=5 // pred_check_branch
      %226 = sbr.rel (%p223) target = $region44
    $region43: #{basic_block_forward.5} parent=5 // pred_region
      %s227 = ssub.s32 %s12, 1
      %p228 = scmp.lt.s32.totalorder %s17, 1
      %s229 = scalar_select %p228, %s17, 1
      %s230 = smul.addr %s229, 32
      %s231 = smul.addr %s230, 4
      %s232 = scalar_lea.vmem %s0, %s231
      %p233 = pneg %p38
      %p234 = pneg %p35
      %p235 = pneg %p59
      %p236 = pneg %p56
      %p237 = pneg %p80
      %p238 = pneg %p77
      %p239 = scmp.lt.s32.totalorder %s17, 1
      %s240 = scalar_select %p239, %s17, 1
      %s241 = smul.addr %s240, 32
      %s242 = smul.addr %s241, 4
      %s243 = scalar_lea.vmem %s3, %s242
      %p244 = pneg %p106
      %p245 = pneg %p103
      %p246 = pneg %p127
      %p247 = pneg %p124
      %p248 = pneg %p148
      %p249 = pneg %p145
      %p250 = pneg %p174
      %p251 = pneg %p171
      %p252 = scmp.lt.s32.totalorder %s17, 1
      %s253 = scalar_select %p252, %s17, 1
      %s254 = smul.addr %s253, 32
      %s255 = smul.addr %s254, 8
      %s256 = scalar_lea.vmem %s6, %s255
      %p257 = scmp.lt.s32.totalorder %s17, 1
      %s258 = scalar_select %p257, %s17, 1
      %s259 = smul.addr %s258, 32
      %s260 = smul.addr %s259, 4
      %s261 = scalar_lea.vmem %s0, %s260
      %p262 = scmp.lt.s32.totalorder %s17, 1
      %s263 = scalar_select %p262, %s17, 1
      %s264 = smul.addr %s263, 32
      %s265 = smul.addr %s264, 4
      %s266 = scalar_lea.vmem %s3, %s265
      %p267 = scmp.lt.s32.totalorder %s17, 1
      %s268 = scalar_select %p267, %s17, 1
      %s269 = smul.addr %s268, 32
      %s270 = smul.addr %s269, 8
      %s271 = scalar_lea.vmem %s6, %s270
      %v272 = vld [vmem:[%s261] sm:$0xf]
      %v273 = vld [vmem:[%s261 + $0x4] sm:$0xf]
      %v274 = vld [vmem:[%s261 + $0x8] sm:$0xf]
      %v275 = vld [vmem:[%s261 + $0xc] sm:$0xf]
      %v276 = vld [vmem:[%s261 + $0x10] sm:$0xf]
      %v277 = vld [vmem:[%s261 + $0x14] sm:$0xf]
      %v278 = vld [vmem:[%s261 + $0x18] sm:$0xf]
      %v279 = vld [vmem:[%s261 + $0x1c] sm:$0xf]
      %v280 = vld [vmem:[%s261 + $0x20] sm:$0xf]
      %v281 = vld [vmem:[%s261 + $0x24] sm:$0xf]
      %v282 = vld [vmem:[%s261 + $0x28] sm:$0xf]
      %v283 = vld [vmem:[%s261 + $0x2c] sm:$0xf]
      %v284 = vld [vmem:[%s261 + $0x30] sm:$0xf]
      %v285 = vld [vmem:[%s261 + $0x34] sm:$0xf]
      %v286 = vld [vmem:[%s261 + $0x38] sm:$0xf]
      %v287 = vld [vmem:[%s261 + $0x3c] sm:$0xf]
      %v288 = vld [vmem:[%s261 + $0x40] sm:$0xf]
      %v289 = vld [vmem:[%s261 + $0x44] sm:$0xf]
      %v290 = vld [vmem:[%s261 + $0x48] sm:$0xf]
      %v291 = vld [vmem:[%s261 + $0x4c] sm:$0xf]
      %v292 = vld [vmem:[%s261 + $0x50] sm:$0xf]
      %v293 = vld [vmem:[%s261 + $0x54] sm:$0xf]
      %v294 = vld [vmem:[%s261 + $0x58] sm:$0xf]
      %v295 = vld [vmem:[%s261 + $0x5c] sm:$0xf]
      %v296 = vld [vmem:[%s261 + $0x60] sm:$0xf]
      %v297 = vld [vmem:[%s261 + $0x64] sm:$0xf]
      %v298 = vld [vmem:[%s261 + $0x68] sm:$0xf]
      %v299 = vld [vmem:[%s261 + $0x6c] sm:$0xf]
      %v300 = vld [vmem:[%s261 + $0x70] sm:$0xf]
      %v301 = vld [vmem:[%s261 + $0x74] sm:$0xf]
      %v302 = vld [vmem:[%s261 + $0x78] sm:$0xf]
      %v303 = vld [vmem:[%s261 + $0x7c] sm:$0xf]
      %v304 = vunpack.c.l.bf16 %v272
      %v305 = vunpack.c.l.bf16 %v273
      %v306 = vunpack.c.l.bf16 %v274
      %v307 = vunpack.c.l.bf16 %v275
      %v308 = vunpack.c.l.bf16 %v276
      %v309 = vunpack.c.l.bf16 %v277
      %v310 = vunpack.c.l.bf16 %v278
      %v311 = vunpack.c.l.bf16 %v279
      %v312 = vunpack.c.l.bf16 %v280
      %v313 = vunpack.c.l.bf16 %v281
      %v314 = vunpack.c.l.bf16 %v282
      %v315 = vunpack.c.l.bf16 %v283
      %v316 = vunpack.c.l.bf16 %v284
      %v317 = vunpack.c.l.bf16 %v285
      %v318 = vunpack.c.l.bf16 %v286
      %v319 = vunpack.c.l.bf16 %v287
      %v320 = vunpack.c.l.bf16 %v288
      %v321 = vunpack.c.l.bf16 %v289
      %v322 = vunpack.c.l.bf16 %v290
      %v323 = vunpack.c.l.bf16 %v291
      %v324 = vunpack.c.l.bf16 %v292
      %v325 = vunpack.c.l.bf16 %v293
      %v326 = vunpack.c.l.bf16 %v294
      %v327 = vunpack.c.l.bf16 %v295
      %v328 = vunpack.c.l.bf16 %v296
      %v329 = vunpack.c.l.bf16 %v297
      %v330 = vunpack.c.l.bf16 %v298
      %v331 = vunpack.c.l.bf16 %v299
      %v332 = vunpack.c.l.bf16 %v300
      %v333 = vunpack.c.l.bf16 %v301
      %v334 = vunpack.c.l.bf16 %v302
      %v335 = vunpack.c.l.bf16 %v303
      %v336 = vld [vmem:[%s1] sm:$0x1]
      %v338 = vlaneseq
      %v339 = vshrl.u32 %v338, 7
      %v340 = vsub.s32 0, %v339
      %v341 = vrot.slane %v336, %v340
      %v343 = vmul.f32 %v304, %v341
      %v344 = vmul.f32 %v305, %v341
      %v345 = vmul.f32 %v306, %v341
      %v346 = vmul.f32 %v307, %v341
      %v347 = vmul.f32 %v308, %v341
      %v348 = vmul.f32 %v309, %v341
      %v349 = vmul.f32 %v310, %v341
      %v350 = vmul.f32 %v311, %v341
      %v351 = vmul.f32 %v312, %v341
      %v352 = vmul.f32 %v313, %v341
      %v353 = vmul.f32 %v314, %v341
      %v354 = vmul.f32 %v315, %v341
      %v355 = vmul.f32 %v316, %v341
      %v356 = vmul.f32 %v317, %v341
      %v357 = vmul.f32 %v318, %v341
      %v358 = vmul.f32 %v319, %v341
      %v359 = vmul.f32 %v320, %v341
      %v360 = vmul.f32 %v321, %v341
      %v361 = vmul.f32 %v322, %v341
      %v362 = vmul.f32 %v323, %v341
      %v363 = vmul.f32 %v324, %v341
      %v364 = vmul.f32 %v325, %v341
      %v365 = vmul.f32 %v326, %v341
      %v366 = vmul.f32 %v327, %v341
      %v367 = vmul.f32 %v328, %v341
      %v368 = vmul.f32 %v329, %v341
      %v369 = vmul.f32 %v330, %v341
      %v370 = vmul.f32 %v331, %v341
      %v371 = vmul.f32 %v332, %v341
      %v372 = vmul.f32 %v333, %v341
      %v373 = vmul.f32 %v334, %v341
      %v374 = vmul.f32 %v335, %v341
      %v375 = vld [vmem:[%s2] sm:$0x1]
      %v377 = vlaneseq
      %v378 = vshrl.u32 %v377, 7
      %v379 = vsub.s32 0, %v378
      %v380 = vrot.slane %v375, %v379
      %v382 = vadd.f32 %v343, %v380
      %v383 = vadd.f32 %v344, %v380
      %v384 = vadd.f32 %v345, %v380
      %v385 = vadd.f32 %v346, %v380
      %v386 = vadd.f32 %v347, %v380
      %v387 = vadd.f32 %v348, %v380
      %v388 = vadd.f32 %v349, %v380
      %v389 = vadd.f32 %v350, %v380
      %v390 = vadd.f32 %v351, %v380
      %v391 = vadd.f32 %v352, %v380
      %v392 = vadd.f32 %v353, %v380
      %v393 = vadd.f32 %v354, %v380
      %v394 = vadd.f32 %v355, %v380
      %v395 = vadd.f32 %v356, %v380
      %v396 = vadd.f32 %v357, %v380
      %v397 = vadd.f32 %v358, %v380
      %v398 = vadd.f32 %v359, %v380
      %v399 = vadd.f32 %v360, %v380
      %v400 = vadd.f32 %v361, %v380
      %v401 = vadd.f32 %v362, %v380
      %v402 = vadd.f32 %v363, %v380
      %v403 = vadd.f32 %v364, %v380
      %v404 = vadd.f32 %v365, %v380
      %v405 = vadd.f32 %v366, %v380
      %v406 = vadd.f32 %v367, %v380
      %v407 = vadd.f32 %v368, %v380
      %v408 = vadd.f32 %v369, %v380
      %v409 = vadd.f32 %v370, %v380
      %v410 = vadd.f32 %v371, %v380
      %v411 = vadd.f32 %v372, %v380
      %v412 = vadd.f32 %v373, %v380
      %v413 = vadd.f32 %v374, %v380
      %v414 = vld [vmem:[%s266] sm:$0xf]
      %v415 = vld [vmem:[%s266 + $0x4] sm:$0xf]
      %v416 = vld [vmem:[%s266 + $0x8] sm:$0xf]
      %v417 = vld [vmem:[%s266 + $0xc] sm:$0xf]
      %v418 = vld [vmem:[%s266 + $0x10] sm:$0xf]
      %v419 = vld [vmem:[%s266 + $0x14] sm:$0xf]
      %v420 = vld [vmem:[%s266 + $0x18] sm:$0xf]
      %v421 = vld [vmem:[%s266 + $0x1c] sm:$0xf]
      %v422 = vld [vmem:[%s266 + $0x20] sm:$0xf]
      %v423 = vld [vmem:[%s266 + $0x24] sm:$0xf]
      %v424 = vld [vmem:[%s266 + $0x28] sm:$0xf]
      %v425 = vld [vmem:[%s266 + $0x2c] sm:$0xf]
      %v426 = vld [vmem:[%s266 + $0x30] sm:$0xf]
      %v427 = vld [vmem:[%s266 + $0x34] sm:$0xf]
      %v428 = vld [vmem:[%s266 + $0x38] sm:$0xf]
      %v429 = vld [vmem:[%s266 + $0x3c] sm:$0xf]
      %v430 = vld [vmem:[%s266 + $0x40] sm:$0xf]
      %v431 = vld [vmem:[%s266 + $0x44] sm:$0xf]
      %v432 = vld [vmem:[%s266 + $0x48] sm:$0xf]
      %v433 = vld [vmem:[%s266 + $0x4c] sm:$0xf]
      %v434 = vld [vmem:[%s266 + $0x50] sm:$0xf]
      %v435 = vld [vmem:[%s266 + $0x54] sm:$0xf]
      %v436 = vld [vmem:[%s266 + $0x58] sm:$0xf]
      %v437 = vld [vmem:[%s266 + $0x5c] sm:$0xf]
      %v438 = vld [vmem:[%s266 + $0x60] sm:$0xf]
      %v439 = vld [vmem:[%s266 + $0x64] sm:$0xf]
      %v440 = vld [vmem:[%s266 + $0x68] sm:$0xf]
      %v441 = vld [vmem:[%s266 + $0x6c] sm:$0xf]
      %v442 = vld [vmem:[%s266 + $0x70] sm:$0xf]
      %v443 = vld [vmem:[%s266 + $0x74] sm:$0xf]
      %v444 = vld [vmem:[%s266 + $0x78] sm:$0xf]
      %v445 = vld [vmem:[%s266 + $0x7c] sm:$0xf]
      %v446 = vunpack.c.l.bf16 %v414
      %v447 = vunpack.c.l.bf16 %v415
      %v448 = vunpack.c.l.bf16 %v416
      %v449 = vunpack.c.l.bf16 %v417
      %v450 = vunpack.c.l.bf16 %v418
      %v451 = vunpack.c.l.bf16 %v419
      %v452 = vunpack.c.l.bf16 %v420
      %v453 = vunpack.c.l.bf16 %v421
      %v454 = vunpack.c.l.bf16 %v422
      %v455 = vunpack.c.l.bf16 %v423
      %v456 = vunpack.c.l.bf16 %v424
      %v457 = vunpack.c.l.bf16 %v425
      %v458 = vunpack.c.l.bf16 %v426
      %v459 = vunpack.c.l.bf16 %v427
      %v460 = vunpack.c.l.bf16 %v428
      %v461 = vunpack.c.l.bf16 %v429
      %v462 = vunpack.c.l.bf16 %v430
      %v463 = vunpack.c.l.bf16 %v431
      %v464 = vunpack.c.l.bf16 %v432
      %v465 = vunpack.c.l.bf16 %v433
      %v466 = vunpack.c.l.bf16 %v434
      %v467 = vunpack.c.l.bf16 %v435
      %v468 = vunpack.c.l.bf16 %v436
      %v469 = vunpack.c.l.bf16 %v437
      %v470 = vunpack.c.l.bf16 %v438
      %v471 = vunpack.c.l.bf16 %v439
      %v472 = vunpack.c.l.bf16 %v440
      %v473 = vunpack.c.l.bf16 %v441
      %v474 = vunpack.c.l.bf16 %v442
      %v475 = vunpack.c.l.bf16 %v443
      %v476 = vunpack.c.l.bf16 %v444
      %v477 = vunpack.c.l.bf16 %v445
      %v478 = vld [vmem:[%s4] sm:$0x1]
      %v480 = vlaneseq
      %v481 = vshrl.u32 %v480, 7
      %v482 = vsub.s32 0, %v481
      %v483 = vrot.slane %v478, %v482
      %v485 = vmul.f32 %v446, %v483
      %v486 = vmul.f32 %v447, %v483
      %v487 = vmul.f32 %v448, %v483
      %v488 = vmul.f32 %v449, %v483
      %v489 = vmul.f32 %v450, %v483
      %v490 = vmul.f32 %v451, %v483
      %v491 = vmul.f32 %v452, %v483
      %v492 = vmul.f32 %v453, %v483
      %v493 = vmul.f32 %v454, %v483
      %v494 = vmul.f32 %v455, %v483
      %v495 = vmul.f32 %v456, %v483
      %v496 = vmul.f32 %v457, %v483
      %v497 = vmul.f32 %v458, %v483
      %v498 = vmul.f32 %v459, %v483
      %v499 = vmul.f32 %v460, %v483
      %v500 = vmul.f32 %v461, %v483
      %v501 = vmul.f32 %v462, %v483
      %v502 = vmul.f32 %v463, %v483
      %v503 = vmul.f32 %v464, %v483
      %v504 = vmul.f32 %v465, %v483
      %v505 = vmul.f32 %v466, %v483
      %v506 = vmul.f32 %v467, %v483
      %v507 = vmul.f32 %v468, %v483
      %v508 = vmul.f32 %v469, %v483
      %v509 = vmul.f32 %v470, %v483
      %v510 = vmul.f32 %v471, %v483
      %v511 = vmul.f32 %v472, %v483
      %v512 = vmul.f32 %v473, %v483
      %v513 = vmul.f32 %v474, %v483
      %v514 = vmul.f32 %v475, %v483
      %v515 = vmul.f32 %v476, %v483
      %v516 = vmul.f32 %v477, %v483
      %v517 = vld [vmem:[%s5] sm:$0x1]
      %v519 = vlaneseq
      %v520 = vshrl.u32 %v519, 7
      %v521 = vsub.s32 0, %v520
      %v522 = vrot.slane %v517, %v521
      %v524 = vadd.f32 %v485, %v522
      %v525 = vadd.f32 %v486, %v522
      %v526 = vadd.f32 %v487, %v522
      %v527 = vadd.f32 %v488, %v522
      %v528 = vadd.f32 %v489, %v522
      %v529 = vadd.f32 %v490, %v522
      %v530 = vadd.f32 %v491, %v522
      %v531 = vadd.f32 %v492, %v522
      %v532 = vadd.f32 %v493, %v522
      %v533 = vadd.f32 %v494, %v522
      %v534 = vadd.f32 %v495, %v522
      %v535 = vadd.f32 %v496, %v522
      %v536 = vadd.f32 %v497, %v522
      %v537 = vadd.f32 %v498, %v522
      %v538 = vadd.f32 %v499, %v522
      %v539 = vadd.f32 %v500, %v522
      %v540 = vadd.f32 %v501, %v522
      %v541 = vadd.f32 %v502, %v522
      %v542 = vadd.f32 %v503, %v522
      %v543 = vadd.f32 %v504, %v522
      %v544 = vadd.f32 %v505, %v522
      %v545 = vadd.f32 %v506, %v522
      %v546 = vadd.f32 %v507, %v522
      %v547 = vadd.f32 %v508, %v522
      %v548 = vadd.f32 %v509, %v522
      %v549 = vadd.f32 %v510, %v522
      %v550 = vadd.f32 %v511, %v522
      %v551 = vadd.f32 %v512, %v522
      %v552 = vadd.f32 %v513, %v522
      %v553 = vadd.f32 %v514, %v522
      %v554 = vadd.f32 %v515, %v522
      %v555 = vadd.f32 %v516, %v522
      %v556 = vadd.f32 %v382, %v524
      %v557 = vadd.f32 %v383, %v525
      %v558 = vadd.f32 %v384, %v526
      %v559 = vadd.f32 %v385, %v527
      %v560 = vadd.f32 %v386, %v528
      %v561 = vadd.f32 %v387, %v529
      %v562 = vadd.f32 %v388, %v530
      %v563 = vadd.f32 %v389, %v531
      %v564 = vadd.f32 %v390, %v532
      %v565 = vadd.f32 %v391, %v533
      %v566 = vadd.f32 %v392, %v534
      %v567 = vadd.f32 %v393, %v535
      %v568 = vadd.f32 %v394, %v536
      %v569 = vadd.f32 %v395, %v537
      %v570 = vadd.f32 %v396, %v538
      %v571 = vadd.f32 %v397, %v539
      %v572 = vadd.f32 %v398, %v540
      %v573 = vadd.f32 %v399, %v541
      %v574 = vadd.f32 %v400, %v542
      %v575 = vadd.f32 %v401, %v543
      %v576 = vadd.f32 %v402, %v544
      %v577 = vadd.f32 %v403, %v545
      %v578 = vadd.f32 %v404, %v546
      %v579 = vadd.f32 %v405, %v547
      %v580 = vadd.f32 %v406, %v548
      %v581 = vadd.f32 %v407, %v549
      %v582 = vadd.f32 %v408, %v550
      %v583 = vadd.f32 %v409, %v551
      %v584 = vadd.f32 %v410, %v552
      %v585 = vadd.f32 %v411, %v553
      %v586 = vadd.f32 %v412, %v554
      %v587 = vadd.f32 %v413, %v555
      %v588 = vmax.f32 %v556, 0.0
      %v589 = vmax.f32 %v557, 0.0
      %v590 = vmax.f32 %v558, 0.0
      %v591 = vmax.f32 %v559, 0.0
      %v592 = vmax.f32 %v560, 0.0
      %v593 = vmax.f32 %v561, 0.0
      %v594 = vmax.f32 %v562, 0.0
      %v595 = vmax.f32 %v563, 0.0
      %v596 = vmax.f32 %v564, 0.0
      %v597 = vmax.f32 %v565, 0.0
      %v598 = vmax.f32 %v566, 0.0
      %v599 = vmax.f32 %v567, 0.0
      %v600 = vmax.f32 %v568, 0.0
      %v601 = vmax.f32 %v569, 0.0
      %v602 = vmax.f32 %v570, 0.0
      %v603 = vmax.f32 %v571, 0.0
      %v604 = vmax.f32 %v572, 0.0
      %v605 = vmax.f32 %v573, 0.0
      %v606 = vmax.f32 %v574, 0.0
      %v607 = vmax.f32 %v575, 0.0
      %v608 = vmax.f32 %v576, 0.0
      %v609 = vmax.f32 %v577, 0.0
      %v610 = vmax.f32 %v578, 0.0
      %v611 = vmax.f32 %v579, 0.0
      %v612 = vmax.f32 %v580, 0.0
      %v613 = vmax.f32 %v581, 0.0
      %v614 = vmax.f32 %v582, 0.0
      %v615 = vmax.f32 %v583, 0.0
      %v616 = vmax.f32 %v584, 0.0
      %v617 = vmax.f32 %v585, 0.0
      %v618 = vmax.f32 %v586, 0.0
      %v619 = vmax.f32 %v587, 0.0
      %620 = vst [vmem:[%s271] sm:$0xff] %v588
      %621 = vst [vmem:[%s271 + $0x8] sm:$0xff] %v589
      %622 = vst [vmem:[%s271 + $0x10] sm:$0xff] %v590
      %623 = vst [vmem:[%s271 + $0x18] sm:$0xff] %v591
      %624 = vst [vmem:[%s271 + $0x20] sm:$0xff] %v592
      %625 = vst [vmem:[%s271 + $0x28] sm:$0xff] %v593
      %626 = vst [vmem:[%s271 + $0x30] sm:$0xff] %v594
      %627 = vst [vmem:[%s271 + $0x38] sm:$0xff] %v595
      %628 = vst [vmem:[%s271 + $0x40] sm:$0xff] %v596
      %629 = vst [vmem:[%s271 + $0x48] sm:$0xff] %v597
      %630 = vst [vmem:[%s271 + $0x50] sm:$0xff] %v598
      %631 = vst [vmem:[%s271 + $0x58] sm:$0xff] %v599
      %632 = vst [vmem:[%s271 + $0x60] sm:$0xff] %v600
      %633 = vst [vmem:[%s271 + $0x68] sm:$0xff] %v601
      %634 = vst [vmem:[%s271 + $0x70] sm:$0xff] %v602
      %635 = vst [vmem:[%s271 + $0x78] sm:$0xff] %v603
      %636 = vst [vmem:[%s271 + $0x80] sm:$0xff] %v604
      %637 = vst [vmem:[%s271 + $0x88] sm:$0xff] %v605
      %638 = vst [vmem:[%s271 + $0x90] sm:$0xff] %v606
      %639 = vst [vmem:[%s271 + $0x98] sm:$0xff] %v607
      %640 = vst [vmem:[%s271 + $0xa0] sm:$0xff] %v608
      %641 = vst [vmem:[%s271 + $0xa8] sm:$0xff] %v609
      %642 = vst [vmem:[%s271 + $0xb0] sm:$0xff] %v610
      %643 = vst [vmem:[%s271 + $0xb8] sm:$0xff] %v611
      %644 = vst [vmem:[%s271 + $0xc0] sm:$0xff] %v612
      %645 = vst [vmem:[%s271 + $0xc8] sm:$0xff] %v613
      %646 = vst [vmem:[%s271 + $0xd0] sm:$0xff] %v614
      %647 = vst [vmem:[%s271 + $0xd8] sm:$0xff] %v615
      %648 = vst [vmem:[%s271 + $0xe0] sm:$0xff] %v616
      %649 = vst [vmem:[%s271 + $0xe8] sm:$0xff] %v617
      %650 = vst [vmem:[%s271 + $0xf0] sm:$0xff] %v618
      %651 = vst [vmem:[%s271 + $0xf8] sm:$0xff] %v619
      %p652 = scmp.lt.s32.totalorder %s17, 1
      %s653 = scalar_select %p652, %s17, 1
      %s654 = smul.addr %s653, 32
      %s655 = smul.addr %s654, 8
      %s656 = scalar_lea.vmem %s6, %s655
      // Predicated region
      $region45: #{basic_block_forward.5} parent=43 // pred_check
        %p657 = pneg %p171
      $region46: #{basic_block_forward.5} parent=43 // pred_check_branch
        %659 = sbr.rel (%p657) target = $region48
      $region47: #{basic_block_forward.5} parent=43 // pred_region
        _
      $region48: #{basic_block_forward.5} parent=43 // pred_fallthru
        _
    $region44: #{basic_block_forward.5} parent=5 // pred_fallthru
      _
    %p660 = scmp.le.s32.totalorder 2, %s12
    // Predicated region
    $region49: #{basic_block_forward.5} parent=5 // pred_check
      %p661 = pneg %p660
    $region50: #{basic_block_forward.5} parent=5 // pred_check_branch
      %663 = sbr.rel (%p661) target = $region52
    $region51: #{basic_block_forward.5} parent=5 // pred_region
      %s664 = ssub.s32 %s12, 2
      // Predicated region
      $region53: #{basic_block_forward.5} parent=51 // pred_check
        %p665 = pneg %p177
      $region54: #{basic_block_forward.5} parent=51 // pred_check_branch
        %667 = sbr.rel (%p665) target = $region56
      $region55: #{basic_block_forward.5} parent=51 // pred_region
        %p668 = scmp.lt.s32.totalorder %s18, 1
        %s669 = scalar_select %p668, %s18, 1
        %s670 = smul.addr %s669, 32
        %s671 = smul.addr %s670, 8
        %s672 = scalar_lea.vmem %s6, %s671
      $region56: #{basic_block_forward.5} parent=51 // pred_fallthru
        _
    $region52: #{basic_block_forward.5} parent=5 // pred_fallthru
      _
  $region6: #{basic_block_forward.5} parent=0 // loop_footer
    %s16 = sadd.s32 1, %s12
  $region7: #{basic_block_forward.5} parent=0 // loop_footer_branch
    %11 = sbr.rel target = $region3
  $region8: #{basic_block_forward.5} parent=0 // loop_exit
    _

// kernel: basic_block_forward.3
$region0: #{basic_block_forward.3}
  #allocation0 [shape = 'u32[]', space=smem, size = 0x4, offset = 0x4, fixed_abs, tag = 'smem constant byte address 0x4 - core index']
  #allocation1 [shape = 'u32[144,128]{1,0:T(1,128)}', space=vmem, size = 0x12000, scoped, tag = 'internal scratch']
  %s0 = inlined_call_operand.vmem [shape: bf16[2,18,18,128], index: 0, kind: input, shape index: {}]
  %s1 = inlined_call_operand.vmem [shape: bf16[1152,128], index: 1, kind: input, shape index: {}]
  %s2 = inlined_call_operand.vmem [shape: bf16[128,128], index: 2, kind: input, shape index: {}]
  %s3 = inlined_call_operand.vmem [shape: bf16[2,256,128], index: 3, kind: output, shape index: {0}]
  %s4 = inlined_call_operand.vmem [shape: f32[2,2,128], index: 4, kind: output, shape index: {1}]
  %s5 = inlined_call_operand.vmem [shape: bf16[2,256,128], index: 5, kind: output, shape index: {2}]
  %s6 = inlined_call_operand.vmem [shape: f32[2,2,128], index: 6, kind: output, shape index: {3}]
  %7 = xla_tuple %s3, %s4, %s5, %s6
  %s8 = sld [smem:[#allocation0]]
  $region69: #{basic_block_forward.3} parent=0
    _
  %s10 = ssub.s32 1, %s8
  %s11 = scalar_select 0, %s10, %s8
  loop: start=0, step=1, limit=4
  $region2: #{basic_block_forward.3} parent=0 // loop_pre_header
    _
  $region3: #{basic_block_forward.3} parent=0 // loop_header
    %s13 = sphi 0, %s17
    %p14 = scmp.ge.s32.totalorder %s13, 4
    %s23 = sphi 0, %s25
    %s26 = sphi 0, %s23
    %s27 = sphi 0, %s26
    %s43 = sphi 0, %s27
    %s47 = sphi 0, %s47
    %s49 = sphi 0, %s47
    %s50 = sphi 0, %s49
    %s64 = sphi 0, %s50
    %s68 = sphi 0, %s68
    %s70 = sphi 0, %s68
    %s71 = sphi 0, %s70
    %s85 = sphi 0, %s71
    %s91 = sphi 0, %s93
    %s94 = sphi 0, %s91
    %s95 = sphi 0, %s94
    %s111 = sphi 0, %s95
    %s117 = sphi 0, %s119
    %s120 = sphi 0, %s117
    %s121 = sphi 0, %s120
    %s137 = sphi 0, %s121
    %s143 = sphi 0, %s145
    %s146 = sphi 0, %s143
    %s147 = sphi 0, %s146
    %s163 = sphi 0, %s147
    %s169 = sphi 0, %s171
    %s172 = sphi 0, %s169
    %s173 = sphi 0, %s172
    %s189 = sphi 0, %s173
  $region4: #{basic_block_forward.3} parent=0 // loop_header_branch
    %16 = sbr.rel (%p14) target = $region8
  $region5: #{basic_block_forward.3} parent=0 // loop_body
    %s18 = ssub.s32 %s13, 1
    %s19 = ssub.s32 %s13, 2
    %s20 = sadd.s32 %s13, 1
    %s21 = ssub.s32 %s13, %s20
    %p22 = scmp.eq.s32.totalorder %s21, 0
    %s24 = sadd.s32 %s23, 1
    %s25 = scalar_select %p22, %s23, %s24
    %p28 = pneg %p22
    %p29 = scmp.eq.s32.totalorder %s13, 1
    %p30 = por %p28, %p29
    %p31 = scmp.ne.s32.totalorder %s23, %s26
    %p32 = scmp.eq.s32.totalorder %s13, 0
    %p33 = por %p31, %p32
    %p34 = scmp.ne.s32.totalorder %s23, %s26
    %p35 = scmp.eq.s32.totalorder %s18, 1
    %p36 = por %p34, %p35
    %p37 = scmp.ne.s32.totalorder %s26, %s27
    %p38 = scmp.eq.s32.totalorder %s18, 0
    %p39 = por %p37, %p38
    %p40 = scmp.ne.s32.totalorder %s26, %s27
    %p41 = scmp.eq.s32.totalorder %s19, 1
    %p42 = por %p40, %p41
    %p44 = scmp.ne.s32.totalorder %s27, %s43
    %p45 = scmp.eq.s32.totalorder %s19, 0
    %p46 = por %p44, %p45
    %s48 = sadd.s32 %s47, 1
    %p51 = scmp.eq.s32.totalorder %s13, 1
    %p52 = scmp.ne.s32.totalorder %s47, %s49
    %p53 = scmp.eq.s32.totalorder %s13, 0
    %p54 = por %p52, %p53
    %p55 = scmp.ne.s32.totalorder %s47, %s49
    %p56 = scmp.eq.s32.totalorder %s18, 1
    %p57 = por %p55, %p56
    %p58 = scmp.ne.s32.totalorder %s49, %s50
    %p59 = scmp.eq.s32.totalorder %s18, 0
    %p60 = por %p58, %p59
    %p61 = scmp.ne.s32.totalorder %s49, %s50
    %p62 = scmp.eq.s32.totalorder %s19, 1
    %p63 = por %p61, %p62
    %p65 = scmp.ne.s32.totalorder %s50, %s64
    %p66 = scmp.eq.s32.totalorder %s19, 0
    %p67 = por %p65, %p66
    %s69 = sadd.s32 %s68, 1
    %p72 = scmp.eq.s32.totalorder %s13, 1
    %p73 = scmp.ne.s32.totalorder %s68, %s70
    %p74 = scmp.eq.s32.totalorder %s13, 0
    %p75 = por %p73, %p74
    %p76 = scmp.ne.s32.totalorder %s68, %s70
    %p77 = scmp.eq.s32.totalorder %s18, 1
    %p78 = por %p76, %p77
    %p79 = scmp.ne.s32.totalorder %s70, %s71
    %p80 = scmp.eq.s32.totalorder %s18, 0
    %p81 = por %p79, %p80
    %p82 = scmp.ne.s32.totalorder %s70, %s71
    %p83 = scmp.eq.s32.totalorder %s19, 1
    %p84 = por %p82, %p83
    %p86 = scmp.ne.s32.totalorder %s71, %s85
    %p87 = scmp.eq.s32.totalorder %s19, 0
    %p88 = por %p86, %p87
    %s89 = ssub.s32 %s13, %s20
    %p90 = scmp.eq.s32.totalorder %s89, 0
    %s92 = sadd.s32 %s91, 1
    %s93 = scalar_select %p90, %s91, %s92
    %p96 = pneg %p90
    %p97 = scmp.eq.s32.totalorder %s13, 1
    %p98 = por %p96, %p97
    %p99 = scmp.ne.s32.totalorder %s91, %s94
    %p100 = scmp.eq.s32.totalorder %s13, 0
    %p101 = por %p99, %p100
    %p102 = scmp.ne.s32.totalorder %s91, %s94
    %p103 = scmp.eq.s32.totalorder %s18, 1
    %p104 = por %p102, %p103
    %p105 = scmp.ne.s32.totalorder %s94, %s95
    %p106 = scmp.eq.s32.totalorder %s18, 0
    %p107 = por %p105, %p106
    %p108 = scmp.ne.s32.totalorder %s94, %s95
    %p109 = scmp.eq.s32.totalorder %s19, 1
    %p110 = por %p108, %p109
    %p112 = scmp.ne.s32.totalorder %s95, %s111
    %p113 = scmp.eq.s32.totalorder %s19, 0
    %p114 = por %p112, %p113
    %s115 = ssub.s32 %s13, %s20
    %p116 = scmp.eq.s32.totalorder %s115, 0
    %s118 = sadd.s32 %s117, 1
    %s119 = scalar_select %p116, %s117, %s118
    %p122 = pneg %p116
    %p123 = scmp.eq.s32.totalorder %s13, 1
    %p124 = por %p122, %p123
    %p125 = scmp.ne.s32.totalorder %s117, %s120
    %p126 = scmp.eq.s32.totalorder %s13, 0
    %p127 = por %p125, %p126
    %p128 = scmp.ne.s32.totalorder %s117, %s120
    %p129 = scmp.eq.s32.totalorder %s18, 1
    %p130 = por %p128, %p129
    %p131 = scmp.ne.s32.totalorder %s120, %s121
    %p132 = scmp.eq.s32.totalorder %s18, 0
    %p133 = por %p131, %p132
    %p134 = scmp.ne.s32.totalorder %s120, %s121
    %p135 = scmp.eq.s32.totalorder %s19, 1
    %p136 = por %p134, %p135
    %p138 = scmp.ne.s32.totalorder %s121, %s137
    %p139 = scmp.eq.s32.totalorder %s19, 0
    %p140 = por %p138, %p139
    %s141 = ssub.s32 %s13, %s20
    %p142 = scmp.eq.s32.totalorder %s141, 0
    %s144 = sadd.s32 %s143, 1
    %s145 = scalar_select %p142, %s143, %s144
    %p148 = pneg %p142
    %p149 = scmp.eq.s32.totalorder %s13, 1
    %p150 = por %p148, %p149
    %p151 = scmp.ne.s32.totalorder %s143, %s146
    %p152 = scmp.eq.s32.totalorder %s13, 0
    %p153 = por %p151, %p152
    %p154 = scmp.ne.s32.totalorder %s143, %s146
    %p155 = scmp.eq.s32.totalorder %s18, 1
    %p156 = por %p154, %p155
    %p157 = scmp.ne.s32.totalorder %s146, %s147
    %p158 = scmp.eq.s32.totalorder %s18, 0
    %p159 = por %p157, %p158
    %p160 = scmp.ne.s32.totalorder %s146, %s147
    %p161 = scmp.eq.s32.totalorder %s19, 1
    %p162 = por %p160, %p161
    %p164 = scmp.ne.s32.totalorder %s147, %s163
    %p165 = scmp.eq.s32.totalorder %s19, 0
    %p166 = por %p164, %p165
    %s167 = ssub.s32 %s13, %s20
    %p168 = scmp.eq.s32.totalorder %s167, 0
    %s170 = sadd.s32 %s169, 1
    %s171 = scalar_select %p168, %s169, %s170
    %p174 = pneg %p168
    %p175 = scmp.eq.s32.totalorder %s13, 1
    %p176 = por %p174, %p175
    %p177 = scmp.ne.s32.totalorder %s169, %s172
    %p178 = scmp.eq.s32.totalorder %s13, 0
    %p179 = por %p177, %p178
    %p180 = scmp.ne.s32.totalorder %s169, %s172
    %p181 = scmp.eq.s32.totalorder %s18, 1
    %p182 = por %p180, %p181
    %p183 = scmp.ne.s32.totalorder %s172, %s173
    %p184 = scmp.eq.s32.totalorder %s18, 0
    %p185 = por %p183, %p184
    %p186 = scmp.ne.s32.totalorder %s172, %s173
    %p187 = scmp.eq.s32.totalorder %s19, 1
    %p188 = por %p186, %p187
    %p190 = scmp.ne.s32.totalorder %s173, %s189
    %p191 = scmp.eq.s32.totalorder %s19, 0
    %p192 = por %p190, %p191
    %p193 = scmp.le.s32.totalorder 1, %s13
    %p194 = scmp.lt.s32.totalorder %s13, 3
    %p195 = pnand %p193, %p194
    %p196 = pneg %p195
    // Predicated region
    $region9: #{basic_block_forward.3} parent=5 // pred_check
      _
    $region10: #{basic_block_forward.3} parent=5 // pred_check_branch
      %198 = sbr.rel (%p195) target = $region12
    $region11: #{basic_block_forward.3} parent=5 // pred_region
      %s199 = ssub.s32 %s13, 1
      // Predicated region
      $region13: #{basic_block_forward.3} parent=11 // pred_check
        %p200 = pneg %p60
      $region14: #{basic_block_forward.3} parent=11 // pred_check_branch
        %202 = sbr.rel (%p200) target = $region16
      $region15: #{basic_block_forward.3} parent=11 // pred_region
        _
      $region16: #{basic_block_forward.3} parent=11 // pred_fallthru
        _
      // Predicated region
      $region17: #{basic_block_forward.3} parent=11 // pred_check
        %p203 = pneg %p81
      $region18: #{basic_block_forward.3} parent=11 // pred_check_branch
        %205 = sbr.rel (%p203) target = $region20
      $region19: #{basic_block_forward.3} parent=11 // pred_region
        _
      $region20: #{basic_block_forward.3} parent=11 // pred_fallthru
        _
    $region12: #{basic_block_forward.3} parent=5 // pred_fallthru
      _
    %p206 = scmp.lt.s32.totalorder %s13, 2
    // Predicated region
    $region21: #{basic_block_forward.3} parent=5 // pred_check
      %p207 = pneg %p206
    $region22: #{basic_block_forward.3} parent=5 // pred_check_branch
      %209 = sbr.rel (%p207) target = $region24
    $region23: #{basic_block_forward.3} parent=5 // pred_region
      // Predicated region
      $region25: #{basic_block_forward.3} parent=23 // pred_check
        %p210 = pneg %p33
      $region26: #{basic_block_forward.3} parent=23 // pred_check_branch
        %212 = sbr.rel (%p210) target = $region28
      $region27: #{basic_block_forward.3} parent=23 // pred_region
        %p213 = scmp.lt.s32.totalorder %s13, 1
        %s214 = scalar_select %p213, %s13, 1
        %s215 = smul.addr %s214, 54
        %s216 = smul.addr %s215, 4
        %s217 = scalar_lea.vmem %s0, %s216
      $region28: #{basic_block_forward.3} parent=23 // pred_fallthru
        _
    $region24: #{basic_block_forward.3} parent=5 // pred_fallthru
      _
    %p218 = scmp.le.s32.totalorder 1, %s13
    %p219 = scmp.lt.s32.totalorder %s13, 3
    %p220 = pnand %p218, %p219
    %p221 = pneg %p220
    // Predicated region
    $region29: #{basic_block_forward.3} parent=5 // pred_check
      _
    $region30: #{basic_block_forward.3} parent=5 // pred_check_branch
      %223 = sbr.rel (%p220) target = $region32
    $region31: #{basic_block_forward.3} parent=5 // pred_region
      %s224 = ssub.s32 %s13, 1
      %p225 = scmp.lt.s32.totalorder %s18, 1
      %s226 = scalar_select %p225, %s18, 1
      %s227 = smul.addr %s226, 54
      %s228 = smul.addr %s227, 4
      %s229 = scalar_lea.vmem %s0, %s228
      %p230 = pneg %p39
      %p231 = pneg %p36
      %p232 = pneg %p60
      %p233 = pneg %p57
      %p234 = pneg %p81
      %p235 = pneg %p78
      %p236 = pneg %p107
      %p237 = pneg %p104
      %p238 = scmp.lt.s32.totalorder %s18, 1
      %s239 = scalar_select %p238, %s18, 1
      %s240 = smul.addr %s239, 32
      %s241 = smul.addr %s240, 4
      %s242 = scalar_lea.vmem %s3, %s241
      %p243 = pneg %p133
      %p244 = pneg %p130
      %p245 = scmp.lt.s32.totalorder %s18, 1
      %s246 = scalar_select %p245, %s18, 1
      %s247 = smul.addr %s246, 2
      %s248 = scalar_lea.vmem %s4, %s247
      %p249 = pneg %p159
      %p250 = pneg %p156
      %p251 = scmp.lt.s32.totalorder %s18, 1
      %s252 = scalar_select %p251, %s18, 1
      %s253 = smul.addr %s252, 32
      %s254 = smul.addr %s253, 4
      %s255 = scalar_lea.vmem %s5, %s254
      %p256 = pneg %p185
      %p257 = pneg %p182
      %p258 = scmp.lt.s32.totalorder %s18, 1
      %s259 = scalar_select %p258, %s18, 1
      %s260 = smul.addr %s259, 2
      %s261 = scalar_lea.vmem %s6, %s260
      %p262 = scmp.lt.s32.totalorder %s18, 1
      %s263 = scalar_select %p262, %s18, 1
      %s264 = smul.addr %s263, 54
      %s265 = smul.addr %s264, 4
      %s266 = scalar_lea.vmem %s0, %s265
      %p267 = scmp.lt.s32.totalorder %s18, 1
      %s268 = scalar_select %p267, %s18, 1
      %s269 = smul.addr %s268, 32
      %s270 = smul.addr %s269, 4
      %s271 = scalar_lea.vmem %s3, %s270
      %p272 = scmp.lt.s32.totalorder %s18, 1
      %s273 = scalar_select %p272, %s18, 1
      %s274 = smul.addr %s273, 2
      %s275 = scalar_lea.vmem %s4, %s274
      %p276 = scmp.lt.s32.totalorder %s18, 1
      %s277 = scalar_select %p276, %s18, 1
      %s278 = smul.addr %s277, 32
      %s279 = smul.addr %s278, 4
      %s280 = scalar_lea.vmem %s5, %s279
      %p281 = scmp.lt.s32.totalorder %s18, 1
      %s282 = scalar_select %p281, %s18, 1
      %s283 = smul.addr %s282, 2
      %s284 = scalar_lea.vmem %s6, %s283
      %v286 = vld [vmem:[%s266] sm:$0xf]
      %v287 = vld [vmem:[%s266 + $0x4] sm:$0xf]
      %v288 = vld [vmem:[%s266 + $0x8] sm:$0x1]
      %v289 = vld [vmem:[%s266 + $0xc] sm:$0xf]
      %v290 = vld [vmem:[%s266 + $0x10] sm:$0xf]
      %v291 = vld [vmem:[%s266 + $0x14] sm:$0x1]
      %v292 = vld [vmem:[%s266 + $0x18] sm:$0xf]
      %v293 = vld [vmem:[%s266 + $0x1c] sm:$0xf]
      %v294 = vld [vmem:[%s266 + $0x20] sm:$0x1]
      %v295 = vld [vmem:[%s266 + $0x24] sm:$0xf]
      %v296 = vld [vmem:[%s266 + $0x28] sm:$0xf]
      %v297 = vld [vmem:[%s266 + $0x2c] sm:$0x1]
      %v298 = vld [vmem:[%s266 + $0x30] sm:$0xf]
      %v299 = vld [vmem:[%s266 + $0x34] sm:$0xf]
      %v300 = vld [vmem:[%s266 + $0x38] sm:$0x1]
      %v301 = vld [vmem:[%s266 + $0x3c] sm:$0xf]
      %v302 = vld [vmem:[%s266 + $0x40] sm:$0xf]
      %v303 = vld [vmem:[%s266 + $0x44] sm:$0x1]
      %v304 = vld [vmem:[%s266 + $0x48] sm:$0xf]
      %v305 = vld [vmem:[%s266 + $0x4c] sm:$0xf]
      %v306 = vld [vmem:[%s266 + $0x50] sm:$0x1]
      %v307 = vld [vmem:[%s266 + $0x54] sm:$0xf]
      %v308 = vld [vmem:[%s266 + $0x58] sm:$0xf]
      %v309 = vld [vmem:[%s266 + $0x5c] sm:$0x1]
      %v310 = vld [vmem:[%s266 + $0x60] sm:$0xf]
      %v311 = vld [vmem:[%s266 + $0x64] sm:$0xf]
      %v312 = vld [vmem:[%s266 + $0x68] sm:$0x1]
      %v313 = vld [vmem:[%s266 + $0x6c] sm:$0xf]
      %v314 = vld [vmem:[%s266 + $0x70] sm:$0xf]
      %v315 = vld [vmem:[%s266 + $0x74] sm:$0x1]
      %v316 = vld [vmem:[%s266 + $0x78] sm:$0xf]
      %v317 = vld [vmem:[%s266 + $0x7c] sm:$0xf]
      %v318 = vld [vmem:[%s266 + $0x80] sm:$0x1]
      %v319 = vld [vmem:[%s266 + $0x84] sm:$0xf]
      %v320 = vld [vmem:[%s266 + $0x88] sm:$0xf]
      %v321 = vld [vmem:[%s266 + $0x8c] sm:$0x1]
      %v322 = vld [vmem:[%s266 + $0x90] sm:$0xf]
      %v323 = vld [vmem:[%s266 + $0x94] sm:$0xf]
      %v324 = vld [vmem:[%s266 + $0x98] sm:$0x1]
      %v325 = vld [vmem:[%s266 + $0x9c] sm:$0xf]
      %v326 = vld [vmem:[%s266 + $0xa0] sm:$0xf]
      %v327 = vld [vmem:[%s266 + $0xa4] sm:$0x1]
      %v328 = vld [vmem:[%s266 + $0xa8] sm:$0xf]
      %v329 = vld [vmem:[%s266 + $0xac] sm:$0xf]
      %v330 = vld [vmem:[%s266 + $0xb0] sm:$0x1]
      %v331 = vld [vmem:[%s266 + $0xb4] sm:$0xf]
      %v332 = vld [vmem:[%s266 + $0xb8] sm:$0xf]
      %v333 = vld [vmem:[%s266 + $0xbc] sm:$0x1]
      %v334 = vld [vmem:[%s266 + $0xc0] sm:$0xf]
      %v335 = vld [vmem:[%s266 + $0xc4] sm:$0xf]
      %v336 = vld [vmem:[%s266 + $0xc8] sm:$0x1]
      %v337 = vld [vmem:[%s266 + $0xcc] sm:$0xf]
      %v338 = vld [vmem:[%s266 + $0xd0] sm:$0xf]
      %v339 = vld [vmem:[%s266 + $0xd4] sm:$0x1]
      %vm340 = vsmask.f32 3328
      %vm341 = vsmask.f32 7440
      %vm342 = vmor %vm340, %vm341
      %v344 = vshrl.u32 %v286, 16
      %v346 = vrot.slane %v344, 4
      %v347 = vshll.u32 %v286, 16
      %v349 = vrot.slane %v347, 5
      %v350 = vor.u32 %v346, %v349
      %v351 = vrot.slane %v350, 4
      %v353 = vshll.u32 %v287, 16
      %v355 = vrot.slane %v353, 5
      %v356 = vsel %vm342, %v351, %v355
      %v357 = vshrl.u32 %v287, 16
      %v359 = vrot.slane %v357, 4
      %v360 = vor.u32 %v359, %v355
      %v361 = vrot.slane %v360, 4
      %v363 = vshll.u32 %v288, 16
      %v365 = vrot.slane %v363, 5
      %v366 = vsel %vm342, %v361, %v365
      %v368 = vshrl.u32 %v289, 16
      %v370 = vrot.slane %v368, 4
      %v371 = vshll.u32 %v289, 16
      %v373 = vrot.slane %v371, 5
      %v374 = vor.u32 %v370, %v373
      %v375 = vrot.slane %v374, 4
      %v377 = vshll.u32 %v290, 16
      %v379 = vrot.slane %v377, 5
      %v380 = vsel %vm342, %v375, %v379
      %v381 = vshrl.u32 %v290, 16
      %v383 = vrot.slane %v381, 4
      %v384 = vor.u32 %v383, %v379
      %v385 = vrot.slane %v384, 4
      %v387 = vshll.u32 %v291, 16
      %v389 = vrot.slane %v387, 5
      %v390 = vsel %vm342, %v385, %v389
      %v392 = vshrl.u32 %v292, 16
      %v394 = vrot.slane %v392, 4
      %v395 = vshll.u32 %v292, 16
      %v397 = vrot.slane %v395, 5
      %v398 = vor.u32 %v394, %v397
      %v399 = vrot.slane %v398, 4
      %v401 = vshll.u32 %v293, 16
      %v403 = vrot.slane %v401, 5
      %v404 = vsel %vm342, %v399, %v403
      %v405 = vshrl.u32 %v293, 16
      %v407 = vrot.slane %v405, 4
      %v408 = vor.u32 %v407, %v403
      %v409 = vrot.slane %v408, 4
      %v411 = vshll.u32 %v294, 16
      %v413 = vrot.slane %v411, 5
      %v414 = vsel %vm342, %v409, %v413
      %v416 = vshrl.u32 %v295, 16
      %v418 = vrot.slane %v416, 4
      %v419 = vshll.u32 %v295, 16
      %v421 = vrot.slane %v419, 5
      %v422 = vor.u32 %v418, %v421
      %v423 = vrot.slane %v422, 4
      %v425 = vshll.u32 %v296, 16
      %v427 = vrot.slane %v425, 5
      %v428 = vsel %vm342, %v423, %v427
      %v429 = vshrl.u32 %v296, 16
      %v431 = vrot.slane %v429, 4
      %v432 = vor.u32 %v431, %v427
      %v433 = vrot.slane %v432, 4
      %v435 = vshll.u32 %v297, 16
      %v437 = vrot.slane %v435, 5
      %v438 = vsel %vm342, %v433, %v437
      %v440 = vshrl.u32 %v298, 16
      %v442 = vrot.slane %v440, 4
      %v443 = vshll.u32 %v298, 16
      %v445 = vrot.slane %v443, 5
      %v446 = vor.u32 %v442, %v445
      %v447 = vrot.slane %v446, 4
      %v449 = vshll.u32 %v299, 16
      %v451 = vrot.slane %v449, 5
      %v452 = vsel %vm342, %v447, %v451
      %v453 = vshrl.u32 %v299, 16
      %v455 = vrot.slane %v453, 4
      %v456 = vor.u32 %v455, %v451
      %v457 = vrot.slane %v456, 4
      %v459 = vshll.u32 %v300, 16
      %v461 = vrot.slane %v459, 5
      %v462 = vsel %vm342, %v457, %v461
      %v464 = vshrl.u32 %v301, 16
      %v466 = vrot.slane %v464, 4
      %v467 = vshll.u32 %v301, 16
      %v469 = vrot.slane %v467, 5
      %v470 = vor.u32 %v466, %v469
      %v471 = vrot.slane %v470, 4
      %v473 = vshll.u32 %v302, 16
      %v475 = vrot.slane %v473, 5
      %v476 = vsel %vm342, %v471, %v475
      %v477 = vshrl.u32 %v302, 16
      %v479 = vrot.slane %v477, 4
      %v480 = vor.u32 %v479, %v475
      %v481 = vrot.slane %v480, 4
      %v483 = vshll.u32 %v303, 16
      %v485 = vrot.slane %v483, 5
      %v486 = vsel %vm342, %v481, %v485
      %v488 = vshrl.u32 %v304, 16
      %v490 = vrot.slane %v488, 4
      %v491 = vshll.u32 %v304, 16
      %v493 = vrot.slane %v491, 5
      %v494 = vor.u32 %v490, %v493
      %v495 = vrot.slane %v494, 4
      %v497 = vshll.u32 %v305, 16
      %v499 = vrot.slane %v497, 5
      %v500 = vsel %vm342, %v495, %v499
      %v501 = vshrl.u32 %v305, 16
      %v503 = vrot.slane %v501, 4
      %v504 = vor.u32 %v503, %v499
      %v505 = vrot.slane %v504, 4
      %v507 = vshll.u32 %v306, 16
      %v509 = vrot.slane %v507, 5
      %v510 = vsel %vm342, %v505, %v509
      %v512 = vshrl.u32 %v307, 16
      %v514 = vrot.slane %v512, 4
      %v515 = vshll.u32 %v307, 16
      %v517 = vrot.slane %v515, 5
      %v518 = vor.u32 %v514, %v517
      %v519 = vrot.slane %v518, 4
      %v521 = vshll.u32 %v308, 16
      %v523 = vrot.slane %v521, 5
      %v524 = vsel %vm342, %v519, %v523
      %v525 = vshrl.u32 %v308, 16
      %v527 = vrot.slane %v525, 4
      %v528 = vor.u32 %v527, %v523
      %v529 = vrot.slane %v528, 4
      %v531 = vshll.u32 %v309, 16
      %v533 = vrot.slane %v531, 5
      %v534 = vsel %vm342, %v529, %v533
      %v536 = vshrl.u32 %v310, 16
      %v538 = vrot.slane %v536, 4
      %v539 = vshll.u32 %v310, 16
      %v541 = vrot.slane %v539, 5
      %v542 = vor.u32 %v538, %v541
      %v543 = vrot.slane %v542, 4
      %v545 = vshll.u32 %v311, 16
      %v547 = vrot.slane %v545, 5
      %v548 = vsel %vm342, %v543, %v547
      %v549 = vshrl.u32 %v311, 16
      %v551 = vrot.slane %v549, 4
      %v552 = vor.u32 %v551, %v547
      %v553 = vrot.slane %v552, 4
      %v555 = vshll.u32 %v312, 16
      %v557 = vrot.slane %v555, 5
      %v558 = vsel %vm342, %v553, %v557
      %v560 = vshrl.u32 %v313, 16
      %v562 = vrot.slane %v560, 4
      %v563 = vshll.u32 %v313, 16
      %v565 = vrot.slane %v563, 5
      %v566 = vor.u32 %v562, %v565
      %v567 = vrot.slane %v566, 4
      %v569 = vshll.u32 %v314, 16
      %v571 = vrot.slane %v569, 5
      %v572 = vsel %vm342, %v567, %v571
      %v573 = vshrl.u32 %v314, 16
      %v575 = vrot.slane %v573, 4
      %v576 = vor.u32 %v575, %v571
      %v577 = vrot.slane %v576, 4
      %v579 = vshll.u32 %v315, 16
      %v581 = vrot.slane %v579, 5
      %v582 = vsel %vm342, %v577, %v581
      %v584 = vshrl.u32 %v316, 16
      %v586 = vrot.slane %v584, 4
      %v587 = vshll.u32 %v316, 16
      %v589 = vrot.slane %v587, 5
      %v590 = vor.u32 %v586, %v589
      %v591 = vrot.slane %v590, 4
      %v593 = vshll.u32 %v317, 16
      %v595 = vrot.slane %v593, 5
      %v596 = vsel %vm342, %v591, %v595
      %v597 = vshrl.u32 %v317, 16
      %v599 = vrot.slane %v597, 4
      %v600 = vor.u32 %v599, %v595
      %v601 = vrot.slane %v600, 4
      %v603 = vshll.u32 %v318, 16
      %v605 = vrot.slane %v603, 5
      %v606 = vsel %vm342, %v601, %v605
      %v608 = vshrl.u32 %v319, 16
      %v610 = vrot.slane %v608, 4
      %v611 = vshll.u32 %v319, 16
      %v613 = vrot.slane %v611, 5
      %v614 = vor.u32 %v610, %v613
      %v615 = vrot.slane %v614, 4
      %v617 = vshll.u32 %v320, 16
      %v619 = vrot.slane %v617, 5
      %v620 = vsel %vm342, %v615, %v619
      %v621 = vshrl.u32 %v320, 16
      %v623 = vrot.slane %v621, 4
      %v624 = vor.u32 %v623, %v619
      %v625 = vrot.slane %v624, 4
      %v627 = vshll.u32 %v321, 16
      %v629 = vrot.slane %v627, 5
      %v630 = vsel %vm342, %v625, %v629
      %v632 = vshrl.u32 %v322, 16
      %v634 = vrot.slane %v632, 4
      %v635 = vshll.u32 %v322, 16
      %v637 = vrot.slane %v635, 5
      %v638 = vor.u32 %v634, %v637
      %v639 = vrot.slane %v638, 4
      %v641 = vshll.u32 %v323, 16
      %v643 = vrot.slane %v641, 5
      %v644 = vsel %vm342, %v639, %v643
      %v645 = vshrl.u32 %v323, 16
      %v647 = vrot.slane %v645, 4
      %v648 = vor.u32 %v647, %v643
      %v649 = vrot.slane %v648, 4
      %v651 = vshll.u32 %v324, 16
      %v653 = vrot.slane %v651, 5
      %v654 = vsel %vm342, %v649, %v653
      %v656 = vshrl.u32 %v325, 16
      %v658 = vrot.slane %v656, 4
      %v659 = vshll.u32 %v325, 16
      %v661 = vrot.slane %v659, 5
      %v662 = vor.u32 %v658, %v661
      %v663 = vrot.slane %v662, 4
      %v665 = vshll.u32 %v326, 16
      %v667 = vrot.slane %v665, 5
      %v668 = vsel %vm342, %v663, %v667
      %v669 = vshrl.u32 %v326, 16
      %v671 = vrot.slane %v669, 4
      %v672 = vor.u32 %v671, %v667
      %v673 = vrot.slane %v672, 4
      %v675 = vshll.u32 %v327, 16
      %v677 = vrot.slane %v675, 5
      %v678 = vsel %vm342, %v673, %v677
      %v680 = vshrl.u32 %v328, 16
      %v682 = vrot.slane %v680, 4
      %v683 = vshll.u32 %v328, 16
      %v685 = vrot.slane %v683, 5
      %v686 = vor.u32 %v682, %v685
      %v687 = vrot.slane %v686, 4
      %v689 = vshll.u32 %v329, 16
      %v691 = vrot.slane %v689, 5
      %v692 = vsel %vm342, %v687, %v691
      %v693 = vshrl.u32 %v329, 16
      %v695 = vrot.slane %v693, 4
      %v696 = vor.u32 %v695, %v691
      %v697 = vrot.slane %v696, 4
      %v699 = vshll.u32 %v330, 16
      %v701 = vrot.slane %v699, 5
      %v702 = vsel %vm342, %v697, %v701
      %v704 = vshrl.u32 %v331, 16
      %v706 = vrot.slane %v704, 4
      %v707 = vshll.u32 %v331, 16
      %v709 = vrot.slane %v707, 5
      %v710 = vor.u32 %v706, %v709
      %v711 = vrot.slane %v710, 4
      %v713 = vshll.u32 %v332, 16
      %v715 = vrot.slane %v713, 5
      %v716 = vsel %vm342, %v711, %v715
      %v717 = vshrl.u32 %v332, 16
      %v719 = vrot.slane %v717, 4
      %v720 = vor.u32 %v719, %v715
      %v721 = vrot.slane %v720, 4
      %v723 = vshll.u32 %v333, 16
      %v725 = vrot.slane %v723, 5
      %v726 = vsel %vm342, %v721, %v725
      %vm775 = vcmask 1042432
      %vm776 = vcmask 1046532
      %vm777 = vmor %vm775, %vm776
      %v778 = vrot.slane %v286, 5
      %v779 = vrot.slane %v778, 4
      %v780 = vrot.slane %v287, 5
      %v781 = vsel %vm777, %v779, %v780
      %v782 = vrot.slane %v780, 4
      %v783 = vrot.slane %v288, 5
      %v784 = vsel %vm777, %v782, %v783
      %v785 = vrot.slane %v289, 5
      %v786 = vrot.slane %v785, 4
      %v787 = vrot.slane %v290, 5
      %v788 = vsel %vm777, %v786, %v787
      %v789 = vrot.slane %v787, 4
      %v790 = vrot.slane %v291, 5
      %v791 = vsel %vm777, %v789, %v790
      %v792 = vrot.slane %v292, 5
      %v793 = vrot.slane %v792, 4
      %v794 = vrot.slane %v293, 5
      %v795 = vsel %vm777, %v793, %v794
      %v796 = vrot.slane %v794, 4
      %v797 = vrot.slane %v294, 5
      %v798 = vsel %vm777, %v796, %v797
      %v799 = vrot.slane %v295, 5
      %v800 = vrot.slane %v799, 4
      %v801 = vrot.slane %v296, 5
      %v802 = vsel %vm777, %v800, %v801
      %v803 = vrot.slane %v801, 4
      %v804 = vrot.slane %v297, 5
      %v805 = vsel %vm777, %v803, %v804
      %v806 = vrot.slane %v298, 5
      %v807 = vrot.slane %v806, 4
      %v808 = vrot.slane %v299, 5
      %v809 = vsel %vm777, %v807, %v808
      %v810 = vrot.slane %v808, 4
      %v811 = vrot.slane %v300, 5
      %v812 = vsel %vm777, %v810, %v811
      %v813 = vrot.slane %v301, 5
      %v814 = vrot.slane %v813, 4
      %v815 = vrot.slane %v302, 5
      %v816 = vsel %vm777, %v814, %v815
      %v817 = vrot.slane %v815, 4
      %v818 = vrot.slane %v303, 5
      %v819 = vsel %vm777, %v817, %v818
      %v820 = vrot.slane %v304, 5
      %v821 = vrot.slane %v820, 4
      %v822 = vrot.slane %v305, 5
      %v823 = vsel %vm777, %v821, %v822
      %v824 = vrot.slane %v822, 4
      %v825 = vrot.slane %v306, 5
      %v826 = vsel %vm777, %v824, %v825
      %v827 = vrot.slane %v307, 5
      %v828 = vrot.slane %v827, 4
      %v829 = vrot.slane %v308, 5
      %v830 = vsel %vm777, %v828, %v829
      %v831 = vrot.slane %v829, 4
      %v832 = vrot.slane %v309, 5
      %v833 = vsel %vm777, %v831, %v832
      %v834 = vrot.slane %v310, 5
      %v835 = vrot.slane %v834, 4
      %v836 = vrot.slane %v311, 5
      %v837 = vsel %vm777, %v835, %v836
      %v838 = vrot.slane %v836, 4
      %v839 = vrot.slane %v312, 5
      %v840 = vsel %vm777, %v838, %v839
      %v841 = vrot.slane %v313, 5
      %v842 = vrot.slane %v841, 4
      %v843 = vrot.slane %v314, 5
      %v844 = vsel %vm777, %v842, %v843
      %v845 = vrot.slane %v843, 4
      %v846 = vrot.slane %v315, 5
      %v847 = vsel %vm777, %v845, %v846
      %v848 = vrot.slane %v316, 5
      %v849 = vrot.slane %v848, 4
      %v850 = vrot.slane %v317, 5
      %v851 = vsel %vm777, %v849, %v850
      %v852 = vrot.slane %v850, 4
      %v853 = vrot.slane %v318, 5
      %v854 = vsel %vm777, %v852, %v853
      %v855 = vrot.slane %v319, 5
      %v856 = vrot.slane %v855, 4
      %v857 = vrot.slane %v320, 5
      %v858 = vsel %vm777, %v856, %v857
      %v859 = vrot.slane %v857, 4
      %v860 = vrot.slane %v321, 5
      %v861 = vsel %vm777, %v859, %v860
      %v862 = vrot.slane %v322, 5
      %v863 = vrot.slane %v862, 4
      %v864 = vrot.slane %v323, 5
      %v865 = vsel %vm777, %v863, %v864
      %v866 = vrot.slane %v864, 4
      %v867 = vrot.slane %v324, 5
      %v868 = vsel %vm777, %v866, %v867
      %v869 = vrot.slane %v325, 5
      %v870 = vrot.slane %v869, 4
      %v871 = vrot.slane %v326, 5
      %v872 = vsel %vm777, %v870, %v871
      %v873 = vrot.slane %v871, 4
      %v874 = vrot.slane %v327, 5
      %v875 = vsel %vm777, %v873, %v874
      %v876 = vrot.slane %v328, 5
      %v877 = vrot.slane %v876, 4
      %v878 = vrot.slane %v329, 5
      %v879 = vsel %vm777, %v877, %v878
      %v880 = vrot.slane %v878, 4
      %v881 = vrot.slane %v330, 5
      %v882 = vsel %vm777, %v880, %v881
      %v883 = vrot.slane %v331, 5
      %v884 = vrot.slane %v883, 4
      %v885 = vrot.slane %v332, 5
      %v886 = vsel %vm777, %v884, %v885
      %v887 = vrot.slane %v885, 4
      %v888 = vrot.slane %v333, 5
      %v889 = vsel %vm777, %v887, %v888
      %v891 = vshrl.u32 %v334, 16
      %v893 = vrot.slane %v891, 4
      %v894 = vshll.u32 %v334, 16
      %v896 = vrot.slane %v894, 5
      %v897 = vor.u32 %v893, %v896
      %v898 = vrot.slane %v897, 4
      %v900 = vshll.u32 %v335, 16
      %v902 = vrot.slane %v900, 5
      %v903 = vsel %vm342, %v898, %v902
      %v904 = vshrl.u32 %v335, 16
      %v906 = vrot.slane %v904, 4
      %v907 = vor.u32 %v906, %v902
      %v908 = vrot.slane %v907, 4
      %v910 = vshll.u32 %v336, 16
      %v912 = vrot.slane %v910, 5
      %v913 = vsel %vm342, %v908, %v912
      %v917 = vrot.slane %v334, 5
      %v918 = vrot.slane %v917, 4
      %v919 = vrot.slane %v335, 5
      %v920 = vsel %vm777, %v918, %v919
      %v921 = vrot.slane %v919, 4
      %v922 = vrot.slane %v336, 5
      %v923 = vsel %vm777, %v921, %v922
      %v925 = vshrl.u32 %v337, 16
      %v927 = vrot.slane %v925, 4
      %v928 = vshll.u32 %v337, 16
      %v930 = vrot.slane %v928, 5
      %v931 = vor.u32 %v927, %v930
      %v932 = vrot.slane %v931, 4
      %v934 = vshll.u32 %v338, 16
      %v936 = vrot.slane %v934, 5
      %v937 = vsel %vm342, %v932, %v936
      %v938 = vshrl.u32 %v338, 16
      %v940 = vrot.slane %v938, 4
      %v941 = vor.u32 %v940, %v936
      %v942 = vrot.slane %v941, 4
      %v944 = vshll.u32 %v339, 16
      %v946 = vrot.slane %v944, 5
      %v947 = vsel %vm342, %v942, %v946
      %v951 = vrot.slane %v337, 5
      %v952 = vrot.slane %v951, 4
      %v953 = vrot.slane %v338, 5
      %v954 = vsel %vm777, %v952, %v953
      %v955 = vrot.slane %v953, 4
      %v956 = vrot.slane %v339, 5
      %v957 = vsel %vm777, %v955, %v956
      %v958 = vunpack.c.l.b16 %v286
      %v959 = vunpack.c.l.b16 %v287
      %v960 = vunpack.c.l.b16 %v289
      %v961 = vunpack.c.l.b16 %v290
      %v962 = vunpack.c.l.b16 %v292
      %v963 = vunpack.c.l.b16 %v293
      %v964 = vunpack.c.l.b16 %v295
      %v965 = vunpack.c.l.b16 %v296
      %v966 = vunpack.c.l.b16 %v298
      %v967 = vunpack.c.l.b16 %v299
      %v968 = vunpack.c.l.b16 %v301
      %v969 = vunpack.c.l.b16 %v302
      %v970 = vunpack.c.l.b16 %v304
      %v971 = vunpack.c.l.b16 %v305
      %v972 = vunpack.c.l.b16 %v307
      %v973 = vunpack.c.l.b16 %v308
      %v974 = vunpack.c.l.b16 %v310
      %v975 = vunpack.c.l.b16 %v311
      %v976 = vunpack.c.l.b16 %v313
      %v977 = vunpack.c.l.b16 %v314
      %v978 = vunpack.c.l.b16 %v316
      %v979 = vunpack.c.l.b16 %v317
      %v980 = vunpack.c.l.b16 %v319
      %v981 = vunpack.c.l.b16 %v320
      %v982 = vunpack.c.l.b16 %v322
      %v983 = vunpack.c.l.b16 %v323
      %v984 = vunpack.c.l.b16 %v325
      %v985 = vunpack.c.l.b16 %v326
      %v986 = vunpack.c.l.b16 %v328
      %v987 = vunpack.c.l.b16 %v329
      %v988 = vunpack.c.l.b16 %v331
      %v989 = vunpack.c.l.b16 %v332
      %v990 = vpack.c.b16 %v959, %v958
      %v991 = vpack.c.b16 %v961, %v960
      %v992 = vpack.c.b16 %v963, %v962
      %v993 = vpack.c.b16 %v965, %v964
      %v994 = vpack.c.b16 %v967, %v966
      %v995 = vpack.c.b16 %v969, %v968
      %v996 = vpack.c.b16 %v971, %v970
      %v997 = vpack.c.b16 %v973, %v972
      %v998 = vpack.c.b16 %v975, %v974
      %v999 = vpack.c.b16 %v977, %v976
      %v1000 = vpack.c.b16 %v979, %v978
      %v1001 = vpack.c.b16 %v981, %v980
      %v1002 = vpack.c.b16 %v983, %v982
      %v1003 = vpack.c.b16 %v985, %v984
      %v1004 = vpack.c.b16 %v987, %v986
      %v1005 = vpack.c.b16 %v989, %v988
      %v1022 = vunpack.c.l.b16 %v356
      %v1023 = vunpack.c.l.b16 %v366
      %v1024 = vunpack.c.l.b16 %v380
      %v1025 = vunpack.c.l.b16 %v390
      %v1026 = vunpack.c.l.b16 %v404
      %v1027 = vunpack.c.l.b16 %v414
      %v1028 = vunpack.c.l.b16 %v428
      %v1029 = vunpack.c.l.b16 %v438
      %v1030 = vunpack.c.l.b16 %v452
      %v1031 = vunpack.c.l.b16 %v462
      %v1032 = vunpack.c.l.b16 %v476
      %v1033 = vunpack.c.l.b16 %v486
      %v1034 = vunpack.c.l.b16 %v500
      %v1035 = vunpack.c.l.b16 %v510
      %v1036 = vunpack.c.l.b16 %v524
      %v1037 = vunpack.c.l.b16 %v534
      %v1038 = vunpack.c.l.b16 %v548
      %v1039 = vunpack.c.l.b16 %v558
      %v1040 = vunpack.c.l.b16 %v572
      %v1041 = vunpack.c.l.b16 %v582
      %v1042 = vunpack.c.l.b16 %v596
      %v1043 = vunpack.c.l.b16 %v606
      %v1044 = vunpack.c.l.b16 %v620
      %v1045 = vunpack.c.l.b16 %v630
      %v1046 = vunpack.c.l.b16 %v644
      %v1047 = vunpack.c.l.b16 %v654
      %v1048 = vunpack.c.l.b16 %v668
      %v1049 = vunpack.c.l.b16 %v678
      %v1050 = vunpack.c.l.b16 %v692
      %v1051 = vunpack.c.l.b16 %v702
      %v1052 = vunpack.c.l.b16 %v716
      %v1053 = vunpack.c.l.b16 %v726
      %v1054 = vpack.c.b16 %v1023, %v1022
      %v1055 = vpack.c.b16 %v1025, %v1024
      %v1056 = vpack.c.b16 %v1027, %v1026
      %v1057 = vpack.c.b16 %v1029, %v1028
      %v1058 = vpack.c.b16 %v1031, %v1030
      %v1059 = vpack.c.b16 %v1033, %v1032
      %v1060 = vpack.c.b16 %v1035, %v1034
      %v1061 = vpack.c.b16 %v1037, %v1036
      %v1062 = vpack.c.b16 %v1039, %v1038
      %v1063 = vpack.c.b16 %v1041, %v1040
      %v1064 = vpack.c.b16 %v1043, %v1042
      %v1065 = vpack.c.b16 %v1045, %v1044
      %v1066 = vpack.c.b16 %v1047, %v1046
      %v1067 = vpack.c.b16 %v1049, %v1048
      %v1068 = vpack.c.b16 %v1051, %v1050
      %v1069 = vpack.c.b16 %v1053, %v1052
      %v1086 = vunpack.c.l.b16 %v781
      %v1087 = vunpack.c.l.b16 %v784
      %v1088 = vunpack.c.l.b16 %v788
      %v1089 = vunpack.c.l.b16 %v791
      %v1090 = vunpack.c.l.b16 %v795
      %v1091 = vunpack.c.l.b16 %v798
      %v1092 = vunpack.c.l.b16 %v802
      %v1093 = vunpack.c.l.b16 %v805
      %v1094 = vunpack.c.l.b16 %v809
      %v1095 = vunpack.c.l.b16 %v812
      %v1096 = vunpack.c.l.b16 %v816
      %v1097 = vunpack.c.l.b16 %v819
      %v1098 = vunpack.c.l.b16 %v823
      %v1099 = vunpack.c.l.b16 %v826
      %v1100 = vunpack.c.l.b16 %v830
      %v1101 = vunpack.c.l.b16 %v833
      %v1102 = vunpack.c.l.b16 %v837
      %v1103 = vunpack.c.l.b16 %v840
      %v1104 = vunpack.c.l.b16 %v844
      %v1105 = vunpack.c.l.b16 %v847
      %v1106 = vunpack.c.l.b16 %v851
      %v1107 = vunpack.c.l.b16 %v854
      %v1108 = vunpack.c.l.b16 %v858
      %v1109 = vunpack.c.l.b16 %v861
      %v1110 = vunpack.c.l.b16 %v865
      %v1111 = vunpack.c.l.b16 %v868
      %v1112 = vunpack.c.l.b16 %v872
      %v1113 = vunpack.c.l.b16 %v875
      %v1114 = vunpack.c.l.b16 %v879
      %v1115 = vunpack.c.l.b16 %v882
      %v1116 = vunpack.c.l.b16 %v886
      %v1117 = vunpack.c.l.b16 %v889
      %v1118 = vpack.c.b16 %v1087, %v1086
      %v1119 = vpack.c.b16 %v1089, %v1088
      %v1120 = vpack.c.b16 %v1091, %v1090
      %v1121 = vpack.c.b16 %v1093, %v1092
      %v1122 = vpack.c.b16 %v1095, %v1094
      %v1123 = vpack.c.b16 %v1097, %v1096
      %v1124 = vpack.c.b16 %v1099, %v1098
      %v1125 = vpack.c.b16 %v1101, %v1100
      %v1126 = vpack.c.b16 %v1103, %v1102
      %v1127 = vpack.c.b16 %v1105, %v1104
      %v1128 = vpack.c.b16 %v1107, %v1106
      %v1129 = vpack.c.b16 %v1109, %v1108
      %v1130 = vpack.c.b16 %v1111, %v1110
      %v1131 = vpack.c.b16 %v1113, %v1112
      %v1132 = vpack.c.b16 %v1115, %v1114
      %v1133 = vpack.c.b16 %v1117, %v1116
      %v1150 = vunpack.c.l.b16 %v334
      %v1151 = vunpack.c.l.b16 %v335
      %v1152 = vpack.c.b16 %v1151, %v1150
      %v1154 = vunpack.c.l.b16 %v903
      %v1155 = vunpack.c.l.b16 %v913
      %v1156 = vpack.c.b16 %v1155, %v1154
      %v1158 = vunpack.c.l.b16 %v920
      %v1159 = vunpack.c.l.b16 %v923
      %v1160 = vpack.c.b16 %v1159, %v1158
      %v1162 = vunpack.c.l.b16 %v337
      %v1163 = vunpack.c.l.b16 %v338
      %v1164 = vpack.c.b16 %v1163, %v1162
      %v1166 = vunpack.c.l.b16 %v937
      %v1167 = vunpack.c.l.b16 %v947
      %v1168 = vpack.c.b16 %v1167, %v1166
      %v1170 = vunpack.c.l.b16 %v954
      %v1171 = vunpack.c.l.b16 %v957
      %v1172 = vpack.c.b16 %v1171, %v1170
      %v1174 = vld [vmem:[%s1] sm:$0xf]
      %v1175 = vld [vmem:[%s1 + $0x4] sm:$0xf]
      %v1176 = vld [vmem:[%s1 + $0x8] sm:$0xf]
      %v1177 = vld [vmem:[%s1 + $0xc] sm:$0xf]
      %v1178 = vld [vmem:[%s1 + $0x10] sm:$0xf]
      %v1179 = vld [vmem:[%s1 + $0x14] sm:$0xf]
      %v1180 = vld [vmem:[%s1 + $0x18] sm:$0xf]
      %v1181 = vld [vmem:[%s1 + $0x1c] sm:$0xf]
      %v1182 = vld [vmem:[%s1 + $0x20] sm:$0xf]
      %v1183 = vld [vmem:[%s1 + $0x24] sm:$0xf]
      %v1184 = vld [vmem:[%s1 + $0x28] sm:$0xf]
      %v1185 = vld [vmem:[%s1 + $0x2c] sm:$0xf]
      %v1186 = vld [vmem:[%s1 + $0x30] sm:$0xf]
      %v1187 = vld [vmem:[%s1 + $0x34] sm:$0xf]
      %v1188 = vld [vmem:[%s1 + $0x38] sm:$0xf]
      %v1189 = vld [vmem:[%s1 + $0x3c] sm:$0xf]
      %v1190 = vld [vmem:[%s1 + $0x40] sm:$0xf]
      %v1191 = vld [vmem:[%s1 + $0x44] sm:$0xf]
      %v1192 = vld [vmem:[%s1 + $0x48] sm:$0xf]
      %v1193 = vld [vmem:[%s1 + $0x4c] sm:$0xf]
      %v1194 = vld [vmem:[%s1 + $0x50] sm:$0xf]
      %v1195 = vld [vmem:[%s1 + $0x54] sm:$0xf]
      %v1196 = vld [vmem:[%s1 + $0x58] sm:$0xf]
      %v1197 = vld [vmem:[%s1 + $0x5c] sm:$0xf]
      %v1198 = vld [vmem:[%s1 + $0x60] sm:$0xf]
      %v1199 = vld [vmem:[%s1 + $0x64] sm:$0xf]
      %v1200 = vld [vmem:[%s1 + $0x68] sm:$0xf]
      %v1201 = vld [vmem:[%s1 + $0x6c] sm:$0xf]
      %v1202 = vld [vmem:[%s1 + $0x70] sm:$0xf]
      %v1203 = vld [vmem:[%s1 + $0x74] sm:$0xf]
      %v1204 = vld [vmem:[%s1 + $0x78] sm:$0xf]
      %v1205 = vld [vmem:[%s1 + $0x7c] sm:$0xf]
      %v1206 = vld [vmem:[%s1 + $0x80] sm:$0xf]
      %v1207 = vld [vmem:[%s1 + $0x84] sm:$0xf]
      %v1208 = vld [vmem:[%s1 + $0x88] sm:$0xf]
      %v1209 = vld [vmem:[%s1 + $0x8c] sm:$0xf]
      %v1210 = vld [vmem:[%s1 + $0x90] sm:$0xf]
      %v1211 = vld [vmem:[%s1 + $0x94] sm:$0xf]
      %v1212 = vld [vmem:[%s1 + $0x98] sm:$0xf]
      %v1213 = vld [vmem:[%s1 + $0x9c] sm:$0xf]
      %v1214 = vld [vmem:[%s1 + $0xa0] sm:$0xf]
      %v1215 = vld [vmem:[%s1 + $0xa4] sm:$0xf]
      %v1216 = vld [vmem:[%s1 + $0xa8] sm:$0xf]
      %v1217 = vld [vmem:[%s1 + $0xac] sm:$0xf]
      %v1218 = vld [vmem:[%s1 + $0xb0] sm:$0xf]
      %v1219 = vld [vmem:[%s1 + $0xb4] sm:$0xf]
      %v1220 = vld [vmem:[%s1 + $0xb8] sm:$0xf]
      %v1221 = vld [vmem:[%s1 + $0xbc] sm:$0xf]
      %v1222 = vld [vmem:[%s1 + $0xc0] sm:$0xf]
      %v1223 = vld [vmem:[%s1 + $0xc4] sm:$0xf]
      %v1224 = vld [vmem:[%s1 + $0xc8] sm:$0xf]
      %v1225 = vld [vmem:[%s1 + $0xcc] sm:$0xf]
      %v1226 = vld [vmem:[%s1 + $0xd0] sm:$0xf]
      %v1227 = vld [vmem:[%s1 + $0xd4] sm:$0xf]
      %v1228 = vld [vmem:[%s1 + $0xd8] sm:$0xf]
      %v1229 = vld [vmem:[%s1 + $0xdc] sm:$0xf]
      %v1230 = vld [vmem:[%s1 + $0xe0] sm:$0xf]
      %v1231 = vld [vmem:[%s1 + $0xe4] sm:$0xf]
      %v1232 = vld [vmem:[%s1 + $0xe8] sm:$0xf]
      %v1233 = vld [vmem:[%s1 + $0xec] sm:$0xf]
      %v1234 = vld [vmem:[%s1 + $0xf0] sm:$0xf]
      %v1235 = vld [vmem:[%s1 + $0xf4] sm:$0xf]
      %v1236 = vld [vmem:[%s1 + $0xf8] sm:$0xf]
      %v1237 = vld [vmem:[%s1 + $0xfc] sm:$0xf]
      %v1238 = vld [vmem:[%s1 + $0x100] sm:$0xf]
      %v1239 = vld [vmem:[%s1 + $0x104] sm:$0xf]
      %v1240 = vld [vmem:[%s1 + $0x108] sm:$0xf]
      %v1241 = vld [vmem:[%s1 + $0x10c] sm:$0xf]
      %v1242 = vld [vmem:[%s1 + $0x110] sm:$0xf]
      %v1243 = vld [vmem:[%s1 + $0x114] sm:$0xf]
      %v1244 = vld [vmem:[%s1 + $0x118] sm:$0xf]
      %v1245 = vld [vmem:[%s1 + $0x11c] sm:$0xf]
      %v1246 = vld [vmem:[%s1 + $0x120] sm:$0xf]
      %v1247 = vld [vmem:[%s1 + $0x124] sm:$0xf]
      %v1248 = vld [vmem:[%s1 + $0x128] sm:$0xf]
      %v1249 = vld [vmem:[%s1 + $0x12c] sm:$0xf]
      %v1250 = vld [vmem:[%s1 + $0x130] sm:$0xf]
      %v1251 = vld [vmem:[%s1 + $0x134] sm:$0xf]
      %v1252 = vld [vmem:[%s1 + $0x138] sm:$0xf]
      %v1253 = vld [vmem:[%s1 + $0x13c] sm:$0xf]
      %v1254 = vld [vmem:[%s1 + $0x140] sm:$0xf]
      %v1255 = vld [vmem:[%s1 + $0x144] sm:$0xf]
      %v1256 = vld [vmem:[%s1 + $0x148] sm:$0xf]
      %v1257 = vld [vmem:[%s1 + $0x14c] sm:$0xf]
      %v1258 = vld [vmem:[%s1 + $0x150] sm:$0xf]
      %v1259 = vld [vmem:[%s1 + $0x154] sm:$0xf]
      %v1260 = vld [vmem:[%s1 + $0x158] sm:$0xf]
      %v1261 = vld [vmem:[%s1 + $0x15c] sm:$0xf]
      %v1262 = vld [vmem:[%s1 + $0x160] sm:$0xf]
      %v1263 = vld [vmem:[%s1 + $0x164] sm:$0xf]
      %v1264 = vld [vmem:[%s1 + $0x168] sm:$0xf]
      %v1265 = vld [vmem:[%s1 + $0x16c] sm:$0xf]
      %v1266 = vld [vmem:[%s1 + $0x170] sm:$0xf]
      %v1267 = vld [vmem:[%s1 + $0x174] sm:$0xf]
      %v1268 = vld [vmem:[%s1 + $0x178] sm:$0xf]
      %v1269 = vld [vmem:[%s1 + $0x17c] sm:$0xf]
      %v1270 = vld [vmem:[%s1 + $0x180] sm:$0xf]
      %v1271 = vld [vmem:[%s1 + $0x184] sm:$0xf]
      %v1272 = vld [vmem:[%s1 + $0x188] sm:$0xf]
      %v1273 = vld [vmem:[%s1 + $0x18c] sm:$0xf]
      %v1274 = vld [vmem:[%s1 + $0x190] sm:$0xf]
      %v1275 = vld [vmem:[%s1 + $0x194] sm:$0xf]
      %v1276 = vld [vmem:[%s1 + $0x198] sm:$0xf]
      %v1277 = vld [vmem:[%s1 + $0x19c] sm:$0xf]
      %v1278 = vld [vmem:[%s1 + $0x1a0] sm:$0xf]
      %v1279 = vld [vmem:[%s1 + $0x1a4] sm:$0xf]
      %v1280 = vld [vmem:[%s1 + $0x1a8] sm:$0xf]
      %v1281 = vld [vmem:[%s1 + $0x1ac] sm:$0xf]
      %v1282 = vld [vmem:[%s1 + $0x1b0] sm:$0xf]
      %v1283 = vld [vmem:[%s1 + $0x1b4] sm:$0xf]
      %v1284 = vld [vmem:[%s1 + $0x1b8] sm:$0xf]
      %v1285 = vld [vmem:[%s1 + $0x1bc] sm:$0xf]
      %v1286 = vld [vmem:[%s1 + $0x1c0] sm:$0xf]
      %v1287 = vld [vmem:[%s1 + $0x1c4] sm:$0xf]
      %v1288 = vld [vmem:[%s1 + $0x1c8] sm:$0xf]
      %v1289 = vld [vmem:[%s1 + $0x1cc] sm:$0xf]
      %v1290 = vld [vmem:[%s1 + $0x1d0] sm:$0xf]
      %v1291 = vld [vmem:[%s1 + $0x1d4] sm:$0xf]
      %v1292 = vld [vmem:[%s1 + $0x1d8] sm:$0xf]
      %v1293 = vld [vmem:[%s1 + $0x1dc] sm:$0xf]
      %v1294 = vld [vmem:[%s1 + $0x1e0] sm:$0xf]
      %v1295 = vld [vmem:[%s1 + $0x1e4] sm:$0xf]
      %v1296 = vld [vmem:[%s1 + $0x1e8] sm:$0xf]
      %v1297 = vld [vmem:[%s1 + $0x1ec] sm:$0xf]
      %v1298 = vld [vmem:[%s1 + $0x1f0] sm:$0xf]
      %v1299 = vld [vmem:[%s1 + $0x1f4] sm:$0xf]
      %v1300 = vld [vmem:[%s1 + $0x1f8] sm:$0xf]
      %v1301 = vld [vmem:[%s1 + $0x1fc] sm:$0xf]
      %v1302 = vld [vmem:[%s1 + $0x200] sm:$0xf]
      %v1303 = vld [vmem:[%s1 + $0x204] sm:$0xf]
      %v1304 = vld [vmem:[%s1 + $0x208] sm:$0xf]
      %v1305 = vld [vmem:[%s1 + $0x20c] sm:$0xf]
      %v1306 = vld [vmem:[%s1 + $0x210] sm:$0xf]
      %v1307 = vld [vmem:[%s1 + $0x214] sm:$0xf]
      %v1308 = vld [vmem:[%s1 + $0x218] sm:$0xf]
      %v1309 = vld [vmem:[%s1 + $0x21c] sm:$0xf]
      %v1310 = vld [vmem:[%s1 + $0x220] sm:$0xf]
      %v1311 = vld [vmem:[%s1 + $0x224] sm:$0xf]
      %v1312 = vld [vmem:[%s1 + $0x228] sm:$0xf]
      %v1313 = vld [vmem:[%s1 + $0x22c] sm:$0xf]
      %v1314 = vld [vmem:[%s1 + $0x230] sm:$0xf]
      %v1315 = vld [vmem:[%s1 + $0x234] sm:$0xf]
      %v1316 = vld [vmem:[%s1 + $0x238] sm:$0xf]
      %v1317 = vld [vmem:[%s1 + $0x23c] sm:$0xf]
      %v1462 = vunpack.c.l.b16 %v1174
      %v1463 = vunpack.c.l.b16 %v1175
      %v1464 = vunpack.c.l.b16 %v1176
      %v1465 = vunpack.c.l.b16 %v1177
      %v1466 = vunpack.c.l.b16 %v1178
      %v1467 = vunpack.c.l.b16 %v1179
      %v1468 = vunpack.c.l.b16 %v1180
      %v1469 = vunpack.c.l.b16 %v1181
      %v1470 = vunpack.c.l.b16 %v1182
      %v1471 = vunpack.c.l.b16 %v1183
      %v1472 = vunpack.c.l.b16 %v1184
      %v1473 = vunpack.c.l.b16 %v1185
      %v1474 = vunpack.c.l.b16 %v1186
      %v1475 = vunpack.c.l.b16 %v1187
      %v1476 = vunpack.c.l.b16 %v1188
      %v1477 = vunpack.c.l.b16 %v1189
      %v1478 = vunpack.c.l.b16 %v1190
      %v1479 = vunpack.c.l.b16 %v1191
      %v1480 = vunpack.c.l.b16 %v1192
      %v1481 = vunpack.c.l.b16 %v1193
      %v1482 = vunpack.c.l.b16 %v1194
      %v1483 = vunpack.c.l.b16 %v1195
      %v1484 = vunpack.c.l.b16 %v1196
      %v1485 = vunpack.c.l.b16 %v1197
      %v1486 = vunpack.c.l.b16 %v1198
      %v1487 = vunpack.c.l.b16 %v1199
      %v1488 = vunpack.c.l.b16 %v1200
      %v1489 = vunpack.c.l.b16 %v1201
      %v1490 = vunpack.c.l.b16 %v1202
      %v1491 = vunpack.c.l.b16 %v1203
      %v1492 = vunpack.c.l.b16 %v1204
      %v1493 = vunpack.c.l.b16 %v1205
      %v1494 = vunpack.c.l.b16 %v1206
      %v1495 = vunpack.c.l.b16 %v1207
      %v1496 = vunpack.c.l.b16 %v1208
      %v1497 = vunpack.c.l.b16 %v1209
      %v1498 = vunpack.c.l.b16 %v1210
      %v1499 = vunpack.c.l.b16 %v1211
      %v1500 = vunpack.c.l.b16 %v1212
      %v1501 = vunpack.c.l.b16 %v1213
      %v1502 = vunpack.c.l.b16 %v1214
      %v1503 = vunpack.c.l.b16 %v1215
      %v1504 = vunpack.c.l.b16 %v1216
      %v1505 = vunpack.c.l.b16 %v1217
      %v1506 = vunpack.c.l.b16 %v1218
      %v1507 = vunpack.c.l.b16 %v1219
      %v1508 = vunpack.c.l.b16 %v1220
      %v1509 = vunpack.c.l.b16 %v1221
      %v1510 = vunpack.c.l.b16 %v1222
      %v1511 = vunpack.c.l.b16 %v1223
      %v1512 = vunpack.c.l.b16 %v1224
      %v1513 = vunpack.c.l.b16 %v1225
      %v1514 = vunpack.c.l.b16 %v1226
      %v1515 = vunpack.c.l.b16 %v1227
      %v1516 = vunpack.c.l.b16 %v1228
      %v1517 = vunpack.c.l.b16 %v1229
      %v1518 = vunpack.c.l.b16 %v1230
      %v1519 = vunpack.c.l.b16 %v1231
      %v1520 = vunpack.c.l.b16 %v1232
      %v1521 = vunpack.c.l.b16 %v1233
      %v1522 = vunpack.c.l.b16 %v1234
      %v1523 = vunpack.c.l.b16 %v1235
      %v1524 = vunpack.c.l.b16 %v1236
      %v1525 = vunpack.c.l.b16 %v1237
      %v1526 = vunpack.c.l.b16 %v1238
      %v1527 = vunpack.c.l.b16 %v1239
      %v1528 = vunpack.c.l.b16 %v1240
      %v1529 = vunpack.c.l.b16 %v1241
      %v1530 = vunpack.c.l.b16 %v1242
      %v1531 = vunpack.c.l.b16 %v1243
      %v1532 = vunpack.c.l.b16 %v1244
      %v1533 = vunpack.c.l.b16 %v1245
      %v1534 = vunpack.c.l.b16 %v1246
      %v1535 = vunpack.c.l.b16 %v1247
      %v1536 = vunpack.c.l.b16 %v1248
      %v1537 = vunpack.c.l.b16 %v1249
      %v1538 = vunpack.c.l.b16 %v1250
      %v1539 = vunpack.c.l.b16 %v1251
      %v1540 = vunpack.c.l.b16 %v1252
      %v1541 = vunpack.c.l.b16 %v1253
      %v1542 = vunpack.c.l.b16 %v1254
      %v1543 = vunpack.c.l.b16 %v1255
      %v1544 = vunpack.c.l.b16 %v1256
      %v1545 = vunpack.c.l.b16 %v1257
      %v1546 = vunpack.c.l.b16 %v1258
      %v1547 = vunpack.c.l.b16 %v1259
      %v1548 = vunpack.c.l.b16 %v1260
      %v1549 = vunpack.c.l.b16 %v1261
      %v1550 = vunpack.c.l.b16 %v1262
      %v1551 = vunpack.c.l.b16 %v1263
      %v1552 = vunpack.c.l.b16 %v1264
      %v1553 = vunpack.c.l.b16 %v1265
      %v1554 = vunpack.c.l.b16 %v1266
      %v1555 = vunpack.c.l.b16 %v1267
      %v1556 = vunpack.c.l.b16 %v1268
      %v1557 = vunpack.c.l.b16 %v1269
      %v1558 = vunpack.c.l.b16 %v1270
      %v1559 = vunpack.c.l.b16 %v1271
      %v1560 = vunpack.c.l.b16 %v1272
      %v1561 = vunpack.c.l.b16 %v1273
      %v1562 = vunpack.c.l.b16 %v1274
      %v1563 = vunpack.c.l.b16 %v1275
      %v1564 = vunpack.c.l.b16 %v1276
      %v1565 = vunpack.c.l.b16 %v1277
      %v1566 = vunpack.c.l.b16 %v1278
      %v1567 = vunpack.c.l.b16 %v1279
      %v1568 = vunpack.c.l.b16 %v1280
      %v1569 = vunpack.c.l.b16 %v1281
      %v1570 = vunpack.c.l.b16 %v1282
      %v1571 = vunpack.c.l.b16 %v1283
      %v1572 = vunpack.c.l.b16 %v1284
      %v1573 = vunpack.c.l.b16 %v1285
      %v1574 = vunpack.c.l.b16 %v1286
      %v1575 = vunpack.c.l.b16 %v1287
      %v1576 = vunpack.c.l.b16 %v1288
      %v1577 = vunpack.c.l.b16 %v1289
      %v1578 = vunpack.c.l.b16 %v1290
      %v1579 = vunpack.c.l.b16 %v1291
      %v1580 = vunpack.c.l.b16 %v1292
      %v1581 = vunpack.c.l.b16 %v1293
      %v1582 = vunpack.c.l.b16 %v1294
      %v1583 = vunpack.c.l.b16 %v1295
      %v1584 = vunpack.c.l.b16 %v1296
      %v1585 = vunpack.c.l.b16 %v1297
      %v1586 = vunpack.c.l.b16 %v1298
      %v1587 = vunpack.c.l.b16 %v1299
      %v1588 = vunpack.c.l.b16 %v1300
      %v1589 = vunpack.c.l.b16 %v1301
      %v1590 = vunpack.c.l.b16 %v1302
      %v1591 = vunpack.c.l.b16 %v1303
      %v1592 = vunpack.c.l.b16 %v1304
      %v1593 = vunpack.c.l.b16 %v1305
      %v1594 = vunpack.c.l.b16 %v1306
      %v1595 = vunpack.c.l.b16 %v1307
      %v1596 = vunpack.c.l.b16 %v1308
      %v1597 = vunpack.c.l.b16 %v1309
      %v1598 = vunpack.c.l.b16 %v1310
      %v1599 = vunpack.c.l.b16 %v1311
      %v1600 = vunpack.c.l.b16 %v1312
      %v1601 = vunpack.c.l.b16 %v1313
      %v1602 = vunpack.c.l.b16 %v1314
      %v1603 = vunpack.c.l.b16 %v1315
      %v1604 = vunpack.c.l.b16 %v1316
      %v1605 = vunpack.c.l.b16 %v1317
      %v1606 = vpack.c.b16 %v1463, %v1462
      %v1607 = vpack.c.b16 %v1465, %v1464
      %v1608 = vpack.c.b16 %v1467, %v1466
      %v1609 = vpack.c.b16 %v1469, %v1468
      %v1610 = vpack.c.b16 %v1471, %v1470
      %v1611 = vpack.c.b16 %v1473, %v1472
      %v1612 = vpack.c.b16 %v1475, %v1474
      %v1613 = vpack.c.b16 %v1477, %v1476
      %v1614 = vpack.c.b16 %v1479, %v1478
      %v1615 = vpack.c.b16 %v1481, %v1480
      %v1616 = vpack.c.b16 %v1483, %v1482
      %v1617 = vpack.c.b16 %v1485, %v1484
      %v1618 = vpack.c.b16 %v1487, %v1486
      %v1619 = vpack.c.b16 %v1489, %v1488
      %v1620 = vpack.c.b16 %v1491, %v1490
      %v1621 = vpack.c.b16 %v1493, %v1492
      %v1622 = vpack.c.b16 %v1495, %v1494
      %v1623 = vpack.c.b16 %v1497, %v1496
      %v1624 = vpack.c.b16 %v1499, %v1498
      %v1625 = vpack.c.b16 %v1501, %v1500
      %v1626 = vpack.c.b16 %v1503, %v1502
      %v1627 = vpack.c.b16 %v1505, %v1504
      %v1628 = vpack.c.b16 %v1507, %v1506
      %v1629 = vpack.c.b16 %v1509, %v1508
      %v1630 = vpack.c.b16 %v1511, %v1510
      %v1631 = vpack.c.b16 %v1513, %v1512
      %v1632 = vpack.c.b16 %v1515, %v1514
      %v1633 = vpack.c.b16 %v1517, %v1516
      %v1634 = vpack.c.b16 %v1519, %v1518
      %v1635 = vpack.c.b16 %v1521, %v1520
      %v1636 = vpack.c.b16 %v1523, %v1522
      %v1637 = vpack.c.b16 %v1525, %v1524
      %v1638 = vpack.c.b16 %v1527, %v1526
      %v1639 = vpack.c.b16 %v1529, %v1528
      %v1640 = vpack.c.b16 %v1531, %v1530
      %v1641 = vpack.c.b16 %v1533, %v1532
      %v1642 = vpack.c.b16 %v1535, %v1534
      %v1643 = vpack.c.b16 %v1537, %v1536
      %v1644 = vpack.c.b16 %v1539, %v1538
      %v1645 = vpack.c.b16 %v1541, %v1540
      %v1646 = vpack.c.b16 %v1543, %v1542
      %v1647 = vpack.c.b16 %v1545, %v1544
      %v1648 = vpack.c.b16 %v1547, %v1546
      %v1649 = vpack.c.b16 %v1549, %v1548
      %v1650 = vpack.c.b16 %v1551, %v1550
      %v1651 = vpack.c.b16 %v1553, %v1552
      %v1652 = vpack.c.b16 %v1555, %v1554
      %v1653 = vpack.c.b16 %v1557, %v1556
      %v1654 = vpack.c.b16 %v1559, %v1558
      %v1655 = vpack.c.b16 %v1561, %v1560
      %v1656 = vpack.c.b16 %v1563, %v1562
      %v1657 = vpack.c.b16 %v1565, %v1564
      %v1658 = vpack.c.b16 %v1567, %v1566
      %v1659 = vpack.c.b16 %v1569, %v1568
      %v1660 = vpack.c.b16 %v1571, %v1570
      %v1661 = vpack.c.b16 %v1573, %v1572
      %v1662 = vpack.c.b16 %v1575, %v1574
      %v1663 = vpack.c.b16 %v1577, %v1576
      %v1664 = vpack.c.b16 %v1579, %v1578
      %v1665 = vpack.c.b16 %v1581, %v1580
      %v1666 = vpack.c.b16 %v1583, %v1582
      %v1667 = vpack.c.b16 %v1585, %v1584
      %v1668 = vpack.c.b16 %v1587, %v1586
      %v1669 = vpack.c.b16 %v1589, %v1588
      %v1670 = vpack.c.b16 %v1591, %v1590
      %v1671 = vpack.c.b16 %v1593, %v1592
      %v1672 = vpack.c.b16 %v1595, %v1594
      %v1673 = vpack.c.b16 %v1597, %v1596
      %v1674 = vpack.c.b16 %v1599, %v1598
      %v1675 = vpack.c.b16 %v1601, %v1600
      %v1676 = vpack.c.b16 %v1603, %v1602
      %v1677 = vpack.c.b16 %v1605, %v1604
      %1750 = vmatprep.subr.bf16.mxu0 0
      %1751 = vmatpush1.bf16.msra.mxu0 %v1606
      %1752 = vmatprep.subr.bf16.mxu0 0
      %1753 = vmatpush1.bf16.msra.mxu0 %v1607
      %1754 = vmatprep.subr.bf16.mxu0 0
      %1755 = vmatpush1.bf16.msra.mxu0 %v1608
      %1756 = vmatprep.subr.bf16.mxu0 0
      %1757 = vmatpush1.bf16.msra.mxu0 %v1609
      %1758 = vmatprep.subr.bf16.mxu0 0
      %1759 = vmatpush1.bf16.msra.mxu0 %v1610
      %1760 = vmatprep.subr.bf16.mxu0 0
      %1761 = vmatpush1.bf16.msra.mxu0 %v1611
      %1762 = vmatprep.subr.bf16.mxu0 0
      %1763 = vmatpush1.bf16.msra.mxu0 %v1612
      %1764 = vmatprep.subr.bf16.mxu0 0
      %1765 = vmatpush1.bf16.msra.mxu0 %v1613
      %1766 = vmatprep.subr.bf16.mxu0 0
      %1767 = vmatpush1.bf16.msra.mxu0 %v1614
      %1768 = vmatprep.subr.bf16.mxu0 0
      %1769 = vmatpush1.bf16.msra.mxu0 %v1615
      %1770 = vmatprep.subr.bf16.mxu0 0
      %1771 = vmatpush1.bf16.msra.mxu0 %v1616
      %1772 = vmatprep.subr.bf16.mxu0 0
      %1773 = vmatpush1.bf16.msra.mxu0 %v1617
      %1774 = vmatprep.subr.bf16.mxu0 0
      %1775 = vmatpush1.bf16.msra.mxu0 %v1618
      %1776 = vmatprep.subr.bf16.mxu0 0
      %1777 = vmatpush1.bf16.msra.mxu0 %v1619
      %1778 = vmatprep.subr.bf16.mxu0 0
      %1779 = vmatpush1.bf16.msra.mxu0 %v1620
      %1780 = vmatprep.subr.bf16.mxu0 0
      %1781 = vmatpush1.bf16.msra.mxu0 %v1621
      %1782 = vmatprep.mubr.bf16.mxu0 %v1054
      %1783 = vmatmul.mubr.bf16.gmra.mrb[0].mxu0 %v990
      %v1784 = vpop.f32.mrb[0].mxu0
      %v1785 = vadd.f32 0.0, %v1784
      %v1786 = vpop.f32.mrb[0].mxu0
      %v1787 = vpop.f32.mrb[0].mxu0
      %v1788 = vadd.f32 0.0, %v1787
      %v1789 = vpop.f32.mrb[0].mxu0
      %1790 = vmatprep.mubr.bf16.mxu0 %v1055
      %1791 = vmatmul.mubr.bf16.gmra.mrb[0].mxu0 %v991
      %v1792 = vpop.f32.mrb[0].mxu0
      %v1793 = vadd.f32 0.0, %v1792
      %v1794 = vpop.f32.mrb[0].mxu0
      %v1795 = vpop.f32.mrb[0].mxu0
      %v1796 = vadd.f32 0.0, %v1795
      %v1797 = vpop.f32.mrb[0].mxu0
      %1798 = vmatprep.mubr.bf16.mxu0 %v1056
      %1799 = vmatmul.mubr.bf16.gmra.mrb[0].mxu0 %v992
      %v1800 = vpop.f32.mrb[0].mxu0
      %v1801 = vadd.f32 0.0, %v1800
      %v1802 = vpop.f32.mrb[0].mxu0
      %v1803 = vpop.f32.mrb[0].mxu0
      %v1804 = vadd.f32 0.0, %v1803
      %v1805 = vpop.f32.mrb[0].mxu0
      %1806 = vmatprep.mubr.bf16.mxu0 %v1057
      %1807 = vmatmul.mubr.bf16.gmra.mrb[0].mxu0 %v993
      %v1808 = vpop.f32.mrb[0].mxu0
      %v1809 = vadd.f32 0.0, %v1808
      %v1810 = vpop.f32.mrb[0].mxu0
      %v1811 = vpop.f32.mrb[0].mxu0
      %v1812 = vadd.f32 0.0, %v1811
      %v1813 = vpop.f32.mrb[0].mxu0
      %1814 = vmatprep.mubr.bf16.mxu0 %v1058
      %1815 = vmatmul.mubr.bf16.gmra.mrb[0].mxu0 %v994
      %v1816 = vpop.f32.mrb[0].mxu0
      %v1817 = vadd.f32 0.0, %v1816
      %v1818 = vpop.f32.mrb[0].mxu0
      %v1819 = vpop.f32.mrb[0].mxu0
      %v1820 = vadd.f32 0.0, %v1819
      %v1821 = vpop.f32.mrb[0].mxu0
      %1822 = vmatprep.mubr.bf16.mxu0 %v1059
      %1823 = vmatmul.mubr.bf16.gmra.mrb[0].mxu0 %v995
      %v1824 = vpop.f32.mrb[0].mxu0
      %v1825 = vadd.f32 0.0, %v1824
      %v1826 = vpop.f32.mrb[0].mxu0
      %v1827 = vpop.f32.mrb[0].mxu0
      %v1828 = vadd.f32 0.0, %v1827
      %v1829 = vpop.f32.mrb[0].mxu0
      %1830 = vmatprep.mubr.bf16.mxu0 %v1060
      %1831 = vmatmul.mubr.bf16.gmra.mrb[0].mxu0 %v996
      %v1832 = vpop.f32.mrb[0].mxu0
      %v1833 = vadd.f32 0.0, %v1832
      %v1834 = vpop.f32.mrb[0].mxu0
      %v1835 = vpop.f32.mrb[0].mxu0
      %v1836 = vadd.f32 0.0, %v1835
      %v1837 = vpop.f32.mrb[0].mxu0
      %1838 = vmatprep.mubr.bf16.mxu0 %v1061
      %1839 = vmatmul.mubr.bf16.gmra.mrb[0].mxu0 %v997
      %v1840 = vpop.f32.mrb[0].mxu0
      %v1841 = vadd.f32 0.0, %v1840
      %v1842 = vpop.f32.mrb[0].mxu0
      %v1843 = vpop.f32.mrb[0].mxu0
      %v1844 = vadd.f32 0.0, %v1843
      %v1845 = vpop.f32.mrb[0].mxu0
      %1846 = vmatprep.mubr.bf16.mxu0 %v1062
      %1847 = vmatmul.mubr.bf16.gmra.mrb[0].mxu0 %v998
      %v1848 = vpop.f32.mrb[0].mxu0
      %v1849 = vadd.f32 0.0, %v1848
      %v1850 = vpop.f32.mrb[0].mxu0
      %v1851 = vpop.f32.mrb[0].mxu0
      %v1852 = vadd.f32 0.0, %v1851
      %v1853 = vpop.f32.mrb[0].mxu0
      %1854 = vmatprep.mubr.bf16.mxu0 %v1063
      %1855 = vmatmul.mubr.bf16.gmra.mrb[0].mxu0 %v999
      %v1856 = vpop.f32.mrb[0].mxu0
      %v1857 = vadd.f32 0.0, %v1856
      %v1858 = vpop.f32.mrb[0].mxu0
      %v1859 = vpop.f32.mrb[0].mxu0
      %v1860 = vadd.f32 0.0, %v1859
      %v1861 = vpop.f32.mrb[0].mxu0
      %1862 = vmatprep.mubr.bf16.mxu0 %v1064
      %1863 = vmatmul.mubr.bf16.gmra.mrb[0].mxu0 %v1000
      %v1864 = vpop.f32.mrb[0].mxu0
      %v1865 = vadd.f32 0.0, %v1864
      %v1866 = vpop.f32.mrb[0].mxu0
      %v1867 = vpop.f32.mrb[0].mxu0
      %v1868 = vadd.f32 0.0, %v1867
      %v1869 = vpop.f32.mrb[0].mxu0
      %1870 = vmatprep.mubr.bf16.mxu0 %v1065
      %1871 = vmatmul.mubr.bf16.gmra.mrb[0].mxu0 %v1001
      %v1872 = vpop.f32.mrb[0].mxu0
      %v1873 = vadd.f32 0.0, %v1872
      %v1874 = vpop.f32.mrb[0].mxu0
      %v1875 = vpop.f32.mrb[0].mxu0
      %v1876 = vadd.f32 0.0, %v1875
      %v1877 = vpop.f32.mrb[0].mxu0
      %1878 = vmatprep.mubr.bf16.mxu0 %v1066
      %1879 = vmatmul.mubr.bf16.gmra.mrb[0].mxu0 %v1002
      %v1880 = vpop.f32.mrb[0].mxu0
      %v1881 = vadd.f32 0.0, %v1880
      %v1882 = vpop.f32.mrb[0].mxu0
      %v1883 = vpop.f32.mrb[0].mxu0
      %v1884 = vadd.f32 0.0, %v1883
      %v1885 = vpop.f32.mrb[0].mxu0
      %1886 = vmatprep.mubr.bf16.mxu0 %v1067
      %1887 = vmatmul.mubr.bf16.gmra.mrb[0].mxu0 %v1003
      %v1888 = vpop.f32.mrb[0].mxu0
      %v1889 = vadd.f32 0.0, %v1888
      %v1890 = vpop.f32.mrb[0].mxu0
      %v1891 = vpop.f32.mrb[0].mxu0
      %v1892 = vadd.f32 0.0, %v1891
      %v1893 = vpop.f32.mrb[0].mxu0
      %1894 = vmatprep.mubr.bf16.mxu0 %v1068
      %1895 = vmatmul.mubr.bf16.gmra.mrb[0].mxu0 %v1004
      %v1896 = vpop.f32.mrb[0].mxu0
      %v1897 = vadd.f32 0.0, %v1896
      %v1898 = vpop.f32.mrb[0].mxu0
      %v1899 = vpop.f32.mrb[0].mxu0
      %v1900 = vadd.f32 0.0, %v1899
      %v1901 = vpop.f32.mrb[0].mxu0
      %1902 = vmatprep.mubr.bf16.mxu0 %v1069
      %1903 = vmatmul.mubr.bf16.gmra.mrb[0].mxu0 %v1005
      %v1904 = vpop.f32.mrb[0].mxu0
      %v1905 = vadd.f32 0.0, %v1904
      %v1906 = vpop.f32.mrb[0].mxu0
      %v1907 = vpop.f32.mrb[0].mxu0
      %v1908 = vadd.f32 0.0, %v1907
      %v1909 = vpop.f32.mrb[0].mxu0
      %1910 = vdwg.mxu0
      %1911 = vmatprep.subr.bf16.mxu0 0
      %1912 = vmatpush1.bf16.msra.mxu0 %v1622
      %1913 = vmatprep.subr.bf16.mxu0 0
      %1914 = vmatpush1.bf16.msra.mxu0 %v1623
      %1915 = vmatprep.subr.bf16.mxu0 0
      %1916 = vmatpush1.bf16.msra.mxu0 %v1624
      %1917 = vmatprep.subr.bf16.mxu0 0
      %1918 = vmatpush1.bf16.msra.mxu0 %v1625
      %1919 = vmatprep.subr.bf16.mxu0 0
      %1920 = vmatpush1.bf16.msra.mxu0 %v1626
      %1921 = vmatprep.subr.bf16.mxu0 0
      %1922 = vmatpush1.bf16.msra.mxu0 %v1627
      %1923 = vmatprep.subr.bf16.mxu0 0
      %1924 = vmatpush1.bf16.msra.mxu0 %v1628
      %1925 = vmatprep.subr.bf16.mxu0 0
      %1926 = vmatpush1.bf16.msra.mxu0 %v1629
      %1927 = vmatprep.subr.bf16.mxu0 0
      %1928 = vmatpush1.bf16.msra.mxu0 %v1630
      %1929 = vmatprep.subr.bf16.mxu0 0
      %1930 = vmatpush1.bf16.msra.mxu0 %v1631
      %1931 = vmatprep.subr.bf16.mxu0 0
      %1932 = vmatpush1.bf16.msra.mxu0 %v1632
      %1933 = vmatprep.subr.bf16.mxu0 0
      %1934 = vmatpush1.bf16.msra.mxu0 %v1633
      %1935 = vmatprep.subr.bf16.mxu0 0
      %1936 = vmatpush1.bf16.msra.mxu0 %v1634
      %1937 = vmatprep.subr.bf16.mxu0 0
      %1938 = vmatpush1.bf16.msra.mxu0 %v1635
      %1939 = vmatprep.subr.bf16.mxu0 0
      %1940 = vmatpush1.bf16.msra.mxu0 %v1636
      %1941 = vmatprep.subr.bf16.mxu0 0
      %1942 = vmatpush1.bf16.msra.mxu0 %v1637
      %1943 = vmatprep.mubr.bf16.mxu0 %v991
      %1944 = vmatmul.mubr.bf16.gmra.mrb[0].mxu0 %v1118
      %v1945 = vpop.f32.mrb[0].mxu0
      %v1946 = vadd.f32 %v1785, %v1945
      %v1947 = vpop.f32.mrb[0].mxu0
      %v1948 = vpop.f32.mrb[0].mxu0
      %v1949 = vadd.f32 %v1788, %v1948
      %v1950 = vpop.f32.mrb[0].mxu0
      %1951 = vmatprep.mubr.bf16.mxu0 %v992
      %1952 = vmatmul.mubr.bf16.gmra.mrb[0].mxu0 %v1119
      %v1953 = vpop.f32.mrb[0].mxu0
      %v1954 = vadd.f32 %v1793, %v1953
      %v1955 = vpop.f32.mrb[0].mxu0
      %v1956 = vpop.f32.mrb[0].mxu0
      %v1957 = vadd.f32 %v1796, %v1956
      %v1958 = vpop.f32.mrb[0].mxu0
      %1959 = vmatprep.mubr.bf16.mxu0 %v993
      %1960 = vmatmul.mubr.bf16.gmra.mrb[0].mxu0 %v1120
      %v1961 = vpop.f32.mrb[0].mxu0
      %v1962 = vadd.f32 %v1801, %v1961
      %v1963 = vpop.f32.mrb[0].mxu0
      %v1964 = vpop.f32.mrb[0].mxu0
      %v1965 = vadd.f32 %v1804, %v1964
      %v1966 = vpop.f32.mrb[0].mxu0
      %1967 = vmatprep.mubr.bf16.mxu0 %v994
      %1968 = vmatmul.mubr.bf16.gmra.mrb[0].mxu0 %v1121
      %v1969 = vpop.f32.mrb[0].mxu0
      %v1970 = vadd.f32 %v1809, %v1969
      %v1971 = vpop.f32.mrb[0].mxu0
      %v1972 = vpop.f32.mrb[0].mxu0
      %v1973 = vadd.f32 %v1812, %v1972
      %v1974 = vpop.f32.mrb[0].mxu0
      %1975 = vmatprep.mubr.bf16.mxu0 %v995
      %1976 = vmatmul.mubr.bf16.gmra.mrb[0].mxu0 %v1122
      %v1977 = vpop.f32.mrb[0].mxu0
      %v1978 = vadd.f32 %v1817, %v1977
      %v1979 = vpop.f32.mrb[0].mxu0
      %v1980 = vpop.f32.mrb[0].mxu0
      %v1981 = vadd.f32 %v1820, %v1980
      %v1982 = vpop.f32.mrb[0].mxu0
      %1983 = vmatprep.mubr.bf16.mxu0 %v996
      %1984 = vmatmul.mubr.bf16.gmra.mrb[0].mxu0 %v1123
      %v1985 = vpop.f32.mrb[0].mxu0
      %v1986 = vadd.f32 %v1825, %v1985
      %v1987 = vpop.f32.mrb[0].mxu0
      %v1988 = vpop.f32.mrb[0].mxu0
      %v1989 = vadd.f32 %v1828, %v1988
      %v1990 = vpop.f32.mrb[0].mxu0
      %1991 = vmatprep.mubr.bf16.mxu0 %v997
      %1992 = vmatmul.mubr.bf16.gmra.mrb[0].mxu0 %v1124
      %v1993 = vpop.f32.mrb[0].mxu0
      %v1994 = vadd.f32 %v1833, %v1993
      %v1995 = vpop.f32.mrb[0].mxu0
      %v1996 = vpop.f32.mrb[0].mxu0
      %v1997 = vadd.f32 %v1836, %v1996
      %v1998 = vpop.f32.mrb[0].mxu0
      %1999 = vmatprep.mubr.bf16.mxu0 %v998
      %2000 = vmatmul.mubr.bf16.gmra.mrb[0].mxu0 %v1125
      %v2001 = vpop.f32.mrb[0].mxu0
      %v2002 = vadd.f32 %v1841, %v2001
      %v2003 = vpop.f32.mrb[0].mxu0
      %v2004 = vpop.f32.mrb[0].mxu0
      %v2005 = vadd.f32 %v1844, %v2004
      %v2006 = vpop.f32.mrb[0].mxu0
      %2007 = vmatprep.mubr.bf16.mxu0 %v999
      %2008 = vmatmul.mubr.bf16.gmra.mrb[0].mxu0 %v1126
      %v2009 = vpop.f32.mrb[0].mxu0
      %v2010 = vadd.f32 %v1849, %v2009
      %v2011 = vpop.f32.mrb[0].mxu0
      %v2012 = vpop.f32.mrb[0].mxu0
      %v2013 = vadd.f32 %v1852, %v2012
      %v2014 = vpop.f32.mrb[0].mxu0
      %2015 = vmatprep.mubr.bf16.mxu0 %v1000
      %2016 = vmatmul.mubr.bf16.gmra.mrb[0].mxu0 %v1127
      %v2017 = vpop.f32.mrb[0].mxu0
      %v2018 = vadd.f32 %v1857, %v2017
      %v2019 = vpop.f32.mrb[0].mxu0
      %v2020 = vpop.f32.mrb[0].mxu0
      %v2021 = vadd.f32 %v1860, %v2020
      %v2022 = vpop.f32.mrb[0].mxu0
      %2023 = vmatprep.mubr.bf16.mxu0 %v1001
      %2024 = vmatmul.mubr.bf16.gmra.mrb[0].mxu0 %v1128
      %v2025 = vpop.f32.mrb[0].mxu0
      %v2026 = vadd.f32 %v1865, %v2025
      %v2027 = vpop.f32.mrb[0].mxu0
      %v2028 = vpop.f32.mrb[0].mxu0
      %v2029 = vadd.f32 %v1868, %v2028
      %v2030 = vpop.f32.mrb[0].mxu0
      %2031 = vmatprep.mubr.bf16.mxu0 %v1002
      %2032 = vmatmul.mubr.bf16.gmra.mrb[0].mxu0 %v1129
      %v2033 = vpop.f32.mrb[0].mxu0
      %v2034 = vadd.f32 %v1873, %v2033
      %v2035 = vpop.f32.mrb[0].mxu0
      %v2036 = vpop.f32.mrb[0].mxu0
      %v2037 = vadd.f32 %v1876, %v2036
      %v2038 = vpop.f32.mrb[0].mxu0
      %2039 = vmatprep.mubr.bf16.mxu0 %v1003
      %2040 = vmatmul.mubr.bf16.gmra.mrb[0].mxu0 %v1130
      %v2041 = vpop.f32.mrb[0].mxu0
      %v2042 = vadd.f32 %v1881, %v2041
      %v2043 = vpop.f32.mrb[0].mxu0
      %v2044 = vpop.f32.mrb[0].mxu0
      %v2045 = vadd.f32 %v1884, %v2044
      %v2046 = vpop.f32.mrb[0].mxu0
      %2047 = vmatprep.mubr.bf16.mxu0 %v1004
      %2048 = vmatmul.mubr.bf16.gmra.mrb[0].mxu0 %v1131
      %v2049 = vpop.f32.mrb[0].mxu0
      %v2050 = vadd.f32 %v1889, %v2049
      %v2051 = vpop.f32.mrb[0].mxu0
      %v2052 = vpop.f32.mrb[0].mxu0
      %v2053 = vadd.f32 %v1892, %v2052
      %v2054 = vpop.f32.mrb[0].mxu0
      %2055 = vmatprep.mubr.bf16.mxu0 %v1005
      %2056 = vmatmul.mubr.bf16.gmra.mrb[0].mxu0 %v1132
      %v2057 = vpop.f32.mrb[0].mxu0
      %v2058 = vadd.f32 %v1897, %v2057
      %v2059 = vpop.f32.mrb[0].mxu0
      %v2060 = vpop.f32.mrb[0].mxu0
      %v2061 = vadd.f32 %v1900, %v2060
      %v2062 = vpop.f32.mrb[0].mxu0
      %2063 = vmatprep.mubr.bf16.mxu0 %v1152
      %2064 = vmatmul.mubr.bf16.gmra.mrb[0].mxu0 %v1133
      %v2065 = vpop.f32.mrb[0].mxu0
      %v2066 = vadd.f32 %v1905, %v2065
      %v2067 = vpop.f32.mrb[0].mxu0
      %v2068 = vpop.f32.mrb[0].mxu0
      %v2069 = vadd.f32 %v1908, %v2068
      %v2070 = vpop.f32.mrb[0].mxu0
      %2071 = vdwg.mxu0
      %2072 = vmatprep.subr.bf16.mxu0 0
      %2073 = vmatpush1.bf16.msra.mxu0 %v1638
      %2074 = vmatprep.subr.bf16.mxu0 0
      %2075 = vmatpush1.bf16.msra.mxu0 %v1639
      %2076 = vmatprep.subr.bf16.mxu0 0
      %2077 = vmatpush1.bf16.msra.mxu0 %v1640
      %2078 = vmatprep.subr.bf16.mxu0 0
      %2079 = vmatpush1.bf16.msra.mxu0 %v1641
      %2080 = vmatprep.subr.bf16.mxu0 0
      %2081 = vmatpush1.bf16.msra.mxu0 %v1642
      %2082 = vmatprep.subr.bf16.mxu0 0
      %2083 = vmatpush1.bf16.msra.mxu0 %v1643
      %2084 = vmatprep.subr.bf16.mxu0 0
      %2085 = vmatpush1.bf16.msra.mxu0 %v1644
      %2086 = vmatprep.subr.bf16.mxu0 0
      %2087 = vmatpush1.bf16.msra.mxu0 %v1645
      %2088 = vmatprep.subr.bf16.mxu0 0
      %2089 = vmatpush1.bf16.msra.mxu0 %v1646
      %2090 = vmatprep.subr.bf16.mxu0 0
      %2091 = vmatpush1.bf16.msra.mxu0 %v1647
      %2092 = vmatprep.subr.bf16.mxu0 0
      %2093 = vmatpush1.bf16.msra.mxu0 %v1648
      %2094 = vmatprep.subr.bf16.mxu0 0
      %2095 = vmatpush1.bf16.msra.mxu0 %v1649
      %2096 = vmatprep.subr.bf16.mxu0 0
      %2097 = vmatpush1.bf16.msra.mxu0 %v1650
      %2098 = vmatprep.subr.bf16.mxu0 0
      %2099 = vmatpush1.bf16.msra.mxu0 %v1651
      %2100 = vmatprep.subr.bf16.mxu0 0
      %2101 = vmatpush1.bf16.msra.mxu0 %v1652
      %2102 = vmatprep.subr.bf16.mxu0 0
      %2103 = vmatpush1.bf16.msra.mxu0 %v1653
      %2104 = vmatprep.mubr.bf16.mxu0 %v1119
      %2105 = vmatmul.mubr.bf16.gmra.mrb[0].mxu0 %v1055
      %v2106 = vpop.f32.mrb[0].mxu0
      %v2107 = vadd.f32 %v1946, %v2106
      %v2108 = vpop.f32.mrb[0].mxu0
      %v2109 = vpop.f32.mrb[0].mxu0
      %v2110 = vadd.f32 %v1949, %v2109
      %v2111 = vpop.f32.mrb[0].mxu0
      %2112 = vmatprep.mubr.bf16.mxu0 %v1120
      %2113 = vmatmul.mubr.bf16.gmra.mrb[0].mxu0 %v1056
      %v2114 = vpop.f32.mrb[0].mxu0
      %v2115 = vadd.f32 %v1954, %v2114
      %v2116 = vpop.f32.mrb[0].mxu0
      %v2117 = vpop.f32.mrb[0].mxu0
      %v2118 = vadd.f32 %v1957, %v2117
      %v2119 = vpop.f32.mrb[0].mxu0
      %2120 = vmatprep.mubr.bf16.mxu0 %v1121
      %2121 = vmatmul.mubr.bf16.gmra.mrb[0].mxu0 %v1057
      %v2122 = vpop.f32.mrb[0].mxu0
      %v2123 = vadd.f32 %v1962, %v2122
      %v2124 = vpop.f32.mrb[0].mxu0
      %v2125 = vpop.f32.mrb[0].mxu0
      %v2126 = vadd.f32 %v1965, %v2125
      %v2127 = vpop.f32.mrb[0].mxu0
      %2128 = vmatprep.mubr.bf16.mxu0 %v1122
      %2129 = vmatmul.mubr.bf16.gmra.mrb[0].mxu0 %v1058
      %v2130 = vpop.f32.mrb[0].mxu0
      %v2131 = vadd.f32 %v1970, %v2130
      %v2132 = vpop.f32.mrb[0].mxu0
      %v2133 = vpop.f32.mrb[0].mxu0
      %v2134 = vadd.f32 %v1973, %v2133
      %v2135 = vpop.f32.mrb[0].mxu0
      %2136 = vmatprep.mubr.bf16.mxu0 %v1123
      %2137 = vmatmul.mubr.bf16.gmra.mrb[0].mxu0 %v1059
      %v2138 = vpop.f32.mrb[0].mxu0
      %v2139 = vadd.f32 %v1978, %v2138
      %v2140 = vpop.f32.mrb[0].mxu0
      %v2141 = vpop.f32.mrb[0].mxu0
      %v2142 = vadd.f32 %v1981, %v2141
      %v2143 = vpop.f32.mrb[0].mxu0
      %2144 = vmatprep.mubr.bf16.mxu0 %v1124
      %2145 = vmatmul.mubr.bf16.gmra.mrb[0].mxu0 %v1060
      %v2146 = vpop.f32.mrb[0].mxu0
      %v2147 = vadd.f32 %v1986, %v2146
      %v2148 = vpop.f32.mrb[0].mxu0
      %v2149 = vpop.f32.mrb[0].mxu0
      %v2150 = vadd.f32 %v1989, %v2149
      %v2151 = vpop.f32.mrb[0].mxu0
      %2152 = vmatprep.mubr.bf16.mxu0 %v1125
      %2153 = vmatmul.mubr.bf16.gmra.mrb[0].mxu0 %v1061
      %v2154 = vpop.f32.mrb[0].mxu0
      %v2155 = vadd.f32 %v1994, %v2154
      %v2156 = vpop.f32.mrb[0].mxu0
      %v2157 = vpop.f32.mrb[0].mxu0
      %v2158 = vadd.f32 %v1997, %v2157
      %v2159 = vpop.f32.mrb[0].mxu0
      %2160 = vmatprep.mubr.bf16.mxu0 %v1126
      %2161 = vmatmul.mubr.bf16.gmra.mrb[0].mxu0 %v1062
      %v2162 = vpop.f32.mrb[0].mxu0
      %v2163 = vadd.f32 %v2002, %v2162
      %v2164 = vpop.f32.mrb[0].mxu0
      %v2165 = vpop.f32.mrb[0].mxu0
      %v2166 = vadd.f32 %v2005, %v2165
      %v2167 = vpop.f32.mrb[0].mxu0
      %2168 = vmatprep.mubr.bf16.mxu0 %v1127
      %2169 = vmatmul.mubr.bf16.gmra.mrb[0].mxu0 %v1063
      %v2170 = vpop.f32.mrb[0].mxu0
      %v2171 = vadd.f32 %v2010, %v2170
      %v2172 = vpop.f32.mrb[0].mxu0
      %v2173 = vpop.f32.mrb[0].mxu0
      %v2174 = vadd.f32 %v2013, %v2173
      %v2175 = vpop.f32.mrb[0].mxu0
      %2176 = vmatprep.mubr.bf16.mxu0 %v1128
      %2177 = vmatmul.mubr.bf16.gmra.mrb[0].mxu0 %v1064
      %v2178 = vpop.f32.mrb[0].mxu0
      %v2179 = vadd.f32 %v2018, %v2178
      %v2180 = vpop.f32.mrb[0].mxu0
      %v2181 = vpop.f32.mrb[0].mxu0
      %v2182 = vadd.f32 %v2021, %v2181
      %v2183 = vpop.f32.mrb[0].mxu0
      %2184 = vmatprep.mubr.bf16.mxu0 %v1129
      %2185 = vmatmul.mubr.bf16.gmra.mrb[0].mxu0 %v1065
      %v2186 = vpop.f32.mrb[0].mxu0
      %v2187 = vadd.f32 %v2026, %v2186
      %v2188 = vpop.f32.mrb[0].mxu0
      %v2189 = vpop.f32.mrb[0].mxu0
      %v2190 = vadd.f32 %v2029, %v2189
      %v2191 = vpop.f32.mrb[0].mxu0
      %2192 = vmatprep.mubr.bf16.mxu0 %v1130
      %2193 = vmatmul.mubr.bf16.gmra.mrb[0].mxu0 %v1066
      %v2194 = vpop.f32.mrb[0].mxu0
      %v2195 = vadd.f32 %v2034, %v2194
      %v2196 = vpop.f32.mrb[0].mxu0
      %v2197 = vpop.f32.mrb[0].mxu0
      %v2198 = vadd.f32 %v2037, %v2197
      %v2199 = vpop.f32.mrb[0].mxu0
      %2200 = vmatprep.mubr.bf16.mxu0 %v1131
      %2201 = vmatmul.mubr.bf16.gmra.mrb[0].mxu0 %v1067
      %v2202 = vpop.f32.mrb[0].mxu0
      %v2203 = vadd.f32 %v2042, %v2202
      %v2204 = vpop.f32.mrb[0].mxu0
      %v2205 = vpop.f32.mrb[0].mxu0
      %v2206 = vadd.f32 %v2045, %v2205
      %v2207 = vpop.f32.mrb[0].mxu0
      %2208 = vmatprep.mubr.bf16.mxu0 %v1132
      %2209 = vmatmul.mubr.bf16.gmra.mrb[0].mxu0 %v1068
      %v2210 = vpop.f32.mrb[0].mxu0
      %v2211 = vadd.f32 %v2050, %v2210
      %v2212 = vpop.f32.mrb[0].mxu0
      %v2213 = vpop.f32.mrb[0].mxu0
      %v2214 = vadd.f32 %v2053, %v2213
      %v2215 = vpop.f32.mrb[0].mxu0
      %2216 = vmatprep.mubr.bf16.mxu0 %v1133
      %2217 = vmatmul.mubr.bf16.gmra.mrb[0].mxu0 %v1069
      %v2218 = vpop.f32.mrb[0].mxu0
      %v2219 = vadd.f32 %v2058, %v2218
      %v2220 = vpop.f32.mrb[0].mxu0
      %v2221 = vpop.f32.mrb[0].mxu0
      %v2222 = vadd.f32 %v2061, %v2221
      %v2223 = vpop.f32.mrb[0].mxu0
      %2224 = vmatprep.mubr.bf16.mxu0 %v1160
      %2225 = vmatmul.mubr.bf16.gmra.mrb[0].mxu0 %v1156
      %v2226 = vpop.f32.mrb[0].mxu0
      %v2227 = vadd.f32 %v2066, %v2226
      %v2228 = vpop.f32.mrb[0].mxu0
      %v2229 = vpop.f32.mrb[0].mxu0
      %v2230 = vadd.f32 %v2069, %v2229
      %v2231 = vpop.f32.mrb[0].mxu0
      %2232 = vdwg.mxu0
      %2233 = vmatprep.subr.bf16.mxu0 0
      %2234 = vmatpush1.bf16.msra.mxu0 %v1654
      %2235 = vmatprep.subr.bf16.mxu0 0
      %2236 = vmatpush1.bf16.msra.mxu0 %v1655
      %2237 = vmatprep.subr.bf16.mxu0 0
      %2238 = vmatpush1.bf16.msra.mxu0 %v1656
      %2239 = vmatprep.subr.bf16.mxu0 0
      %2240 = vmatpush1.bf16.msra.mxu0 %v1657
      %2241 = vmatprep.subr.bf16.mxu0 0
      %2242 = vmatpush1.bf16.msra.mxu0 %v1658
      %2243 = vmatprep.subr.bf16.mxu0 0
      %2244 = vmatpush1.bf16.msra.mxu0 %v1659
      %2245 = vmatprep.subr.bf16.mxu0 0
      %2246 = vmatpush1.bf16.msra.mxu0 %v1660
      %2247 = vmatprep.subr.bf16.mxu0 0
      %2248 = vmatpush1.bf16.msra.mxu0 %v1661
      %2249 = vmatprep.subr.bf16.mxu0 0
      %2250 = vmatpush1.bf16.msra.mxu0 %v1662
      %2251 = vmatprep.subr.bf16.mxu0 0
      %2252 = vmatpush1.bf16.msra.mxu0 %v1663
      %2253 = vmatprep.subr.bf16.mxu0 0
      %2254 = vmatpush1.bf16.msra.mxu0 %v1664
      %2255 = vmatprep.subr.bf16.mxu0 0
      %2256 = vmatpush1.bf16.msra.mxu0 %v1665
      %2257 = vmatprep.subr.bf16.mxu0 0
      %2258 = vmatpush1.bf16.msra.mxu0 %v1666
      %2259 = vmatprep.subr.bf16.mxu0 0
      %2260 = vmatpush1.bf16.msra.mxu0 %v1667
      %2261 = vmatprep.subr.bf16.mxu0 0
      %2262 = vmatpush1.bf16.msra.mxu0 %v1668
      %2263 = vmatprep.subr.bf16.mxu0 0
      %2264 = vmatpush1.bf16.msra.mxu0 %v1669
      %2265 = vmatprep.mubr.bf16.mxu0 %v1056
      %2266 = vmatmul.mubr.bf16.gmra.mrb[0].mxu0 %v992
      %v2267 = vpop.f32.mrb[0].mxu0
      %v2268 = vadd.f32 %v2107, %v2267
      %v2269 = vpop.f32.mrb[0].mxu0
      %v2270 = vpop.f32.mrb[0].mxu0
      %v2271 = vadd.f32 %v2110, %v2270
      %v2272 = vpop.f32.mrb[0].mxu0
      %2273 = vmatprep.mubr.bf16.mxu0 %v1057
      %2274 = vmatmul.mubr.bf16.gmra.mrb[0].mxu0 %v993
      %v2275 = vpop.f32.mrb[0].mxu0
      %v2276 = vadd.f32 %v2115, %v2275
      %v2277 = vpop.f32.mrb[0].mxu0
      %v2278 = vpop.f32.mrb[0].mxu0
      %v2279 = vadd.f32 %v2118, %v2278
      %v2280 = vpop.f32.mrb[0].mxu0
      %2281 = vmatprep.mubr.bf16.mxu0 %v1058
      %2282 = vmatmul.mubr.bf16.gmra.mrb[0].mxu0 %v994
      %v2283 = vpop.f32.mrb[0].mxu0
      %v2284 = vadd.f32 %v2123, %v2283
      %v2285 = vpop.f32.mrb[0].mxu0
      %v2286 = vpop.f32.mrb[0].mxu0
      %v2287 = vadd.f32 %v2126, %v2286
      %v2288 = vpop.f32.mrb[0].mxu0
      %2289 = vmatprep.mubr.bf16.mxu0 %v1059
      %2290 = vmatmul.mubr.bf16.gmra.mrb[0].mxu0 %v995
      %v2291 = vpop.f32.mrb[0].mxu0
      %v2292 = vadd.f32 %v2131, %v2291
      %v2293 = vpop.f32.mrb[0].mxu0
      %v2294 = vpop.f32.mrb[0].mxu0
      %v2295 = vadd.f32 %v2134, %v2294
      %v2296 = vpop.f32.mrb[0].mxu0
      %2297 = vmatprep.mubr.bf16.mxu0 %v1060
      %2298 = vmatmul.mubr.bf16.gmra.mrb[0].mxu0 %v996
      %v2299 = vpop.f32.mrb[0].mxu0
      %v2300 = vadd.f32 %v2139, %v2299
      %v2301 = vpop.f32.mrb[0].mxu0
      %v2302 = vpop.f32.mrb[0].mxu0
      %v2303 = vadd.f32 %v2142, %v2302
      %v2304 = vpop.f32.mrb[0].mxu0
      %2305 = vmatprep.mubr.bf16.mxu0 %v1061
      %2306 = vmatmul.mubr.bf16.gmra.mrb[0].mxu0 %v997
      %v2307 = vpop.f32.mrb[0].mxu0
      %v2308 = vadd.f32 %v2147, %v2307
      %v2309 = vpop.f32.mrb[0].mxu0
      %v2310 = vpop.f32.mrb[0].mxu0
      %v2311 = vadd.f32 %v2150, %v2310
      %v2312 = vpop.f32.mrb[0].mxu0
      %2313 = vmatprep.mubr.bf16.mxu0 %v1062
      %2314 = vmatmul.mubr.bf16.gmra.mrb[0].mxu0 %v998
      %v2315 = vpop.f32.mrb[0].mxu0
      %v2316 = vadd.f32 %v2155, %v2315
      %v2317 = vpop.f32.mrb[0].mxu0
      %v2318 = vpop.f32.mrb[0].mxu0
      %v2319 = vadd.f32 %v2158, %v2318
      %v2320 = vpop.f32.mrb[0].mxu0
      %2321 = vmatprep.mubr.bf16.mxu0 %v1063
      %2322 = vmatmul.mubr.bf16.gmra.mrb[0].mxu0 %v999
      %v2323 = vpop.f32.mrb[0].mxu0
      %v2324 = vadd.f32 %v2163, %v2323
      %v2325 = vpop.f32.mrb[0].mxu0
      %v2326 = vpop.f32.mrb[0].mxu0
      %v2327 = vadd.f32 %v2166, %v2326
      %v2328 = vpop.f32.mrb[0].mxu0
      %2329 = vmatprep.mubr.bf16.mxu0 %v1064
      %2330 = vmatmul.mubr.bf16.gmra.mrb[0].mxu0 %v1000
      %v2331 = vpop.f32.mrb[0].mxu0
      %v2332 = vadd.f32 %v2171, %v2331
      %v2333 = vpop.f32.mrb[0].mxu0
      %v2334 = vpop.f32.mrb[0].mxu0
      %v2335 = vadd.f32 %v2174, %v2334
      %v2336 = vpop.f32.mrb[0].mxu0
      %2337 = vmatprep.mubr.bf16.mxu0 %v1065
      %2338 = vmatmul.mubr.bf16.gmra.mrb[0].mxu0 %v1001
      %v2339 = vpop.f32.mrb[0].mxu0
      %v2340 = vadd.f32 %v2179, %v2339
      %v2341 = vpop.f32.mrb[0].mxu0
      %v2342 = vpop.f32.mrb[0].mxu0
      %v2343 = vadd.f32 %v2182, %v2342
      %v2344 = vpop.f32.mrb[0].mxu0
      %2345 = vmatprep.mubr.bf16.mxu0 %v1066
      %2346 = vmatmul.mubr.bf16.gmra.mrb[0].mxu0 %v1002
      %v2347 = vpop.f32.mrb[0].mxu0
      %v2348 = vadd.f32 %v2187, %v2347
      %v2349 = vpop.f32.mrb[0].mxu0
      %v2350 = vpop.f32.mrb[0].mxu0
      %v2351 = vadd.f32 %v2190, %v2350
      %v2352 = vpop.f32.mrb[0].mxu0
      %2353 = vmatprep.mubr.bf16.mxu0 %v1067
      %2354 = vmatmul.mubr.bf16.gmra.mrb[0].mxu0 %v1003
      %v2355 = vpop.f32.mrb[0].mxu0
      %v2356 = vadd.f32 %v2195, %v2355
      %v2357 = vpop.f32.mrb[0].mxu0
      %v2358 = vpop.f32.mrb[0].mxu0
      %v2359 = vadd.f32 %v2198, %v2358
      %v2360 = vpop.f32.mrb[0].mxu0
      %2361 = vmatprep.mubr.bf16.mxu0 %v1068
      %2362 = vmatmul.mubr.bf16.gmra.mrb[0].mxu0 %v1004
      %v2363 = vpop.f32.mrb[0].mxu0
      %v2364 = vadd.f32 %v2203, %v2363
      %v2365 = vpop.f32.mrb[0].mxu0
      %v2366 = vpop.f32.mrb[0].mxu0
      %v2367 = vadd.f32 %v2206, %v2366
      %v2368 = vpop.f32.mrb[0].mxu0
      %2369 = vmatprep.mubr.bf16.mxu0 %v1069
      %2370 = vmatmul.mubr.bf16.gmra.mrb[0].mxu0 %v1005
      %v2371 = vpop.f32.mrb[0].mxu0
      %v2372 = vadd.f32 %v2211, %v2371
      %v2373 = vpop.f32.mrb[0].mxu0
      %v2374 = vpop.f32.mrb[0].mxu0
      %v2375 = vadd.f32 %v2214, %v2374
      %v2376 = vpop.f32.mrb[0].mxu0
      %2377 = vmatprep.mubr.bf16.mxu0 %v1156
      %2378 = vmatmul.mubr.bf16.gmra.mrb[0].mxu0 %v1152
      %v2379 = vpop.f32.mrb[0].mxu0
      %v2380 = vadd.f32 %v2219, %v2379
      %v2381 = vpop.f32.mrb[0].mxu0
      %v2382 = vpop.f32.mrb[0].mxu0
      %v2383 = vadd.f32 %v2222, %v2382
      %v2384 = vpop.f32.mrb[0].mxu0
      %2385 = vmatprep.mubr.bf16.mxu0 %v1168
      %2386 = vmatmul.mubr.bf16.gmra.mrb[0].mxu0 %v1164
      %v2387 = vpop.f32.mrb[0].mxu0
      %v2388 = vadd.f32 %v2227, %v2387
      %v2389 = vpop.f32.mrb[0].mxu0
      %v2390 = vpop.f32.mrb[0].mxu0
      %v2391 = vadd.f32 %v2230, %v2390
      %v2392 = vpop.f32.mrb[0].mxu0
      %2393 = vdwg.mxu0
      %2394 = vmatprep.subr.bf16.mxu0 0
      %2395 = vmatpush1.bf16.msra.mxu0 %v1670
      %2396 = vmatprep.subr.bf16.mxu0 0
      %2397 = vmatpush1.bf16.msra.mxu0 %v1671
      %2398 = vmatprep.subr.bf16.mxu0 0
      %2399 = vmatpush1.bf16.msra.mxu0 %v1672
      %2400 = vmatprep.subr.bf16.mxu0 0
      %2401 = vmatpush1.bf16.msra.mxu0 %v1673
      %2402 = vmatprep.subr.bf16.mxu0 0
      %2403 = vmatpush1.bf16.msra.mxu0 %v1674
      %2404 = vmatprep.subr.bf16.mxu0 0
      %2405 = vmatpush1.bf16.msra.mxu0 %v1675
      %2406 = vmatprep.subr.bf16.mxu0 0
      %2407 = vmatpush1.bf16.msra.mxu0 %v1676
      %2408 = vmatprep.subr.bf16.mxu0 0
      %2409 = vmatpush1.bf16.msra.mxu0 %v1677
      %2410 = vmatprep.subr.bf16.mxu0 0
      %2411 = vmatpush1.bf16.msra.mxu0 0
      %2412 = vmatprep.subr.bf16.mxu0 0
      %2413 = vmatpush1.bf16.msra.mxu0 0
      %2414 = vmatprep.subr.bf16.mxu0 0
      %2415 = vmatpush1.bf16.msra.mxu0 0
      %2416 = vmatprep.subr.bf16.mxu0 0
      %2417 = vmatpush1.bf16.msra.mxu0 0
      %2418 = vmatprep.subr.bf16.mxu0 0
      %2419 = vmatpush1.bf16.msra.mxu0 0
      %2420 = vmatprep.subr.bf16.mxu0 0
      %2421 = vmatpush1.bf16.msra.mxu0 0
      %2422 = vmatprep.subr.bf16.mxu0 0
      %2423 = vmatpush1.bf16.msra.mxu0 0
      %2424 = vmatprep.subr.bf16.mxu0 0
      %2425 = vmatpush1.bf16.msra.mxu0 0
      %2426 = vmatprep.mubr.bf16.mxu0 0
      %2427 = vmatmul.mubr.bf16.gmra.mrb[0].mxu0 %v1120
      %v2428 = vpop.f32.mrb[0].mxu0
      %v2429 = vadd.f32 %v2268, %v2428
      %v2430 = vpop.f32.mrb[0].mxu0
      %v2431 = vpop.f32.mrb[0].mxu0
      %v2432 = vadd.f32 %v2271, %v2431
      %v2433 = vpop.f32.mrb[0].mxu0
      %2434 = vmatprep.mubr.bf16.mxu0 0
      %2435 = vmatmul.mubr.bf16.gmra.mrb[0].mxu0 %v1121
      %v2436 = vpop.f32.mrb[0].mxu0
      %v2437 = vadd.f32 %v2276, %v2436
      %v2438 = vpop.f32.mrb[0].mxu0
      %v2439 = vpop.f32.mrb[0].mxu0
      %v2440 = vadd.f32 %v2279, %v2439
      %v2441 = vpop.f32.mrb[0].mxu0
      %2442 = vmatprep.mubr.bf16.mxu0 0
      %2443 = vmatmul.mubr.bf16.gmra.mrb[0].mxu0 %v1122
      %v2444 = vpop.f32.mrb[0].mxu0
      %v2445 = vadd.f32 %v2284, %v2444
      %v2446 = vpop.f32.mrb[0].mxu0
      %v2447 = vpop.f32.mrb[0].mxu0
      %v2448 = vadd.f32 %v2287, %v2447
      %v2449 = vpop.f32.mrb[0].mxu0
      %2450 = vmatprep.mubr.bf16.mxu0 0
      %2451 = vmatmul.mubr.bf16.gmra.mrb[0].mxu0 %v1123
      %v2452 = vpop.f32.mrb[0].mxu0
      %v2453 = vadd.f32 %v2292, %v2452
      %v2454 = vpop.f32.mrb[0].mxu0
      %v2455 = vpop.f32.mrb[0].mxu0
      %v2456 = vadd.f32 %v2295, %v2455
      %v2457 = vpop.f32.mrb[0].mxu0
      %2458 = vmatprep.mubr.bf16.mxu0 0
      %2459 = vmatmul.mubr.bf16.gmra.mrb[0].mxu0 %v1124
      %v2460 = vpop.f32.mrb[0].mxu0
      %v2461 = vadd.f32 %v2300, %v2460
      %v2462 = vpop.f32.mrb[0].mxu0
      %v2463 = vpop.f32.mrb[0].mxu0
      %v2464 = vadd.f32 %v2303, %v2463
      %v2465 = vpop.f32.mrb[0].mxu0
      %2466 = vmatprep.mubr.bf16.mxu0 0
      %2467 = vmatmul.mubr.bf16.gmra.mrb[0].mxu0 %v1125
      %v2468 = vpop.f32.mrb[0].mxu0
      %v2469 = vadd.f32 %v2308, %v2468
      %v2470 = vpop.f32.mrb[0].mxu0
      %v2471 = vpop.f32.mrb[0].mxu0
      %v2472 = vadd.f32 %v2311, %v2471
      %v2473 = vpop.f32.mrb[0].mxu0
      %2474 = vmatprep.mubr.bf16.mxu0 0
      %2475 = vmatmul.mubr.bf16.gmra.mrb[0].mxu0 %v1126
      %v2476 = vpop.f32.mrb[0].mxu0
      %v2477 = vadd.f32 %v2316, %v2476
      %v2478 = vpop.f32.mrb[0].mxu0
      %v2479 = vpop.f32.mrb[0].mxu0
      %v2480 = vadd.f32 %v2319, %v2479
      %v2481 = vpop.f32.mrb[0].mxu0
      %2482 = vmatprep.mubr.bf16.mxu0 0
      %2483 = vmatmul.mubr.bf16.gmra.mrb[0].mxu0 %v1127
      %v2484 = vpop.f32.mrb[0].mxu0
      %v2485 = vadd.f32 %v2324, %v2484
      %v2486 = vpop.f32.mrb[0].mxu0
      %v2487 = vpop.f32.mrb[0].mxu0
      %v2488 = vadd.f32 %v2327, %v2487
      %v2489 = vpop.f32.mrb[0].mxu0
      %2490 = vmatprep.mubr.bf16.mxu0 0
      %2491 = vmatmul.mubr.bf16.gmra.mrb[0].mxu0 %v1128
      %v2492 = vpop.f32.mrb[0].mxu0
      %v2493 = vadd.f32 %v2332, %v2492
      %v2494 = vpop.f32.mrb[0].mxu0
      %v2495 = vpop.f32.mrb[0].mxu0
      %v2496 = vadd.f32 %v2335, %v2495
      %v2497 = vpop.f32.mrb[0].mxu0
      %2498 = vmatprep.mubr.bf16.mxu0 0
      %2499 = vmatmul.mubr.bf16.gmra.mrb[0].mxu0 %v1129
      %v2500 = vpop.f32.mrb[0].mxu0
      %v2501 = vadd.f32 %v2340, %v2500
      %v2502 = vpop.f32.mrb[0].mxu0
      %v2503 = vpop.f32.mrb[0].mxu0
      %v2504 = vadd.f32 %v2343, %v2503
      %v2505 = vpop.f32.mrb[0].mxu0
      %2506 = vmatprep.mubr.bf16.mxu0 0
      %2507 = vmatmul.mubr.bf16.gmra.mrb[0].mxu0 %v1130
      %v2508 = vpop.f32.mrb[0].mxu0
      %v2509 = vadd.f32 %v2348, %v2508
      %v2510 = vpop.f32.mrb[0].mxu0
      %v2511 = vpop.f32.mrb[0].mxu0
      %v2512 = vadd.f32 %v2351, %v2511
      %v2513 = vpop.f32.mrb[0].mxu0
      %2514 = vmatprep.mubr.bf16.mxu0 0
      %2515 = vmatmul.mubr.bf16.gmra.mrb[0].mxu0 %v1131
      %v2516 = vpop.f32.mrb[0].mxu0
      %v2517 = vadd.f32 %v2356, %v2516
      %v2518 = vpop.f32.mrb[0].mxu0
      %v2519 = vpop.f32.mrb[0].mxu0
      %v2520 = vadd.f32 %v2359, %v2519
      %v2521 = vpop.f32.mrb[0].mxu0
      %2522 = vmatprep.mubr.bf16.mxu0 0
      %2523 = vmatmul.mubr.bf16.gmra.mrb[0].mxu0 %v1132
      %v2524 = vpop.f32.mrb[0].mxu0
      %v2525 = vadd.f32 %v2364, %v2524
      %v2526 = vpop.f32.mrb[0].mxu0
      %v2527 = vpop.f32.mrb[0].mxu0
      %v2528 = vadd.f32 %v2367, %v2527
      %v2529 = vpop.f32.mrb[0].mxu0
      %2530 = vmatprep.mubr.bf16.mxu0 0
      %2531 = vmatmul.mubr.bf16.gmra.mrb[0].mxu0 %v1133
      %v2532 = vpop.f32.mrb[0].mxu0
      %v2533 = vadd.f32 %v2372, %v2532
      %v2534 = vpop.f32.mrb[0].mxu0
      %v2535 = vpop.f32.mrb[0].mxu0
      %v2536 = vadd.f32 %v2375, %v2535
      %v2537 = vpop.f32.mrb[0].mxu0
      %2538 = vmatprep.mubr.bf16.mxu0 0
      %2539 = vmatmul.mubr.bf16.gmra.mrb[0].mxu0 %v1160
      %v2540 = vpop.f32.mrb[0].mxu0
      %v2541 = vadd.f32 %v2380, %v2540
      %v2542 = vpop.f32.mrb[0].mxu0
      %v2543 = vpop.f32.mrb[0].mxu0
      %v2544 = vadd.f32 %v2383, %v2543
      %v2545 = vpop.f32.mrb[0].mxu0
      %2546 = vmatprep.mubr.bf16.mxu0 0
      %2547 = vmatmul.mubr.bf16.gmra.mrb[0].mxu0 %v1172
      %v2548 = vpop.f32.mrb[0].mxu0
      %v2549 = vadd.f32 %v2388, %v2548
      %v2550 = vpop.f32.mrb[0].mxu0
      %v2551 = vpop.f32.mrb[0].mxu0
      %v2552 = vadd.f32 %v2391, %v2551
      %v2553 = vpop.f32.mrb[0].mxu0
      %2554 = vdwg.mxu0
      %v2555 = vpack.c.bf16 %v2432, %v2429
      %v2556 = vpack.c.bf16 %v2440, %v2437
      %v2557 = vpack.c.bf16 %v2448, %v2445
      %v2558 = vpack.c.bf16 %v2456, %v2453
      %v2559 = vpack.c.bf16 %v2464, %v2461
      %v2560 = vpack.c.bf16 %v2472, %v2469
      %v2561 = vpack.c.bf16 %v2480, %v2477
      %v2562 = vpack.c.bf16 %v2488, %v2485
      %v2563 = vpack.c.bf16 %v2496, %v2493
      %v2564 = vpack.c.bf16 %v2504, %v2501
      %v2565 = vpack.c.bf16 %v2512, %v2509
      %v2566 = vpack.c.bf16 %v2520, %v2517
      %v2567 = vpack.c.bf16 %v2528, %v2525
      %v2568 = vpack.c.bf16 %v2536, %v2533
      %v2569 = vpack.c.bf16 %v2544, %v2541
      %v2570 = vpack.c.bf16 %v2552, %v2549
      %v2587 = vunpack.c.l.b16 %v2555
      %v2588 = vunpack.c.h.b16 %v2555
      %v2589 = vunpack.c.l.b16 %v2556
      %v2590 = vunpack.c.h.b16 %v2556
      %v2591 = vunpack.c.l.b16 %v2557
      %v2592 = vunpack.c.h.b16 %v2557
      %v2593 = vunpack.c.l.b16 %v2558
      %v2594 = vunpack.c.h.b16 %v2558
      %v2595 = vunpack.c.l.b16 %v2559
      %v2596 = vunpack.c.h.b16 %v2559
      %v2597 = vunpack.c.l.b16 %v2560
      %v2598 = vunpack.c.h.b16 %v2560
      %v2599 = vunpack.c.l.b16 %v2561
      %v2600 = vunpack.c.h.b16 %v2561
      %v2601 = vunpack.c.l.b16 %v2562
      %v2602 = vunpack.c.h.b16 %v2562
      %v2603 = vunpack.c.l.b16 %v2563
      %v2604 = vunpack.c.h.b16 %v2563
      %v2605 = vunpack.c.l.b16 %v2564
      %v2606 = vunpack.c.h.b16 %v2564
      %v2607 = vunpack.c.l.b16 %v2565
      %v2608 = vunpack.c.h.b16 %v2565
      %v2609 = vunpack.c.l.b16 %v2566
      %v2610 = vunpack.c.h.b16 %v2566
      %v2611 = vunpack.c.l.b16 %v2567
      %v2612 = vunpack.c.h.b16 %v2567
      %v2613 = vunpack.c.l.b16 %v2568
      %v2614 = vunpack.c.h.b16 %v2568
      %v2615 = vunpack.c.l.b16 %v2569
      %v2616 = vunpack.c.h.b16 %v2569
      %v2617 = vunpack.c.l.b16 %v2570
      %v2618 = vunpack.c.h.b16 %v2570
      %v2619 = vpack.c.b16 %v2587, %v2587
      %v2620 = vpack.c.b16 %v2588, %v2588
      %v2621 = vpack.c.b16 %v2589, %v2589
      %v2622 = vpack.c.b16 %v2590, %v2590
      %v2623 = vpack.c.b16 %v2591, %v2591
      %v2624 = vpack.c.b16 %v2592, %v2592
      %v2625 = vpack.c.b16 %v2593, %v2593
      %v2626 = vpack.c.b16 %v2594, %v2594
      %v2627 = vpack.c.b16 %v2595, %v2595
      %v2628 = vpack.c.b16 %v2596, %v2596
      %v2629 = vpack.c.b16 %v2597, %v2597
      %v2630 = vpack.c.b16 %v2598, %v2598
      %v2631 = vpack.c.b16 %v2599, %v2599
      %v2632 = vpack.c.b16 %v2600, %v2600
      %v2633 = vpack.c.b16 %v2601, %v2601
      %v2634 = vpack.c.b16 %v2602, %v2602
      %v2635 = vpack.c.b16 %v2603, %v2603
      %v2636 = vpack.c.b16 %v2604, %v2604
      %v2637 = vpack.c.b16 %v2605, %v2605
      %v2638 = vpack.c.b16 %v2606, %v2606
      %v2639 = vpack.c.b16 %v2607, %v2607
      %v2640 = vpack.c.b16 %v2608, %v2608
      %v2641 = vpack.c.b16 %v2609, %v2609
      %v2642 = vpack.c.b16 %v2610, %v2610
      %v2643 = vpack.c.b16 %v2611, %v2611
      %v2644 = vpack.c.b16 %v2612, %v2612
      %v2645 = vpack.c.b16 %v2613, %v2613
      %v2646 = vpack.c.b16 %v2614, %v2614
      %v2647 = vpack.c.b16 %v2615, %v2615
      %v2648 = vpack.c.b16 %v2616, %v2616
      %v2649 = vpack.c.b16 %v2617, %v2617
      %v2650 = vpack.c.b16 %v2618, %v2618
      %2683 = vst [vmem:[%s271] sm:$0xf] %v2619
      %2684 = vst [vmem:[%s271 + $0x4] sm:$0xf] %v2620
      %2685 = vst [vmem:[%s271 + $0x8] sm:$0xf] %v2621
      %2686 = vst [vmem:[%s271 + $0xc] sm:$0xf] %v2622
      %2687 = vst [vmem:[%s271 + $0x10] sm:$0xf] %v2623
      %2688 = vst [vmem:[%s271 + $0x14] sm:$0xf] %v2624
      %2689 = vst [vmem:[%s271 + $0x18] sm:$0xf] %v2625
      %2690 = vst [vmem:[%s271 + $0x1c] sm:$0xf] %v2626
      %2691 = vst [vmem:[%s271 + $0x20] sm:$0xf] %v2627
      %2692 = vst [vmem:[%s271 + $0x24] sm:$0xf] %v2628
      %2693 = vst [vmem:[%s271 + $0x28] sm:$0xf] %v2629
      %2694 = vst [vmem:[%s271 + $0x2c] sm:$0xf] %v2630
      %2695 = vst [vmem:[%s271 + $0x30] sm:$0xf] %v2631
      %2696 = vst [vmem:[%s271 + $0x34] sm:$0xf] %v2632
      %2697 = vst [vmem:[%s271 + $0x38] sm:$0xf] %v2633
      %2698 = vst [vmem:[%s271 + $0x3c] sm:$0xf] %v2634
      %2699 = vst [vmem:[%s271 + $0x40] sm:$0xf] %v2635
      %2700 = vst [vmem:[%s271 + $0x44] sm:$0xf] %v2636
      %2701 = vst [vmem:[%s271 + $0x48] sm:$0xf] %v2637
      %2702 = vst [vmem:[%s271 + $0x4c] sm:$0xf] %v2638
      %2703 = vst [vmem:[%s271 + $0x50] sm:$0xf] %v2639
      %2704 = vst [vmem:[%s271 + $0x54] sm:$0xf] %v2640
      %2705 = vst [vmem:[%s271 + $0x58] sm:$0xf] %v2641
      %2706 = vst [vmem:[%s271 + $0x5c] sm:$0xf] %v2642
      %2707 = vst [vmem:[%s271 + $0x60] sm:$0xf] %v2643
      %2708 = vst [vmem:[%s271 + $0x64] sm:$0xf] %v2644
      %2709 = vst [vmem:[%s271 + $0x68] sm:$0xf] %v2645
      %2710 = vst [vmem:[%s271 + $0x6c] sm:$0xf] %v2646
      %2711 = vst [vmem:[%s271 + $0x70] sm:$0xf] %v2647
      %2712 = vst [vmem:[%s271 + $0x74] sm:$0xf] %v2648
      %2713 = vst [vmem:[%s271 + $0x78] sm:$0xf] %v2649
      %2714 = vst [vmem:[%s271 + $0x7c] sm:$0xf] %v2650
      %v2715 = vadd.f32 %v2429, %v2432
      %v2716 = vadd.f32 %v2715, %v2437
      %v2717 = vadd.f32 %v2716, %v2440
      %v2718 = vadd.f32 %v2717, %v2445
      %v2719 = vadd.f32 %v2718, %v2448
      %v2720 = vadd.f32 %v2719, %v2453
      %v2721 = vadd.f32 %v2720, %v2456
      %v2722 = vadd.f32 %v2721, %v2461
      %v2723 = vadd.f32 %v2722, %v2464
      %v2724 = vadd.f32 %v2723, %v2469
      %v2725 = vadd.f32 %v2724, %v2472
      %v2726 = vadd.f32 %v2725, %v2477
      %v2727 = vadd.f32 %v2726, %v2480
      %v2728 = vadd.f32 %v2727, %v2485
      %v2729 = vadd.f32 %v2728, %v2488
      %v2730 = vadd.f32 %v2729, %v2493
      %v2731 = vadd.f32 %v2730, %v2496
      %v2732 = vadd.f32 %v2731, %v2501
      %v2733 = vadd.f32 %v2732, %v2504
      %v2734 = vadd.f32 %v2733, %v2509
      %v2735 = vadd.f32 %v2734, %v2512
      %v2736 = vadd.f32 %v2735, %v2517
      %v2737 = vadd.f32 %v2736, %v2520
      %v2738 = vadd.f32 %v2737, %v2525
      %v2739 = vadd.f32 %v2738, %v2528
      %v2740 = vadd.f32 %v2739, %v2533
      %v2741 = vadd.f32 %v2740, %v2536
      %v2742 = vadd.f32 %v2741, %v2541
      %v2743 = vadd.f32 %v2742, %v2544
      %v2744 = vadd.f32 %v2743, %v2549
      %v2745 = vadd.f32 %v2744, %v2552
      %v2746 = vrot.slane %v2745, 4
      %v2747 = vadd.f32 %v2745, %v2746
      %v2748 = vrot.slane %v2747, 2
      %v2749 = vadd.f32 %v2747, %v2748
      %v2750 = vrot.slane %v2749, 1
      %v2751 = vadd.f32 %v2749, %v2750
      %v2752 = vmul.f32 %v2429, %v2429
      %v2753 = vmul.f32 %v2432, %v2432
      %v2754 = vmul.f32 %v2437, %v2437
      %v2755 = vmul.f32 %v2440, %v2440
      %v2756 = vmul.f32 %v2445, %v2445
      %v2757 = vmul.f32 %v2448, %v2448
      %v2758 = vmul.f32 %v2453, %v2453
      %v2759 = vmul.f32 %v2456, %v2456
      %v2760 = vmul.f32 %v2461, %v2461
      %v2761 = vmul.f32 %v2464, %v2464
      %v2762 = vmul.f32 %v2469, %v2469
      %v2763 = vmul.f32 %v2472, %v2472
      %v2764 = vmul.f32 %v2477, %v2477
      %v2765 = vmul.f32 %v2480, %v2480
      %v2766 = vmul.f32 %v2485, %v2485
      %v2767 = vmul.f32 %v2488, %v2488
      %v2768 = vmul.f32 %v2493, %v2493
      %v2769 = vmul.f32 %v2496, %v2496
      %v2770 = vmul.f32 %v2501, %v2501
      %v2771 = vmul.f32 %v2504, %v2504
      %v2772 = vmul.f32 %v2509, %v2509
      %v2773 = vmul.f32 %v2512, %v2512
      %v2774 = vmul.f32 %v2517, %v2517
      %v2775 = vmul.f32 %v2520, %v2520
      %v2776 = vmul.f32 %v2525, %v2525
      %v2777 = vmul.f32 %v2528, %v2528
      %v2778 = vmul.f32 %v2533, %v2533
      %v2779 = vmul.f32 %v2536, %v2536
      %v2780 = vmul.f32 %v2541, %v2541
      %v2781 = vmul.f32 %v2544, %v2544
      %v2782 = vmul.f32 %v2549, %v2549
      %v2783 = vmul.f32 %v2552, %v2552
      %v2784 = vadd.f32 %v2752, %v2753
      %v2785 = vadd.f32 %v2784, %v2754
      %v2786 = vadd.f32 %v2785, %v2755
      %v2787 = vadd.f32 %v2786, %v2756
      %v2788 = vadd.f32 %v2787, %v2757
      %v2789 = vadd.f32 %v2788, %v2758
      %v2790 = vadd.f32 %v2789, %v2759
      %v2791 = vadd.f32 %v2790, %v2760
      %v2792 = vadd.f32 %v2791, %v2761
      %v2793 = vadd.f32 %v2792, %v2762
      %v2794 = vadd.f32 %v2793, %v2763
      %v2795 = vadd.f32 %v2794, %v2764
      %v2796 = vadd.f32 %v2795, %v2765
      %v2797 = vadd.f32 %v2796, %v2766
      %v2798 = vadd.f32 %v2797, %v2767
      %v2799 = vadd.f32 %v2798, %v2768
      %v2800 = vadd.f32 %v2799, %v2769
      %v2801 = vadd.f32 %v2800, %v2770
      %v2802 = vadd.f32 %v2801, %v2771
      %v2803 = vadd.f32 %v2802, %v2772
      %v2804 = vadd.f32 %v2803, %v2773
      %v2805 = vadd.f32 %v2804, %v2774
      %v2806 = vadd.f32 %v2805, %v2775
      %v2807 = vadd.f32 %v2806, %v2776
      %v2808 = vadd.f32 %v2807, %v2777
      %v2809 = vadd.f32 %v2808, %v2778
      %v2810 = vadd.f32 %v2809, %v2779
      %v2811 = vadd.f32 %v2810, %v2780
      %v2812 = vadd.f32 %v2811, %v2781
      %v2813 = vadd.f32 %v2812, %v2782
      %v2814 = vadd.f32 %v2813, %v2783
      %v2815 = vrot.slane %v2814, 4
      %v2816 = vadd.f32 %v2814, %v2815
      %v2817 = vrot.slane %v2816, 2
      %v2818 = vadd.f32 %v2816, %v2817
      %v2819 = vrot.slane %v2818, 1
      %v2820 = vadd.f32 %v2818, %v2819
      %vm2821 = vcmask 1040384
      %v2822 = vsel %vm2821, %v2751, %v2820
      %2823 = vst [vmem:[%s275] sm:$0x3] %v2822
      %v2824 = vld [vmem:[%s2] sm:$0xf]
      %v2825 = vld [vmem:[%s2 + $0x4] sm:$0xf]
      %v2826 = vld [vmem:[%s2 + $0x8] sm:$0xf]
      %v2827 = vld [vmem:[%s2 + $0xc] sm:$0xf]
      %v2828 = vld [vmem:[%s2 + $0x10] sm:$0xf]
      %v2829 = vld [vmem:[%s2 + $0x14] sm:$0xf]
      %v2830 = vld [vmem:[%s2 + $0x18] sm:$0xf]
      %v2831 = vld [vmem:[%s2 + $0x1c] sm:$0xf]
      %v2832 = vld [vmem:[%s2 + $0x20] sm:$0xf]
      %v2833 = vld [vmem:[%s2 + $0x24] sm:$0xf]
      %v2834 = vld [vmem:[%s2 + $0x28] sm:$0xf]
      %v2835 = vld [vmem:[%s2 + $0x2c] sm:$0xf]
      %v2836 = vld [vmem:[%s2 + $0x30] sm:$0xf]
      %v2837 = vld [vmem:[%s2 + $0x34] sm:$0xf]
      %v2838 = vld [vmem:[%s2 + $0x38] sm:$0xf]
      %v2839 = vld [vmem:[%s2 + $0x3c] sm:$0xf]
      %v2856 = vunpack.c.l.b16 %v2824
      %v2857 = vunpack.c.l.b16 %v2825
      %v2858 = vunpack.c.l.b16 %v2826
      %v2859 = vunpack.c.l.b16 %v2827
      %v2860 = vunpack.c.l.b16 %v2828
      %v2861 = vunpack.c.l.b16 %v2829
      %v2862 = vunpack.c.l.b16 %v2830
      %v2863 = vunpack.c.l.b16 %v2831
      %v2864 = vunpack.c.l.b16 %v2832
      %v2865 = vunpack.c.l.b16 %v2833
      %v2866 = vunpack.c.l.b16 %v2834
      %v2867 = vunpack.c.l.b16 %v2835
      %v2868 = vunpack.c.l.b16 %v2836
      %v2869 = vunpack.c.l.b16 %v2837
      %v2870 = vunpack.c.l.b16 %v2838
      %v2871 = vunpack.c.l.b16 %v2839
      %v2872 = vpack.c.b16 %v2857, %v2856
      %v2873 = vpack.c.b16 %v2859, %v2858
      %v2874 = vpack.c.b16 %v2861, %v2860
      %v2875 = vpack.c.b16 %v2863, %v2862
      %v2876 = vpack.c.b16 %v2865, %v2864
      %v2877 = vpack.c.b16 %v2867, %v2866
      %v2878 = vpack.c.b16 %v2869, %v2868
      %v2879 = vpack.c.b16 %v2871, %v2870
      %2888 = vmatprep.subr.bf16.mxu0 0
      %2889 = vmatpush1.bf16.msra.mxu0 %v2872
      %2890 = vmatprep.subr.bf16.mxu0 0
      %2891 = vmatpush1.bf16.msra.mxu0 %v2873
      %2892 = vmatprep.subr.bf16.mxu0 0
      %2893 = vmatpush1.bf16.msra.mxu0 %v2874
      %2894 = vmatprep.subr.bf16.mxu0 0
      %2895 = vmatpush1.bf16.msra.mxu0 %v2875
      %2896 = vmatprep.subr.bf16.mxu0 0
      %2897 = vmatpush1.bf16.msra.mxu0 %v2876
      %2898 = vmatprep.subr.bf16.mxu0 0
      %2899 = vmatpush1.bf16.msra.mxu0 %v2877
      %2900 = vmatprep.subr.bf16.mxu0 0
      %2901 = vmatpush1.bf16.msra.mxu0 %v2878
      %2902 = vmatprep.subr.bf16.mxu0 0
      %2903 = vmatpush1.bf16.msra.mxu0 %v2879
      %2904 = vmatprep.subr.bf16.mxu0 0
      %2905 = vmatpush1.bf16.msra.mxu0 0
      %2906 = vmatprep.subr.bf16.mxu0 0
      %2907 = vmatpush1.bf16.msra.mxu0 0
      %2908 = vmatprep.subr.bf16.mxu0 0
      %2909 = vmatpush1.bf16.msra.mxu0 0
      %2910 = vmatprep.subr.bf16.mxu0 0
      %2911 = vmatpush1.bf16.msra.mxu0 0
      %2912 = vmatprep.subr.bf16.mxu0 0
      %2913 = vmatpush1.bf16.msra.mxu0 0
      %2914 = vmatprep.subr.bf16.mxu0 0
      %2915 = vmatpush1.bf16.msra.mxu0 0
      %2916 = vmatprep.subr.bf16.mxu0 0
      %2917 = vmatpush1.bf16.msra.mxu0 0
      %2918 = vmatprep.subr.bf16.mxu0 0
      %2919 = vmatpush1.bf16.msra.mxu0 0
      %2920 = vmatprep.mubr.bf16.mxu0 0
      %2921 = vmatmul.mubr.bf16.gmra.mrb[0].mxu0 %v1055
      %v2922 = vpop.f32.mrb[0].mxu0
      %v2923 = vadd.f32 0.0, %v2922
      %v2924 = vpop.f32.mrb[0].mxu0
      %v2925 = vpop.f32.mrb[0].mxu0
      %v2926 = vadd.f32 0.0, %v2925
      %v2927 = vpop.f32.mrb[0].mxu0
      %2928 = vmatprep.mubr.bf16.mxu0 0
      %2929 = vmatmul.mubr.bf16.gmra.mrb[0].mxu0 %v1056
      %v2930 = vpop.f32.mrb[0].mxu0
      %v2931 = vadd.f32 0.0, %v2930
      %v2932 = vpop.f32.mrb[0].mxu0
      %v2933 = vpop.f32.mrb[0].mxu0
      %v2934 = vadd.f32 0.0, %v2933
      %v2935 = vpop.f32.mrb[0].mxu0
      %2936 = vmatprep.mubr.bf16.mxu0 0
      %2937 = vmatmul.mubr.bf16.gmra.mrb[0].mxu0 %v1057
      %v2938 = vpop.f32.mrb[0].mxu0
      %v2939 = vadd.f32 0.0, %v2938
      %v2940 = vpop.f32.mrb[0].mxu0
      %v2941 = vpop.f32.mrb[0].mxu0
      %v2942 = vadd.f32 0.0, %v2941
      %v2943 = vpop.f32.mrb[0].mxu0
      %2944 = vmatprep.mubr.bf16.mxu0 0
      %2945 = vmatmul.mubr.bf16.gmra.mrb[0].mxu0 %v1058
      %v2946 = vpop.f32.mrb[0].mxu0
      %v2947 = vadd.f32 0.0, %v2946
      %v2948 = vpop.f32.mrb[0].mxu0
      %v2949 = vpop.f32.mrb[0].mxu0
      %v2950 = vadd.f32 0.0, %v2949
      %v2951 = vpop.f32.mrb[0].mxu0
      %2952 = vmatprep.mubr.bf16.mxu0 0
      %2953 = vmatmul.mubr.bf16.gmra.mrb[0].mxu0 %v1059
      %v2954 = vpop.f32.mrb[0].mxu0
      %v2955 = vadd.f32 0.0, %v2954
      %v2956 = vpop.f32.mrb[0].mxu0
      %v2957 = vpop.f32.mrb[0].mxu0
      %v2958 = vadd.f32 0.0, %v2957
      %v2959 = vpop.f32.mrb[0].mxu0
      %2960 = vmatprep.mubr.bf16.mxu0 0
      %2961 = vmatmul.mubr.bf16.gmra.mrb[0].mxu0 %v1060
      %v2962 = vpop.f32.mrb[0].mxu0
      %v2963 = vadd.f32 0.0, %v2962
      %v2964 = vpop.f32.mrb[0].mxu0
      %v2965 = vpop.f32.mrb[0].mxu0
      %v2966 = vadd.f32 0.0, %v2965
      %v2967 = vpop.f32.mrb[0].mxu0
      %2968 = vmatprep.mubr.bf16.mxu0 0
      %2969 = vmatmul.mubr.bf16.gmra.mrb[0].mxu0 %v1061
      %v2970 = vpop.f32.mrb[0].mxu0
      %v2971 = vadd.f32 0.0, %v2970
      %v2972 = vpop.f32.mrb[0].mxu0
      %v2973 = vpop.f32.mrb[0].mxu0
      %v2974 = vadd.f32 0.0, %v2973
      %v2975 = vpop.f32.mrb[0].mxu0
      %2976 = vmatprep.mubr.bf16.mxu0 0
      %2977 = vmatmul.mubr.bf16.gmra.mrb[0].mxu0 %v1062
      %v2978 = vpop.f32.mrb[0].mxu0
      %v2979 = vadd.f32 0.0, %v2978
      %v2980 = vpop.f32.mrb[0].mxu0
      %v2981 = vpop.f32.mrb[0].mxu0
      %v2982 = vadd.f32 0.0, %v2981
      %v2983 = vpop.f32.mrb[0].mxu0
      %2984 = vmatprep.mubr.bf16.mxu0 0
      %2985 = vmatmul.mubr.bf16.gmra.mrb[0].mxu0 %v1063
      %v2986 = vpop.f32.mrb[0].mxu0
      %v2987 = vadd.f32 0.0, %v2986
      %v2988 = vpop.f32.mrb[0].mxu0
      %v2989 = vpop.f32.mrb[0].mxu0
      %v2990 = vadd.f32 0.0, %v2989
      %v2991 = vpop.f32.mrb[0].mxu0
      %2992 = vmatprep.mubr.bf16.mxu0 0
      %2993 = vmatmul.mubr.bf16.gmra.mrb[0].mxu0 %v1064
      %v2994 = vpop.f32.mrb[0].mxu0
      %v2995 = vadd.f32 0.0, %v2994
      %v2996 = vpop.f32.mrb[0].mxu0
      %v2997 = vpop.f32.mrb[0].mxu0
      %v2998 = vadd.f32 0.0, %v2997
      %v2999 = vpop.f32.mrb[0].mxu0
      %3000 = vmatprep.mubr.bf16.mxu0 0
      %3001 = vmatmul.mubr.bf16.gmra.mrb[0].mxu0 %v1065
      %v3002 = vpop.f32.mrb[0].mxu0
      %v3003 = vadd.f32 0.0, %v3002
      %v3004 = vpop.f32.mrb[0].mxu0
      %v3005 = vpop.f32.mrb[0].mxu0
      %v3006 = vadd.f32 0.0, %v3005
      %v3007 = vpop.f32.mrb[0].mxu0
      %3008 = vmatprep.mubr.bf16.mxu0 0
      %3009 = vmatmul.mubr.bf16.gmra.mrb[0].mxu0 %v1066
      %v3010 = vpop.f32.mrb[0].mxu0
      %v3011 = vadd.f32 0.0, %v3010
      %v3012 = vpop.f32.mrb[0].mxu0
      %v3013 = vpop.f32.mrb[0].mxu0
      %v3014 = vadd.f32 0.0, %v3013
      %v3015 = vpop.f32.mrb[0].mxu0
      %3016 = vmatprep.mubr.bf16.mxu0 0
      %3017 = vmatmul.mubr.bf16.gmra.mrb[0].mxu0 %v1067
      %v3018 = vpop.f32.mrb[0].mxu0
      %v3019 = vadd.f32 0.0, %v3018
      %v3020 = vpop.f32.mrb[0].mxu0
      %v3021 = vpop.f32.mrb[0].mxu0
      %v3022 = vadd.f32 0.0, %v3021
      %v3023 = vpop.f32.mrb[0].mxu0
      %3024 = vmatprep.mubr.bf16.mxu0 0
      %3025 = vmatmul.mubr.bf16.gmra.mrb[0].mxu0 %v1068
      %v3026 = vpop.f32.mrb[0].mxu0
      %v3027 = vadd.f32 0.0, %v3026
      %v3028 = vpop.f32.mrb[0].mxu0
      %v3029 = vpop.f32.mrb[0].mxu0
      %v3030 = vadd.f32 0.0, %v3029
      %v3031 = vpop.f32.mrb[0].mxu0
      %3032 = vmatprep.mubr.bf16.mxu0 0
      %3033 = vmatmul.mubr.bf16.gmra.mrb[0].mxu0 %v1069
      %v3034 = vpop.f32.mrb[0].mxu0
      %v3035 = vadd.f32 0.0, %v3034
      %v3036 = vpop.f32.mrb[0].mxu0
      %v3037 = vpop.f32.mrb[0].mxu0
      %v3038 = vadd.f32 0.0, %v3037
      %v3039 = vpop.f32.mrb[0].mxu0
      %3040 = vmatprep.mubr.bf16.mxu0 0
      %3041 = vmatmul.mubr.bf16.gmra.mrb[0].mxu0 %v1156
      %v3042 = vpop.f32.mrb[0].mxu0
      %v3043 = vadd.f32 0.0, %v3042
      %v3044 = vpop.f32.mrb[0].mxu0
      %v3045 = vpop.f32.mrb[0].mxu0
      %v3046 = vadd.f32 0.0, %v3045
      %v3047 = vpop.f32.mrb[0].mxu0
      %3048 = vdwg.mxu0
      %v3049 = vpack.c.bf16 %v2926, %v2923
      %v3050 = vpack.c.bf16 %v2934, %v2931
      %v3051 = vpack.c.bf16 %v2942, %v2939
      %v3052 = vpack.c.bf16 %v2950, %v2947
      %v3053 = vpack.c.bf16 %v2958, %v2955
      %v3054 = vpack.c.bf16 %v2966, %v2963
      %v3055 = vpack.c.bf16 %v2974, %v2971
      %v3056 = vpack.c.bf16 %v2982, %v2979
      %v3057 = vpack.c.bf16 %v2990, %v2987
      %v3058 = vpack.c.bf16 %v2998, %v2995
      %v3059 = vpack.c.bf16 %v3006, %v3003
      %v3060 = vpack.c.bf16 %v3014, %v3011
      %v3061 = vpack.c.bf16 %v3022, %v3019
      %v3062 = vpack.c.bf16 %v3030, %v3027
      %v3063 = vpack.c.bf16 %v3038, %v3035
      %v3064 = vpack.c.bf16 %v3046, %v3043
      %v3081 = vunpack.c.l.b16 %v3049
      %v3082 = vunpack.c.h.b16 %v3049
      %v3083 = vunpack.c.l.b16 %v3050
      %v3084 = vunpack.c.h.b16 %v3050
      %v3085 = vunpack.c.l.b16 %v3051
      %v3086 = vunpack.c.h.b16 %v3051
      %v3087 = vunpack.c.l.b16 %v3052
      %v3088 = vunpack.c.h.b16 %v3052
      %v3089 = vunpack.c.l.b16 %v3053
      %v3090 = vunpack.c.h.b16 %v3053
      %v3091 = vunpack.c.l.b16 %v3054
      %v3092 = vunpack.c.h.b16 %v3054
      %v3093 = vunpack.c.l.b16 %v3055
      %v3094 = vunpack.c.h.b16 %v3055
      %v3095 = vunpack.c.l.b16 %v3056
      %v3096 = vunpack.c.h.b16 %v3056
      %v3097 = vunpack.c.l.b16 %v3057
      %v3098 = vunpack.c.h.b16 %v3057
      %v3099 = vunpack.c.l.b16 %v3058
      %v3100 = vunpack.c.h.b16 %v3058
      %v3101 = vunpack.c.l.b16 %v3059
      %v3102 = vunpack.c.h.b16 %v3059
      %v3103 = vunpack.c.l.b16 %v3060
      %v3104 = vunpack.c.h.b16 %v3060
      %v3105 = vunpack.c.l.b16 %v3061
      %v3106 = vunpack.c.h.b16 %v3061
      %v3107 = vunpack.c.l.b16 %v3062
      %v3108 = vunpack.c.h.b16 %v3062
      %v3109 = vunpack.c.l.b16 %v3063
      %v3110 = vunpack.c.h.b16 %v3063
      %v3111 = vunpack.c.l.b16 %v3064
      %v3112 = vunpack.c.h.b16 %v3064
      %v3113 = vpack.c.b16 %v3081, %v3081
      %v3114 = vpack.c.b16 %v3082, %v3082
      %v3115 = vpack.c.b16 %v3083, %v3083
      %v3116 = vpack.c.b16 %v3084, %v3084
      %v3117 = vpack.c.b16 %v3085, %v3085
      %v3118 = vpack.c.b16 %v3086, %v3086
      %v3119 = vpack.c.b16 %v3087, %v3087
      %v3120 = vpack.c.b16 %v3088, %v3088
      %v3121 = vpack.c.b16 %v3089, %v3089
      %v3122 = vpack.c.b16 %v3090, %v3090
      %v3123 = vpack.c.b16 %v3091, %v3091
      %v3124 = vpack.c.b16 %v3092, %v3092
      %v3125 = vpack.c.b16 %v3093, %v3093
      %v3126 = vpack.c.b16 %v3094, %v3094
      %v3127 = vpack.c.b16 %v3095, %v3095
      %v3128 = vpack.c.b16 %v3096, %v3096
      %v3129 = vpack.c.b16 %v3097, %v3097
      %v3130 = vpack.c.b16 %v3098, %v3098
      %v3131 = vpack.c.b16 %v3099, %v3099
      %v3132 = vpack.c.b16 %v3100, %v3100
      %v3133 = vpack.c.b16 %v3101, %v3101
      %v3134 = vpack.c.b16 %v3102, %v3102
      %v3135 = vpack.c.b16 %v3103, %v3103
      %v3136 = vpack.c.b16 %v3104, %v3104
      %v3137 = vpack.c.b16 %v3105, %v3105
      %v3138 = vpack.c.b16 %v3106, %v3106
      %v3139 = vpack.c.b16 %v3107, %v3107
      %v3140 = vpack.c.b16 %v3108, %v3108
      %v3141 = vpack.c.b16 %v3109, %v3109
      %v3142 = vpack.c.b16 %v3110, %v3110
      %v3143 = vpack.c.b16 %v3111, %v3111
      %v3144 = vpack.c.b16 %v3112, %v3112
      %3177 = vst [vmem:[%s280] sm:$0xf] %v3113
      %3178 = vst [vmem:[%s280 + $0x4] sm:$0xf] %v3114
      %3179 = vst [vmem:[%s280 + $0x8] sm:$0xf] %v3115
      %3180 = vst [vmem:[%s280 + $0xc] sm:$0xf] %v3116
      %3181 = vst [vmem:[%s280 + $0x10] sm:$0xf] %v3117
      %3182 = vst [vmem:[%s280 + $0x14] sm:$0xf] %v3118
      %3183 = vst [vmem:[%s280 + $0x18] sm:$0xf] %v3119
      %3184 = vst [vmem:[%s280 + $0x1c] sm:$0xf] %v3120
      %3185 = vst [vmem:[%s280 + $0x20] sm:$0xf] %v3121
      %3186 = vst [vmem:[%s280 + $0x24] sm:$0xf] %v3122
      %3187 = vst [vmem:[%s280 + $0x28] sm:$0xf] %v3123
      %3188 = vst [vmem:[%s280 + $0x2c] sm:$0xf] %v3124
      %3189 = vst [vmem:[%s280 + $0x30] sm:$0xf] %v3125
      %3190 = vst [vmem:[%s280 + $0x34] sm:$0xf] %v3126
      %3191 = vst [vmem:[%s280 + $0x38] sm:$0xf] %v3127
      %3192 = vst [vmem:[%s280 + $0x3c] sm:$0xf] %v3128
      %3193 = vst [vmem:[%s280 + $0x40] sm:$0xf] %v3129
      %3194 = vst [vmem:[%s280 + $0x44] sm:$0xf] %v3130
      %3195 = vst [vmem:[%s280 + $0x48] sm:$0xf] %v3131
      %3196 = vst [vmem:[%s280 + $0x4c] sm:$0xf] %v3132
      %3197 = vst [vmem:[%s280 + $0x50] sm:$0xf] %v3133
      %3198 = vst [vmem:[%s280 + $0x54] sm:$0xf] %v3134
      %3199 = vst [vmem:[%s280 + $0x58] sm:$0xf] %v3135
      %3200 = vst [vmem:[%s280 + $0x5c] sm:$0xf] %v3136
      %3201 = vst [vmem:[%s280 + $0x60] sm:$0xf] %v3137
      %3202 = vst [vmem:[%s280 + $0x64] sm:$0xf] %v3138
      %3203 = vst [vmem:[%s280 + $0x68] sm:$0xf] %v3139
      %3204 = vst [vmem:[%s280 + $0x6c] sm:$0xf] %v3140
      %3205 = vst [vmem:[%s280 + $0x70] sm:$0xf] %v3141
      %3206 = vst [vmem:[%s280 + $0x74] sm:$0xf] %v3142
      %3207 = vst [vmem:[%s280 + $0x78] sm:$0xf] %v3143
      %3208 = vst [vmem:[%s280 + $0x7c] sm:$0xf] %v3144
      %v3209 = vadd.f32 %v2923, %v2926
      %v3210 = vadd.f32 %v3209, %v2931
      %v3211 = vadd.f32 %v3210, %v2934
      %v3212 = vadd.f32 %v3211, %v2939
      %v3213 = vadd.f32 %v3212, %v2942
      %v3214 = vadd.f32 %v3213, %v2947
      %v3215 = vadd.f32 %v3214, %v2950
      %v3216 = vadd.f32 %v3215, %v2955
      %v3217 = vadd.f32 %v3216, %v2958
      %v3218 = vadd.f32 %v3217, %v2963
      %v3219 = vadd.f32 %v3218, %v2966
      %v3220 = vadd.f32 %v3219, %v2971
      %v3221 = vadd.f32 %v3220, %v2974
      %v3222 = vadd.f32 %v3221, %v2979
      %v3223 = vadd.f32 %v3222, %v2982
      %v3224 = vadd.f32 %v3223, %v2987
      %v3225 = vadd.f32 %v3224, %v2990
      %v3226 = vadd.f32 %v3225, %v2995
      %v3227 = vadd.f32 %v3226, %v2998
      %v3228 = vadd.f32 %v3227, %v3003
      %v3229 = vadd.f32 %v3228, %v3006
      %v3230 = vadd.f32 %v3229, %v3011
      %v3231 = vadd.f32 %v3230, %v3014
      %v3232 = vadd.f32 %v3231, %v3019
      %v3233 = vadd.f32 %v3232, %v3022
      %v3234 = vadd.f32 %v3233, %v3027
      %v3235 = vadd.f32 %v3234, %v3030
      %v3236 = vadd.f32 %v3235, %v3035
      %v3237 = vadd.f32 %v3236, %v3038
      %v3238 = vadd.f32 %v3237, %v3043
      %v3239 = vadd.f32 %v3238, %v3046
      %v3240 = vrot.slane %v3239, 4
      %v3241 = vadd.f32 %v3239, %v3240
      %v3242 = vrot.slane %v3241, 2
      %v3243 = vadd.f32 %v3241, %v3242
      %v3244 = vrot.slane %v3243, 1
      %v3245 = vadd.f32 %v3243, %v3244
      %v3246 = vmul.f32 %v2923, %v2923
      %v3247 = vmul.f32 %v2926, %v2926
      %v3248 = vmul.f32 %v2931, %v2931
      %v3249 = vmul.f32 %v2934, %v2934
      %v3250 = vmul.f32 %v2939, %v2939
      %v3251 = vmul.f32 %v2942, %v2942
      %v3252 = vmul.f32 %v2947, %v2947
      %v3253 = vmul.f32 %v2950, %v2950
      %v3254 = vmul.f32 %v2955, %v2955
      %v3255 = vmul.f32 %v2958, %v2958
      %v3256 = vmul.f32 %v2963, %v2963
      %v3257 = vmul.f32 %v2966, %v2966
      %v3258 = vmul.f32 %v2971, %v2971
      %v3259 = vmul.f32 %v2974, %v2974
      %v3260 = vmul.f32 %v2979, %v2979
      %v3261 = vmul.f32 %v2982, %v2982
      %v3262 = vmul.f32 %v2987, %v2987
      %v3263 = vmul.f32 %v2990, %v2990
      %v3264 = vmul.f32 %v2995, %v2995
      %v3265 = vmul.f32 %v2998, %v2998
      %v3266 = vmul.f32 %v3003, %v3003
      %v3267 = vmul.f32 %v3006, %v3006
      %v3268 = vmul.f32 %v3011, %v3011
      %v3269 = vmul.f32 %v3014, %v3014
      %v3270 = vmul.f32 %v3019, %v3019
      %v3271 = vmul.f32 %v3022, %v3022
      %v3272 = vmul.f32 %v3027, %v3027
      %v3273 = vmul.f32 %v3030, %v3030
      %v3274 = vmul.f32 %v3035, %v3035
      %v3275 = vmul.f32 %v3038, %v3038
      %v3276 = vmul.f32 %v3043, %v3043
      %v3277 = vmul.f32 %v3046, %v3046
      %v3278 = vadd.f32 %v3246, %v3247
      %v3279 = vadd.f32 %v3278, %v3248
      %v3280 = vadd.f32 %v3279, %v3249
      %v3281 = vadd.f32 %v3280, %v3250
      %v3282 = vadd.f32 %v3281, %v3251
      %v3283 = vadd.f32 %v3282, %v3252
      %v3284 = vadd.f32 %v3283, %v3253
      %v3285 = vadd.f32 %v3284, %v3254
      %v3286 = vadd.f32 %v3285, %v3255
      %v3287 = vadd.f32 %v3286, %v3256
      %v3288 = vadd.f32 %v3287, %v3257
      %v3289 = vadd.f32 %v3288, %v3258
      %v3290 = vadd.f32 %v3289, %v3259
      %v3291 = vadd.f32 %v3290, %v3260
      %v3292 = vadd.f32 %v3291, %v3261
      %v3293 = vadd.f32 %v3292, %v3262
      %v3294 = vadd.f32 %v3293, %v3263
      %v3295 = vadd.f32 %v3294, %v3264
      %v3296 = vadd.f32 %v3295, %v3265
      %v3297 = vadd.f32 %v3296, %v3266
      %v3298 = vadd.f32 %v3297, %v3267
      %v3299 = vadd.f32 %v3298, %v3268
      %v3300 = vadd.f32 %v3299, %v3269
      %v3301 = vadd.f32 %v3300, %v3270
      %v3302 = vadd.f32 %v3301, %v3271
      %v3303 = vadd.f32 %v3302, %v3272
      %v3304 = vadd.f32 %v3303, %v3273
      %v3305 = vadd.f32 %v3304, %v3274
      %v3306 = vadd.f32 %v3305, %v3275
      %v3307 = vadd.f32 %v3306, %v3276
      %v3308 = vadd.f32 %v3307, %v3277
      %v3309 = vrot.slane %v3308, 4
      %v3310 = vadd.f32 %v3308, %v3309
      %v3311 = vrot.slane %v3310, 2
      %v3312 = vadd.f32 %v3310, %v3311
      %v3313 = vrot.slane %v3312, 1
      %v3314 = vadd.f32 %v3312, %v3313
      %v3315 = vsel %vm2821, %v3245, %v3314
      %3316 = vst [vmem:[%s284] sm:$0x3] %v3315
      %p3317 = scmp.lt.s32.totalorder %s18, 1
      %s3318 = scalar_select %p3317, %s18, 1
      %s3319 = smul.addr %s3318, 32
      %s3320 = smul.addr %s3319, 4
      %s3321 = scalar_lea.vmem %s3, %s3320
      %p3322 = scmp.lt.s32.totalorder %s18, 1
      %s3323 = scalar_select %p3322, %s18, 1
      %s3324 = smul.addr %s3323, 2
      %s3325 = scalar_lea.vmem %s4, %s3324
      %p3326 = scmp.lt.s32.totalorder %s18, 1
      %s3327 = scalar_select %p3326, %s18, 1
      %s3328 = smul.addr %s3327, 32
      %s3329 = smul.addr %s3328, 4
      %s3330 = scalar_lea.vmem %s5, %s3329
      %p3331 = scmp.lt.s32.totalorder %s18, 1
      %s3332 = scalar_select %p3331, %s18, 1
      %s3333 = smul.addr %s3332, 2
      %s3334 = scalar_lea.vmem %s6, %s3333
      // Predicated region
      $region33: #{basic_block_forward.3} parent=31 // pred_check
        %p3335 = pneg %p104
      $region34: #{basic_block_forward.3} parent=31 // pred_check_branch
        %3337 = sbr.rel (%p3335) target = $region36
      $region35: #{basic_block_forward.3} parent=31 // pred_region
        _
      $region36: #{basic_block_forward.3} parent=31 // pred_fallthru
        _
      // Predicated region
      $region37: #{basic_block_forward.3} parent=31 // pred_check
        %p3338 = pneg %p130
      $region38: #{basic_block_forward.3} parent=31 // pred_check_branch
        %3340 = sbr.rel (%p3338) target = $region40
      $region39: #{basic_block_forward.3} parent=31 // pred_region
        _
      $region40: #{basic_block_forward.3} parent=31 // pred_fallthru
        _
      // Predicated region
      $region41: #{basic_block_forward.3} parent=31 // pred_check
        %p3341 = pneg %p156
      $region42: #{basic_block_forward.3} parent=31 // pred_check_branch
        %3343 = sbr.rel (%p3341) target = $region44
      $region43: #{basic_block_forward.3} parent=31 // pred_region
        _
      $region44: #{basic_block_forward.3} parent=31 // pred_fallthru
        _
      // Predicated region
      $region45: #{basic_block_forward.3} parent=31 // pred_check
        %p3344 = pneg %p182
      $region46: #{basic_block_forward.3} parent=31 // pred_check_branch
        %3346 = sbr.rel (%p3344) target = $region48
      $region47: #{basic_block_forward.3} parent=31 // pred_region
        _
      $region48: #{basic_block_forward.3} parent=31 // pred_fallthru
        _
    $region32: #{basic_block_forward.3} parent=5 // pred_fallthru
      _
    %p3347 = scmp.le.s32.totalorder 2, %s13
    // Predicated region
    $region49: #{basic_block_forward.3} parent=5 // pred_check
      %p3348 = pneg %p3347
    $region50: #{basic_block_forward.3} parent=5 // pred_check_branch
      %3350 = sbr.rel (%p3348) target = $region52
    $region51: #{basic_block_forward.3} parent=5 // pred_region
      %s3351 = ssub.s32 %s13, 2
      // Predicated region
      $region53: #{basic_block_forward.3} parent=51 // pred_check
        %p3352 = pneg %p110
      $region54: #{basic_block_forward.3} parent=51 // pred_check_branch
        %3354 = sbr.rel (%p3352) target = $region56
      $region55: #{basic_block_forward.3} parent=51 // pred_region
        %p3355 = scmp.lt.s32.totalorder %s19, 1
        %s3356 = scalar_select %p3355, %s19, 1
        %s3357 = smul.addr %s3356, 32
        %s3358 = smul.addr %s3357, 4
        %s3359 = scalar_lea.vmem %s3, %s3358
      $region56: #{basic_block_forward.3} parent=51 // pred_fallthru
        _
      // Predicated region
      $region57: #{basic_block_forward.3} parent=51 // pred_check
        %p3360 = pneg %p136
      $region58: #{basic_block_forward.3} parent=51 // pred_check_branch
        %3362 = sbr.rel (%p3360) target = $region60
      $region59: #{basic_block_forward.3} parent=51 // pred_region
        %p3363 = scmp.lt.s32.totalorder %s19, 1
        %s3364 = scalar_select %p3363, %s19, 1
        %s3365 = smul.addr %s3364, 2
        %s3366 = scalar_lea.vmem %s4, %s3365
      $region60: #{basic_block_forward.3} parent=51 // pred_fallthru
        _
      // Predicated region
      $region61: #{basic_block_forward.3} parent=51 // pred_check
        %p3367 = pneg %p162
      $region62: #{basic_block_forward.3} parent=51 // pred_check_branch
        %3369 = sbr.rel (%p3367) target = $region64
      $region63: #{basic_block_forward.3} parent=51 // pred_region
        %p3370 = scmp.lt.s32.totalorder %s19, 1
        %s3371 = scalar_select %p3370, %s19, 1
        %s3372 = smul.addr %s3371, 32
        %s3373 = smul.addr %s3372, 4
        %s3374 = scalar_lea.vmem %s5, %s3373
      $region64: #{basic_block_forward.3} parent=51 // pred_fallthru
        _
      // Predicated region
      $region65: #{basic_block_forward.3} parent=51 // pred_check
        %p3375 = pneg %p188
      $region66: #{basic_block_forward.3} parent=51 // pred_check_branch
        %3377 = sbr.rel (%p3375) target = $region68
      $region67: #{basic_block_forward.3} parent=51 // pred_region
        %p3378 = scmp.lt.s32.totalorder %s19, 1
        %s3379 = scalar_select %p3378, %s19, 1
        %s3380 = smul.addr %s3379, 2
        %s3381 = scalar_lea.vmem %s6, %s3380
      $region68: #{basic_block_forward.3} parent=51 // pred_fallthru
        _
    $region52: #{basic_block_forward.3} parent=5 // pred_fallthru
      _
  $region6: #{basic_block_forward.3} parent=0 // loop_footer
    %s17 = sadd.s32 1, %s13
  $region7: #{basic_block_forward.3} parent=0 // loop_footer_branch
    %12 = sbr.rel target = $region3
  $region8: #{basic_block_forward.3} parent=0 // loop_exit
    _

// kernel: basic_block_forward.4
$region0: #{basic_block_forward.4}
  #allocation0 [shape = 'u32[]', space=smem, size = 0x4, offset = 0x4, fixed_abs, tag = 'smem constant byte address 0x4 - core index']
  #allocation1 [shape = 'u32[144,128]{1,0:T(1,128)}', space=vmem, size = 0x12000, scoped, tag = 'internal scratch']
  #allocation2 [shape = 'bf16[18,18,128]{2,1,0:T(8,128)(2,1)}', space=vmem, size = 0x1b000, scoped, tag = 'scratch operand']
  %s0 = inlined_call_operand.vmem [shape: bf16[2,256,128], index: 0, kind: input, shape index: {}]
  %s1 = inlined_call_operand.vmem [shape: bf16[1152,128], index: 1, kind: input, shape index: {}]
  %s2 = inlined_call_operand.vmem [shape: f32[1,128], index: 2, kind: input, shape index: {}]
  %s3 = inlined_call_operand.vmem [shape: f32[1,128], index: 3, kind: input, shape index: {}]
  %s4 = inlined_call_operand.vmem [shape: bf16[2,256,128], index: 4, kind: output, shape index: {0}]
  %s5 = inlined_call_operand.vmem [shape: f32[2,2,128], index: 5, kind: output, shape index: {1}]
  %6 = xla_tuple %s4, %s5
  %s7 = sld [smem:[#allocation0]]
  $region57: #{basic_block_forward.4} parent=0
    _
  %s9 = ssub.s32 1, %s7
  %s10 = scalar_select 0, %s9, %s7
  loop: start=0, step=1, limit=4
  $region2: #{basic_block_forward.4} parent=0 // loop_pre_header
    _
  $region3: #{basic_block_forward.4} parent=0 // loop_header
    %s12 = sphi 0, %s16
    %p13 = scmp.ge.s32.totalorder %s12, 4
    %s22 = sphi 0, %s24
    %s25 = sphi 0, %s22
    %s26 = sphi 0, %s25
    %s42 = sphi 0, %s26
    %s46 = sphi 0, %s46
    %s48 = sphi 0, %s46
    %s49 = sphi 0, %s48
    %s63 = sphi 0, %s49
    %s67 = sphi 0, %s67
    %s69 = sphi 0, %s67
    %s70 = sphi 0, %s69
    %s84 = sphi 0, %s70
    %s88 = sphi 0, %s88
    %s90 = sphi 0, %s88
    %s91 = sphi 0, %s90
    %s105 = sphi 0, %s91
    %s111 = sphi 0, %s113
    %s114 = sphi 0, %s111
    %s115 = sphi 0, %s114
    %s131 = sphi 0, %s115
    %s137 = sphi 0, %s139
    %s140 = sphi 0, %s137
    %s141 = sphi 0, %s140
    %s157 = sphi 0, %s141
  $region4: #{basic_block_forward.4} parent=0 // loop_header_branch
    %15 = sbr.rel (%p13) target = $region8
  $region5: #{basic_block_forward.4} parent=0 // loop_body
    %s17 = ssub.s32 %s12, 1
    %s18 = ssub.s32 %s12, 2
    %s19 = sadd.s32 %s12, 1
    %s20 = ssub.s32 %s12, %s19
    %p21 = scmp.eq.s32.totalorder %s20, 0
    %s23 = sadd.s32 %s22, 1
    %s24 = scalar_select %p21, %s22, %s23
    %p27 = pneg %p21
    %p28 = scmp.eq.s32.totalorder %s12, 1
    %p29 = por %p27, %p28
    %p30 = scmp.ne.s32.totalorder %s22, %s25
    %p31 = scmp.eq.s32.totalorder %s12, 0
    %p32 = por %p30, %p31
    %p33 = scmp.ne.s32.totalorder %s22, %s25
    %p34 = scmp.eq.s32.totalorder %s17, 1
    %p35 = por %p33, %p34
    %p36 = scmp.ne.s32.totalorder %s25, %s26
    %p37 = scmp.eq.s32.totalorder %s17, 0
    %p38 = por %p36, %p37
    %p39 = scmp.ne.s32.totalorder %s25, %s26
    %p40 = scmp.eq.s32.totalorder %s18, 1
    %p41 = por %p39, %p40
    %p43 = scmp.ne.s32.totalorder %s26, %s42
    %p44 = scmp.eq.s32.totalorder %s18, 0
    %p45 = por %p43, %p44
    %s47 = sadd.s32 %s46, 1
    %p50 = scmp.eq.s32.totalorder %s12, 1
    %p51 = scmp.ne.s32.totalorder %s46, %s48
    %p52 = scmp.eq.s32.totalorder %s12, 0
    %p53 = por %p51, %p52
    %p54 = scmp.ne.s32.totalorder %s46, %s48
    %p55 = scmp.eq.s32.totalorder %s17, 1
    %p56 = por %p54, %p55
    %p57 = scmp.ne.s32.totalorder %s48, %s49
    %p58 = scmp.eq.s32.totalorder %s17, 0
    %p59 = por %p57, %p58
    %p60 = scmp.ne.s32.totalorder %s48, %s49
    %p61 = scmp.eq.s32.totalorder %s18, 1
    %p62 = por %p60, %p61
    %p64 = scmp.ne.s32.totalorder %s49, %s63
    %p65 = scmp.eq.s32.totalorder %s18, 0
    %p66 = por %p64, %p65
    %s68 = sadd.s32 %s67, 1
    %p71 = scmp.eq.s32.totalorder %s12, 1
    %p72 = scmp.ne.s32.totalorder %s67, %s69
    %p73 = scmp.eq.s32.totalorder %s12, 0
    %p74 = por %p72, %p73
    %p75 = scmp.ne.s32.totalorder %s67, %s69
    %p76 = scmp.eq.s32.totalorder %s17, 1
    %p77 = por %p75, %p76
    %p78 = scmp.ne.s32.totalorder %s69, %s70
    %p79 = scmp.eq.s32.totalorder %s17, 0
    %p80 = por %p78, %p79
    %p81 = scmp.ne.s32.totalorder %s69, %s70
    %p82 = scmp.eq.s32.totalorder %s18, 1
    %p83 = por %p81, %p82
    %p85 = scmp.ne.s32.totalorder %s70, %s84
    %p86 = scmp.eq.s32.totalorder %s18, 0
    %p87 = por %p85, %p86
    %s89 = sadd.s32 %s88, 1
    %p92 = scmp.eq.s32.totalorder %s12, 1
    %p93 = scmp.ne.s32.totalorder %s88, %s90
    %p94 = scmp.eq.s32.totalorder %s12, 0
    %p95 = por %p93, %p94
    %p96 = scmp.ne.s32.totalorder %s88, %s90
    %p97 = scmp.eq.s32.totalorder %s17, 1
    %p98 = por %p96, %p97
    %p99 = scmp.ne.s32.totalorder %s90, %s91
    %p100 = scmp.eq.s32.totalorder %s17, 0
    %p101 = por %p99, %p100
    %p102 = scmp.ne.s32.totalorder %s90, %s91
    %p103 = scmp.eq.s32.totalorder %s18, 1
    %p104 = por %p102, %p103
    %p106 = scmp.ne.s32.totalorder %s91, %s105
    %p107 = scmp.eq.s32.totalorder %s18, 0
    %p108 = por %p106, %p107
    %s109 = ssub.s32 %s12, %s19
    %p110 = scmp.eq.s32.totalorder %s109, 0
    %s112 = sadd.s32 %s111, 1
    %s113 = scalar_select %p110, %s111, %s112
    %p116 = pneg %p110
    %p117 = scmp.eq.s32.totalorder %s12, 1
    %p118 = por %p116, %p117
    %p119 = scmp.ne.s32.totalorder %s111, %s114
    %p120 = scmp.eq.s32.totalorder %s12, 0
    %p121 = por %p119, %p120
    %p122 = scmp.ne.s32.totalorder %s111, %s114
    %p123 = scmp.eq.s32.totalorder %s17, 1
    %p124 = por %p122, %p123
    %p125 = scmp.ne.s32.totalorder %s114, %s115
    %p126 = scmp.eq.s32.totalorder %s17, 0
    %p127 = por %p125, %p126
    %p128 = scmp.ne.s32.totalorder %s114, %s115
    %p129 = scmp.eq.s32.totalorder %s18, 1
    %p130 = por %p128, %p129
    %p132 = scmp.ne.s32.totalorder %s115, %s131
    %p133 = scmp.eq.s32.totalorder %s18, 0
    %p134 = por %p132, %p133
    %s135 = ssub.s32 %s12, %s19
    %p136 = scmp.eq.s32.totalorder %s135, 0
    %s138 = sadd.s32 %s137, 1
    %s139 = scalar_select %p136, %s137, %s138
    %p142 = pneg %p136
    %p143 = scmp.eq.s32.totalorder %s12, 1
    %p144 = por %p142, %p143
    %p145 = scmp.ne.s32.totalorder %s137, %s140
    %p146 = scmp.eq.s32.totalorder %s12, 0
    %p147 = por %p145, %p146
    %p148 = scmp.ne.s32.totalorder %s137, %s140
    %p149 = scmp.eq.s32.totalorder %s17, 1
    %p150 = por %p148, %p149
    %p151 = scmp.ne.s32.totalorder %s140, %s141
    %p152 = scmp.eq.s32.totalorder %s17, 0
    %p153 = por %p151, %p152
    %p154 = scmp.ne.s32.totalorder %s140, %s141
    %p155 = scmp.eq.s32.totalorder %s18, 1
    %p156 = por %p154, %p155
    %p158 = scmp.ne.s32.totalorder %s141, %s157
    %p159 = scmp.eq.s32.totalorder %s18, 0
    %p160 = por %p158, %p159
    %p161 = scmp.le.s32.totalorder 1, %s12
    %p162 = scmp.lt.s32.totalorder %s12, 3
    %p163 = pnand %p161, %p162
    %p164 = pneg %p163
    // Predicated region
    $region9: #{basic_block_forward.4} parent=5 // pred_check
      _
    $region10: #{basic_block_forward.4} parent=5 // pred_check_branch
      %166 = sbr.rel (%p163) target = $region12
    $region11: #{basic_block_forward.4} parent=5 // pred_region
      %s167 = ssub.s32 %s12, 1
      // Predicated region
      $region13: #{basic_block_forward.4} parent=11 // pred_check
        %p168 = pneg %p59
      $region14: #{basic_block_forward.4} parent=11 // pred_check_branch
        %170 = sbr.rel (%p168) target = $region16
      $region15: #{basic_block_forward.4} parent=11 // pred_region
        _
      $region16: #{basic_block_forward.4} parent=11 // pred_fallthru
        _
      // Predicated region
      $region17: #{basic_block_forward.4} parent=11 // pred_check
        %p171 = pneg %p80
      $region18: #{basic_block_forward.4} parent=11 // pred_check_branch
        %173 = sbr.rel (%p171) target = $region20
      $region19: #{basic_block_forward.4} parent=11 // pred_region
        _
      $region20: #{basic_block_forward.4} parent=11 // pred_fallthru
        _
      // Predicated region
      $region21: #{basic_block_forward.4} parent=11 // pred_check
        %p174 = pneg %p101
      $region22: #{basic_block_forward.4} parent=11 // pred_check_branch
        %176 = sbr.rel (%p174) target = $region24
      $region23: #{basic_block_forward.4} parent=11 // pred_region
        _
      $region24: #{basic_block_forward.4} parent=11 // pred_fallthru
        _
    $region12: #{basic_block_forward.4} parent=5 // pred_fallthru
      _
    %p177 = scmp.lt.s32.totalorder %s12, 2
    // Predicated region
    $region25: #{basic_block_forward.4} parent=5 // pred_check
      %p178 = pneg %p177
    $region26: #{basic_block_forward.4} parent=5 // pred_check_branch
      %180 = sbr.rel (%p178) target = $region28
    $region27: #{basic_block_forward.4} parent=5 // pred_region
      // Predicated region
      $region29: #{basic_block_forward.4} parent=27 // pred_check
        %p181 = pneg %p32
      $region30: #{basic_block_forward.4} parent=27 // pred_check_branch
        %183 = sbr.rel (%p181) target = $region32
      $region31: #{basic_block_forward.4} parent=27 // pred_region
        %p184 = scmp.lt.s32.totalorder %s12, 1
        %s185 = scalar_select %p184, %s12, 1
        %s186 = smul.addr %s185, 32
        %s187 = smul.addr %s186, 4
        %s188 = scalar_lea.vmem %s0, %s187
      $region32: #{basic_block_forward.4} parent=27 // pred_fallthru
        _
    $region28: #{basic_block_forward.4} parent=5 // pred_fallthru
      _
    %p189 = scmp.le.s32.totalorder 1, %s12
    %p190 = scmp.lt.s32.totalorder %s12, 3
    %p191 = pnand %p189, %p190
    %p192 = pneg %p191
    // Predicated region
    $region33: #{basic_block_forward.4} parent=5 // pred_check
      _
    $region34: #{basic_block_forward.4} parent=5 // pred_check_branch
      %194 = sbr.rel (%p191) target = $region36
    $region35: #{basic_block_forward.4} parent=5 // pred_region
      %s195 = ssub.s32 %s12, 1
      %p196 = scmp.lt.s32.totalorder %s17, 1
      %s197 = scalar_select %p196, %s17, 1
      %s198 = smul.addr %s197, 32
      %s199 = smul.addr %s198, 4
      %s200 = scalar_lea.vmem %s0, %s199
      %p201 = pneg %p38
      %p202 = pneg %p35
      %p203 = pneg %p59
      %p204 = pneg %p56
      %p205 = pneg %p80
      %p206 = pneg %p77
      %p207 = pneg %p101
      %p208 = pneg %p98
      %p209 = pneg %p127
      %p210 = pneg %p124
      %p211 = scmp.lt.s32.totalorder %s17, 1
      %s212 = scalar_select %p211, %s17, 1
      %s213 = smul.addr %s212, 32
      %s214 = smul.addr %s213, 4
      %s215 = scalar_lea.vmem %s4, %s214
      %p216 = pneg %p153
      %p217 = pneg %p150
      %p218 = scmp.lt.s32.totalorder %s17, 1
      %s219 = scalar_select %p218, %s17, 1
      %s220 = smul.addr %s219, 2
      %s221 = scalar_lea.vmem %s5, %s220
      %p222 = scmp.lt.s32.totalorder %s17, 1
      %s223 = scalar_select %p222, %s17, 1
      %s224 = smul.addr %s223, 32
      %s225 = smul.addr %s224, 4
      %s226 = scalar_lea.vmem %s0, %s225
      %p227 = scmp.lt.s32.totalorder %s17, 1
      %s228 = scalar_select %p227, %s17, 1
      %s229 = smul.addr %s228, 32
      %s230 = smul.addr %s229, 4
      %s231 = scalar_lea.vmem %s4, %s230
      %p232 = scmp.lt.s32.totalorder %s17, 1
      %s233 = scalar_select %p232, %s17, 1
      %s234 = smul.addr %s233, 2
      %s235 = scalar_lea.vmem %s5, %s234
      %v237 = vld [vmem:[%s226] sm:$0xf]
      %v238 = vld [vmem:[%s226 + $0x4] sm:$0xf]
      %v239 = vld [vmem:[%s226 + $0x8] sm:$0xf]
      %v240 = vld [vmem:[%s226 + $0xc] sm:$0xf]
      %v241 = vld [vmem:[%s226 + $0x10] sm:$0xf]
      %v242 = vld [vmem:[%s226 + $0x14] sm:$0xf]
      %v243 = vld [vmem:[%s226 + $0x18] sm:$0xf]
      %v244 = vld [vmem:[%s226 + $0x1c] sm:$0xf]
      %v245 = vld [vmem:[%s226 + $0x20] sm:$0xf]
      %v246 = vld [vmem:[%s226 + $0x24] sm:$0xf]
      %v247 = vld [vmem:[%s226 + $0x28] sm:$0xf]
      %v248 = vld [vmem:[%s226 + $0x2c] sm:$0xf]
      %v249 = vld [vmem:[%s226 + $0x30] sm:$0xf]
      %v250 = vld [vmem:[%s226 + $0x34] sm:$0xf]
      %v251 = vld [vmem:[%s226 + $0x38] sm:$0xf]
      %v252 = vld [vmem:[%s226 + $0x3c] sm:$0xf]
      %v253 = vld [vmem:[%s226 + $0x40] sm:$0xf]
      %v254 = vld [vmem:[%s226 + $0x44] sm:$0xf]
      %v255 = vld [vmem:[%s226 + $0x48] sm:$0xf]
      %v256 = vld [vmem:[%s226 + $0x4c] sm:$0xf]
      %v257 = vld [vmem:[%s226 + $0x50] sm:$0xf]
      %v258 = vld [vmem:[%s226 + $0x54] sm:$0xf]
      %v259 = vld [vmem:[%s226 + $0x58] sm:$0xf]
      %v260 = vld [vmem:[%s226 + $0x5c] sm:$0xf]
      %v261 = vld [vmem:[%s226 + $0x60] sm:$0xf]
      %v262 = vld [vmem:[%s226 + $0x64] sm:$0xf]
      %v263 = vld [vmem:[%s226 + $0x68] sm:$0xf]
      %v264 = vld [vmem:[%s226 + $0x6c] sm:$0xf]
      %v265 = vld [vmem:[%s226 + $0x70] sm:$0xf]
      %v266 = vld [vmem:[%s226 + $0x74] sm:$0xf]
      %v267 = vld [vmem:[%s226 + $0x78] sm:$0xf]
      %v268 = vld [vmem:[%s226 + $0x7c] sm:$0xf]
      %v269 = vunpack.c.l.bf16 %v237
      %v270 = vunpack.c.l.bf16 %v238
      %v271 = vunpack.c.l.bf16 %v239
      %v272 = vunpack.c.l.bf16 %v240
      %v273 = vunpack.c.l.bf16 %v241
      %v274 = vunpack.c.l.bf16 %v242
      %v275 = vunpack.c.l.bf16 %v243
      %v276 = vunpack.c.l.bf16 %v244
      %v277 = vunpack.c.l.bf16 %v245
      %v278 = vunpack.c.l.bf16 %v246
      %v279 = vunpack.c.l.bf16 %v247
      %v280 = vunpack.c.l.bf16 %v248
      %v281 = vunpack.c.l.bf16 %v249
      %v282 = vunpack.c.l.bf16 %v250
      %v283 = vunpack.c.l.bf16 %v251
      %v284 = vunpack.c.l.bf16 %v252
      %v285 = vunpack.c.l.bf16 %v253
      %v286 = vunpack.c.l.bf16 %v254
      %v287 = vunpack.c.l.bf16 %v255
      %v288 = vunpack.c.l.bf16 %v256
      %v289 = vunpack.c.l.bf16 %v257
      %v290 = vunpack.c.l.bf16 %v258
      %v291 = vunpack.c.l.bf16 %v259
      %v292 = vunpack.c.l.bf16 %v260
      %v293 = vunpack.c.l.bf16 %v261
      %v294 = vunpack.c.l.bf16 %v262
      %v295 = vunpack.c.l.bf16 %v263
      %v296 = vunpack.c.l.bf16 %v264
      %v297 = vunpack.c.l.bf16 %v265
      %v298 = vunpack.c.l.bf16 %v266
      %v299 = vunpack.c.l.bf16 %v267
      %v300 = vunpack.c.l.bf16 %v268
      %v301 = vld [vmem:[%s2] sm:$0x1]
      %v303 = vlaneseq
      %v304 = vshrl.u32 %v303, 7
      %v305 = vsub.s32 0, %v304
      %v306 = vrot.slane %v301, %v305
      %v308 = vmul.f32 %v269, %v306
      %v309 = vmul.f32 %v270, %v306
      %v310 = vmul.f32 %v271, %v306
      %v311 = vmul.f32 %v272, %v306
      %v312 = vmul.f32 %v273, %v306
      %v313 = vmul.f32 %v274, %v306
      %v314 = vmul.f32 %v275, %v306
      %v315 = vmul.f32 %v276, %v306
      %v316 = vmul.f32 %v277, %v306
      %v317 = vmul.f32 %v278, %v306
      %v318 = vmul.f32 %v279, %v306
      %v319 = vmul.f32 %v280, %v306
      %v320 = vmul.f32 %v281, %v306
      %v321 = vmul.f32 %v282, %v306
      %v322 = vmul.f32 %v283, %v306
      %v323 = vmul.f32 %v284, %v306
      %v324 = vmul.f32 %v285, %v306
      %v325 = vmul.f32 %v286, %v306
      %v326 = vmul.f32 %v287, %v306
      %v327 = vmul.f32 %v288, %v306
      %v328 = vmul.f32 %v289, %v306
      %v329 = vmul.f32 %v290, %v306
      %v330 = vmul.f32 %v291, %v306
      %v331 = vmul.f32 %v292, %v306
      %v332 = vmul.f32 %v293, %v306
      %v333 = vmul.f32 %v294, %v306
      %v334 = vmul.f32 %v295, %v306
      %v335 = vmul.f32 %v296, %v306
      %v336 = vmul.f32 %v297, %v306
      %v337 = vmul.f32 %v298, %v306
      %v338 = vmul.f32 %v299, %v306
      %v339 = vmul.f32 %v300, %v306
      %v340 = vld [vmem:[%s3] sm:$0x1]
      %v342 = vlaneseq
      %v343 = vshrl.u32 %v342, 7
      %v344 = vsub.s32 0, %v343
      %v345 = vrot.slane %v340, %v344
      %v347 = vadd.f32 %v308, %v345
      %v348 = vadd.f32 %v309, %v345
      %v349 = vadd.f32 %v310, %v345
      %v350 = vadd.f32 %v311, %v345
      %v351 = vadd.f32 %v312, %v345
      %v352 = vadd.f32 %v313, %v345
      %v353 = vadd.f32 %v314, %v345
      %v354 = vadd.f32 %v315, %v345
      %v355 = vadd.f32 %v316, %v345
      %v356 = vadd.f32 %v317, %v345
      %v357 = vadd.f32 %v318, %v345
      %v358 = vadd.f32 %v319, %v345
      %v359 = vadd.f32 %v320, %v345
      %v360 = vadd.f32 %v321, %v345
      %v361 = vadd.f32 %v322, %v345
      %v362 = vadd.f32 %v323, %v345
      %v363 = vadd.f32 %v324, %v345
      %v364 = vadd.f32 %v325, %v345
      %v365 = vadd.f32 %v326, %v345
      %v366 = vadd.f32 %v327, %v345
      %v367 = vadd.f32 %v328, %v345
      %v368 = vadd.f32 %v329, %v345
      %v369 = vadd.f32 %v330, %v345
      %v370 = vadd.f32 %v331, %v345
      %v371 = vadd.f32 %v332, %v345
      %v372 = vadd.f32 %v333, %v345
      %v373 = vadd.f32 %v334, %v345
      %v374 = vadd.f32 %v335, %v345
      %v375 = vadd.f32 %v336, %v345
      %v376 = vadd.f32 %v337, %v345
      %v377 = vadd.f32 %v338, %v345
      %v378 = vadd.f32 %v339, %v345
      %v379 = vmax.f32 %v347, 0.0
      %v380 = vmax.f32 %v348, 0.0
      %v381 = vmax.f32 %v349, 0.0
      %v382 = vmax.f32 %v350, 0.0
      %v383 = vmax.f32 %v351, 0.0
      %v384 = vmax.f32 %v352, 0.0
      %v385 = vmax.f32 %v353, 0.0
      %v386 = vmax.f32 %v354, 0.0
      %v387 = vmax.f32 %v355, 0.0
      %v388 = vmax.f32 %v356, 0.0
      %v389 = vmax.f32 %v357, 0.0
      %v390 = vmax.f32 %v358, 0.0
      %v391 = vmax.f32 %v359, 0.0
      %v392 = vmax.f32 %v360, 0.0
      %v393 = vmax.f32 %v361, 0.0
      %v394 = vmax.f32 %v362, 0.0
      %v395 = vmax.f32 %v363, 0.0
      %v396 = vmax.f32 %v364, 0.0
      %v397 = vmax.f32 %v365, 0.0
      %v398 = vmax.f32 %v366, 0.0
      %v399 = vmax.f32 %v367, 0.0
      %v400 = vmax.f32 %v368, 0.0
      %v401 = vmax.f32 %v369, 0.0
      %v402 = vmax.f32 %v370, 0.0
      %v403 = vmax.f32 %v371, 0.0
      %v404 = vmax.f32 %v372, 0.0
      %v405 = vmax.f32 %v373, 0.0
      %v406 = vmax.f32 %v374, 0.0
      %v407 = vmax.f32 %v375, 0.0
      %v408 = vmax.f32 %v376, 0.0
      %v409 = vmax.f32 %v377, 0.0
      %v410 = vmax.f32 %v378, 0.0
      %v411 = vpack.c.bf16 %v380, %v379
      %v412 = vpack.c.bf16 %v382, %v381
      %v413 = vpack.c.bf16 %v384, %v383
      %v414 = vpack.c.bf16 %v386, %v385
      %v415 = vpack.c.bf16 %v388, %v387
      %v416 = vpack.c.bf16 %v390, %v389
      %v417 = vpack.c.bf16 %v392, %v391
      %v418 = vpack.c.bf16 %v394, %v393
      %v419 = vpack.c.bf16 %v396, %v395
      %v420 = vpack.c.bf16 %v398, %v397
      %v421 = vpack.c.bf16 %v400, %v399
      %v422 = vpack.c.bf16 %v402, %v401
      %v423 = vpack.c.bf16 %v404, %v403
      %v424 = vpack.c.bf16 %v406, %v405
      %v425 = vpack.c.bf16 %v408, %v407
      %v426 = vpack.c.bf16 %v410, %v409
      %427 = vst [vmem:[#allocation2] sm:$0xf] 0
      %428 = vst [vmem:[#allocation2 + $0x4] sm:$0xf] 0
      %429 = vst [vmem:[#allocation2 + $0x8] sm:$0x1] 0
      %s430 = scalar_lea.vmem [#allocation2], 204
      %431 = vst [vmem:[%s430] sm:$0xf] 0
      %432 = vst [vmem:[%s430 + $0x4] sm:$0xf] 0
      %433 = vst [vmem:[%s430 + $0x8] sm:$0x1] 0
      %vm434 = vcmask 1040384
      %vm435 = vsmask.f32 256
      %vm436 = vmand %vm434, %vm435
      %v437 = vld [vmem:[#allocation2] sm:$0x1]
      %v438 = vsel %vm436, 0, %v437
      %439 = vst [vmem:[#allocation2] sm:$0x1] %v438
      %v440 = vld [vmem:[#allocation2 + $0xc] sm:$0x1]
      %v441 = vsel %vm436, 0, %v440
      %442 = vst [vmem:[#allocation2 + $0xc] sm:$0x1] %v441
      %v443 = vld [vmem:[#allocation2 + $0x18] sm:$0x1]
      %v444 = vsel %vm436, 0, %v443
      %445 = vst [vmem:[#allocation2 + $0x18] sm:$0x1] %v444
      %v446 = vld [vmem:[#allocation2 + $0x24] sm:$0x1]
      %v447 = vsel %vm436, 0, %v446
      %448 = vst [vmem:[#allocation2 + $0x24] sm:$0x1] %v447
      %v449 = vld [vmem:[#allocation2 + $0x30] sm:$0x1]
      %v450 = vsel %vm436, 0, %v449
      %451 = vst [vmem:[#allocation2 + $0x30] sm:$0x1] %v450
      %v452 = vld [vmem:[#allocation2 + $0x3c] sm:$0x1]
      %v453 = vsel %vm436, 0, %v452
      %454 = vst [vmem:[#allocation2 + $0x3c] sm:$0x1] %v453
      %v455 = vld [vmem:[#allocation2 + $0x48] sm:$0x1]
      %v456 = vsel %vm436, 0, %v455
      %457 = vst [vmem:[#allocation2 + $0x48] sm:$0x1] %v456
      %v458 = vld [vmem:[#allocation2 + $0x54] sm:$0x1]
      %v459 = vsel %vm436, 0, %v458
      %460 = vst [vmem:[#allocation2 + $0x54] sm:$0x1] %v459
      %v461 = vld [vmem:[#allocation2 + $0x60] sm:$0x1]
      %v462 = vsel %vm436, 0, %v461
      %463 = vst [vmem:[#allocation2 + $0x60] sm:$0x1] %v462
      %v464 = vld [vmem:[#allocation2 + $0x6c] sm:$0x1]
      %v465 = vsel %vm436, 0, %v464
      %466 = vst [vmem:[#allocation2 + $0x6c] sm:$0x1] %v465
      %v467 = vld [vmem:[#allocation2 + $0x78] sm:$0x1]
      %v468 = vsel %vm436, 0, %v467
      %469 = vst [vmem:[#allocation2 + $0x78] sm:$0x1] %v468
      %v470 = vld [vmem:[#allocation2 + $0x84] sm:$0x1]
      %v471 = vsel %vm436, 0, %v470
      %472 = vst [vmem:[#allocation2 + $0x84] sm:$0x1] %v471
      %v473 = vld [vmem:[#allocation2 + $0x90] sm:$0x1]
      %v474 = vsel %vm436, 0, %v473
      %475 = vst [vmem:[#allocation2 + $0x90] sm:$0x1] %v474
      %v476 = vld [vmem:[#allocation2 + $0x9c] sm:$0x1]
      %v477 = vsel %vm436, 0, %v476
      %478 = vst [vmem:[#allocation2 + $0x9c] sm:$0x1] %v477
      %v479 = vld [vmem:[#allocation2 + $0xa8] sm:$0x1]
      %v480 = vsel %vm436, 0, %v479
      %481 = vst [vmem:[#allocation2 + $0xa8] sm:$0x1] %v480
      %v482 = vld [vmem:[#allocation2 + $0xb4] sm:$0x1]
      %v483 = vsel %vm436, 0, %v482
      %484 = vst [vmem:[#allocation2 + $0xb4] sm:$0x1] %v483
      %v485 = vld [vmem:[#allocation2 + $0xc0] sm:$0x1]
      %v486 = vsel %vm436, 0, %v485
      %487 = vst [vmem:[#allocation2 + $0xc0] sm:$0x1] %v486
      %v488 = vld [vmem:[#allocation2 + $0xcc] sm:$0x1]
      %v489 = vsel %vm436, 0, %v488
      %490 = vst [vmem:[#allocation2 + $0xcc] sm:$0x1] %v489
      %vm491 = vsmask.f32 7938
      %vm492 = vmand %vm434, %vm491
      %v493 = vld [vmem:[#allocation2 + $0x8] sm:$0x1]
      %v494 = vsel %vm492, 0, %v493
      %495 = vst [vmem:[#allocation2 + $0x8] sm:$0x1] %v494
      %v496 = vld [vmem:[#allocation2 + $0x14] sm:$0x1]
      %v497 = vsel %vm492, 0, %v496
      %498 = vst [vmem:[#allocation2 + $0x14] sm:$0x1] %v497
      %v499 = vld [vmem:[#allocation2 + $0x20] sm:$0x1]
      %v500 = vsel %vm492, 0, %v499
      %501 = vst [vmem:[#allocation2 + $0x20] sm:$0x1] %v500
      %v502 = vld [vmem:[#allocation2 + $0x2c] sm:$0x1]
      %v503 = vsel %vm492, 0, %v502
      %504 = vst [vmem:[#allocation2 + $0x2c] sm:$0x1] %v503
      %v505 = vld [vmem:[#allocation2 + $0x38] sm:$0x1]
      %v506 = vsel %vm492, 0, %v505
      %507 = vst [vmem:[#allocation2 + $0x38] sm:$0x1] %v506
      %v508 = vld [vmem:[#allocation2 + $0x44] sm:$0x1]
      %v509 = vsel %vm492, 0, %v508
      %510 = vst [vmem:[#allocation2 + $0x44] sm:$0x1] %v509
      %v511 = vld [vmem:[#allocation2 + $0x50] sm:$0x1]
      %v512 = vsel %vm492, 0, %v511
      %513 = vst [vmem:[#allocation2 + $0x50] sm:$0x1] %v512
      %v514 = vld [vmem:[#allocation2 + $0x5c] sm:$0x1]
      %v515 = vsel %vm492, 0, %v514
      %516 = vst [vmem:[#allocation2 + $0x5c] sm:$0x1] %v515
      %v517 = vld [vmem:[#allocation2 + $0x68] sm:$0x1]
      %v518 = vsel %vm492, 0, %v517
      %519 = vst [vmem:[#allocation2 + $0x68] sm:$0x1] %v518
      %v520 = vld [vmem:[#allocation2 + $0x74] sm:$0x1]
      %v521 = vsel %vm492, 0, %v520
      %522 = vst [vmem:[#allocation2 + $0x74] sm:$0x1] %v521
      %v523 = vld [vmem:[#allocation2 + $0x80] sm:$0x1]
      %v524 = vsel %vm492, 0, %v523
      %525 = vst [vmem:[#allocation2 + $0x80] sm:$0x1] %v524
      %v526 = vld [vmem:[#allocation2 + $0x8c] sm:$0x1]
      %v527 = vsel %vm492, 0, %v526
      %528 = vst [vmem:[#allocation2 + $0x8c] sm:$0x1] %v527
      %v529 = vld [vmem:[#allocation2 + $0x98] sm:$0x1]
      %v530 = vsel %vm492, 0, %v529
      %531 = vst [vmem:[#allocation2 + $0x98] sm:$0x1] %v530
      %v532 = vld [vmem:[#allocation2 + $0xa4] sm:$0x1]
      %v533 = vsel %vm492, 0, %v532
      %534 = vst [vmem:[#allocation2 + $0xa4] sm:$0x1] %v533
      %v535 = vld [vmem:[#allocation2 + $0xb0] sm:$0x1]
      %v536 = vsel %vm492, 0, %v535
      %537 = vst [vmem:[#allocation2 + $0xb0] sm:$0x1] %v536
      %v538 = vld [vmem:[#allocation2 + $0xbc] sm:$0x1]
      %v539 = vsel %vm492, 0, %v538
      %540 = vst [vmem:[#allocation2 + $0xbc] sm:$0x1] %v539
      %v541 = vld [vmem:[#allocation2 + $0xc8] sm:$0x1]
      %v542 = vsel %vm492, 0, %v541
      %543 = vst [vmem:[#allocation2 + $0xc8] sm:$0x1] %v542
      %v544 = vld [vmem:[#allocation2 + $0xd4] sm:$0x1]
      %v545 = vsel %vm492, 0, %v544
      %546 = vst [vmem:[#allocation2 + $0xd4] sm:$0x1] %v545
      %v563 = vunpack.c.l.b16 %v411
      %v564 = vunpack.c.h.b16 %v411
      %v565 = vunpack.c.l.b16 %v412
      %v566 = vunpack.c.h.b16 %v412
      %v567 = vunpack.c.l.b16 %v413
      %v568 = vunpack.c.h.b16 %v413
      %v569 = vunpack.c.l.b16 %v414
      %v570 = vunpack.c.h.b16 %v414
      %v571 = vunpack.c.l.b16 %v415
      %v572 = vunpack.c.h.b16 %v415
      %v573 = vunpack.c.l.b16 %v416
      %v574 = vunpack.c.h.b16 %v416
      %v575 = vunpack.c.l.b16 %v417
      %v576 = vunpack.c.h.b16 %v417
      %v577 = vunpack.c.l.b16 %v418
      %v578 = vunpack.c.h.b16 %v418
      %v579 = vunpack.c.l.b16 %v419
      %v580 = vunpack.c.h.b16 %v419
      %v581 = vunpack.c.l.b16 %v420
      %v582 = vunpack.c.h.b16 %v420
      %v583 = vunpack.c.l.b16 %v421
      %v584 = vunpack.c.h.b16 %v421
      %v585 = vunpack.c.l.b16 %v422
      %v586 = vunpack.c.h.b16 %v422
      %v587 = vunpack.c.l.b16 %v423
      %v588 = vunpack.c.h.b16 %v423
      %v589 = vunpack.c.l.b16 %v424
      %v590 = vunpack.c.h.b16 %v424
      %v591 = vunpack.c.l.b16 %v425
      %v592 = vunpack.c.h.b16 %v425
      %v593 = vunpack.c.l.b16 %v426
      %v594 = vunpack.c.h.b16 %v426
      %v595 = vpack.c.b16 %v563, %v563
      %v596 = vpack.c.b16 %v564, %v564
      %v597 = vpack.c.b16 %v565, %v565
      %v598 = vpack.c.b16 %v566, %v566
      %v599 = vpack.c.b16 %v567, %v567
      %v600 = vpack.c.b16 %v568, %v568
      %v601 = vpack.c.b16 %v569, %v569
      %v602 = vpack.c.b16 %v570, %v570
      %v603 = vpack.c.b16 %v571, %v571
      %v604 = vpack.c.b16 %v572, %v572
      %v605 = vpack.c.b16 %v573, %v573
      %v606 = vpack.c.b16 %v574, %v574
      %v607 = vpack.c.b16 %v575, %v575
      %v608 = vpack.c.b16 %v576, %v576
      %v609 = vpack.c.b16 %v577, %v577
      %v610 = vpack.c.b16 %v578, %v578
      %v611 = vpack.c.b16 %v579, %v579
      %v612 = vpack.c.b16 %v580, %v580
      %v613 = vpack.c.b16 %v581, %v581
      %v614 = vpack.c.b16 %v582, %v582
      %v615 = vpack.c.b16 %v583, %v583
      %v616 = vpack.c.b16 %v584, %v584
      %v617 = vpack.c.b16 %v585, %v585
      %v618 = vpack.c.b16 %v586, %v586
      %v619 = vpack.c.b16 %v587, %v587
      %v620 = vpack.c.b16 %v588, %v588
      %v621 = vpack.c.b16 %v589, %v589
      %v622 = vpack.c.b16 %v590, %v590
      %v623 = vpack.c.b16 %v591, %v591
      %v624 = vpack.c.b16 %v592, %v592
      %v625 = vpack.c.b16 %v593, %v593
      %v626 = vpack.c.b16 %v594, %v594
      %vm627 = vsmask.f32 4368
      %vm628 = vmor %vm435, %vm627
      %v630 = vshrl.u32 %v595, 16
      %v632 = vrot.slane %v630, 7
      %v633 = vshll.u32 %v595, 16
      %v635 = vor.u32 %v632, %v633
      %v636 = vrot.slane %v632, 4
      %v638 = vshrl.u32 %v596, 16
      %v640 = vrot.slane %v638, 7
      %v641 = vshll.u32 %v596, 16
      %v643 = vor.u32 %v640, %v641
      %v644 = vsel %vm628, %v636, %v643
      %v645 = vrot.slane %v640, 4
      %v647 = vshrl.u32 %v597, 16
      %v649 = vrot.slane %v647, 7
      %v650 = vshll.u32 %v597, 16
      %v652 = vor.u32 %v649, %v650
      %v653 = vrot.slane %v649, 4
      %v655 = vshrl.u32 %v598, 16
      %v657 = vrot.slane %v655, 7
      %v658 = vshll.u32 %v598, 16
      %v660 = vor.u32 %v657, %v658
      %v661 = vsel %vm628, %v653, %v660
      %v662 = vrot.slane %v657, 4
      %v664 = vshrl.u32 %v599, 16
      %v666 = vrot.slane %v664, 7
      %v667 = vshll.u32 %v599, 16
      %v669 = vor.u32 %v666, %v667
      %v670 = vrot.slane %v666, 4
      %v672 = vshrl.u32 %v600, 16
      %v674 = vrot.slane %v672, 7
      %v675 = vshll.u32 %v600, 16
      %v677 = vor.u32 %v674, %v675
      %v678 = vsel %vm628, %v670, %v677
      %v679 = vrot.slane %v674, 4
      %v681 = vshrl.u32 %v601, 16
      %v683 = vrot.slane %v681, 7
      %v684 = vshll.u32 %v601, 16
      %v686 = vor.u32 %v683, %v684
      %v687 = vrot.slane %v683, 4
      %v689 = vshrl.u32 %v602, 16
      %v691 = vrot.slane %v689, 7
      %v692 = vshll.u32 %v602, 16
      %v694 = vor.u32 %v691, %v692
      %v695 = vsel %vm628, %v687, %v694
      %v696 = vrot.slane %v691, 4
      %v698 = vshrl.u32 %v603, 16
      %v700 = vrot.slane %v698, 7
      %v701 = vshll.u32 %v603, 16
      %v703 = vor.u32 %v700, %v701
      %v704 = vrot.slane %v700, 4
      %v706 = vshrl.u32 %v604, 16
      %v708 = vrot.slane %v706, 7
      %v709 = vshll.u32 %v604, 16
      %v711 = vor.u32 %v708, %v709
      %v712 = vsel %vm628, %v704, %v711
      %v713 = vrot.slane %v708, 4
      %v715 = vshrl.u32 %v605, 16
      %v717 = vrot.slane %v715, 7
      %v718 = vshll.u32 %v605, 16
      %v720 = vor.u32 %v717, %v718
      %v721 = vrot.slane %v717, 4
      %v723 = vshrl.u32 %v606, 16
      %v725 = vrot.slane %v723, 7
      %v726 = vshll.u32 %v606, 16
      %v728 = vor.u32 %v725, %v726
      %v729 = vsel %vm628, %v721, %v728
      %v730 = vrot.slane %v725, 4
      %v732 = vshrl.u32 %v607, 16
      %v734 = vrot.slane %v732, 7
      %v735 = vshll.u32 %v607, 16
      %v737 = vor.u32 %v734, %v735
      %v738 = vrot.slane %v734, 4
      %v740 = vshrl.u32 %v608, 16
      %v742 = vrot.slane %v740, 7
      %v743 = vshll.u32 %v608, 16
      %v745 = vor.u32 %v742, %v743
      %v746 = vsel %vm628, %v738, %v745
      %v747 = vrot.slane %v742, 4
      %v749 = vshrl.u32 %v609, 16
      %v751 = vrot.slane %v749, 7
      %v752 = vshll.u32 %v609, 16
      %v754 = vor.u32 %v751, %v752
      %v755 = vrot.slane %v751, 4
      %v757 = vshrl.u32 %v610, 16
      %v759 = vrot.slane %v757, 7
      %v760 = vshll.u32 %v610, 16
      %v762 = vor.u32 %v759, %v760
      %v763 = vsel %vm628, %v755, %v762
      %v764 = vrot.slane %v759, 4
      %v766 = vshrl.u32 %v611, 16
      %v768 = vrot.slane %v766, 7
      %v769 = vshll.u32 %v611, 16
      %v771 = vor.u32 %v768, %v769
      %v772 = vrot.slane %v768, 4
      %v774 = vshrl.u32 %v612, 16
      %v776 = vrot.slane %v774, 7
      %v777 = vshll.u32 %v612, 16
      %v779 = vor.u32 %v776, %v777
      %v780 = vsel %vm628, %v772, %v779
      %v781 = vrot.slane %v776, 4
      %v783 = vshrl.u32 %v613, 16
      %v785 = vrot.slane %v783, 7
      %v786 = vshll.u32 %v613, 16
      %v788 = vor.u32 %v785, %v786
      %v789 = vrot.slane %v785, 4
      %v791 = vshrl.u32 %v614, 16
      %v793 = vrot.slane %v791, 7
      %v794 = vshll.u32 %v614, 16
      %v796 = vor.u32 %v793, %v794
      %v797 = vsel %vm628, %v789, %v796
      %v798 = vrot.slane %v793, 4
      %v800 = vshrl.u32 %v615, 16
      %v802 = vrot.slane %v800, 7
      %v803 = vshll.u32 %v615, 16
      %v805 = vor.u32 %v802, %v803
      %v806 = vrot.slane %v802, 4
      %v808 = vshrl.u32 %v616, 16
      %v810 = vrot.slane %v808, 7
      %v811 = vshll.u32 %v616, 16
      %v813 = vor.u32 %v810, %v811
      %v814 = vsel %vm628, %v806, %v813
      %v815 = vrot.slane %v810, 4
      %v817 = vshrl.u32 %v617, 16
      %v819 = vrot.slane %v817, 7
      %v820 = vshll.u32 %v617, 16
      %v822 = vor.u32 %v819, %v820
      %v823 = vrot.slane %v819, 4
      %v825 = vshrl.u32 %v618, 16
      %v827 = vrot.slane %v825, 7
      %v828 = vshll.u32 %v618, 16
      %v830 = vor.u32 %v827, %v828
      %v831 = vsel %vm628, %v823, %v830
      %v832 = vrot.slane %v827, 4
      %v834 = vshrl.u32 %v619, 16
      %v836 = vrot.slane %v834, 7
      %v837 = vshll.u32 %v619, 16
      %v839 = vor.u32 %v836, %v837
      %v840 = vrot.slane %v836, 4
      %v842 = vshrl.u32 %v620, 16
      %v844 = vrot.slane %v842, 7
      %v845 = vshll.u32 %v620, 16
      %v847 = vor.u32 %v844, %v845
      %v848 = vsel %vm628, %v840, %v847
      %v849 = vrot.slane %v844, 4
      %v851 = vshrl.u32 %v621, 16
      %v853 = vrot.slane %v851, 7
      %v854 = vshll.u32 %v621, 16
      %v856 = vor.u32 %v853, %v854
      %v857 = vrot.slane %v853, 4
      %v859 = vshrl.u32 %v622, 16
      %v861 = vrot.slane %v859, 7
      %v862 = vshll.u32 %v622, 16
      %v864 = vor.u32 %v861, %v862
      %v865 = vsel %vm628, %v857, %v864
      %v866 = vrot.slane %v861, 4
      %v868 = vshrl.u32 %v623, 16
      %v870 = vrot.slane %v868, 7
      %v871 = vshll.u32 %v623, 16
      %v873 = vor.u32 %v870, %v871
      %v874 = vrot.slane %v870, 4
      %v876 = vshrl.u32 %v624, 16
      %v878 = vrot.slane %v876, 7
      %v879 = vshll.u32 %v624, 16
      %v881 = vor.u32 %v878, %v879
      %v882 = vsel %vm628, %v874, %v881
      %v883 = vrot.slane %v878, 4
      %v885 = vshrl.u32 %v625, 16
      %v887 = vrot.slane %v885, 7
      %v888 = vshll.u32 %v625, 16
      %v890 = vor.u32 %v887, %v888
      %v891 = vrot.slane %v887, 4
      %v893 = vshrl.u32 %v626, 16
      %v895 = vrot.slane %v893, 7
      %v896 = vshll.u32 %v626, 16
      %v898 = vor.u32 %v895, %v896
      %v899 = vsel %vm628, %v891, %v898
      %v900 = vrot.slane %v895, 4
      %s949 = scalar_lea.vmem [#allocation2], 12
      %vm950 = vcmask 1043456
      %vm951 = vmand %vm950, %vm491
      %v952 = vld [vmem:[%s949] sm:$0xf]
      %v953 = vsel %vm951, %v635, %v952
      %954 = vst [vmem:[%s949] sm:$0xf] %v953
      %955 = vst [vmem:[%s949 + $0x4] sm:$0xf] %v644
      %v956 = vld [vmem:[%s949 + $0x8] sm:$0x1]
      %v957 = vsel %vm436, %v645, %v956
      %958 = vst [vmem:[%s949 + $0x8] sm:$0x1] %v957
      %v959 = vld [vmem:[%s949 + $0xc] sm:$0xf]
      %v960 = vsel %vm951, %v652, %v959
      %961 = vst [vmem:[%s949 + $0xc] sm:$0xf] %v960
      %962 = vst [vmem:[%s949 + $0x10] sm:$0xf] %v661
      %v963 = vld [vmem:[%s949 + $0x14] sm:$0x1]
      %v964 = vsel %vm436, %v662, %v963
      %965 = vst [vmem:[%s949 + $0x14] sm:$0x1] %v964
      %v966 = vld [vmem:[%s949 + $0x18] sm:$0xf]
      %v967 = vsel %vm951, %v669, %v966
      %968 = vst [vmem:[%s949 + $0x18] sm:$0xf] %v967
      %969 = vst [vmem:[%s949 + $0x1c] sm:$0xf] %v678
      %v970 = vld [vmem:[%s949 + $0x20] sm:$0x1]
      %v971 = vsel %vm436, %v679, %v970
      %972 = vst [vmem:[%s949 + $0x20] sm:$0x1] %v971
      %v973 = vld [vmem:[%s949 + $0x24] sm:$0xf]
      %v974 = vsel %vm951, %v686, %v973
      %975 = vst [vmem:[%s949 + $0x24] sm:$0xf] %v974
      %976 = vst [vmem:[%s949 + $0x28] sm:$0xf] %v695
      %v977 = vld [vmem:[%s949 + $0x2c] sm:$0x1]
      %v978 = vsel %vm436, %v696, %v977
      %979 = vst [vmem:[%s949 + $0x2c] sm:$0x1] %v978
      %v980 = vld [vmem:[%s949 + $0x30] sm:$0xf]
      %v981 = vsel %vm951, %v703, %v980
      %982 = vst [vmem:[%s949 + $0x30] sm:$0xf] %v981
      %983 = vst [vmem:[%s949 + $0x34] sm:$0xf] %v712
      %v984 = vld [vmem:[%s949 + $0x38] sm:$0x1]
      %v985 = vsel %vm436, %v713, %v984
      %986 = vst [vmem:[%s949 + $0x38] sm:$0x1] %v985
      %v987 = vld [vmem:[%s949 + $0x3c] sm:$0xf]
      %v988 = vsel %vm951, %v720, %v987
      %989 = vst [vmem:[%s949 + $0x3c] sm:$0xf] %v988
      %990 = vst [vmem:[%s949 + $0x40] sm:$0xf] %v729
      %v991 = vld [vmem:[%s949 + $0x44] sm:$0x1]
      %v992 = vsel %vm436, %v730, %v991
      %993 = vst [vmem:[%s949 + $0x44] sm:$0x1] %v992
      %v994 = vld [vmem:[%s949 + $0x48] sm:$0xf]
      %v995 = vsel %vm951, %v737, %v994
      %996 = vst [vmem:[%s949 + $0x48] sm:$0xf] %v995
      %997 = vst [vmem:[%s949 + $0x4c] sm:$0xf] %v746
      %v998 = vld [vmem:[%s949 + $0x50] sm:$0x1]
      %v999 = vsel %vm436, %v747, %v998
      %1000 = vst [vmem:[%s949 + $0x50] sm:$0x1] %v999
      %v1001 = vld [vmem:[%s949 + $0x54] sm:$0xf]
      %v1002 = vsel %vm951, %v754, %v1001
      %1003 = vst [vmem:[%s949 + $0x54] sm:$0xf] %v1002
      %1004 = vst [vmem:[%s949 + $0x58] sm:$0xf] %v763
      %v1005 = vld [vmem:[%s949 + $0x5c] sm:$0x1]
      %v1006 = vsel %vm436, %v764, %v1005
      %1007 = vst [vmem:[%s949 + $0x5c] sm:$0x1] %v1006
      %v1008 = vld [vmem:[%s949 + $0x60] sm:$0xf]
      %v1009 = vsel %vm951, %v771, %v1008
      %1010 = vst [vmem:[%s949 + $0x60] sm:$0xf] %v1009
      %1011 = vst [vmem:[%s949 + $0x64] sm:$0xf] %v780
      %v1012 = vld [vmem:[%s949 + $0x68] sm:$0x1]
      %v1013 = vsel %vm436, %v781, %v1012
      %1014 = vst [vmem:[%s949 + $0x68] sm:$0x1] %v1013
      %v1015 = vld [vmem:[%s949 + $0x6c] sm:$0xf]
      %v1016 = vsel %vm951, %v788, %v1015
      %1017 = vst [vmem:[%s949 + $0x6c] sm:$0xf] %v1016
      %1018 = vst [vmem:[%s949 + $0x70] sm:$0xf] %v797
      %v1019 = vld [vmem:[%s949 + $0x74] sm:$0x1]
      %v1020 = vsel %vm436, %v798, %v1019
      %1021 = vst [vmem:[%s949 + $0x74] sm:$0x1] %v1020
      %v1022 = vld [vmem:[%s949 + $0x78] sm:$0xf]
      %v1023 = vsel %vm951, %v805, %v1022
      %1024 = vst [vmem:[%s949 + $0x78] sm:$0xf] %v1023
      %1025 = vst [vmem:[%s949 + $0x7c] sm:$0xf] %v814
      %v1026 = vld [vmem:[%s949 + $0x80] sm:$0x1]
      %v1027 = vsel %vm436, %v815, %v1026
      %1028 = vst [vmem:[%s949 + $0x80] sm:$0x1] %v1027
      %v1029 = vld [vmem:[%s949 + $0x84] sm:$0xf]
      %v1030 = vsel %vm951, %v822, %v1029
      %1031 = vst [vmem:[%s949 + $0x84] sm:$0xf] %v1030
      %1032 = vst [vmem:[%s949 + $0x88] sm:$0xf] %v831
      %v1033 = vld [vmem:[%s949 + $0x8c] sm:$0x1]
      %v1034 = vsel %vm436, %v832, %v1033
      %1035 = vst [vmem:[%s949 + $0x8c] sm:$0x1] %v1034
      %v1036 = vld [vmem:[%s949 + $0x90] sm:$0xf]
      %v1037 = vsel %vm951, %v839, %v1036
      %1038 = vst [vmem:[%s949 + $0x90] sm:$0xf] %v1037
      %1039 = vst [vmem:[%s949 + $0x94] sm:$0xf] %v848
      %v1040 = vld [vmem:[%s949 + $0x98] sm:$0x1]
      %v1041 = vsel %vm436, %v849, %v1040
      %1042 = vst [vmem:[%s949 + $0x98] sm:$0x1] %v1041
      %v1043 = vld [vmem:[%s949 + $0x9c] sm:$0xf]
      %v1044 = vsel %vm951, %v856, %v1043
      %1045 = vst [vmem:[%s949 + $0x9c] sm:$0xf] %v1044
      %1046 = vst [vmem:[%s949 + $0xa0] sm:$0xf] %v865
      %v1047 = vld [vmem:[%s949 + $0xa4] sm:$0x1]
      %v1048 = vsel %vm436, %v866, %v1047
      %1049 = vst [vmem:[%s949 + $0xa4] sm:$0x1] %v1048
      %v1050 = vld [vmem:[%s949 + $0xa8] sm:$0xf]
      %v1051 = vsel %vm951, %v873, %v1050
      %1052 = vst [vmem:[%s949 + $0xa8] sm:$0xf] %v1051
      %1053 = vst [vmem:[%s949 + $0xac] sm:$0xf] %v882
      %v1054 = vld [vmem:[%s949 + $0xb0] sm:$0x1]
      %v1055 = vsel %vm436, %v883, %v1054
      %1056 = vst [vmem:[%s949 + $0xb0] sm:$0x1] %v1055
      %v1057 = vld [vmem:[%s949 + $0xb4] sm:$0xf]
      %v1058 = vsel %vm951, %v890, %v1057
      %1059 = vst [vmem:[%s949 + $0xb4] sm:$0xf] %v1058
      %1060 = vst [vmem:[%s949 + $0xb8] sm:$0xf] %v899
      %v1061 = vld [vmem:[%s949 + $0xbc] sm:$0x1]
      %v1062 = vsel %vm436, %v900, %v1061
      %1063 = vst [vmem:[%s949 + $0xbc] sm:$0x1] %v1062
      %v1064 = vld [vmem:[#allocation2] sm:$0xf]
      %v1065 = vld [vmem:[#allocation2 + $0x4] sm:$0xf]
      %v1066 = vld [vmem:[#allocation2 + $0x8] sm:$0x1]
      %v1067 = vld [vmem:[#allocation2 + $0xc] sm:$0xf]
      %v1068 = vld [vmem:[#allocation2 + $0x10] sm:$0xf]
      %v1069 = vld [vmem:[#allocation2 + $0x14] sm:$0x1]
      %v1070 = vld [vmem:[#allocation2 + $0x18] sm:$0xf]
      %v1071 = vld [vmem:[#allocation2 + $0x1c] sm:$0xf]
      %v1072 = vld [vmem:[#allocation2 + $0x20] sm:$0x1]
      %v1073 = vld [vmem:[#allocation2 + $0x24] sm:$0xf]
      %v1074 = vld [vmem:[#allocation2 + $0x28] sm:$0xf]
      %v1075 = vld [vmem:[#allocation2 + $0x2c] sm:$0x1]
      %v1076 = vld [vmem:[#allocation2 + $0x30] sm:$0xf]
      %v1077 = vld [vmem:[#allocation2 + $0x34] sm:$0xf]
      %v1078 = vld [vmem:[#allocation2 + $0x38] sm:$0x1]
      %v1079 = vld [vmem:[#allocation2 + $0x3c] sm:$0xf]
      %v1080 = vld [vmem:[#allocation2 + $0x40] sm:$0xf]
      %v1081 = vld [vmem:[#allocation2 + $0x44] sm:$0x1]
      %v1082 = vld [vmem:[#allocation2 + $0x48] sm:$0xf]
      %v1083 = vld [vmem:[#allocation2 + $0x4c] sm:$0xf]
      %v1084 = vld [vmem:[#allocation2 + $0x50] sm:$0x1]
      %v1085 = vld [vmem:[#allocation2 + $0x54] sm:$0xf]
      %v1086 = vld [vmem:[#allocation2 + $0x58] sm:$0xf]
      %v1087 = vld [vmem:[#allocation2 + $0x5c] sm:$0x1]
      %v1088 = vld [vmem:[#allocation2 + $0x60] sm:$0xf]
      %v1089 = vld [vmem:[#allocation2 + $0x64] sm:$0xf]
      %v1090 = vld [vmem:[#allocation2 + $0x68] sm:$0x1]
      %v1091 = vld [vmem:[#allocation2 + $0x6c] sm:$0xf]
      %v1092 = vld [vmem:[#allocation2 + $0x70] sm:$0xf]
      %v1093 = vld [vmem:[#allocation2 + $0x74] sm:$0x1]
      %v1094 = vld [vmem:[#allocation2 + $0x78] sm:$0xf]
      %v1095 = vld [vmem:[#allocation2 + $0x7c] sm:$0xf]
      %v1096 = vld [vmem:[#allocation2 + $0x80] sm:$0x1]
      %v1097 = vld [vmem:[#allocation2 + $0x84] sm:$0xf]
      %v1098 = vld [vmem:[#allocation2 + $0x88] sm:$0xf]
      %v1099 = vld [vmem:[#allocation2 + $0x8c] sm:$0x1]
      %v1100 = vld [vmem:[#allocation2 + $0x90] sm:$0xf]
      %v1101 = vld [vmem:[#allocation2 + $0x94] sm:$0xf]
      %v1102 = vld [vmem:[#allocation2 + $0x98] sm:$0x1]
      %v1103 = vld [vmem:[#allocation2 + $0x9c] sm:$0xf]
      %v1104 = vld [vmem:[#allocation2 + $0xa0] sm:$0xf]
      %v1105 = vld [vmem:[#allocation2 + $0xa4] sm:$0x1]
      %v1106 = vld [vmem:[#allocation2 + $0xa8] sm:$0xf]
      %v1107 = vld [vmem:[#allocation2 + $0xac] sm:$0xf]
      %v1108 = vld [vmem:[#allocation2 + $0xb0] sm:$0x1]
      %v1109 = vld [vmem:[#allocation2 + $0xb4] sm:$0xf]
      %v1110 = vld [vmem:[#allocation2 + $0xb8] sm:$0xf]
      %v1111 = vld [vmem:[#allocation2 + $0xbc] sm:$0x1]
      %v1112 = vld [vmem:[#allocation2 + $0xc0] sm:$0xf]
      %v1113 = vld [vmem:[#allocation2 + $0xc4] sm:$0xf]
      %v1114 = vld [vmem:[#allocation2 + $0xc8] sm:$0x1]
      %v1115 = vld [vmem:[#allocation2 + $0xcc] sm:$0xf]
      %v1116 = vld [vmem:[#allocation2 + $0xd0] sm:$0xf]
      %v1117 = vld [vmem:[#allocation2 + $0xd4] sm:$0x1]
      %vm1118 = vsmask.f32 3328
      %vm1119 = vsmask.f32 7440
      %vm1120 = vmor %vm1118, %vm1119
      %v1122 = vshrl.u32 %v1064, 16
      %v1124 = vrot.slane %v1122, 4
      %v1125 = vshll.u32 %v1064, 16
      %v1127 = vrot.slane %v1125, 5
      %v1128 = vor.u32 %v1124, %v1127
      %v1129 = vrot.slane %v1128, 4
      %v1131 = vshll.u32 %v1065, 16
      %v1133 = vrot.slane %v1131, 5
      %v1134 = vsel %vm1120, %v1129, %v1133
      %v1135 = vshrl.u32 %v1065, 16
      %v1137 = vrot.slane %v1135, 4
      %v1138 = vor.u32 %v1137, %v1133
      %v1139 = vrot.slane %v1138, 4
      %v1141 = vshll.u32 %v1066, 16
      %v1143 = vrot.slane %v1141, 5
      %v1144 = vsel %vm1120, %v1139, %v1143
      %v1146 = vshrl.u32 %v1067, 16
      %v1148 = vrot.slane %v1146, 4
      %v1149 = vshll.u32 %v1067, 16
      %v1151 = vrot.slane %v1149, 5
      %v1152 = vor.u32 %v1148, %v1151
      %v1153 = vrot.slane %v1152, 4
      %v1155 = vshll.u32 %v1068, 16
      %v1157 = vrot.slane %v1155, 5
      %v1158 = vsel %vm1120, %v1153, %v1157
      %v1159 = vshrl.u32 %v1068, 16
      %v1161 = vrot.slane %v1159, 4
      %v1162 = vor.u32 %v1161, %v1157
      %v1163 = vrot.slane %v1162, 4
      %v1165 = vshll.u32 %v1069, 16
      %v1167 = vrot.slane %v1165, 5
      %v1168 = vsel %vm1120, %v1163, %v1167
      %v1170 = vshrl.u32 %v1070, 16
      %v1172 = vrot.slane %v1170, 4
      %v1173 = vshll.u32 %v1070, 16
      %v1175 = vrot.slane %v1173, 5
      %v1176 = vor.u32 %v1172, %v1175
      %v1177 = vrot.slane %v1176, 4
      %v1179 = vshll.u32 %v1071, 16
      %v1181 = vrot.slane %v1179, 5
      %v1182 = vsel %vm1120, %v1177, %v1181
      %v1183 = vshrl.u32 %v1071, 16
      %v1185 = vrot.slane %v1183, 4
      %v1186 = vor.u32 %v1185, %v1181
      %v1187 = vrot.slane %v1186, 4
      %v1189 = vshll.u32 %v1072, 16
      %v1191 = vrot.slane %v1189, 5
      %v1192 = vsel %vm1120, %v1187, %v1191
      %v1194 = vshrl.u32 %v1073, 16
      %v1196 = vrot.slane %v1194, 4
      %v1197 = vshll.u32 %v1073, 16
      %v1199 = vrot.slane %v1197, 5
      %v1200 = vor.u32 %v1196, %v1199
      %v1201 = vrot.slane %v1200, 4
      %v1203 = vshll.u32 %v1074, 16
      %v1205 = vrot.slane %v1203, 5
      %v1206 = vsel %vm1120, %v1201, %v1205
      %v1207 = vshrl.u32 %v1074, 16
      %v1209 = vrot.slane %v1207, 4
      %v1210 = vor.u32 %v1209, %v1205
      %v1211 = vrot.slane %v1210, 4
      %v1213 = vshll.u32 %v1075, 16
      %v1215 = vrot.slane %v1213, 5
      %v1216 = vsel %vm1120, %v1211, %v1215
      %v1218 = vshrl.u32 %v1076, 16
      %v1220 = vrot.slane %v1218, 4
      %v1221 = vshll.u32 %v1076, 16
      %v1223 = vrot.slane %v1221, 5
      %v1224 = vor.u32 %v1220, %v1223
      %v1225 = vrot.slane %v1224, 4
      %v1227 = vshll.u32 %v1077, 16
      %v1229 = vrot.slane %v1227, 5
      %v1230 = vsel %vm1120, %v1225, %v1229
      %v1231 = vshrl.u32 %v1077, 16
      %v1233 = vrot.slane %v1231, 4
      %v1234 = vor.u32 %v1233, %v1229
      %v1235 = vrot.slane %v1234, 4
      %v1237 = vshll.u32 %v1078, 16
      %v1239 = vrot.slane %v1237, 5
      %v1240 = vsel %vm1120, %v1235, %v1239
      %v1242 = vshrl.u32 %v1079, 16
      %v1244 = vrot.slane %v1242, 4
      %v1245 = vshll.u32 %v1079, 16
      %v1247 = vrot.slane %v1245, 5
      %v1248 = vor.u32 %v1244, %v1247
      %v1249 = vrot.slane %v1248, 4
      %v1251 = vshll.u32 %v1080, 16
      %v1253 = vrot.slane %v1251, 5
      %v1254 = vsel %vm1120, %v1249, %v1253
      %v1255 = vshrl.u32 %v1080, 16
      %v1257 = vrot.slane %v1255, 4
      %v1258 = vor.u32 %v1257, %v1253
      %v1259 = vrot.slane %v1258, 4
      %v1261 = vshll.u32 %v1081, 16
      %v1263 = vrot.slane %v1261, 5
      %v1264 = vsel %vm1120, %v1259, %v1263
      %v1266 = vshrl.u32 %v1082, 16
      %v1268 = vrot.slane %v1266, 4
      %v1269 = vshll.u32 %v1082, 16
      %v1271 = vrot.slane %v1269, 5
      %v1272 = vor.u32 %v1268, %v1271
      %v1273 = vrot.slane %v1272, 4
      %v1275 = vshll.u32 %v1083, 16
      %v1277 = vrot.slane %v1275, 5
      %v1278 = vsel %vm1120, %v1273, %v1277
      %v1279 = vshrl.u32 %v1083, 16
      %v1281 = vrot.slane %v1279, 4
      %v1282 = vor.u32 %v1281, %v1277
      %v1283 = vrot.slane %v1282, 4
      %v1285 = vshll.u32 %v1084, 16
      %v1287 = vrot.slane %v1285, 5
      %v1288 = vsel %vm1120, %v1283, %v1287
      %v1290 = vshrl.u32 %v1085, 16
      %v1292 = vrot.slane %v1290, 4
      %v1293 = vshll.u32 %v1085, 16
      %v1295 = vrot.slane %v1293, 5
      %v1296 = vor.u32 %v1292, %v1295
      %v1297 = vrot.slane %v1296, 4
      %v1299 = vshll.u32 %v1086, 16
      %v1301 = vrot.slane %v1299, 5
      %v1302 = vsel %vm1120, %v1297, %v1301
      %v1303 = vshrl.u32 %v1086, 16
      %v1305 = vrot.slane %v1303, 4
      %v1306 = vor.u32 %v1305, %v1301
      %v1307 = vrot.slane %v1306, 4
      %v1309 = vshll.u32 %v1087, 16
      %v1311 = vrot.slane %v1309, 5
      %v1312 = vsel %vm1120, %v1307, %v1311
      %v1314 = vshrl.u32 %v1088, 16
      %v1316 = vrot.slane %v1314, 4
      %v1317 = vshll.u32 %v1088, 16
      %v1319 = vrot.slane %v1317, 5
      %v1320 = vor.u32 %v1316, %v1319
      %v1321 = vrot.slane %v1320, 4
      %v1323 = vshll.u32 %v1089, 16
      %v1325 = vrot.slane %v1323, 5
      %v1326 = vsel %vm1120, %v1321, %v1325
      %v1327 = vshrl.u32 %v1089, 16
      %v1329 = vrot.slane %v1327, 4
      %v1330 = vor.u32 %v1329, %v1325
      %v1331 = vrot.slane %v1330, 4
      %v1333 = vshll.u32 %v1090, 16
      %v1335 = vrot.slane %v1333, 5
      %v1336 = vsel %vm1120, %v1331, %v1335
      %v1338 = vshrl.u32 %v1091, 16
      %v1340 = vrot.slane %v1338, 4
      %v1341 = vshll.u32 %v1091, 16
      %v1343 = vrot.slane %v1341, 5
      %v1344 = vor.u32 %v1340, %v1343
      %v1345 = vrot.slane %v1344, 4
      %v1347 = vshll.u32 %v1092, 16
      %v1349 = vrot.slane %v1347, 5
      %v1350 = vsel %vm1120, %v1345, %v1349
      %v1351 = vshrl.u32 %v1092, 16
      %v1353 = vrot.slane %v1351, 4
      %v1354 = vor.u32 %v1353, %v1349
      %v1355 = vrot.slane %v1354, 4
      %v1357 = vshll.u32 %v1093, 16
      %v1359 = vrot.slane %v1357, 5
      %v1360 = vsel %vm1120, %v1355, %v1359
      %v1362 = vshrl.u32 %v1094, 16
      %v1364 = vrot.slane %v1362, 4
      %v1365 = vshll.u32 %v1094, 16
      %v1367 = vrot.slane %v1365, 5
      %v1368 = vor.u32 %v1364, %v1367
      %v1369 = vrot.slane %v1368, 4
      %v1371 = vshll.u32 %v1095, 16
      %v1373 = vrot.slane %v1371, 5
      %v1374 = vsel %vm1120, %v1369, %v1373
      %v1375 = vshrl.u32 %v1095, 16
      %v1377 = vrot.slane %v1375, 4
      %v1378 = vor.u32 %v1377, %v1373
      %v1379 = vrot.slane %v1378, 4
      %v1381 = vshll.u32 %v1096, 16
      %v1383 = vrot.slane %v1381, 5
      %v1384 = vsel %vm1120, %v1379, %v1383
      %v1386 = vshrl.u32 %v1097, 16
      %v1388 = vrot.slane %v1386, 4
      %v1389 = vshll.u32 %v1097, 16
      %v1391 = vrot.slane %v1389, 5
      %v1392 = vor.u32 %v1388, %v1391
      %v1393 = vrot.slane %v1392, 4
      %v1395 = vshll.u32 %v1098, 16
      %v1397 = vrot.slane %v1395, 5
      %v1398 = vsel %vm1120, %v1393, %v1397
      %v1399 = vshrl.u32 %v1098, 16
      %v1401 = vrot.slane %v1399, 4
      %v1402 = vor.u32 %v1401, %v1397
      %v1403 = vrot.slane %v1402, 4
      %v1405 = vshll.u32 %v1099, 16
      %v1407 = vrot.slane %v1405, 5
      %v1408 = vsel %vm1120, %v1403, %v1407
      %v1410 = vshrl.u32 %v1100, 16
      %v1412 = vrot.slane %v1410, 4
      %v1413 = vshll.u32 %v1100, 16
      %v1415 = vrot.slane %v1413, 5
      %v1416 = vor.u32 %v1412, %v1415
      %v1417 = vrot.slane %v1416, 4
      %v1419 = vshll.u32 %v1101, 16
      %v1421 = vrot.slane %v1419, 5
      %v1422 = vsel %vm1120, %v1417, %v1421
      %v1423 = vshrl.u32 %v1101, 16
      %v1425 = vrot.slane %v1423, 4
      %v1426 = vor.u32 %v1425, %v1421
      %v1427 = vrot.slane %v1426, 4
      %v1429 = vshll.u32 %v1102, 16
      %v1431 = vrot.slane %v1429, 5
      %v1432 = vsel %vm1120, %v1427, %v1431
      %v1434 = vshrl.u32 %v1103, 16
      %v1436 = vrot.slane %v1434, 4
      %v1437 = vshll.u32 %v1103, 16
      %v1439 = vrot.slane %v1437, 5
      %v1440 = vor.u32 %v1436, %v1439
      %v1441 = vrot.slane %v1440, 4
      %v1443 = vshll.u32 %v1104, 16
      %v1445 = vrot.slane %v1443, 5
      %v1446 = vsel %vm1120, %v1441, %v1445
      %v1447 = vshrl.u32 %v1104, 16
      %v1449 = vrot.slane %v1447, 4
      %v1450 = vor.u32 %v1449, %v1445
      %v1451 = vrot.slane %v1450, 4
      %v1453 = vshll.u32 %v1105, 16
      %v1455 = vrot.slane %v1453, 5
      %v1456 = vsel %vm1120, %v1451, %v1455
      %v1458 = vshrl.u32 %v1106, 16
      %v1460 = vrot.slane %v1458, 4
      %v1461 = vshll.u32 %v1106, 16
      %v1463 = vrot.slane %v1461, 5
      %v1464 = vor.u32 %v1460, %v1463
      %v1465 = vrot.slane %v1464, 4
      %v1467 = vshll.u32 %v1107, 16
      %v1469 = vrot.slane %v1467, 5
      %v1470 = vsel %vm1120, %v1465, %v1469
      %v1471 = vshrl.u32 %v1107, 16
      %v1473 = vrot.slane %v1471, 4
      %v1474 = vor.u32 %v1473, %v1469
      %v1475 = vrot.slane %v1474, 4
      %v1477 = vshll.u32 %v1108, 16
      %v1479 = vrot.slane %v1477, 5
      %v1480 = vsel %vm1120, %v1475, %v1479
      %v1482 = vshrl.u32 %v1109, 16
      %v1484 = vrot.slane %v1482, 4
      %v1485 = vshll.u32 %v1109, 16
      %v1487 = vrot.slane %v1485, 5
      %v1488 = vor.u32 %v1484, %v1487
      %v1489 = vrot.slane %v1488, 4
      %v1491 = vshll.u32 %v1110, 16
      %v1493 = vrot.slane %v1491, 5
      %v1494 = vsel %vm1120, %v1489, %v1493
      %v1495 = vshrl.u32 %v1110, 16
      %v1497 = vrot.slane %v1495, 4
      %v1498 = vor.u32 %v1497, %v1493
      %v1499 = vrot.slane %v1498, 4
      %v1501 = vshll.u32 %v1111, 16
      %v1503 = vrot.slane %v1501, 5
      %v1504 = vsel %vm1120, %v1499, %v1503
      %vm1553 = vcmask 1042432
      %vm1554 = vcmask 1046532
      %vm1555 = vmor %vm1553, %vm1554
      %v1556 = vrot.slane %v1064, 5
      %v1557 = vrot.slane %v1556, 4
      %v1558 = vrot.slane %v1065, 5
      %v1559 = vsel %vm1555, %v1557, %v1558
      %v1560 = vrot.slane %v1558, 4
      %v1561 = vrot.slane %v1066, 5
      %v1562 = vsel %vm1555, %v1560, %v1561
      %v1563 = vrot.slane %v1067, 5
      %v1564 = vrot.slane %v1563, 4
      %v1565 = vrot.slane %v1068, 5
      %v1566 = vsel %vm1555, %v1564, %v1565
      %v1567 = vrot.slane %v1565, 4
      %v1568 = vrot.slane %v1069, 5
      %v1569 = vsel %vm1555, %v1567, %v1568
      %v1570 = vrot.slane %v1070, 5
      %v1571 = vrot.slane %v1570, 4
      %v1572 = vrot.slane %v1071, 5
      %v1573 = vsel %vm1555, %v1571, %v1572
      %v1574 = vrot.slane %v1572, 4
      %v1575 = vrot.slane %v1072, 5
      %v1576 = vsel %vm1555, %v1574, %v1575
      %v1577 = vrot.slane %v1073, 5
      %v1578 = vrot.slane %v1577, 4
      %v1579 = vrot.slane %v1074, 5
      %v1580 = vsel %vm1555, %v1578, %v1579
      %v1581 = vrot.slane %v1579, 4
      %v1582 = vrot.slane %v1075, 5
      %v1583 = vsel %vm1555, %v1581, %v1582
      %v1584 = vrot.slane %v1076, 5
      %v1585 = vrot.slane %v1584, 4
      %v1586 = vrot.slane %v1077, 5
      %v1587 = vsel %vm1555, %v1585, %v1586
      %v1588 = vrot.slane %v1586, 4
      %v1589 = vrot.slane %v1078, 5
      %v1590 = vsel %vm1555, %v1588, %v1589
      %v1591 = vrot.slane %v1079, 5
      %v1592 = vrot.slane %v1591, 4
      %v1593 = vrot.slane %v1080, 5
      %v1594 = vsel %vm1555, %v1592, %v1593
      %v1595 = vrot.slane %v1593, 4
      %v1596 = vrot.slane %v1081, 5
      %v1597 = vsel %vm1555, %v1595, %v1596
      %v1598 = vrot.slane %v1082, 5
      %v1599 = vrot.slane %v1598, 4
      %v1600 = vrot.slane %v1083, 5
      %v1601 = vsel %vm1555, %v1599, %v1600
      %v1602 = vrot.slane %v1600, 4
      %v1603 = vrot.slane %v1084, 5
      %v1604 = vsel %vm1555, %v1602, %v1603
      %v1605 = vrot.slane %v1085, 5
      %v1606 = vrot.slane %v1605, 4
      %v1607 = vrot.slane %v1086, 5
      %v1608 = vsel %vm1555, %v1606, %v1607
      %v1609 = vrot.slane %v1607, 4
      %v1610 = vrot.slane %v1087, 5
      %v1611 = vsel %vm1555, %v1609, %v1610
      %v1612 = vrot.slane %v1088, 5
      %v1613 = vrot.slane %v1612, 4
      %v1614 = vrot.slane %v1089, 5
      %v1615 = vsel %vm1555, %v1613, %v1614
      %v1616 = vrot.slane %v1614, 4
      %v1617 = vrot.slane %v1090, 5
      %v1618 = vsel %vm1555, %v1616, %v1617
      %v1619 = vrot.slane %v1091, 5
      %v1620 = vrot.slane %v1619, 4
      %v1621 = vrot.slane %v1092, 5
      %v1622 = vsel %vm1555, %v1620, %v1621
      %v1623 = vrot.slane %v1621, 4
      %v1624 = vrot.slane %v1093, 5
      %v1625 = vsel %vm1555, %v1623, %v1624
      %v1626 = vrot.slane %v1094, 5
      %v1627 = vrot.slane %v1626, 4
      %v1628 = vrot.slane %v1095, 5
      %v1629 = vsel %vm1555, %v1627, %v1628
      %v1630 = vrot.slane %v1628, 4
      %v1631 = vrot.slane %v1096, 5
      %v1632 = vsel %vm1555, %v1630, %v1631
      %v1633 = vrot.slane %v1097, 5
      %v1634 = vrot.slane %v1633, 4
      %v1635 = vrot.slane %v1098, 5
      %v1636 = vsel %vm1555, %v1634, %v1635
      %v1637 = vrot.slane %v1635, 4
      %v1638 = vrot.slane %v1099, 5
      %v1639 = vsel %vm1555, %v1637, %v1638
      %v1640 = vrot.slane %v1100, 5
      %v1641 = vrot.slane %v1640, 4
      %v1642 = vrot.slane %v1101, 5
      %v1643 = vsel %vm1555, %v1641, %v1642
      %v1644 = vrot.slane %v1642, 4
      %v1645 = vrot.slane %v1102, 5
      %v1646 = vsel %vm1555, %v1644, %v1645
      %v1647 = vrot.slane %v1103, 5
      %v1648 = vrot.slane %v1647, 4
      %v1649 = vrot.slane %v1104, 5
      %v1650 = vsel %vm1555, %v1648, %v1649
      %v1651 = vrot.slane %v1649, 4
      %v1652 = vrot.slane %v1105, 5
      %v1653 = vsel %vm1555, %v1651, %v1652
      %v1654 = vrot.slane %v1106, 5
      %v1655 = vrot.slane %v1654, 4
      %v1656 = vrot.slane %v1107, 5
      %v1657 = vsel %vm1555, %v1655, %v1656
      %v1658 = vrot.slane %v1656, 4
      %v1659 = vrot.slane %v1108, 5
      %v1660 = vsel %vm1555, %v1658, %v1659
      %v1661 = vrot.slane %v1109, 5
      %v1662 = vrot.slane %v1661, 4
      %v1663 = vrot.slane %v1110, 5
      %v1664 = vsel %vm1555, %v1662, %v1663
      %v1665 = vrot.slane %v1663, 4
      %v1666 = vrot.slane %v1111, 5
      %v1667 = vsel %vm1555, %v1665, %v1666
      %v1669 = vshrl.u32 %v1112, 16
      %v1671 = vrot.slane %v1669, 4
      %v1672 = vshll.u32 %v1112, 16
      %v1674 = vrot.slane %v1672, 5
      %v1675 = vor.u32 %v1671, %v1674
      %v1676 = vrot.slane %v1675, 4
      %v1678 = vshll.u32 %v1113, 16
      %v1680 = vrot.slane %v1678, 5
      %v1681 = vsel %vm1120, %v1676, %v1680
      %v1682 = vshrl.u32 %v1113, 16
      %v1684 = vrot.slane %v1682, 4
      %v1685 = vor.u32 %v1684, %v1680
      %v1686 = vrot.slane %v1685, 4
      %v1688 = vshll.u32 %v1114, 16
      %v1690 = vrot.slane %v1688, 5
      %v1691 = vsel %vm1120, %v1686, %v1690
      %v1695 = vrot.slane %v1112, 5
      %v1696 = vrot.slane %v1695, 4
      %v1697 = vrot.slane %v1113, 5
      %v1698 = vsel %vm1555, %v1696, %v1697
      %v1699 = vrot.slane %v1697, 4
      %v1700 = vrot.slane %v1114, 5
      %v1701 = vsel %vm1555, %v1699, %v1700
      %v1703 = vshrl.u32 %v1115, 16
      %v1705 = vrot.slane %v1703, 4
      %v1706 = vshll.u32 %v1115, 16
      %v1708 = vrot.slane %v1706, 5
      %v1709 = vor.u32 %v1705, %v1708
      %v1710 = vrot.slane %v1709, 4
      %v1712 = vshll.u32 %v1116, 16
      %v1714 = vrot.slane %v1712, 5
      %v1715 = vsel %vm1120, %v1710, %v1714
      %v1716 = vshrl.u32 %v1116, 16
      %v1718 = vrot.slane %v1716, 4
      %v1719 = vor.u32 %v1718, %v1714
      %v1720 = vrot.slane %v1719, 4
      %v1722 = vshll.u32 %v1117, 16
      %v1724 = vrot.slane %v1722, 5
      %v1725 = vsel %vm1120, %v1720, %v1724
      %v1729 = vrot.slane %v1115, 5
      %v1730 = vrot.slane %v1729, 4
      %v1731 = vrot.slane %v1116, 5
      %v1732 = vsel %vm1555, %v1730, %v1731
      %v1733 = vrot.slane %v1731, 4
      %v1734 = vrot.slane %v1117, 5
      %v1735 = vsel %vm1555, %v1733, %v1734
      %v1736 = vunpack.c.l.b16 %v1064
      %v1737 = vunpack.c.l.b16 %v1065
      %v1738 = vunpack.c.l.b16 %v1067
      %v1739 = vunpack.c.l.b16 %v1068
      %v1740 = vunpack.c.l.b16 %v1070
      %v1741 = vunpack.c.l.b16 %v1071
      %v1742 = vunpack.c.l.b16 %v1073
      %v1743 = vunpack.c.l.b16 %v1074
      %v1744 = vunpack.c.l.b16 %v1076
      %v1745 = vunpack.c.l.b16 %v1077
      %v1746 = vunpack.c.l.b16 %v1079
      %v1747 = vunpack.c.l.b16 %v1080
      %v1748 = vunpack.c.l.b16 %v1082
      %v1749 = vunpack.c.l.b16 %v1083
      %v1750 = vunpack.c.l.b16 %v1085
      %v1751 = vunpack.c.l.b16 %v1086
      %v1752 = vunpack.c.l.b16 %v1088
      %v1753 = vunpack.c.l.b16 %v1089
      %v1754 = vunpack.c.l.b16 %v1091
      %v1755 = vunpack.c.l.b16 %v1092
      %v1756 = vunpack.c.l.b16 %v1094
      %v1757 = vunpack.c.l.b16 %v1095
      %v1758 = vunpack.c.l.b16 %v1097
      %v1759 = vunpack.c.l.b16 %v1098
      %v1760 = vunpack.c.l.b16 %v1100
      %v1761 = vunpack.c.l.b16 %v1101
      %v1762 = vunpack.c.l.b16 %v1103
      %v1763 = vunpack.c.l.b16 %v1104
      %v1764 = vunpack.c.l.b16 %v1106
      %v1765 = vunpack.c.l.b16 %v1107
      %v1766 = vunpack.c.l.b16 %v1109
      %v1767 = vunpack.c.l.b16 %v1110
      %v1768 = vpack.c.b16 %v1737, %v1736
      %v1769 = vpack.c.b16 %v1739, %v1738
      %v1770 = vpack.c.b16 %v1741, %v1740
      %v1771 = vpack.c.b16 %v1743, %v1742
      %v1772 = vpack.c.b16 %v1745, %v1744
      %v1773 = vpack.c.b16 %v1747, %v1746
      %v1774 = vpack.c.b16 %v1749, %v1748
      %v1775 = vpack.c.b16 %v1751, %v1750
      %v1776 = vpack.c.b16 %v1753, %v1752
      %v1777 = vpack.c.b16 %v1755, %v1754
      %v1778 = vpack.c.b16 %v1757, %v1756
      %v1779 = vpack.c.b16 %v1759, %v1758
      %v1780 = vpack.c.b16 %v1761, %v1760
      %v1781 = vpack.c.b16 %v1763, %v1762
      %v1782 = vpack.c.b16 %v1765, %v1764
      %v1783 = vpack.c.b16 %v1767, %v1766
      %v1800 = vunpack.c.l.b16 %v1134
      %v1801 = vunpack.c.l.b16 %v1144
      %v1802 = vunpack.c.l.b16 %v1158
      %v1803 = vunpack.c.l.b16 %v1168
      %v1804 = vunpack.c.l.b16 %v1182
      %v1805 = vunpack.c.l.b16 %v1192
      %v1806 = vunpack.c.l.b16 %v1206
      %v1807 = vunpack.c.l.b16 %v1216
      %v1808 = vunpack.c.l.b16 %v1230
      %v1809 = vunpack.c.l.b16 %v1240
      %v1810 = vunpack.c.l.b16 %v1254
      %v1811 = vunpack.c.l.b16 %v1264
      %v1812 = vunpack.c.l.b16 %v1278
      %v1813 = vunpack.c.l.b16 %v1288
      %v1814 = vunpack.c.l.b16 %v1302
      %v1815 = vunpack.c.l.b16 %v1312
      %v1816 = vunpack.c.l.b16 %v1326
      %v1817 = vunpack.c.l.b16 %v1336
      %v1818 = vunpack.c.l.b16 %v1350
      %v1819 = vunpack.c.l.b16 %v1360
      %v1820 = vunpack.c.l.b16 %v1374
      %v1821 = vunpack.c.l.b16 %v1384
      %v1822 = vunpack.c.l.b16 %v1398
      %v1823 = vunpack.c.l.b16 %v1408
      %v1824 = vunpack.c.l.b16 %v1422
      %v1825 = vunpack.c.l.b16 %v1432
      %v1826 = vunpack.c.l.b16 %v1446
      %v1827 = vunpack.c.l.b16 %v1456
      %v1828 = vunpack.c.l.b16 %v1470
      %v1829 = vunpack.c.l.b16 %v1480
      %v1830 = vunpack.c.l.b16 %v1494
      %v1831 = vunpack.c.l.b16 %v1504
      %v1832 = vpack.c.b16 %v1801, %v1800
      %v1833 = vpack.c.b16 %v1803, %v1802
      %v1834 = vpack.c.b16 %v1805, %v1804
      %v1835 = vpack.c.b16 %v1807, %v1806
      %v1836 = vpack.c.b16 %v1809, %v1808
      %v1837 = vpack.c.b16 %v1811, %v1810
      %v1838 = vpack.c.b16 %v1813, %v1812
      %v1839 = vpack.c.b16 %v1815, %v1814
      %v1840 = vpack.c.b16 %v1817, %v1816
      %v1841 = vpack.c.b16 %v1819, %v1818
      %v1842 = vpack.c.b16 %v1821, %v1820
      %v1843 = vpack.c.b16 %v1823, %v1822
      %v1844 = vpack.c.b16 %v1825, %v1824
      %v1845 = vpack.c.b16 %v1827, %v1826
      %v1846 = vpack.c.b16 %v1829, %v1828
      %v1847 = vpack.c.b16 %v1831, %v1830
      %v1864 = vunpack.c.l.b16 %v1559
      %v1865 = vunpack.c.l.b16 %v1562
      %v1866 = vunpack.c.l.b16 %v1566
      %v1867 = vunpack.c.l.b16 %v1569
      %v1868 = vunpack.c.l.b16 %v1573
      %v1869 = vunpack.c.l.b16 %v1576
      %v1870 = vunpack.c.l.b16 %v1580
      %v1871 = vunpack.c.l.b16 %v1583
      %v1872 = vunpack.c.l.b16 %v1587
      %v1873 = vunpack.c.l.b16 %v1590
      %v1874 = vunpack.c.l.b16 %v1594
      %v1875 = vunpack.c.l.b16 %v1597
      %v1876 = vunpack.c.l.b16 %v1601
      %v1877 = vunpack.c.l.b16 %v1604
      %v1878 = vunpack.c.l.b16 %v1608
      %v1879 = vunpack.c.l.b16 %v1611
      %v1880 = vunpack.c.l.b16 %v1615
      %v1881 = vunpack.c.l.b16 %v1618
      %v1882 = vunpack.c.l.b16 %v1622
      %v1883 = vunpack.c.l.b16 %v1625
      %v1884 = vunpack.c.l.b16 %v1629
      %v1885 = vunpack.c.l.b16 %v1632
      %v1886 = vunpack.c.l.b16 %v1636
      %v1887 = vunpack.c.l.b16 %v1639
      %v1888 = vunpack.c.l.b16 %v1643
      %v1889 = vunpack.c.l.b16 %v1646
      %v1890 = vunpack.c.l.b16 %v1650
      %v1891 = vunpack.c.l.b16 %v1653
      %v1892 = vunpack.c.l.b16 %v1657
      %v1893 = vunpack.c.l.b16 %v1660
      %v1894 = vunpack.c.l.b16 %v1664
      %v1895 = vunpack.c.l.b16 %v1667
      %v1896 = vpack.c.b16 %v1865, %v1864
      %v1897 = vpack.c.b16 %v1867, %v1866
      %v1898 = vpack.c.b16 %v1869, %v1868
      %v1899 = vpack.c.b16 %v1871, %v1870
      %v1900 = vpack.c.b16 %v1873, %v1872
      %v1901 = vpack.c.b16 %v1875, %v1874
      %v1902 = vpack.c.b16 %v1877, %v1876
      %v1903 = vpack.c.b16 %v1879, %v1878
      %v1904 = vpack.c.b16 %v1881, %v1880
      %v1905 = vpack.c.b16 %v1883, %v1882
      %v1906 = vpack.c.b16 %v1885, %v1884
      %v1907 = vpack.c.b16 %v1887, %v1886
      %v1908 = vpack.c.b16 %v1889, %v1888
      %v1909 = vpack.c.b16 %v1891, %v1890
      %v1910 = vpack.c.b16 %v1893, %v1892
      %v1911 = vpack.c.b16 %v1895, %v1894
      %v1928 = vunpack.c.l.b16 %v1112
      %v1929 = vunpack.c.l.b16 %v1113
      %v1930 = vpack.c.b16 %v1929, %v1928
      %v1932 = vunpack.c.l.b16 %v1681
      %v1933 = vunpack.c.l.b16 %v1691
      %v1934 = vpack.c.b16 %v1933, %v1932
      %v1936 = vunpack.c.l.b16 %v1698
      %v1937 = vunpack.c.l.b16 %v1701
      %v1938 = vpack.c.b16 %v1937, %v1936
      %v1940 = vunpack.c.l.b16 %v1115
      %v1941 = vunpack.c.l.b16 %v1116
      %v1942 = vpack.c.b16 %v1941, %v1940
      %v1944 = vunpack.c.l.b16 %v1715
      %v1945 = vunpack.c.l.b16 %v1725
      %v1946 = vpack.c.b16 %v1945, %v1944
      %v1948 = vunpack.c.l.b16 %v1732
      %v1949 = vunpack.c.l.b16 %v1735
      %v1950 = vpack.c.b16 %v1949, %v1948
      %v1952 = vld [vmem:[%s1] sm:$0xf]
      %v1953 = vld [vmem:[%s1 + $0x4] sm:$0xf]
      %v1954 = vld [vmem:[%s1 + $0x8] sm:$0xf]
      %v1955 = vld [vmem:[%s1 + $0xc] sm:$0xf]
      %v1956 = vld [vmem:[%s1 + $0x10] sm:$0xf]
      %v1957 = vld [vmem:[%s1 + $0x14] sm:$0xf]
      %v1958 = vld [vmem:[%s1 + $0x18] sm:$0xf]
      %v1959 = vld [vmem:[%s1 + $0x1c] sm:$0xf]
      %v1960 = vld [vmem:[%s1 + $0x20] sm:$0xf]
      %v1961 = vld [vmem:[%s1 + $0x24] sm:$0xf]
      %v1962 = vld [vmem:[%s1 + $0x28] sm:$0xf]
      %v1963 = vld [vmem:[%s1 + $0x2c] sm:$0xf]
      %v1964 = vld [vmem:[%s1 + $0x30] sm:$0xf]
      %v1965 = vld [vmem:[%s1 + $0x34] sm:$0xf]
      %v1966 = vld [vmem:[%s1 + $0x38] sm:$0xf]
      %v1967 = vld [vmem:[%s1 + $0x3c] sm:$0xf]
      %v1968 = vld [vmem:[%s1 + $0x40] sm:$0xf]
      %v1969 = vld [vmem:[%s1 + $0x44] sm:$0xf]
      %v1970 = vld [vmem:[%s1 + $0x48] sm:$0xf]
      %v1971 = vld [vmem:[%s1 + $0x4c] sm:$0xf]
      %v1972 = vld [vmem:[%s1 + $0x50] sm:$0xf]
      %v1973 = vld [vmem:[%s1 + $0x54] sm:$0xf]
      %v1974 = vld [vmem:[%s1 + $0x58] sm:$0xf]
      %v1975 = vld [vmem:[%s1 + $0x5c] sm:$0xf]
      %v1976 = vld [vmem:[%s1 + $0x60] sm:$0xf]
      %v1977 = vld [vmem:[%s1 + $0x64] sm:$0xf]
      %v1978 = vld [vmem:[%s1 + $0x68] sm:$0xf]
      %v1979 = vld [vmem:[%s1 + $0x6c] sm:$0xf]
      %v1980 = vld [vmem:[%s1 + $0x70] sm:$0xf]
      %v1981 = vld [vmem:[%s1 + $0x74] sm:$0xf]
      %v1982 = vld [vmem:[%s1 + $0x78] sm:$0xf]
      %v1983 = vld [vmem:[%s1 + $0x7c] sm:$0xf]
      %v1984 = vld [vmem:[%s1 + $0x80] sm:$0xf]
      %v1985 = vld [vmem:[%s1 + $0x84] sm:$0xf]
      %v1986 = vld [vmem:[%s1 + $0x88] sm:$0xf]
      %v1987 = vld [vmem:[%s1 + $0x8c] sm:$0xf]
      %v1988 = vld [vmem:[%s1 + $0x90] sm:$0xf]
      %v1989 = vld [vmem:[%s1 + $0x94] sm:$0xf]
      %v1990 = vld [vmem:[%s1 + $0x98] sm:$0xf]
      %v1991 = vld [vmem:[%s1 + $0x9c] sm:$0xf]
      %v1992 = vld [vmem:[%s1 + $0xa0] sm:$0xf]
      %v1993 = vld [vmem:[%s1 + $0xa4] sm:$0xf]
      %v1994 = vld [vmem:[%s1 + $0xa8] sm:$0xf]
      %v1995 = vld [vmem:[%s1 + $0xac] sm:$0xf]
      %v1996 = vld [vmem:[%s1 + $0xb0] sm:$0xf]
      %v1997 = vld [vmem:[%s1 + $0xb4] sm:$0xf]
      %v1998 = vld [vmem:[%s1 + $0xb8] sm:$0xf]
      %v1999 = vld [vmem:[%s1 + $0xbc] sm:$0xf]
      %v2000 = vld [vmem:[%s1 + $0xc0] sm:$0xf]
      %v2001 = vld [vmem:[%s1 + $0xc4] sm:$0xf]
      %v2002 = vld [vmem:[%s1 + $0xc8] sm:$0xf]
      %v2003 = vld [vmem:[%s1 + $0xcc] sm:$0xf]
      %v2004 = vld [vmem:[%s1 + $0xd0] sm:$0xf]
      %v2005 = vld [vmem:[%s1 + $0xd4] sm:$0xf]
      %v2006 = vld [vmem:[%s1 + $0xd8] sm:$0xf]
      %v2007 = vld [vmem:[%s1 + $0xdc] sm:$0xf]
      %v2008 = vld [vmem:[%s1 + $0xe0] sm:$0xf]
      %v2009 = vld [vmem:[%s1 + $0xe4] sm:$0xf]
      %v2010 = vld [vmem:[%s1 + $0xe8] sm:$0xf]
      %v2011 = vld [vmem:[%s1 + $0xec] sm:$0xf]
      %v2012 = vld [vmem:[%s1 + $0xf0] sm:$0xf]
      %v2013 = vld [vmem:[%s1 + $0xf4] sm:$0xf]
      %v2014 = vld [vmem:[%s1 + $0xf8] sm:$0xf]
      %v2015 = vld [vmem:[%s1 + $0xfc] sm:$0xf]
      %v2016 = vld [vmem:[%s1 + $0x100] sm:$0xf]
      %v2017 = vld [vmem:[%s1 + $0x104] sm:$0xf]
      %v2018 = vld [vmem:[%s1 + $0x108] sm:$0xf]
      %v2019 = vld [vmem:[%s1 + $0x10c] sm:$0xf]
      %v2020 = vld [vmem:[%s1 + $0x110] sm:$0xf]
      %v2021 = vld [vmem:[%s1 + $0x114] sm:$0xf]
      %v2022 = vld [vmem:[%s1 + $0x118] sm:$0xf]
      %v2023 = vld [vmem:[%s1 + $0x11c] sm:$0xf]
      %v2024 = vld [vmem:[%s1 + $0x120] sm:$0xf]
      %v2025 = vld [vmem:[%s1 + $0x124] sm:$0xf]
      %v2026 = vld [vmem:[%s1 + $0x128] sm:$0xf]
      %v2027 = vld [vmem:[%s1 + $0x12c] sm:$0xf]
      %v2028 = vld [vmem:[%s1 + $0x130] sm:$0xf]
      %v2029 = vld [vmem:[%s1 + $0x134] sm:$0xf]
      %v2030 = vld [vmem:[%s1 + $0x138] sm:$0xf]
      %v2031 = vld [vmem:[%s1 + $0x13c] sm:$0xf]
      %v2032 = vld [vmem:[%s1 + $0x140] sm:$0xf]
      %v2033 = vld [vmem:[%s1 + $0x144] sm:$0xf]
      %v2034 = vld [vmem:[%s1 + $0x148] sm:$0xf]
      %v2035 = vld [vmem:[%s1 + $0x14c] sm:$0xf]
      %v2036 = vld [vmem:[%s1 + $0x150] sm:$0xf]
      %v2037 = vld [vmem:[%s1 + $0x154] sm:$0xf]
      %v2038 = vld [vmem:[%s1 + $0x158] sm:$0xf]
      %v2039 = vld [vmem:[%s1 + $0x15c] sm:$0xf]
      %v2040 = vld [vmem:[%s1 + $0x160] sm:$0xf]
      %v2041 = vld [vmem:[%s1 + $0x164] sm:$0xf]
      %v2042 = vld [vmem:[%s1 + $0x168] sm:$0xf]
      %v2043 = vld [vmem:[%s1 + $0x16c] sm:$0xf]
      %v2044 = vld [vmem:[%s1 + $0x170] sm:$0xf]
      %v2045 = vld [vmem:[%s1 + $0x174] sm:$0xf]
      %v2046 = vld [vmem:[%s1 + $0x178] sm:$0xf]
      %v2047 = vld [vmem:[%s1 + $0x17c] sm:$0xf]
      %v2048 = vld [vmem:[%s1 + $0x180] sm:$0xf]
      %v2049 = vld [vmem:[%s1 + $0x184] sm:$0xf]
      %v2050 = vld [vmem:[%s1 + $0x188] sm:$0xf]
      %v2051 = vld [vmem:[%s1 + $0x18c] sm:$0xf]
      %v2052 = vld [vmem:[%s1 + $0x190] sm:$0xf]
      %v2053 = vld [vmem:[%s1 + $0x194] sm:$0xf]
      %v2054 = vld [vmem:[%s1 + $0x198] sm:$0xf]
      %v2055 = vld [vmem:[%s1 + $0x19c] sm:$0xf]
      %v2056 = vld [vmem:[%s1 + $0x1a0] sm:$0xf]
      %v2057 = vld [vmem:[%s1 + $0x1a4] sm:$0xf]
      %v2058 = vld [vmem:[%s1 + $0x1a8] sm:$0xf]
      %v2059 = vld [vmem:[%s1 + $0x1ac] sm:$0xf]
      %v2060 = vld [vmem:[%s1 + $0x1b0] sm:$0xf]
      %v2061 = vld [vmem:[%s1 + $0x1b4] sm:$0xf]
      %v2062 = vld [vmem:[%s1 + $0x1b8] sm:$0xf]
      %v2063 = vld [vmem:[%s1 + $0x1bc] sm:$0xf]
      %v2064 = vld [vmem:[%s1 + $0x1c0] sm:$0xf]
      %v2065 = vld [vmem:[%s1 + $0x1c4] sm:$0xf]
      %v2066 = vld [vmem:[%s1 + $0x1c8] sm:$0xf]
      %v2067 = vld [vmem:[%s1 + $0x1cc] sm:$0xf]
      %v2068 = vld [vmem:[%s1 + $0x1d0] sm:$0xf]
      %v2069 = vld [vmem:[%s1 + $0x1d4] sm:$0xf]
      %v2070 = vld [vmem:[%s1 + $0x1d8] sm:$0xf]
      %v2071 = vld [vmem:[%s1 + $0x1dc] sm:$0xf]
      %v2072 = vld [vmem:[%s1 + $0x1e0] sm:$0xf]
      %v2073 = vld [vmem:[%s1 + $0x1e4] sm:$0xf]
      %v2074 = vld [vmem:[%s1 + $0x1e8] sm:$0xf]
      %v2075 = vld [vmem:[%s1 + $0x1ec] sm:$0xf]
      %v2076 = vld [vmem:[%s1 + $0x1f0] sm:$0xf]
      %v2077 = vld [vmem:[%s1 + $0x1f4] sm:$0xf]
      %v2078 = vld [vmem:[%s1 + $0x1f8] sm:$0xf]
      %v2079 = vld [vmem:[%s1 + $0x1fc] sm:$0xf]
      %v2080 = vld [vmem:[%s1 + $0x200] sm:$0xf]
      %v2081 = vld [vmem:[%s1 + $0x204] sm:$0xf]
      %v2082 = vld [vmem:[%s1 + $0x208] sm:$0xf]
      %v2083 = vld [vmem:[%s1 + $0x20c] sm:$0xf]
      %v2084 = vld [vmem:[%s1 + $0x210] sm:$0xf]
      %v2085 = vld [vmem:[%s1 + $0x214] sm:$0xf]
      %v2086 = vld [vmem:[%s1 + $0x218] sm:$0xf]
      %v2087 = vld [vmem:[%s1 + $0x21c] sm:$0xf]
      %v2088 = vld [vmem:[%s1 + $0x220] sm:$0xf]
      %v2089 = vld [vmem:[%s1 + $0x224] sm:$0xf]
      %v2090 = vld [vmem:[%s1 + $0x228] sm:$0xf]
      %v2091 = vld [vmem:[%s1 + $0x22c] sm:$0xf]
      %v2092 = vld [vmem:[%s1 + $0x230] sm:$0xf]
      %v2093 = vld [vmem:[%s1 + $0x234] sm:$0xf]
      %v2094 = vld [vmem:[%s1 + $0x238] sm:$0xf]
      %v2095 = vld [vmem:[%s1 + $0x23c] sm:$0xf]
      %v2240 = vunpack.c.l.b16 %v1952
      %v2241 = vunpack.c.l.b16 %v1953
      %v2242 = vunpack.c.l.b16 %v1954
      %v2243 = vunpack.c.l.b16 %v1955
      %v2244 = vunpack.c.l.b16 %v1956
      %v2245 = vunpack.c.l.b16 %v1957
      %v2246 = vunpack.c.l.b16 %v1958
      %v2247 = vunpack.c.l.b16 %v1959
      %v2248 = vunpack.c.l.b16 %v1960
      %v2249 = vunpack.c.l.b16 %v1961
      %v2250 = vunpack.c.l.b16 %v1962
      %v2251 = vunpack.c.l.b16 %v1963
      %v2252 = vunpack.c.l.b16 %v1964
      %v2253 = vunpack.c.l.b16 %v1965
      %v2254 = vunpack.c.l.b16 %v1966
      %v2255 = vunpack.c.l.b16 %v1967
      %v2256 = vunpack.c.l.b16 %v1968
      %v2257 = vunpack.c.l.b16 %v1969
      %v2258 = vunpack.c.l.b16 %v1970
      %v2259 = vunpack.c.l.b16 %v1971
      %v2260 = vunpack.c.l.b16 %v1972
      %v2261 = vunpack.c.l.b16 %v1973
      %v2262 = vunpack.c.l.b16 %v1974
      %v2263 = vunpack.c.l.b16 %v1975
      %v2264 = vunpack.c.l.b16 %v1976
      %v2265 = vunpack.c.l.b16 %v1977
      %v2266 = vunpack.c.l.b16 %v1978
      %v2267 = vunpack.c.l.b16 %v1979
      %v2268 = vunpack.c.l.b16 %v1980
      %v2269 = vunpack.c.l.b16 %v1981
      %v2270 = vunpack.c.l.b16 %v1982
      %v2271 = vunpack.c.l.b16 %v1983
      %v2272 = vunpack.c.l.b16 %v1984
      %v2273 = vunpack.c.l.b16 %v1985
      %v2274 = vunpack.c.l.b16 %v1986
      %v2275 = vunpack.c.l.b16 %v1987
      %v2276 = vunpack.c.l.b16 %v1988
      %v2277 = vunpack.c.l.b16 %v1989
      %v2278 = vunpack.c.l.b16 %v1990
      %v2279 = vunpack.c.l.b16 %v1991
      %v2280 = vunpack.c.l.b16 %v1992
      %v2281 = vunpack.c.l.b16 %v1993
      %v2282 = vunpack.c.l.b16 %v1994
      %v2283 = vunpack.c.l.b16 %v1995
      %v2284 = vunpack.c.l.b16 %v1996
      %v2285 = vunpack.c.l.b16 %v1997
      %v2286 = vunpack.c.l.b16 %v1998
      %v2287 = vunpack.c.l.b16 %v1999
      %v2288 = vunpack.c.l.b16 %v2000
      %v2289 = vunpack.c.l.b16 %v2001
      %v2290 = vunpack.c.l.b16 %v2002
      %v2291 = vunpack.c.l.b16 %v2003
      %v2292 = vunpack.c.l.b16 %v2004
      %v2293 = vunpack.c.l.b16 %v2005
      %v2294 = vunpack.c.l.b16 %v2006
      %v2295 = vunpack.c.l.b16 %v2007
      %v2296 = vunpack.c.l.b16 %v2008
      %v2297 = vunpack.c.l.b16 %v2009
      %v2298 = vunpack.c.l.b16 %v2010
      %v2299 = vunpack.c.l.b16 %v2011
      %v2300 = vunpack.c.l.b16 %v2012
      %v2301 = vunpack.c.l.b16 %v2013
      %v2302 = vunpack.c.l.b16 %v2014
      %v2303 = vunpack.c.l.b16 %v2015
      %v2304 = vunpack.c.l.b16 %v2016
      %v2305 = vunpack.c.l.b16 %v2017
      %v2306 = vunpack.c.l.b16 %v2018
      %v2307 = vunpack.c.l.b16 %v2019
      %v2308 = vunpack.c.l.b16 %v2020
      %v2309 = vunpack.c.l.b16 %v2021
      %v2310 = vunpack.c.l.b16 %v2022
      %v2311 = vunpack.c.l.b16 %v2023
      %v2312 = vunpack.c.l.b16 %v2024
      %v2313 = vunpack.c.l.b16 %v2025
      %v2314 = vunpack.c.l.b16 %v2026
      %v2315 = vunpack.c.l.b16 %v2027
      %v2316 = vunpack.c.l.b16 %v2028
      %v2317 = vunpack.c.l.b16 %v2029
      %v2318 = vunpack.c.l.b16 %v2030
      %v2319 = vunpack.c.l.b16 %v2031
      %v2320 = vunpack.c.l.b16 %v2032
      %v2321 = vunpack.c.l.b16 %v2033
      %v2322 = vunpack.c.l.b16 %v2034
      %v2323 = vunpack.c.l.b16 %v2035
      %v2324 = vunpack.c.l.b16 %v2036
      %v2325 = vunpack.c.l.b16 %v2037
      %v2326 = vunpack.c.l.b16 %v2038
      %v2327 = vunpack.c.l.b16 %v2039
      %v2328 = vunpack.c.l.b16 %v2040
      %v2329 = vunpack.c.l.b16 %v2041
      %v2330 = vunpack.c.l.b16 %v2042
      %v2331 = vunpack.c.l.b16 %v2043
      %v2332 = vunpack.c.l.b16 %v2044
      %v2333 = vunpack.c.l.b16 %v2045
      %v2334 = vunpack.c.l.b16 %v2046
      %v2335 = vunpack.c.l.b16 %v2047
      %v2336 = vunpack.c.l.b16 %v2048
      %v2337 = vunpack.c.l.b16 %v2049
      %v2338 = vunpack.c.l.b16 %v2050
      %v2339 = vunpack.c.l.b16 %v2051
      %v2340 = vunpack.c.l.b16 %v2052
      %v2341 = vunpack.c.l.b16 %v2053
      %v2342 = vunpack.c.l.b16 %v2054
      %v2343 = vunpack.c.l.b16 %v2055
      %v2344 = vunpack.c.l.b16 %v2056
      %v2345 = vunpack.c.l.b16 %v2057
      %v2346 = vunpack.c.l.b16 %v2058
      %v2347 = vunpack.c.l.b16 %v2059
      %v2348 = vunpack.c.l.b16 %v2060
      %v2349 = vunpack.c.l.b16 %v2061
      %v2350 = vunpack.c.l.b16 %v2062
      %v2351 = vunpack.c.l.b16 %v2063
      %v2352 = vunpack.c.l.b16 %v2064
      %v2353 = vunpack.c.l.b16 %v2065
      %v2354 = vunpack.c.l.b16 %v2066
      %v2355 = vunpack.c.l.b16 %v2067
      %v2356 = vunpack.c.l.b16 %v2068
      %v2357 = vunpack.c.l.b16 %v2069
      %v2358 = vunpack.c.l.b16 %v2070
      %v2359 = vunpack.c.l.b16 %v2071
      %v2360 = vunpack.c.l.b16 %v2072
      %v2361 = vunpack.c.l.b16 %v2073
      %v2362 = vunpack.c.l.b16 %v2074
      %v2363 = vunpack.c.l.b16 %v2075
      %v2364 = vunpack.c.l.b16 %v2076
      %v2365 = vunpack.c.l.b16 %v2077
      %v2366 = vunpack.c.l.b16 %v2078
      %v2367 = vunpack.c.l.b16 %v2079
      %v2368 = vunpack.c.l.b16 %v2080
      %v2369 = vunpack.c.l.b16 %v2081
      %v2370 = vunpack.c.l.b16 %v2082
      %v2371 = vunpack.c.l.b16 %v2083
      %v2372 = vunpack.c.l.b16 %v2084
      %v2373 = vunpack.c.l.b16 %v2085
      %v2374 = vunpack.c.l.b16 %v2086
      %v2375 = vunpack.c.l.b16 %v2087
      %v2376 = vunpack.c.l.b16 %v2088
      %v2377 = vunpack.c.l.b16 %v2089
      %v2378 = vunpack.c.l.b16 %v2090
      %v2379 = vunpack.c.l.b16 %v2091
      %v2380 = vunpack.c.l.b16 %v2092
      %v2381 = vunpack.c.l.b16 %v2093
      %v2382 = vunpack.c.l.b16 %v2094
      %v2383 = vunpack.c.l.b16 %v2095
      %v2384 = vpack.c.b16 %v2241, %v2240
      %v2385 = vpack.c.b16 %v2243, %v2242
      %v2386 = vpack.c.b16 %v2245, %v2244
      %v2387 = vpack.c.b16 %v2247, %v2246
      %v2388 = vpack.c.b16 %v2249, %v2248
      %v2389 = vpack.c.b16 %v2251, %v2250
      %v2390 = vpack.c.b16 %v2253, %v2252
      %v2391 = vpack.c.b16 %v2255, %v2254
      %v2392 = vpack.c.b16 %v2257, %v2256
      %v2393 = vpack.c.b16 %v2259, %v2258
      %v2394 = vpack.c.b16 %v2261, %v2260
      %v2395 = vpack.c.b16 %v2263, %v2262
      %v2396 = vpack.c.b16 %v2265, %v2264
      %v2397 = vpack.c.b16 %v2267, %v2266
      %v2398 = vpack.c.b16 %v2269, %v2268
      %v2399 = vpack.c.b16 %v2271, %v2270
      %v2400 = vpack.c.b16 %v2273, %v2272
      %v2401 = vpack.c.b16 %v2275, %v2274
      %v2402 = vpack.c.b16 %v2277, %v2276
      %v2403 = vpack.c.b16 %v2279, %v2278
      %v2404 = vpack.c.b16 %v2281, %v2280
      %v2405 = vpack.c.b16 %v2283, %v2282
      %v2406 = vpack.c.b16 %v2285, %v2284
      %v2407 = vpack.c.b16 %v2287, %v2286
      %v2408 = vpack.c.b16 %v2289, %v2288
      %v2409 = vpack.c.b16 %v2291, %v2290
      %v2410 = vpack.c.b16 %v2293, %v2292
      %v2411 = vpack.c.b16 %v2295, %v2294
      %v2412 = vpack.c.b16 %v2297, %v2296
      %v2413 = vpack.c.b16 %v2299, %v2298
      %v2414 = vpack.c.b16 %v2301, %v2300
      %v2415 = vpack.c.b16 %v2303, %v2302
      %v2416 = vpack.c.b16 %v2305, %v2304
      %v2417 = vpack.c.b16 %v2307, %v2306
      %v2418 = vpack.c.b16 %v2309, %v2308
      %v2419 = vpack.c.b16 %v2311, %v2310
      %v2420 = vpack.c.b16 %v2313, %v2312
      %v2421 = vpack.c.b16 %v2315, %v2314
      %v2422 = vpack.c.b16 %v2317, %v2316
      %v2423 = vpack.c.b16 %v2319, %v2318
      %v2424 = vpack.c.b16 %v2321, %v2320
      %v2425 = vpack.c.b16 %v2323, %v2322
      %v2426 = vpack.c.b16 %v2325, %v2324
      %v2427 = vpack.c.b16 %v2327, %v2326
      %v2428 = vpack.c.b16 %v2329, %v2328
      %v2429 = vpack.c.b16 %v2331, %v2330
      %v2430 = vpack.c.b16 %v2333, %v2332
      %v2431 = vpack.c.b16 %v2335, %v2334
      %v2432 = vpack.c.b16 %v2337, %v2336
      %v2433 = vpack.c.b16 %v2339, %v2338
      %v2434 = vpack.c.b16 %v2341, %v2340
      %v2435 = vpack.c.b16 %v2343, %v2342
      %v2436 = vpack.c.b16 %v2345, %v2344
      %v2437 = vpack.c.b16 %v2347, %v2346
      %v2438 = vpack.c.b16 %v2349, %v2348
      %v2439 = vpack.c.b16 %v2351, %v2350
      %v2440 = vpack.c.b16 %v2353, %v2352
      %v2441 = vpack.c.b16 %v2355, %v2354
      %v2442 = vpack.c.b16 %v2357, %v2356
      %v2443 = vpack.c.b16 %v2359, %v2358
      %v2444 = vpack.c.b16 %v2361, %v2360
      %v2445 = vpack.c.b16 %v2363, %v2362
      %v2446 = vpack.c.b16 %v2365, %v2364
      %v2447 = vpack.c.b16 %v2367, %v2366
      %v2448 = vpack.c.b16 %v2369, %v2368
      %v2449 = vpack.c.b16 %v2371, %v2370
      %v2450 = vpack.c.b16 %v2373, %v2372
      %v2451 = vpack.c.b16 %v2375, %v2374
      %v2452 = vpack.c.b16 %v2377, %v2376
      %v2453 = vpack.c.b16 %v2379, %v2378
      %v2454 = vpack.c.b16 %v2381, %v2380
      %v2455 = vpack.c.b16 %v2383, %v2382
      %2528 = vmatprep.subr.bf16.mxu0 0
      %2529 = vmatpush1.bf16.msra.mxu0 %v2384
      %2530 = vmatprep.subr.bf16.mxu0 0
      %2531 = vmatpush1.bf16.msra.mxu0 %v2385
      %2532 = vmatprep.subr.bf16.mxu0 0
      %2533 = vmatpush1.bf16.msra.mxu0 %v2386
      %2534 = vmatprep.subr.bf16.mxu0 0
      %2535 = vmatpush1.bf16.msra.mxu0 %v2387
      %2536 = vmatprep.subr.bf16.mxu0 0
      %2537 = vmatpush1.bf16.msra.mxu0 %v2388
      %2538 = vmatprep.subr.bf16.mxu0 0
      %2539 = vmatpush1.bf16.msra.mxu0 %v2389
      %2540 = vmatprep.subr.bf16.mxu0 0
      %2541 = vmatpush1.bf16.msra.mxu0 %v2390
      %2542 = vmatprep.subr.bf16.mxu0 0
      %2543 = vmatpush1.bf16.msra.mxu0 %v2391
      %2544 = vmatprep.subr.bf16.mxu0 0
      %2545 = vmatpush1.bf16.msra.mxu0 %v2392
      %2546 = vmatprep.subr.bf16.mxu0 0
      %2547 = vmatpush1.bf16.msra.mxu0 %v2393
      %2548 = vmatprep.subr.bf16.mxu0 0
      %2549 = vmatpush1.bf16.msra.mxu0 %v2394
      %2550 = vmatprep.subr.bf16.mxu0 0
      %2551 = vmatpush1.bf16.msra.mxu0 %v2395
      %2552 = vmatprep.subr.bf16.mxu0 0
      %2553 = vmatpush1.bf16.msra.mxu0 %v2396
      %2554 = vmatprep.subr.bf16.mxu0 0
      %2555 = vmatpush1.bf16.msra.mxu0 %v2397
      %2556 = vmatprep.subr.bf16.mxu0 0
      %2557 = vmatpush1.bf16.msra.mxu0 %v2398
      %2558 = vmatprep.subr.bf16.mxu0 0
      %2559 = vmatpush1.bf16.msra.mxu0 %v2399
      %2560 = vmatprep.mubr.bf16.mxu0 %v1832
      %2561 = vmatmul.mubr.bf16.gmra.mrb[0].mxu0 %v1768
      %v2562 = vpop.f32.mrb[0].mxu0
      %v2563 = vadd.f32 0.0, %v2562
      %v2564 = vpop.f32.mrb[0].mxu0
      %v2565 = vpop.f32.mrb[0].mxu0
      %v2566 = vadd.f32 0.0, %v2565
      %v2567 = vpop.f32.mrb[0].mxu0
      %2568 = vmatprep.mubr.bf16.mxu0 %v1833
      %2569 = vmatmul.mubr.bf16.gmra.mrb[0].mxu0 %v1769
      %v2570 = vpop.f32.mrb[0].mxu0
      %v2571 = vadd.f32 0.0, %v2570
      %v2572 = vpop.f32.mrb[0].mxu0
      %v2573 = vpop.f32.mrb[0].mxu0
      %v2574 = vadd.f32 0.0, %v2573
      %v2575 = vpop.f32.mrb[0].mxu0
      %2576 = vmatprep.mubr.bf16.mxu0 %v1834
      %2577 = vmatmul.mubr.bf16.gmra.mrb[0].mxu0 %v1770
      %v2578 = vpop.f32.mrb[0].mxu0
      %v2579 = vadd.f32 0.0, %v2578
      %v2580 = vpop.f32.mrb[0].mxu0
      %v2581 = vpop.f32.mrb[0].mxu0
      %v2582 = vadd.f32 0.0, %v2581
      %v2583 = vpop.f32.mrb[0].mxu0
      %2584 = vmatprep.mubr.bf16.mxu0 %v1835
      %2585 = vmatmul.mubr.bf16.gmra.mrb[0].mxu0 %v1771
      %v2586 = vpop.f32.mrb[0].mxu0
      %v2587 = vadd.f32 0.0, %v2586
      %v2588 = vpop.f32.mrb[0].mxu0
      %v2589 = vpop.f32.mrb[0].mxu0
      %v2590 = vadd.f32 0.0, %v2589
      %v2591 = vpop.f32.mrb[0].mxu0
      %2592 = vmatprep.mubr.bf16.mxu0 %v1836
      %2593 = vmatmul.mubr.bf16.gmra.mrb[0].mxu0 %v1772
      %v2594 = vpop.f32.mrb[0].mxu0
      %v2595 = vadd.f32 0.0, %v2594
      %v2596 = vpop.f32.mrb[0].mxu0
      %v2597 = vpop.f32.mrb[0].mxu0
      %v2598 = vadd.f32 0.0, %v2597
      %v2599 = vpop.f32.mrb[0].mxu0
      %2600 = vmatprep.mubr.bf16.mxu0 %v1837
      %2601 = vmatmul.mubr.bf16.gmra.mrb[0].mxu0 %v1773
      %v2602 = vpop.f32.mrb[0].mxu0
      %v2603 = vadd.f32 0.0, %v2602
      %v2604 = vpop.f32.mrb[0].mxu0
      %v2605 = vpop.f32.mrb[0].mxu0
      %v2606 = vadd.f32 0.0, %v2605
      %v2607 = vpop.f32.mrb[0].mxu0
      %2608 = vmatprep.mubr.bf16.mxu0 %v1838
      %2609 = vmatmul.mubr.bf16.gmra.mrb[0].mxu0 %v1774
      %v2610 = vpop.f32.mrb[0].mxu0
      %v2611 = vadd.f32 0.0, %v2610
      %v2612 = vpop.f32.mrb[0].mxu0
      %v2613 = vpop.f32.mrb[0].mxu0
      %v2614 = vadd.f32 0.0, %v2613
      %v2615 = vpop.f32.mrb[0].mxu0
      %2616 = vmatprep.mubr.bf16.mxu0 %v1839
      %2617 = vmatmul.mubr.bf16.gmra.mrb[0].mxu0 %v1775
      %v2618 = vpop.f32.mrb[0].mxu0
      %v2619 = vadd.f32 0.0, %v2618
      %v2620 = vpop.f32.mrb[0].mxu0
      %v2621 = vpop.f32.mrb[0].mxu0
      %v2622 = vadd.f32 0.0, %v2621
      %v2623 = vpop.f32.mrb[0].mxu0
      %2624 = vmatprep.mubr.bf16.mxu0 %v1840
      %2625 = vmatmul.mubr.bf16.gmra.mrb[0].mxu0 %v1776
      %v2626 = vpop.f32.mrb[0].mxu0
      %v2627 = vadd.f32 0.0, %v2626
      %v2628 = vpop.f32.mrb[0].mxu0
      %v2629 = vpop.f32.mrb[0].mxu0
      %v2630 = vadd.f32 0.0, %v2629
      %v2631 = vpop.f32.mrb[0].mxu0
      %2632 = vmatprep.mubr.bf16.mxu0 %v1841
      %2633 = vmatmul.mubr.bf16.gmra.mrb[0].mxu0 %v1777
      %v2634 = vpop.f32.mrb[0].mxu0
      %v2635 = vadd.f32 0.0, %v2634
      %v2636 = vpop.f32.mrb[0].mxu0
      %v2637 = vpop.f32.mrb[0].mxu0
      %v2638 = vadd.f32 0.0, %v2637
      %v2639 = vpop.f32.mrb[0].mxu0
      %2640 = vmatprep.mubr.bf16.mxu0 %v1842
      %2641 = vmatmul.mubr.bf16.gmra.mrb[0].mxu0 %v1778
      %v2642 = vpop.f32.mrb[0].mxu0
      %v2643 = vadd.f32 0.0, %v2642
      %v2644 = vpop.f32.mrb[0].mxu0
      %v2645 = vpop.f32.mrb[0].mxu0
      %v2646 = vadd.f32 0.0, %v2645
      %v2647 = vpop.f32.mrb[0].mxu0
      %2648 = vmatprep.mubr.bf16.mxu0 %v1843
      %2649 = vmatmul.mubr.bf16.gmra.mrb[0].mxu0 %v1779
      %v2650 = vpop.f32.mrb[0].mxu0
      %v2651 = vadd.f32 0.0, %v2650
      %v2652 = vpop.f32.mrb[0].mxu0
      %v2653 = vpop.f32.mrb[0].mxu0
      %v2654 = vadd.f32 0.0, %v2653
      %v2655 = vpop.f32.mrb[0].mxu0
      %2656 = vmatprep.mubr.bf16.mxu0 %v1844
      %2657 = vmatmul.mubr.bf16.gmra.mrb[0].mxu0 %v1780
      %v2658 = vpop.f32.mrb[0].mxu0
      %v2659 = vadd.f32 0.0, %v2658
      %v2660 = vpop.f32.mrb[0].mxu0
      %v2661 = vpop.f32.mrb[0].mxu0
      %v2662 = vadd.f32 0.0, %v2661
      %v2663 = vpop.f32.mrb[0].mxu0
      %2664 = vmatprep.mubr.bf16.mxu0 %v1845
      %2665 = vmatmul.mubr.bf16.gmra.mrb[0].mxu0 %v1781
      %v2666 = vpop.f32.mrb[0].mxu0
      %v2667 = vadd.f32 0.0, %v2666
      %v2668 = vpop.f32.mrb[0].mxu0
      %v2669 = vpop.f32.mrb[0].mxu0
      %v2670 = vadd.f32 0.0, %v2669
      %v2671 = vpop.f32.mrb[0].mxu0
      %2672 = vmatprep.mubr.bf16.mxu0 %v1846
      %2673 = vmatmul.mubr.bf16.gmra.mrb[0].mxu0 %v1782
      %v2674 = vpop.f32.mrb[0].mxu0
      %v2675 = vadd.f32 0.0, %v2674
      %v2676 = vpop.f32.mrb[0].mxu0
      %v2677 = vpop.f32.mrb[0].mxu0
      %v2678 = vadd.f32 0.0, %v2677
      %v2679 = vpop.f32.mrb[0].mxu0
      %2680 = vmatprep.mubr.bf16.mxu0 %v1847
      %2681 = vmatmul.mubr.bf16.gmra.mrb[0].mxu0 %v1783
      %v2682 = vpop.f32.mrb[0].mxu0
      %v2683 = vadd.f32 0.0, %v2682
      %v2684 = vpop.f32.mrb[0].mxu0
      %v2685 = vpop.f32.mrb[0].mxu0
      %v2686 = vadd.f32 0.0, %v2685
      %v2687 = vpop.f32.mrb[0].mxu0
      %2688 = vdwg.mxu0
      %2689 = vmatprep.subr.bf16.mxu0 0
      %2690 = vmatpush1.bf16.msra.mxu0 %v2400
      %2691 = vmatprep.subr.bf16.mxu0 0
      %2692 = vmatpush1.bf16.msra.mxu0 %v2401
      %2693 = vmatprep.subr.bf16.mxu0 0
      %2694 = vmatpush1.bf16.msra.mxu0 %v2402
      %2695 = vmatprep.subr.bf16.mxu0 0
      %2696 = vmatpush1.bf16.msra.mxu0 %v2403
      %2697 = vmatprep.subr.bf16.mxu0 0
      %2698 = vmatpush1.bf16.msra.mxu0 %v2404
      %2699 = vmatprep.subr.bf16.mxu0 0
      %2700 = vmatpush1.bf16.msra.mxu0 %v2405
      %2701 = vmatprep.subr.bf16.mxu0 0
      %2702 = vmatpush1.bf16.msra.mxu0 %v2406
      %2703 = vmatprep.subr.bf16.mxu0 0
      %2704 = vmatpush1.bf16.msra.mxu0 %v2407
      %2705 = vmatprep.subr.bf16.mxu0 0
      %2706 = vmatpush1.bf16.msra.mxu0 %v2408
      %2707 = vmatprep.subr.bf16.mxu0 0
      %2708 = vmatpush1.bf16.msra.mxu0 %v2409
      %2709 = vmatprep.subr.bf16.mxu0 0
      %2710 = vmatpush1.bf16.msra.mxu0 %v2410
      %2711 = vmatprep.subr.bf16.mxu0 0
      %2712 = vmatpush1.bf16.msra.mxu0 %v2411
      %2713 = vmatprep.subr.bf16.mxu0 0
      %2714 = vmatpush1.bf16.msra.mxu0 %v2412
      %2715 = vmatprep.subr.bf16.mxu0 0
      %2716 = vmatpush1.bf16.msra.mxu0 %v2413
      %2717 = vmatprep.subr.bf16.mxu0 0
      %2718 = vmatpush1.bf16.msra.mxu0 %v2414
      %2719 = vmatprep.subr.bf16.mxu0 0
      %2720 = vmatpush1.bf16.msra.mxu0 %v2415
      %2721 = vmatprep.mubr.bf16.mxu0 %v1769
      %2722 = vmatmul.mubr.bf16.gmra.mrb[0].mxu0 %v1896
      %v2723 = vpop.f32.mrb[0].mxu0
      %v2724 = vadd.f32 %v2563, %v2723
      %v2725 = vpop.f32.mrb[0].mxu0
      %v2726 = vpop.f32.mrb[0].mxu0
      %v2727 = vadd.f32 %v2566, %v2726
      %v2728 = vpop.f32.mrb[0].mxu0
      %2729 = vmatprep.mubr.bf16.mxu0 %v1770
      %2730 = vmatmul.mubr.bf16.gmra.mrb[0].mxu0 %v1897
      %v2731 = vpop.f32.mrb[0].mxu0
      %v2732 = vadd.f32 %v2571, %v2731
      %v2733 = vpop.f32.mrb[0].mxu0
      %v2734 = vpop.f32.mrb[0].mxu0
      %v2735 = vadd.f32 %v2574, %v2734
      %v2736 = vpop.f32.mrb[0].mxu0
      %2737 = vmatprep.mubr.bf16.mxu0 %v1771
      %2738 = vmatmul.mubr.bf16.gmra.mrb[0].mxu0 %v1898
      %v2739 = vpop.f32.mrb[0].mxu0
      %v2740 = vadd.f32 %v2579, %v2739
      %v2741 = vpop.f32.mrb[0].mxu0
      %v2742 = vpop.f32.mrb[0].mxu0
      %v2743 = vadd.f32 %v2582, %v2742
      %v2744 = vpop.f32.mrb[0].mxu0
      %2745 = vmatprep.mubr.bf16.mxu0 %v1772
      %2746 = vmatmul.mubr.bf16.gmra.mrb[0].mxu0 %v1899
      %v2747 = vpop.f32.mrb[0].mxu0
      %v2748 = vadd.f32 %v2587, %v2747
      %v2749 = vpop.f32.mrb[0].mxu0
      %v2750 = vpop.f32.mrb[0].mxu0
      %v2751 = vadd.f32 %v2590, %v2750
      %v2752 = vpop.f32.mrb[0].mxu0
      %2753 = vmatprep.mubr.bf16.mxu0 %v1773
      %2754 = vmatmul.mubr.bf16.gmra.mrb[0].mxu0 %v1900
      %v2755 = vpop.f32.mrb[0].mxu0
      %v2756 = vadd.f32 %v2595, %v2755
      %v2757 = vpop.f32.mrb[0].mxu0
      %v2758 = vpop.f32.mrb[0].mxu0
      %v2759 = vadd.f32 %v2598, %v2758
      %v2760 = vpop.f32.mrb[0].mxu0
      %2761 = vmatprep.mubr.bf16.mxu0 %v1774
      %2762 = vmatmul.mubr.bf16.gmra.mrb[0].mxu0 %v1901
      %v2763 = vpop.f32.mrb[0].mxu0
      %v2764 = vadd.f32 %v2603, %v2763
      %v2765 = vpop.f32.mrb[0].mxu0
      %v2766 = vpop.f32.mrb[0].mxu0
      %v2767 = vadd.f32 %v2606, %v2766
      %v2768 = vpop.f32.mrb[0].mxu0
      %2769 = vmatprep.mubr.bf16.mxu0 %v1775
      %2770 = vmatmul.mubr.bf16.gmra.mrb[0].mxu0 %v1902
      %v2771 = vpop.f32.mrb[0].mxu0
      %v2772 = vadd.f32 %v2611, %v2771
      %v2773 = vpop.f32.mrb[0].mxu0
      %v2774 = vpop.f32.mrb[0].mxu0
      %v2775 = vadd.f32 %v2614, %v2774
      %v2776 = vpop.f32.mrb[0].mxu0
      %2777 = vmatprep.mubr.bf16.mxu0 %v1776
      %2778 = vmatmul.mubr.bf16.gmra.mrb[0].mxu0 %v1903
      %v2779 = vpop.f32.mrb[0].mxu0
      %v2780 = vadd.f32 %v2619, %v2779
      %v2781 = vpop.f32.mrb[0].mxu0
      %v2782 = vpop.f32.mrb[0].mxu0
      %v2783 = vadd.f32 %v2622, %v2782
      %v2784 = vpop.f32.mrb[0].mxu0
      %2785 = vmatprep.mubr.bf16.mxu0 %v1777
      %2786 = vmatmul.mubr.bf16.gmra.mrb[0].mxu0 %v1904
      %v2787 = vpop.f32.mrb[0].mxu0
      %v2788 = vadd.f32 %v2627, %v2787
      %v2789 = vpop.f32.mrb[0].mxu0
      %v2790 = vpop.f32.mrb[0].mxu0
      %v2791 = vadd.f32 %v2630, %v2790
      %v2792 = vpop.f32.mrb[0].mxu0
      %2793 = vmatprep.mubr.bf16.mxu0 %v1778
      %2794 = vmatmul.mubr.bf16.gmra.mrb[0].mxu0 %v1905
      %v2795 = vpop.f32.mrb[0].mxu0
      %v2796 = vadd.f32 %v2635, %v2795
      %v2797 = vpop.f32.mrb[0].mxu0
      %v2798 = vpop.f32.mrb[0].mxu0
      %v2799 = vadd.f32 %v2638, %v2798
      %v2800 = vpop.f32.mrb[0].mxu0
      %2801 = vmatprep.mubr.bf16.mxu0 %v1779
      %2802 = vmatmul.mubr.bf16.gmra.mrb[0].mxu0 %v1906
      %v2803 = vpop.f32.mrb[0].mxu0
      %v2804 = vadd.f32 %v2643, %v2803
      %v2805 = vpop.f32.mrb[0].mxu0
      %v2806 = vpop.f32.mrb[0].mxu0
      %v2807 = vadd.f32 %v2646, %v2806
      %v2808 = vpop.f32.mrb[0].mxu0
      %2809 = vmatprep.mubr.bf16.mxu0 %v1780
      %2810 = vmatmul.mubr.bf16.gmra.mrb[0].mxu0 %v1907
      %v2811 = vpop.f32.mrb[0].mxu0
      %v2812 = vadd.f32 %v2651, %v2811
      %v2813 = vpop.f32.mrb[0].mxu0
      %v2814 = vpop.f32.mrb[0].mxu0
      %v2815 = vadd.f32 %v2654, %v2814
      %v2816 = vpop.f32.mrb[0].mxu0
      %2817 = vmatprep.mubr.bf16.mxu0 %v1781
      %2818 = vmatmul.mubr.bf16.gmra.mrb[0].mxu0 %v1908
      %v2819 = vpop.f32.mrb[0].mxu0
      %v2820 = vadd.f32 %v2659, %v2819
      %v2821 = vpop.f32.mrb[0].mxu0
      %v2822 = vpop.f32.mrb[0].mxu0
      %v2823 = vadd.f32 %v2662, %v2822
      %v2824 = vpop.f32.mrb[0].mxu0
      %2825 = vmatprep.mubr.bf16.mxu0 %v1782
      %2826 = vmatmul.mubr.bf16.gmra.mrb[0].mxu0 %v1909
      %v2827 = vpop.f32.mrb[0].mxu0
      %v2828 = vadd.f32 %v2667, %v2827
      %v2829 = vpop.f32.mrb[0].mxu0
      %v2830 = vpop.f32.mrb[0].mxu0
      %v2831 = vadd.f32 %v2670, %v2830
      %v2832 = vpop.f32.mrb[0].mxu0
      %2833 = vmatprep.mubr.bf16.mxu0 %v1783
      %2834 = vmatmul.mubr.bf16.gmra.mrb[0].mxu0 %v1910
      %v2835 = vpop.f32.mrb[0].mxu0
      %v2836 = vadd.f32 %v2675, %v2835
      %v2837 = vpop.f32.mrb[0].mxu0
      %v2838 = vpop.f32.mrb[0].mxu0
      %v2839 = vadd.f32 %v2678, %v2838
      %v2840 = vpop.f32.mrb[0].mxu0
      %2841 = vmatprep.mubr.bf16.mxu0 %v1930
      %2842 = vmatmul.mubr.bf16.gmra.mrb[0].mxu0 %v1911
      %v2843 = vpop.f32.mrb[0].mxu0
      %v2844 = vadd.f32 %v2683, %v2843
      %v2845 = vpop.f32.mrb[0].mxu0
      %v2846 = vpop.f32.mrb[0].mxu0
      %v2847 = vadd.f32 %v2686, %v2846
      %v2848 = vpop.f32.mrb[0].mxu0
      %2849 = vdwg.mxu0
      %2850 = vmatprep.subr.bf16.mxu0 0
      %2851 = vmatpush1.bf16.msra.mxu0 %v2416
      %2852 = vmatprep.subr.bf16.mxu0 0
      %2853 = vmatpush1.bf16.msra.mxu0 %v2417
      %2854 = vmatprep.subr.bf16.mxu0 0
      %2855 = vmatpush1.bf16.msra.mxu0 %v2418
      %2856 = vmatprep.subr.bf16.mxu0 0
      %2857 = vmatpush1.bf16.msra.mxu0 %v2419
      %2858 = vmatprep.subr.bf16.mxu0 0
      %2859 = vmatpush1.bf16.msra.mxu0 %v2420
      %2860 = vmatprep.subr.bf16.mxu0 0
      %2861 = vmatpush1.bf16.msra.mxu0 %v2421
      %2862 = vmatprep.subr.bf16.mxu0 0
      %2863 = vmatpush1.bf16.msra.mxu0 %v2422
      %2864 = vmatprep.subr.bf16.mxu0 0
      %2865 = vmatpush1.bf16.msra.mxu0 %v2423
      %2866 = vmatprep.subr.bf16.mxu0 0
      %2867 = vmatpush1.bf16.msra.mxu0 %v2424
      %2868 = vmatprep.subr.bf16.mxu0 0
      %2869 = vmatpush1.bf16.msra.mxu0 %v2425
      %2870 = vmatprep.subr.bf16.mxu0 0
      %2871 = vmatpush1.bf16.msra.mxu0 %v2426
      %2872 = vmatprep.subr.bf16.mxu0 0
      %2873 = vmatpush1.bf16.msra.mxu0 %v2427
      %2874 = vmatprep.subr.bf16.mxu0 0
      %2875 = vmatpush1.bf16.msra.mxu0 %v2428
      %2876 = vmatprep.subr.bf16.mxu0 0
      %2877 = vmatpush1.bf16.msra.mxu0 %v2429
      %2878 = vmatprep.subr.bf16.mxu0 0
      %2879 = vmatpush1.bf16.msra.mxu0 %v2430
      %2880 = vmatprep.subr.bf16.mxu0 0
      %2881 = vmatpush1.bf16.msra.mxu0 %v2431
      %2882 = vmatprep.mubr.bf16.mxu0 %v1897
      %2883 = vmatmul.mubr.bf16.gmra.mrb[0].mxu0 %v1833
      %v2884 = vpop.f32.mrb[0].mxu0
      %v2885 = vadd.f32 %v2724, %v2884
      %v2886 = vpop.f32.mrb[0].mxu0
      %v2887 = vpop.f32.mrb[0].mxu0
      %v2888 = vadd.f32 %v2727, %v2887
      %v2889 = vpop.f32.mrb[0].mxu0
      %2890 = vmatprep.mubr.bf16.mxu0 %v1898
      %2891 = vmatmul.mubr.bf16.gmra.mrb[0].mxu0 %v1834
      %v2892 = vpop.f32.mrb[0].mxu0
      %v2893 = vadd.f32 %v2732, %v2892
      %v2894 = vpop.f32.mrb[0].mxu0
      %v2895 = vpop.f32.mrb[0].mxu0
      %v2896 = vadd.f32 %v2735, %v2895
      %v2897 = vpop.f32.mrb[0].mxu0
      %2898 = vmatprep.mubr.bf16.mxu0 %v1899
      %2899 = vmatmul.mubr.bf16.gmra.mrb[0].mxu0 %v1835
      %v2900 = vpop.f32.mrb[0].mxu0
      %v2901 = vadd.f32 %v2740, %v2900
      %v2902 = vpop.f32.mrb[0].mxu0
      %v2903 = vpop.f32.mrb[0].mxu0
      %v2904 = vadd.f32 %v2743, %v2903
      %v2905 = vpop.f32.mrb[0].mxu0
      %2906 = vmatprep.mubr.bf16.mxu0 %v1900
      %2907 = vmatmul.mubr.bf16.gmra.mrb[0].mxu0 %v1836
      %v2908 = vpop.f32.mrb[0].mxu0
      %v2909 = vadd.f32 %v2748, %v2908
      %v2910 = vpop.f32.mrb[0].mxu0
      %v2911 = vpop.f32.mrb[0].mxu0
      %v2912 = vadd.f32 %v2751, %v2911
      %v2913 = vpop.f32.mrb[0].mxu0
      %2914 = vmatprep.mubr.bf16.mxu0 %v1901
      %2915 = vmatmul.mubr.bf16.gmra.mrb[0].mxu0 %v1837
      %v2916 = vpop.f32.mrb[0].mxu0
      %v2917 = vadd.f32 %v2756, %v2916
      %v2918 = vpop.f32.mrb[0].mxu0
      %v2919 = vpop.f32.mrb[0].mxu0
      %v2920 = vadd.f32 %v2759, %v2919
      %v2921 = vpop.f32.mrb[0].mxu0
      %2922 = vmatprep.mubr.bf16.mxu0 %v1902
      %2923 = vmatmul.mubr.bf16.gmra.mrb[0].mxu0 %v1838
      %v2924 = vpop.f32.mrb[0].mxu0
      %v2925 = vadd.f32 %v2764, %v2924
      %v2926 = vpop.f32.mrb[0].mxu0
      %v2927 = vpop.f32.mrb[0].mxu0
      %v2928 = vadd.f32 %v2767, %v2927
      %v2929 = vpop.f32.mrb[0].mxu0
      %2930 = vmatprep.mubr.bf16.mxu0 %v1903
      %2931 = vmatmul.mubr.bf16.gmra.mrb[0].mxu0 %v1839
      %v2932 = vpop.f32.mrb[0].mxu0
      %v2933 = vadd.f32 %v2772, %v2932
      %v2934 = vpop.f32.mrb[0].mxu0
      %v2935 = vpop.f32.mrb[0].mxu0
      %v2936 = vadd.f32 %v2775, %v2935
      %v2937 = vpop.f32.mrb[0].mxu0
      %2938 = vmatprep.mubr.bf16.mxu0 %v1904
      %2939 = vmatmul.mubr.bf16.gmra.mrb[0].mxu0 %v1840
      %v2940 = vpop.f32.mrb[0].mxu0
      %v2941 = vadd.f32 %v2780, %v2940
      %v2942 = vpop.f32.mrb[0].mxu0
      %v2943 = vpop.f32.mrb[0].mxu0
      %v2944 = vadd.f32 %v2783, %v2943
      %v2945 = vpop.f32.mrb[0].mxu0
      %2946 = vmatprep.mubr.bf16.mxu0 %v1905
      %2947 = vmatmul.mubr.bf16.gmra.mrb[0].mxu0 %v1841
      %v2948 = vpop.f32.mrb[0].mxu0
      %v2949 = vadd.f32 %v2788, %v2948
      %v2950 = vpop.f32.mrb[0].mxu0
      %v2951 = vpop.f32.mrb[0].mxu0
      %v2952 = vadd.f32 %v2791, %v2951
      %v2953 = vpop.f32.mrb[0].mxu0
      %2954 = vmatprep.mubr.bf16.mxu0 %v1906
      %2955 = vmatmul.mubr.bf16.gmra.mrb[0].mxu0 %v1842
      %v2956 = vpop.f32.mrb[0].mxu0
      %v2957 = vadd.f32 %v2796, %v2956
      %v2958 = vpop.f32.mrb[0].mxu0
      %v2959 = vpop.f32.mrb[0].mxu0
      %v2960 = vadd.f32 %v2799, %v2959
      %v2961 = vpop.f32.mrb[0].mxu0
      %2962 = vmatprep.mubr.bf16.mxu0 %v1907
      %2963 = vmatmul.mubr.bf16.gmra.mrb[0].mxu0 %v1843
      %v2964 = vpop.f32.mrb[0].mxu0
      %v2965 = vadd.f32 %v2804, %v2964
      %v2966 = vpop.f32.mrb[0].mxu0
      %v2967 = vpop.f32.mrb[0].mxu0
      %v2968 = vadd.f32 %v2807, %v2967
      %v2969 = vpop.f32.mrb[0].mxu0
      %2970 = vmatprep.mubr.bf16.mxu0 %v1908
      %2971 = vmatmul.mubr.bf16.gmra.mrb[0].mxu0 %v1844
      %v2972 = vpop.f32.mrb[0].mxu0
      %v2973 = vadd.f32 %v2812, %v2972
      %v2974 = vpop.f32.mrb[0].mxu0
      %v2975 = vpop.f32.mrb[0].mxu0
      %v2976 = vadd.f32 %v2815, %v2975
      %v2977 = vpop.f32.mrb[0].mxu0
      %2978 = vmatprep.mubr.bf16.mxu0 %v1909
      %2979 = vmatmul.mubr.bf16.gmra.mrb[0].mxu0 %v1845
      %v2980 = vpop.f32.mrb[0].mxu0
      %v2981 = vadd.f32 %v2820, %v2980
      %v2982 = vpop.f32.mrb[0].mxu0
      %v2983 = vpop.f32.mrb[0].mxu0
      %v2984 = vadd.f32 %v2823, %v2983
      %v2985 = vpop.f32.mrb[0].mxu0
      %2986 = vmatprep.mubr.bf16.mxu0 %v1910
      %2987 = vmatmul.mubr.bf16.gmra.mrb[0].mxu0 %v1846
      %v2988 = vpop.f32.mrb[0].mxu0
      %v2989 = vadd.f32 %v2828, %v2988
      %v2990 = vpop.f32.mrb[0].mxu0
      %v2991 = vpop.f32.mrb[0].mxu0
      %v2992 = vadd.f32 %v2831, %v2991
      %v2993 = vpop.f32.mrb[0].mxu0
      %2994 = vmatprep.mubr.bf16.mxu0 %v1911
      %2995 = vmatmul.mubr.bf16.gmra.mrb[0].mxu0 %v1847
      %v2996 = vpop.f32.mrb[0].mxu0
      %v2997 = vadd.f32 %v2836, %v2996
      %v2998 = vpop.f32.mrb[0].mxu0
      %v2999 = vpop.f32.mrb[0].mxu0
      %v3000 = vadd.f32 %v2839, %v2999
      %v3001 = vpop.f32.mrb[0].mxu0
      %3002 = vmatprep.mubr.bf16.mxu0 %v1938
      %3003 = vmatmul.mubr.bf16.gmra.mrb[0].mxu0 %v1934
      %v3004 = vpop.f32.mrb[0].mxu0
      %v3005 = vadd.f32 %v2844, %v3004
      %v3006 = vpop.f32.mrb[0].mxu0
      %v3007 = vpop.f32.mrb[0].mxu0
      %v3008 = vadd.f32 %v2847, %v3007
      %v3009 = vpop.f32.mrb[0].mxu0
      %3010 = vdwg.mxu0
      %3011 = vmatprep.subr.bf16.mxu0 0
      %3012 = vmatpush1.bf16.msra.mxu0 %v2432
      %3013 = vmatprep.subr.bf16.mxu0 0
      %3014 = vmatpush1.bf16.msra.mxu0 %v2433
      %3015 = vmatprep.subr.bf16.mxu0 0
      %3016 = vmatpush1.bf16.msra.mxu0 %v2434
      %3017 = vmatprep.subr.bf16.mxu0 0
      %3018 = vmatpush1.bf16.msra.mxu0 %v2435
      %3019 = vmatprep.subr.bf16.mxu0 0
      %3020 = vmatpush1.bf16.msra.mxu0 %v2436
      %3021 = vmatprep.subr.bf16.mxu0 0
      %3022 = vmatpush1.bf16.msra.mxu0 %v2437
      %3023 = vmatprep.subr.bf16.mxu0 0
      %3024 = vmatpush1.bf16.msra.mxu0 %v2438
      %3025 = vmatprep.subr.bf16.mxu0 0
      %3026 = vmatpush1.bf16.msra.mxu0 %v2439
      %3027 = vmatprep.subr.bf16.mxu0 0
      %3028 = vmatpush1.bf16.msra.mxu0 %v2440
      %3029 = vmatprep.subr.bf16.mxu0 0
      %3030 = vmatpush1.bf16.msra.mxu0 %v2441
      %3031 = vmatprep.subr.bf16.mxu0 0
      %3032 = vmatpush1.bf16.msra.mxu0 %v2442
      %3033 = vmatprep.subr.bf16.mxu0 0
      %3034 = vmatpush1.bf16.msra.mxu0 %v2443
      %3035 = vmatprep.subr.bf16.mxu0 0
      %3036 = vmatpush1.bf16.msra.mxu0 %v2444
      %3037 = vmatprep.subr.bf16.mxu0 0
      %3038 = vmatpush1.bf16.msra.mxu0 %v2445
      %3039 = vmatprep.subr.bf16.mxu0 0
      %3040 = vmatpush1.bf16.msra.mxu0 %v2446
      %3041 = vmatprep.subr.bf16.mxu0 0
      %3042 = vmatpush1.bf16.msra.mxu0 %v2447
      %3043 = vmatprep.mubr.bf16.mxu0 %v1834
      %3044 = vmatmul.mubr.bf16.gmra.mrb[0].mxu0 %v1770
      %v3045 = vpop.f32.mrb[0].mxu0
      %v3046 = vadd.f32 %v2885, %v3045
      %v3047 = vpop.f32.mrb[0].mxu0
      %v3048 = vpop.f32.mrb[0].mxu0
      %v3049 = vadd.f32 %v2888, %v3048
      %v3050 = vpop.f32.mrb[0].mxu0
      %3051 = vmatprep.mubr.bf16.mxu0 %v1835
      %3052 = vmatmul.mubr.bf16.gmra.mrb[0].mxu0 %v1771
      %v3053 = vpop.f32.mrb[0].mxu0
      %v3054 = vadd.f32 %v2893, %v3053
      %v3055 = vpop.f32.mrb[0].mxu0
      %v3056 = vpop.f32.mrb[0].mxu0
      %v3057 = vadd.f32 %v2896, %v3056
      %v3058 = vpop.f32.mrb[0].mxu0
      %3059 = vmatprep.mubr.bf16.mxu0 %v1836
      %3060 = vmatmul.mubr.bf16.gmra.mrb[0].mxu0 %v1772
      %v3061 = vpop.f32.mrb[0].mxu0
      %v3062 = vadd.f32 %v2901, %v3061
      %v3063 = vpop.f32.mrb[0].mxu0
      %v3064 = vpop.f32.mrb[0].mxu0
      %v3065 = vadd.f32 %v2904, %v3064
      %v3066 = vpop.f32.mrb[0].mxu0
      %3067 = vmatprep.mubr.bf16.mxu0 %v1837
      %3068 = vmatmul.mubr.bf16.gmra.mrb[0].mxu0 %v1773
      %v3069 = vpop.f32.mrb[0].mxu0
      %v3070 = vadd.f32 %v2909, %v3069
      %v3071 = vpop.f32.mrb[0].mxu0
      %v3072 = vpop.f32.mrb[0].mxu0
      %v3073 = vadd.f32 %v2912, %v3072
      %v3074 = vpop.f32.mrb[0].mxu0
      %3075 = vmatprep.mubr.bf16.mxu0 %v1838
      %3076 = vmatmul.mubr.bf16.gmra.mrb[0].mxu0 %v1774
      %v3077 = vpop.f32.mrb[0].mxu0
      %v3078 = vadd.f32 %v2917, %v3077
      %v3079 = vpop.f32.mrb[0].mxu0
      %v3080 = vpop.f32.mrb[0].mxu0
      %v3081 = vadd.f32 %v2920, %v3080
      %v3082 = vpop.f32.mrb[0].mxu0
      %3083 = vmatprep.mubr.bf16.mxu0 %v1839
      %3084 = vmatmul.mubr.bf16.gmra.mrb[0].mxu0 %v1775
      %v3085 = vpop.f32.mrb[0].mxu0
      %v3086 = vadd.f32 %v2925, %v3085
      %v3087 = vpop.f32.mrb[0].mxu0
      %v3088 = vpop.f32.mrb[0].mxu0
      %v3089 = vadd.f32 %v2928, %v3088
      %v3090 = vpop.f32.mrb[0].mxu0
      %3091 = vmatprep.mubr.bf16.mxu0 %v1840
      %3092 = vmatmul.mubr.bf16.gmra.mrb[0].mxu0 %v1776
      %v3093 = vpop.f32.mrb[0].mxu0
      %v3094 = vadd.f32 %v2933, %v3093
      %v3095 = vpop.f32.mrb[0].mxu0
      %v3096 = vpop.f32.mrb[0].mxu0
      %v3097 = vadd.f32 %v2936, %v3096
      %v3098 = vpop.f32.mrb[0].mxu0
      %3099 = vmatprep.mubr.bf16.mxu0 %v1841
      %3100 = vmatmul.mubr.bf16.gmra.mrb[0].mxu0 %v1777
      %v3101 = vpop.f32.mrb[0].mxu0
      %v3102 = vadd.f32 %v2941, %v3101
      %v3103 = vpop.f32.mrb[0].mxu0
      %v3104 = vpop.f32.mrb[0].mxu0
      %v3105 = vadd.f32 %v2944, %v3104
      %v3106 = vpop.f32.mrb[0].mxu0
      %3107 = vmatprep.mubr.bf16.mxu0 %v1842
      %3108 = vmatmul.mubr.bf16.gmra.mrb[0].mxu0 %v1778
      %v3109 = vpop.f32.mrb[0].mxu0
      %v3110 = vadd.f32 %v2949, %v3109
      %v3111 = vpop.f32.mrb[0].mxu0
      %v3112 = vpop.f32.mrb[0].mxu0
      %v3113 = vadd.f32 %v2952, %v3112
      %v3114 = vpop.f32.mrb[0].mxu0
      %3115 = vmatprep.mubr.bf16.mxu0 %v1843
      %3116 = vmatmul.mubr.bf16.gmra.mrb[0].mxu0 %v1779
      %v3117 = vpop.f32.mrb[0].mxu0
      %v3118 = vadd.f32 %v2957, %v3117
      %v3119 = vpop.f32.mrb[0].mxu0
      %v3120 = vpop.f32.mrb[0].mxu0
      %v3121 = vadd.f32 %v2960, %v3120
      %v3122 = vpop.f32.mrb[0].mxu0
      %3123 = vmatprep.mubr.bf16.mxu0 %v1844
      %3124 = vmatmul.mubr.bf16.gmra.mrb[0].mxu0 %v1780
      %v3125 = vpop.f32.mrb[0].mxu0
      %v3126 = vadd.f32 %v2965, %v3125
      %v3127 = vpop.f32.mrb[0].mxu0
      %v3128 = vpop.f32.mrb[0].mxu0
      %v3129 = vadd.f32 %v2968, %v3128
      %v3130 = vpop.f32.mrb[0].mxu0
      %3131 = vmatprep.mubr.bf16.mxu0 %v1845
      %3132 = vmatmul.mubr.bf16.gmra.mrb[0].mxu0 %v1781
      %v3133 = vpop.f32.mrb[0].mxu0
      %v3134 = vadd.f32 %v2973, %v3133
      %v3135 = vpop.f32.mrb[0].mxu0
      %v3136 = vpop.f32.mrb[0].mxu0
      %v3137 = vadd.f32 %v2976, %v3136
      %v3138 = vpop.f32.mrb[0].mxu0
      %3139 = vmatprep.mubr.bf16.mxu0 %v1846
      %3140 = vmatmul.mubr.bf16.gmra.mrb[0].mxu0 %v1782
      %v3141 = vpop.f32.mrb[0].mxu0
      %v3142 = vadd.f32 %v2981, %v3141
      %v3143 = vpop.f32.mrb[0].mxu0
      %v3144 = vpop.f32.mrb[0].mxu0
      %v3145 = vadd.f32 %v2984, %v3144
      %v3146 = vpop.f32.mrb[0].mxu0
      %3147 = vmatprep.mubr.bf16.mxu0 %v1847
      %3148 = vmatmul.mubr.bf16.gmra.mrb[0].mxu0 %v1783
      %v3149 = vpop.f32.mrb[0].mxu0
      %v3150 = vadd.f32 %v2989, %v3149
      %v3151 = vpop.f32.mrb[0].mxu0
      %v3152 = vpop.f32.mrb[0].mxu0
      %v3153 = vadd.f32 %v2992, %v3152
      %v3154 = vpop.f32.mrb[0].mxu0
      %3155 = vmatprep.mubr.bf16.mxu0 %v1934
      %3156 = vmatmul.mubr.bf16.gmra.mrb[0].mxu0 %v1930
      %v3157 = vpop.f32.mrb[0].mxu0
      %v3158 = vadd.f32 %v2997, %v3157
      %v3159 = vpop.f32.mrb[0].mxu0
      %v3160 = vpop.f32.mrb[0].mxu0
      %v3161 = vadd.f32 %v3000, %v3160
      %v3162 = vpop.f32.mrb[0].mxu0
      %3163 = vmatprep.mubr.bf16.mxu0 %v1946
      %3164 = vmatmul.mubr.bf16.gmra.mrb[0].mxu0 %v1942
      %v3165 = vpop.f32.mrb[0].mxu0
      %v3166 = vadd.f32 %v3005, %v3165
      %v3167 = vpop.f32.mrb[0].mxu0
      %v3168 = vpop.f32.mrb[0].mxu0
      %v3169 = vadd.f32 %v3008, %v3168
      %v3170 = vpop.f32.mrb[0].mxu0
      %3171 = vdwg.mxu0
      %3172 = vmatprep.subr.bf16.mxu0 0
      %3173 = vmatpush1.bf16.msra.mxu0 %v2448
      %3174 = vmatprep.subr.bf16.mxu0 0
      %3175 = vmatpush1.bf16.msra.mxu0 %v2449
      %3176 = vmatprep.subr.bf16.mxu0 0
      %3177 = vmatpush1.bf16.msra.mxu0 %v2450
      %3178 = vmatprep.subr.bf16.mxu0 0
      %3179 = vmatpush1.bf16.msra.mxu0 %v2451
      %3180 = vmatprep.subr.bf16.mxu0 0
      %3181 = vmatpush1.bf16.msra.mxu0 %v2452
      %3182 = vmatprep.subr.bf16.mxu0 0
      %3183 = vmatpush1.bf16.msra.mxu0 %v2453
      %3184 = vmatprep.subr.bf16.mxu0 0
      %3185 = vmatpush1.bf16.msra.mxu0 %v2454
      %3186 = vmatprep.subr.bf16.mxu0 0
      %3187 = vmatpush1.bf16.msra.mxu0 %v2455
      %3188 = vmatprep.subr.bf16.mxu0 0
      %3189 = vmatpush1.bf16.msra.mxu0 0
      %3190 = vmatprep.subr.bf16.mxu0 0
      %3191 = vmatpush1.bf16.msra.mxu0 0
      %3192 = vmatprep.subr.bf16.mxu0 0
      %3193 = vmatpush1.bf16.msra.mxu0 0
      %3194 = vmatprep.subr.bf16.mxu0 0
      %3195 = vmatpush1.bf16.msra.mxu0 0
      %3196 = vmatprep.subr.bf16.mxu0 0
      %3197 = vmatpush1.bf16.msra.mxu0 0
      %3198 = vmatprep.subr.bf16.mxu0 0
      %3199 = vmatpush1.bf16.msra.mxu0 0
      %3200 = vmatprep.subr.bf16.mxu0 0
      %3201 = vmatpush1.bf16.msra.mxu0 0
      %3202 = vmatprep.subr.bf16.mxu0 0
      %3203 = vmatpush1.bf16.msra.mxu0 0
      %3204 = vmatprep.mubr.bf16.mxu0 0
      %3205 = vmatmul.mubr.bf16.gmra.mrb[0].mxu0 %v1898
      %v3206 = vpop.f32.mrb[0].mxu0
      %v3207 = vadd.f32 %v3046, %v3206
      %v3208 = vpop.f32.mrb[0].mxu0
      %v3209 = vpop.f32.mrb[0].mxu0
      %v3210 = vadd.f32 %v3049, %v3209
      %v3211 = vpop.f32.mrb[0].mxu0
      %3212 = vmatprep.mubr.bf16.mxu0 0
      %3213 = vmatmul.mubr.bf16.gmra.mrb[0].mxu0 %v1899
      %v3214 = vpop.f32.mrb[0].mxu0
      %v3215 = vadd.f32 %v3054, %v3214
      %v3216 = vpop.f32.mrb[0].mxu0
      %v3217 = vpop.f32.mrb[0].mxu0
      %v3218 = vadd.f32 %v3057, %v3217
      %v3219 = vpop.f32.mrb[0].mxu0
      %3220 = vmatprep.mubr.bf16.mxu0 0
      %3221 = vmatmul.mubr.bf16.gmra.mrb[0].mxu0 %v1900
      %v3222 = vpop.f32.mrb[0].mxu0
      %v3223 = vadd.f32 %v3062, %v3222
      %v3224 = vpop.f32.mrb[0].mxu0
      %v3225 = vpop.f32.mrb[0].mxu0
      %v3226 = vadd.f32 %v3065, %v3225
      %v3227 = vpop.f32.mrb[0].mxu0
      %3228 = vmatprep.mubr.bf16.mxu0 0
      %3229 = vmatmul.mubr.bf16.gmra.mrb[0].mxu0 %v1901
      %v3230 = vpop.f32.mrb[0].mxu0
      %v3231 = vadd.f32 %v3070, %v3230
      %v3232 = vpop.f32.mrb[0].mxu0
      %v3233 = vpop.f32.mrb[0].mxu0
      %v3234 = vadd.f32 %v3073, %v3233
      %v3235 = vpop.f32.mrb[0].mxu0
      %3236 = vmatprep.mubr.bf16.mxu0 0
      %3237 = vmatmul.mubr.bf16.gmra.mrb[0].mxu0 %v1902
      %v3238 = vpop.f32.mrb[0].mxu0
      %v3239 = vadd.f32 %v3078, %v3238
      %v3240 = vpop.f32.mrb[0].mxu0
      %v3241 = vpop.f32.mrb[0].mxu0
      %v3242 = vadd.f32 %v3081, %v3241
      %v3243 = vpop.f32.mrb[0].mxu0
      %3244 = vmatprep.mubr.bf16.mxu0 0
      %3245 = vmatmul.mubr.bf16.gmra.mrb[0].mxu0 %v1903
      %v3246 = vpop.f32.mrb[0].mxu0
      %v3247 = vadd.f32 %v3086, %v3246
      %v3248 = vpop.f32.mrb[0].mxu0
      %v3249 = vpop.f32.mrb[0].mxu0
      %v3250 = vadd.f32 %v3089, %v3249
      %v3251 = vpop.f32.mrb[0].mxu0
      %3252 = vmatprep.mubr.bf16.mxu0 0
      %3253 = vmatmul.mubr.bf16.gmra.mrb[0].mxu0 %v1904
      %v3254 = vpop.f32.mrb[0].mxu0
      %v3255 = vadd.f32 %v3094, %v3254
      %v3256 = vpop.f32.mrb[0].mxu0
      %v3257 = vpop.f32.mrb[0].mxu0
      %v3258 = vadd.f32 %v3097, %v3257
      %v3259 = vpop.f32.mrb[0].mxu0
      %3260 = vmatprep.mubr.bf16.mxu0 0
      %3261 = vmatmul.mubr.bf16.gmra.mrb[0].mxu0 %v1905
      %v3262 = vpop.f32.mrb[0].mxu0
      %v3263 = vadd.f32 %v3102, %v3262
      %v3264 = vpop.f32.mrb[0].mxu0
      %v3265 = vpop.f32.mrb[0].mxu0
      %v3266 = vadd.f32 %v3105, %v3265
      %v3267 = vpop.f32.mrb[0].mxu0
      %3268 = vmatprep.mubr.bf16.mxu0 0
      %3269 = vmatmul.mubr.bf16.gmra.mrb[0].mxu0 %v1906
      %v3270 = vpop.f32.mrb[0].mxu0
      %v3271 = vadd.f32 %v3110, %v3270
      %v3272 = vpop.f32.mrb[0].mxu0
      %v3273 = vpop.f32.mrb[0].mxu0
      %v3274 = vadd.f32 %v3113, %v3273
      %v3275 = vpop.f32.mrb[0].mxu0
      %3276 = vmatprep.mubr.bf16.mxu0 0
      %3277 = vmatmul.mubr.bf16.gmra.mrb[0].mxu0 %v1907
      %v3278 = vpop.f32.mrb[0].mxu0
      %v3279 = vadd.f32 %v3118, %v3278
      %v3280 = vpop.f32.mrb[0].mxu0
      %v3281 = vpop.f32.mrb[0].mxu0
      %v3282 = vadd.f32 %v3121, %v3281
      %v3283 = vpop.f32.mrb[0].mxu0
      %3284 = vmatprep.mubr.bf16.mxu0 0
      %3285 = vmatmul.mubr.bf16.gmra.mrb[0].mxu0 %v1908
      %v3286 = vpop.f32.mrb[0].mxu0
      %v3287 = vadd.f32 %v3126, %v3286
      %v3288 = vpop.f32.mrb[0].mxu0
      %v3289 = vpop.f32.mrb[0].mxu0
      %v3290 = vadd.f32 %v3129, %v3289
      %v3291 = vpop.f32.mrb[0].mxu0
      %3292 = vmatprep.mubr.bf16.mxu0 0
      %3293 = vmatmul.mubr.bf16.gmra.mrb[0].mxu0 %v1909
      %v3294 = vpop.f32.mrb[0].mxu0
      %v3295 = vadd.f32 %v3134, %v3294
      %v3296 = vpop.f32.mrb[0].mxu0
      %v3297 = vpop.f32.mrb[0].mxu0
      %v3298 = vadd.f32 %v3137, %v3297
      %v3299 = vpop.f32.mrb[0].mxu0
      %3300 = vmatprep.mubr.bf16.mxu0 0
      %3301 = vmatmul.mubr.bf16.gmra.mrb[0].mxu0 %v1910
      %v3302 = vpop.f32.mrb[0].mxu0
      %v3303 = vadd.f32 %v3142, %v3302
      %v3304 = vpop.f32.mrb[0].mxu0
      %v3305 = vpop.f32.mrb[0].mxu0
      %v3306 = vadd.f32 %v3145, %v3305
      %v3307 = vpop.f32.mrb[0].mxu0
      %3308 = vmatprep.mubr.bf16.mxu0 0
      %3309 = vmatmul.mubr.bf16.gmra.mrb[0].mxu0 %v1911
      %v3310 = vpop.f32.mrb[0].mxu0
      %v3311 = vadd.f32 %v3150, %v3310
      %v3312 = vpop.f32.mrb[0].mxu0
      %v3313 = vpop.f32.mrb[0].mxu0
      %v3314 = vadd.f32 %v3153, %v3313
      %v3315 = vpop.f32.mrb[0].mxu0
      %3316 = vmatprep.mubr.bf16.mxu0 0
      %3317 = vmatmul.mubr.bf16.gmra.mrb[0].mxu0 %v1938
      %v3318 = vpop.f32.mrb[0].mxu0
      %v3319 = vadd.f32 %v3158, %v3318
      %v3320 = vpop.f32.mrb[0].mxu0
      %v3321 = vpop.f32.mrb[0].mxu0
      %v3322 = vadd.f32 %v3161, %v3321
      %v3323 = vpop.f32.mrb[0].mxu0
      %3324 = vmatprep.mubr.bf16.mxu0 0
      %3325 = vmatmul.mubr.bf16.gmra.mrb[0].mxu0 %v1950
      %v3326 = vpop.f32.mrb[0].mxu0
      %v3327 = vadd.f32 %v3166, %v3326
      %v3328 = vpop.f32.mrb[0].mxu0
      %v3329 = vpop.f32.mrb[0].mxu0
      %v3330 = vadd.f32 %v3169, %v3329
      %v3331 = vpop.f32.mrb[0].mxu0
      %3332 = vdwg.mxu0
      %v3333 = vpack.c.bf16 %v3210, %v3207
      %v3334 = vpack.c.bf16 %v3218, %v3215
      %v3335 = vpack.c.bf16 %v3226, %v3223
      %v3336 = vpack.c.bf16 %v3234, %v3231
      %v3337 = vpack.c.bf16 %v3242, %v3239
      %v3338 = vpack.c.bf16 %v3250, %v3247
      %v3339 = vpack.c.bf16 %v3258, %v3255
      %v3340 = vpack.c.bf16 %v3266, %v3263
      %v3341 = vpack.c.bf16 %v3274, %v3271
      %v3342 = vpack.c.bf16 %v3282, %v3279
      %v3343 = vpack.c.bf16 %v3290, %v3287
      %v3344 = vpack.c.bf16 %v3298, %v3295
      %v3345 = vpack.c.bf16 %v3306, %v3303
      %v3346 = vpack.c.bf16 %v3314, %v3311
      %v3347 = vpack.c.bf16 %v3322, %v3319
      %v3348 = vpack.c.bf16 %v3330, %v3327
      %v3365 = vunpack.c.l.b16 %v3333
      %v3366 = vunpack.c.h.b16 %v3333
      %v3367 = vunpack.c.l.b16 %v3334
      %v3368 = vunpack.c.h.b16 %v3334
      %v3369 = vunpack.c.l.b16 %v3335
      %v3370 = vunpack.c.h.b16 %v3335
      %v3371 = vunpack.c.l.b16 %v3336
      %v3372 = vunpack.c.h.b16 %v3336
      %v3373 = vunpack.c.l.b16 %v3337
      %v3374 = vunpack.c.h.b16 %v3337
      %v3375 = vunpack.c.l.b16 %v3338
      %v3376 = vunpack.c.h.b16 %v3338
      %v3377 = vunpack.c.l.b16 %v3339
      %v3378 = vunpack.c.h.b16 %v3339
      %v3379 = vunpack.c.l.b16 %v3340
      %v3380 = vunpack.c.h.b16 %v3340
      %v3381 = vunpack.c.l.b16 %v3341
      %v3382 = vunpack.c.h.b16 %v3341
      %v3383 = vunpack.c.l.b16 %v3342
      %v3384 = vunpack.c.h.b16 %v3342
      %v3385 = vunpack.c.l.b16 %v3343
      %v3386 = vunpack.c.h.b16 %v3343
      %v3387 = vunpack.c.l.b16 %v3344
      %v3388 = vunpack.c.h.b16 %v3344
      %v3389 = vunpack.c.l.b16 %v3345
      %v3390 = vunpack.c.h.b16 %v3345
      %v3391 = vunpack.c.l.b16 %v3346
      %v3392 = vunpack.c.h.b16 %v3346
      %v3393 = vunpack.c.l.b16 %v3347
      %v3394 = vunpack.c.h.b16 %v3347
      %v3395 = vunpack.c.l.b16 %v3348
      %v3396 = vunpack.c.h.b16 %v3348
      %v3397 = vpack.c.b16 %v3365, %v3365
      %v3398 = vpack.c.b16 %v3366, %v3366
      %v3399 = vpack.c.b16 %v3367, %v3367
      %v3400 = vpack.c.b16 %v3368, %v3368
      %v3401 = vpack.c.b16 %v3369, %v3369
      %v3402 = vpack.c.b16 %v3370, %v3370
      %v3403 = vpack.c.b16 %v3371, %v3371
      %v3404 = vpack.c.b16 %v3372, %v3372
      %v3405 = vpack.c.b16 %v3373, %v3373
      %v3406 = vpack.c.b16 %v3374, %v3374
      %v3407 = vpack.c.b16 %v3375, %v3375
      %v3408 = vpack.c.b16 %v3376, %v3376
      %v3409 = vpack.c.b16 %v3377, %v3377
      %v3410 = vpack.c.b16 %v3378, %v3378
      %v3411 = vpack.c.b16 %v3379, %v3379
      %v3412 = vpack.c.b16 %v3380, %v3380
      %v3413 = vpack.c.b16 %v3381, %v3381
      %v3414 = vpack.c.b16 %v3382, %v3382
      %v3415 = vpack.c.b16 %v3383, %v3383
      %v3416 = vpack.c.b16 %v3384, %v3384
      %v3417 = vpack.c.b16 %v3385, %v3385
      %v3418 = vpack.c.b16 %v3386, %v3386
      %v3419 = vpack.c.b16 %v3387, %v3387
      %v3420 = vpack.c.b16 %v3388, %v3388
      %v3421 = vpack.c.b16 %v3389, %v3389
      %v3422 = vpack.c.b16 %v3390, %v3390
      %v3423 = vpack.c.b16 %v3391, %v3391
      %v3424 = vpack.c.b16 %v3392, %v3392
      %v3425 = vpack.c.b16 %v3393, %v3393
      %v3426 = vpack.c.b16 %v3394, %v3394
      %v3427 = vpack.c.b16 %v3395, %v3395
      %v3428 = vpack.c.b16 %v3396, %v3396
      %3461 = vst [vmem:[%s231] sm:$0xf] %v3397
      %3462 = vst [vmem:[%s231 + $0x4] sm:$0xf] %v3398
      %3463 = vst [vmem:[%s231 + $0x8] sm:$0xf] %v3399
      %3464 = vst [vmem:[%s231 + $0xc] sm:$0xf] %v3400
      %3465 = vst [vmem:[%s231 + $0x10] sm:$0xf] %v3401
      %3466 = vst [vmem:[%s231 + $0x14] sm:$0xf] %v3402
      %3467 = vst [vmem:[%s231 + $0x18] sm:$0xf] %v3403
      %3468 = vst [vmem:[%s231 + $0x1c] sm:$0xf] %v3404
      %3469 = vst [vmem:[%s231 + $0x20] sm:$0xf] %v3405
      %3470 = vst [vmem:[%s231 + $0x24] sm:$0xf] %v3406
      %3471 = vst [vmem:[%s231 + $0x28] sm:$0xf] %v3407
      %3472 = vst [vmem:[%s231 + $0x2c] sm:$0xf] %v3408
      %3473 = vst [vmem:[%s231 + $0x30] sm:$0xf] %v3409
      %3474 = vst [vmem:[%s231 + $0x34] sm:$0xf] %v3410
      %3475 = vst [vmem:[%s231 + $0x38] sm:$0xf] %v3411
      %3476 = vst [vmem:[%s231 + $0x3c] sm:$0xf] %v3412
      %3477 = vst [vmem:[%s231 + $0x40] sm:$0xf] %v3413
      %3478 = vst [vmem:[%s231 + $0x44] sm:$0xf] %v3414
      %3479 = vst [vmem:[%s231 + $0x48] sm:$0xf] %v3415
      %3480 = vst [vmem:[%s231 + $0x4c] sm:$0xf] %v3416
      %3481 = vst [vmem:[%s231 + $0x50] sm:$0xf] %v3417
      %3482 = vst [vmem:[%s231 + $0x54] sm:$0xf] %v3418
      %3483 = vst [vmem:[%s231 + $0x58] sm:$0xf] %v3419
      %3484 = vst [vmem:[%s231 + $0x5c] sm:$0xf] %v3420
      %3485 = vst [vmem:[%s231 + $0x60] sm:$0xf] %v3421
      %3486 = vst [vmem:[%s231 + $0x64] sm:$0xf] %v3422
      %3487 = vst [vmem:[%s231 + $0x68] sm:$0xf] %v3423
      %3488 = vst [vmem:[%s231 + $0x6c] sm:$0xf] %v3424
      %3489 = vst [vmem:[%s231 + $0x70] sm:$0xf] %v3425
      %3490 = vst [vmem:[%s231 + $0x74] sm:$0xf] %v3426
      %3491 = vst [vmem:[%s231 + $0x78] sm:$0xf] %v3427
      %3492 = vst [vmem:[%s231 + $0x7c] sm:$0xf] %v3428
      %v3493 = vadd.f32 %v3207, %v3210
      %v3494 = vadd.f32 %v3493, %v3215
      %v3495 = vadd.f32 %v3494, %v3218
      %v3496 = vadd.f32 %v3495, %v3223
      %v3497 = vadd.f32 %v3496, %v3226
      %v3498 = vadd.f32 %v3497, %v3231
      %v3499 = vadd.f32 %v3498, %v3234
      %v3500 = vadd.f32 %v3499, %v3239
      %v3501 = vadd.f32 %v3500, %v3242
      %v3502 = vadd.f32 %v3501, %v3247
      %v3503 = vadd.f32 %v3502, %v3250
      %v3504 = vadd.f32 %v3503, %v3255
      %v3505 = vadd.f32 %v3504, %v3258
      %v3506 = vadd.f32 %v3505, %v3263
      %v3507 = vadd.f32 %v3506, %v3266
      %v3508 = vadd.f32 %v3507, %v3271
      %v3509 = vadd.f32 %v3508, %v3274
      %v3510 = vadd.f32 %v3509, %v3279
      %v3511 = vadd.f32 %v3510, %v3282
      %v3512 = vadd.f32 %v3511, %v3287
      %v3513 = vadd.f32 %v3512, %v3290
      %v3514 = vadd.f32 %v3513, %v3295
      %v3515 = vadd.f32 %v3514, %v3298
      %v3516 = vadd.f32 %v3515, %v3303
      %v3517 = vadd.f32 %v3516, %v3306
      %v3518 = vadd.f32 %v3517, %v3311
      %v3519 = vadd.f32 %v3518, %v3314
      %v3520 = vadd.f32 %v3519, %v3319
      %v3521 = vadd.f32 %v3520, %v3322
      %v3522 = vadd.f32 %v3521, %v3327
      %v3523 = vadd.f32 %v3522, %v3330
      %v3524 = vrot.slane %v3523, 4
      %v3525 = vadd.f32 %v3523, %v3524
      %v3526 = vrot.slane %v3525, 2
      %v3527 = vadd.f32 %v3525, %v3526
      %v3528 = vrot.slane %v3527, 1
      %v3529 = vadd.f32 %v3527, %v3528
      %v3530 = vmul.f32 %v3207, %v3207
      %v3531 = vmul.f32 %v3210, %v3210
      %v3532 = vmul.f32 %v3215, %v3215
      %v3533 = vmul.f32 %v3218, %v3218
      %v3534 = vmul.f32 %v3223, %v3223
      %v3535 = vmul.f32 %v3226, %v3226
      %v3536 = vmul.f32 %v3231, %v3231
      %v3537 = vmul.f32 %v3234, %v3234
      %v3538 = vmul.f32 %v3239, %v3239
      %v3539 = vmul.f32 %v3242, %v3242
      %v3540 = vmul.f32 %v3247, %v3247
      %v3541 = vmul.f32 %v3250, %v3250
      %v3542 = vmul.f32 %v3255, %v3255
      %v3543 = vmul.f32 %v3258, %v3258
      %v3544 = vmul.f32 %v3263, %v3263
      %v3545 = vmul.f32 %v3266, %v3266
      %v3546 = vmul.f32 %v3271, %v3271
      %v3547 = vmul.f32 %v3274, %v3274
      %v3548 = vmul.f32 %v3279, %v3279
      %v3549 = vmul.f32 %v3282, %v3282
      %v3550 = vmul.f32 %v3287, %v3287
      %v3551 = vmul.f32 %v3290, %v3290
      %v3552 = vmul.f32 %v3295, %v3295
      %v3553 = vmul.f32 %v3298, %v3298
      %v3554 = vmul.f32 %v3303, %v3303
      %v3555 = vmul.f32 %v3306, %v3306
      %v3556 = vmul.f32 %v3311, %v3311
      %v3557 = vmul.f32 %v3314, %v3314
      %v3558 = vmul.f32 %v3319, %v3319
      %v3559 = vmul.f32 %v3322, %v3322
      %v3560 = vmul.f32 %v3327, %v3327
      %v3561 = vmul.f32 %v3330, %v3330
      %v3562 = vadd.f32 %v3530, %v3531
      %v3563 = vadd.f32 %v3562, %v3532
      %v3564 = vadd.f32 %v3563, %v3533
      %v3565 = vadd.f32 %v3564, %v3534
      %v3566 = vadd.f32 %v3565, %v3535
      %v3567 = vadd.f32 %v3566, %v3536
      %v3568 = vadd.f32 %v3567, %v3537
      %v3569 = vadd.f32 %v3568, %v3538
      %v3570 = vadd.f32 %v3569, %v3539
      %v3571 = vadd.f32 %v3570, %v3540
      %v3572 = vadd.f32 %v3571, %v3541
      %v3573 = vadd.f32 %v3572, %v3542
      %v3574 = vadd.f32 %v3573, %v3543
      %v3575 = vadd.f32 %v3574, %v3544
      %v3576 = vadd.f32 %v3575, %v3545
      %v3577 = vadd.f32 %v3576, %v3546
      %v3578 = vadd.f32 %v3577, %v3547
      %v3579 = vadd.f32 %v3578, %v3548
      %v3580 = vadd.f32 %v3579, %v3549
      %v3581 = vadd.f32 %v3580, %v3550
      %v3582 = vadd.f32 %v3581, %v3551
      %v3583 = vadd.f32 %v3582, %v3552
      %v3584 = vadd.f32 %v3583, %v3553
      %v3585 = vadd.f32 %v3584, %v3554
      %v3586 = vadd.f32 %v3585, %v3555
      %v3587 = vadd.f32 %v3586, %v3556
      %v3588 = vadd.f32 %v3587, %v3557
      %v3589 = vadd.f32 %v3588, %v3558
      %v3590 = vadd.f32 %v3589, %v3559
      %v3591 = vadd.f32 %v3590, %v3560
      %v3592 = vadd.f32 %v3591, %v3561
      %v3593 = vrot.slane %v3592, 4
      %v3594 = vadd.f32 %v3592, %v3593
      %v3595 = vrot.slane %v3594, 2
      %v3596 = vadd.f32 %v3594, %v3595
      %v3597 = vrot.slane %v3596, 1
      %v3598 = vadd.f32 %v3596, %v3597
      %vm3599 = vcmask 1040384
      %v3600 = vsel %vm3599, %v3529, %v3598
      %3601 = vst [vmem:[%s235] sm:$0x3] %v3600
      %p3602 = scmp.lt.s32.totalorder %s17, 1
      %s3603 = scalar_select %p3602, %s17, 1
      %s3604 = smul.addr %s3603, 32
      %s3605 = smul.addr %s3604, 4
      %s3606 = scalar_lea.vmem %s4, %s3605
      %p3607 = scmp.lt.s32.totalorder %s17, 1
      %s3608 = scalar_select %p3607, %s17, 1
      %s3609 = smul.addr %s3608, 2
      %s3610 = scalar_lea.vmem %s5, %s3609
      // Predicated region
      $region37: #{basic_block_forward.4} parent=35 // pred_check
        %p3611 = pneg %p124
      $region38: #{basic_block_forward.4} parent=35 // pred_check_branch
        %3613 = sbr.rel (%p3611) target = $region40
      $region39: #{basic_block_forward.4} parent=35 // pred_region
        _
      $region40: #{basic_block_forward.4} parent=35 // pred_fallthru
        _
      // Predicated region
      $region41: #{basic_block_forward.4} parent=35 // pred_check
        %p3614 = pneg %p150
      $region42: #{basic_block_forward.4} parent=35 // pred_check_branch
        %3616 = sbr.rel (%p3614) target = $region44
      $region43: #{basic_block_forward.4} parent=35 // pred_region
        _
      $region44: #{basic_block_forward.4} parent=35 // pred_fallthru
        _
    $region36: #{basic_block_forward.4} parent=5 // pred_fallthru
      _
    %p3617 = scmp.le.s32.totalorder 2, %s12
    // Predicated region
    $region45: #{basic_block_forward.4} parent=5 // pred_check
      %p3618 = pneg %p3617
    $region46: #{basic_block_forward.4} parent=5 // pred_check_branch
      %3620 = sbr.rel (%p3618) target = $region48
    $region47: #{basic_block_forward.4} parent=5 // pred_region
      %s3621 = ssub.s32 %s12, 2
      // Predicated region
      $region49: #{basic_block_forward.4} parent=47 // pred_check
        %p3622 = pneg %p130
      $region50: #{basic_block_forward.4} parent=47 // pred_check_branch
        %3624 = sbr.rel (%p3622) target = $region52
      $region51: #{basic_block_forward.4} parent=47 // pred_region
        %p3625 = scmp.lt.s32.totalorder %s18, 1
        %s3626 = scalar_select %p3625, %s18, 1
        %s3627 = smul.addr %s3626, 32
        %s3628 = smul.addr %s3627, 4
        %s3629 = scalar_lea.vmem %s4, %s3628
      $region52: #{basic_block_forward.4} parent=47 // pred_fallthru
        _
      // Predicated region
      $region53: #{basic_block_forward.4} parent=47 // pred_check
        %p3630 = pneg %p156
      $region54: #{basic_block_forward.4} parent=47 // pred_check_branch
        %3632 = sbr.rel (%p3630) target = $region56
      $region55: #{basic_block_forward.4} parent=47 // pred_region
        %p3633 = scmp.lt.s32.totalorder %s18, 1
        %s3634 = scalar_select %p3633, %s18, 1
        %s3635 = smul.addr %s3634, 2
        %s3636 = scalar_lea.vmem %s5, %s3635
      $region56: #{basic_block_forward.4} parent=47 // pred_fallthru
        _
    $region48: #{basic_block_forward.4} parent=5 // pred_fallthru
      _
  $region6: #{basic_block_forward.4} parent=0 // loop_footer
    %s16 = sadd.s32 1, %s12
  $region7: #{basic_block_forward.4} parent=0 // loop_footer_branch
    %11 = sbr.rel target = $region3
  $region8: #{basic_block_forward.4} parent=0 // loop_exit
    _

</llo_original>
